<compile_context>
chip_gen: v6e
topology: v6e:2x2x1
jax: 0.10.0
libtpu: 0.0.40
codegen_flags: <defaults>
</compile_context>

<pallas_src>
import jax
import jax.numpy as jnp
from jax.experimental import pallas as pl
from jax.experimental.pallas import tpu as pltpu

IN_DIM = 331
IN_PAD = 384          # 331 zero-padded to a tile-aligned contraction size
HID = 1024
OUT_DIM = 1
TILE_B = 128          # batch tile: saturates MXU rows on v5e, fine on v6e/v7x


def _mlp_kernel(x_ref, w1_ref, b1_ref, w2_ref, b2_ref, w3_ref, b3_ref,
                o_ref, h1_scr, h2_scr):
    # Layer 1: (TILE_B, 384)bf16 @ (384, 1024)bf16 -> f32; bias + ReLU in f32.
    h1 = jnp.dot(x_ref[...], w1_ref[...], preferred_element_type=jnp.float32)
    h1 = jnp.maximum(h1 + b1_ref[...], 0.0)
    h1_scr[...] = h1.astype(jnp.bfloat16)           # bf16 feed for next MXU pass

    # Layer 2: (TILE_B, 1024)bf16 @ (1024, 1024)bf16 -> f32; bias + ReLU in f32.
    h2 = jnp.dot(h1_scr[...], w2_ref[...], preferred_element_type=jnp.float32)
    h2_scr[...] = jnp.maximum(h2 + b2_ref[...], 0.0)

    # Layer 3 (output width 1): VPU multiply + cross-lane (XLU) reduction
    # instead of a 1-column MXU matmul.
    y = jnp.sum(h2_scr[...] * w3_ref[...], axis=-1, keepdims=True)
    o_ref[...] = y + b3_ref[...]


def mlp_forward(x, w1p, b1, w2p, b2, w3row, b3):
    """x: (B, 331) float32. Params already padded/cast (see prepare_params)."""
    B = x.shape[0]
    B_pad = pl.cdiv(B, TILE_B) * TILE_B
    x_p = jnp.pad(x.astype(jnp.bfloat16),
                  ((0, B_pad - B), (0, IN_PAD - IN_DIM)))

    out = pl.pallas_call(
        _mlp_kernel,
        out_shape=jax.ShapeDtypeStruct((B_pad, OUT_DIM), jnp.float32),
        grid_spec=pltpu.PrefetchScalarGridSpec(
            num_scalar_prefetch=0,
            grid=(B_pad // TILE_B,),
            in_specs=[
                pl.BlockSpec((TILE_B, IN_PAD), lambda i: (i, 0)),   # x tile
                pl.BlockSpec((IN_PAD, HID), lambda i: (0, 0)),      # w1 (resident)
                pl.BlockSpec((1, HID), lambda i: (0, 0)),           # b1
                pl.BlockSpec((HID, HID), lambda i: (0, 0)),         # w2 (resident)
                pl.BlockSpec((1, HID), lambda i: (0, 0)),           # b2
                pl.BlockSpec((1, HID), lambda i: (0, 0)),           # w3 row
                pl.BlockSpec((1, 1), lambda i: (0, 0)),             # b3
            ],
            out_specs=pl.BlockSpec((TILE_B, OUT_DIM), lambda i: (i, 0)),
            scratch_shapes=[
                pltpu.VMEM((TILE_B, HID), jnp.bfloat16),   # h1
                pltpu.VMEM((TILE_B, HID), jnp.float32),    # h2
            ],
        ),
        compiler_params=pltpu.CompilerParams(
            dimension_semantics=("parallel",),
        ),
    )(x_p, w1p, b1, w2p, b2, w3row, b3)
    return out[:B]


def init_params(key):
    """nn.Linear-default init U(-1/sqrt(fan_in), 1/sqrt(fan_in)), stored (in, out)."""
    def linear(key, fan_in, fan_out):
        kw, kb = jax.random.split(key)
        bound = 1.0 / jnp.sqrt(fan_in)
        w = jax.random.uniform(kw, (fan_in, fan_out), jnp.float32, -bound, bound)
        b = jax.random.uniform(kb, (1, fan_out), jnp.float32, -bound, bound)
        return w, b

    k1, k2, k3 = jax.random.split(key, 3)
    w1, b1 = linear(k1, IN_DIM, HID)
    w2, b2 = linear(k2, HID, HID)
    w3, b3 = linear(k3, HID, OUT_DIM)
    return w1, b1, w2, b2, w3, b3


def prepare_params(w1, b1, w2, b2, w3, b3):
    """Pad K 331->384 (exact), cast big weights to bf16, flatten w3 to a row."""
    w1p = jnp.pad(w1, ((0, IN_PAD - IN_DIM), (0, 0))).astype(jnp.bfloat16)
    w2p = w2.astype(jnp.bfloat16)
    w3row = w3.reshape(1, HID).astype(jnp.float32)
    b3p = b3.reshape(1, 1).astype(jnp.float32)
    return w1p, b1, w2p, b2, w3row, b3p


if __name__ == "__main__":
    key = jax.random.PRNGKey(0)
    kx, kp = jax.random.split(key)

    B = 8
    x = jax.random.normal(kx, (B, IN_DIM), jnp.float32)
    w1, b1, w2, b2, w3, b3 = init_params(kp)
    w1p, b1, w2p, b2, w3row, b3p = prepare_params(w1, b1, w2, b2, w3, b3)

    y = mlp_forward(x, w1p, b1, w2p, b2, w3row, b3p)
    y = jax.block_until_ready(y)
    assert y.shape == (B, OUT_DIM)

    # Reference mirroring the kernel's precision scheme
    # (bf16 matmul inputs, f32 accumulation/epilogue; zero-padding is exact).
    xb = x.astype(jnp.bfloat16)
    h1 = jnp.maximum(
        jnp.dot(xb, w1.astype(jnp.bfloat16),
                preferred_element_type=jnp.float32) + b1, 0.0)
    h2 = jnp.maximum(
        jnp.dot(h1.astype(jnp.bfloat16), w2p,
                preferred_element_type=jnp.float32) + b2, 0.0)
    y_ref = jnp.sum(h2 * w3row, axis=-1, keepdims=True) + b3p

    assert jnp.allclose(y, y_ref, atol=1e-2, rtol=1e-3), float(
        jnp.max(jnp.abs(y - y_ref)))
    print("KERNEL_OK")
</pallas_src>

<mosaic_0001>
module attributes {stable_mosaic.version = 11 : i64} {
  func.func @_mlp_kernel(%arg0: i32, %arg1: memref<128x384xbf16, #tpu.memory_space<vmem>>, %arg2: memref<384x1024xbf16, #tpu.memory_space<vmem>>, %arg3: memref<1x1024xf32, #tpu.memory_space<vmem>>, %arg4: memref<1024x1024xbf16, #tpu.memory_space<vmem>>, %arg5: memref<1x1024xf32, #tpu.memory_space<vmem>>, %arg6: memref<1x1024xf32, #tpu.memory_space<vmem>>, %arg7: memref<1x1xf32, #tpu.memory_space<vmem>>, %arg8: memref<128x1xf32, #tpu.memory_space<vmem>>, %arg9: memref<128x1024xbf16, #tpu.memory_space<vmem>>, %arg10: memref<128x1024xf32, #tpu.memory_space<vmem>>) attributes {dimension_semantics = [#tpu.dimension_semantics<parallel>], iteration_bounds = array<i64: 1>, scalar_prefetch = 0 : i64, scratch_operands = 2 : i64, tpu.core_type = #tpu.core_type<tc>, window_params = [{transform_indices = @transform_0, window_bounds = array<i64: 128, 384>}, {pipeline_mode = #tpu.pipeline_mode<synchronous>, transform_indices = @transform_1, window_bounds = array<i64: 384, 1024>}, {pipeline_mode = #tpu.pipeline_mode<synchronous>, transform_indices = @transform_2, window_bounds = array<i64: 1, 1024>}, {pipeline_mode = #tpu.pipeline_mode<synchronous>, transform_indices = @transform_3, window_bounds = array<i64: 1024, 1024>}, {pipeline_mode = #tpu.pipeline_mode<synchronous>, transform_indices = @transform_4, window_bounds = array<i64: 1, 1024>}, {pipeline_mode = #tpu.pipeline_mode<synchronous>, transform_indices = @transform_5, window_bounds = array<i64: 1, 1024>}, {pipeline_mode = #tpu.pipeline_mode<synchronous>, transform_indices = @transform_6, window_bounds = array<i64: 1, 1>}, {transform_indices = @transform_7, window_bounds = array<i64: 128, 1>}]} {
    %c0 = arith.constant 0 : index
    %c0_0 = arith.constant 0 : index
    %0 = vector.load %arg1[%c0, %c0_0] : memref<128x384xbf16, #tpu.memory_space<vmem>>, vector<128x384xbf16>
    %c0_1 = arith.constant 0 : index
    %c0_2 = arith.constant 0 : index
    %1 = vector.load %arg2[%c0_1, %c0_2] : memref<384x1024xbf16, #tpu.memory_space<vmem>>, vector<384x1024xbf16>
    %cst = arith.constant dense<0.000000e+00> : vector<128x1024xf32>
    %2 = tpu.matmul %0, %1, %cst {dimension_numbers = #tpu.dot_dimension_numbers<[1], [0], [0], [1], [0, 0, 1, 1], [], []>} : vector<128x384xbf16>, vector<384x1024xbf16>, vector<128x1024xf32> -> vector<128x1024xf32>
    %c0_3 = arith.constant 0 : index
    %c0_4 = arith.constant 0 : index
    %3 = vector.load %arg3[%c0_3, %c0_4] : memref<1x1024xf32, #tpu.memory_space<vmem>>, vector<1x1024xf32>
    %4 = vector.broadcast %3 : vector<1x1024xf32> to vector<128x1024xf32>
    %5 = arith.addf %2, %4 : vector<128x1024xf32>
    %cst_5 = arith.constant 0.000000e+00 : f32
    %6 = vector.broadcast %cst_5 : f32 to vector<128x1024xf32>
    %7 = arith.maximumf %5, %6 : vector<128x1024xf32>
    %8 = arith.truncf %7 : vector<128x1024xf32> to vector<128x1024xbf16>
    %c0_6 = arith.constant 0 : index
    %c0_7 = arith.constant 0 : index
    %9 = vector.load %arg9[%c0_6, %c0_7] : memref<128x1024xbf16, #tpu.memory_space<vmem>>, vector<128x1024xbf16>
    tpu.vector_store %arg9[%c0_6, %c0_7], %8 {strides = array<i32>} : memref<128x1024xbf16, #tpu.memory_space<vmem>>, vector<128x1024xbf16>,
    %c0_8 = arith.constant 0 : index
    %c0_9 = arith.constant 0 : index
    %10 = vector.load %arg9[%c0_8, %c0_9] : memref<128x1024xbf16, #tpu.memory_space<vmem>>, vector<128x1024xbf16>
    %c0_10 = arith.constant 0 : index
    %c0_11 = arith.constant 0 : index
    %11 = vector.load %arg4[%c0_10, %c0_11] : memref<1024x1024xbf16, #tpu.memory_space<vmem>>, vector<1024x1024xbf16>
    %cst_12 = arith.constant dense<0.000000e+00> : vector<128x1024xf32>
    %12 = tpu.matmul %10, %11, %cst_12 {dimension_numbers = #tpu.dot_dimension_numbers<[1], [0], [0], [1], [0, 0, 1, 1], [], []>} : vector<128x1024xbf16>, vector<1024x1024xbf16>, vector<128x1024xf32> -> vector<128x1024xf32>
    %c0_13 = arith.constant 0 : index
    %c0_14 = arith.constant 0 : index
    %13 = vector.load %arg5[%c0_13, %c0_14] : memref<1x1024xf32, #tpu.memory_space<vmem>>, vector<1x1024xf32>
    %14 = vector.broadcast %13 : vector<1x1024xf32> to vector<128x1024xf32>
    %15 = arith.addf %12, %14 : vector<128x1024xf32>
    %cst_15 = arith.constant 0.000000e+00 : f32
    %16 = vector.broadcast %cst_15 : f32 to vector<128x1024xf32>
    %17 = arith.maximumf %15, %16 : vector<128x1024xf32>
    %c0_16 = arith.constant 0 : index
    %c0_17 = arith.constant 0 : index
    %18 = vector.load %arg10[%c0_16, %c0_17] : memref<128x1024xf32, #tpu.memory_space<vmem>>, vector<128x1024xf32>
    tpu.vector_store %arg10[%c0_16, %c0_17], %17 {strides = array<i32>} : memref<128x1024xf32, #tpu.memory_space<vmem>>, vector<128x1024xf32>,
    %c0_18 = arith.constant 0 : index
    %c0_19 = arith.constant 0 : index
    %19 = vector.load %arg10[%c0_18, %c0_19] : memref<128x1024xf32, #tpu.memory_space<vmem>>, vector<128x1024xf32>
    %c0_20 = arith.constant 0 : index
    %c0_21 = arith.constant 0 : index
    %20 = vector.load %arg6[%c0_20, %c0_21] : memref<1x1024xf32, #tpu.memory_space<vmem>>, vector<1x1024xf32>
    %21 = vector.broadcast %20 : vector<1x1024xf32> to vector<128x1024xf32>
    %22 = arith.mulf %19, %21 : vector<128x1024xf32>
    %cst_22 = arith.constant dense<0.000000e+00> : vector<128xf32>
    %23 = vector.multi_reduction <add>, %22, %cst_22 [1] : vector<128x1024xf32> to vector<128xf32>
    %24 = vector.shape_cast %23 : vector<128xf32> to vector<128x1xf32>
    %c0_23 = arith.constant 0 : index
    %c0_24 = arith.constant 0 : index
    %25 = vector.load %arg7[%c0_23, %c0_24] : memref<1x1xf32, #tpu.memory_space<vmem>>, vector<1x1xf32>
    %26 = vector.broadcast %25 : vector<1x1xf32> to vector<128x1xf32>
    %27 = arith.addf %24, %26 : vector<128x1xf32>
    %c0_25 = arith.constant 0 : index
    %c0_26 = arith.constant 0 : index
    %28 = vector.load %arg8[%c0_25, %c0_26] : memref<128x1xf32, #tpu.memory_space<vmem>>, vector<128x1xf32>
    tpu.vector_store %arg8[%c0_25, %c0_26], %27 {strides = array<i32>} : memref<128x1xf32, #tpu.memory_space<vmem>>, vector<128x1xf32>,
    return
  }
  func.func @transform_0(%arg0: i32) -> (i32, i32) {
    %c0_i32 = arith.constant 0 : i32
    %c0_i32_0 = arith.constant 0 : i32
    return %arg0, %c0_i32 : i32, i32
  }
  func.func @transform_1(%arg0: i32) -> (i32, i32) {
    %c0_i32 = arith.constant 0 : i32
    %c0_i32_0 = arith.constant 0 : i32
    %c0_i32_1 = arith.constant 0 : i32
    return %c0_i32, %c0_i32_0 : i32, i32
  }
  func.func @transform_2(%arg0: i32) -> (i32, i32) {
    %c0_i32 = arith.constant 0 : i32
    %c0_i32_0 = arith.constant 0 : i32
    %c0_i32_1 = arith.constant 0 : i32
    return %c0_i32, %c0_i32_0 : i32, i32
  }
  func.func @transform_3(%arg0: i32) -> (i32, i32) {
    %c0_i32 = arith.constant 0 : i32
    %c0_i32_0 = arith.constant 0 : i32
    %c0_i32_1 = arith.constant 0 : i32
    return %c0_i32, %c0_i32_0 : i32, i32
  }
  func.func @transform_4(%arg0: i32) -> (i32, i32) {
    %c0_i32 = arith.constant 0 : i32
    %c0_i32_0 = arith.constant 0 : i32
    %c0_i32_1 = arith.constant 0 : i32
    return %c0_i32, %c0_i32_0 : i32, i32
  }
  func.func @transform_5(%arg0: i32) -> (i32, i32) {
    %c0_i32 = arith.constant 0 : i32
    %c0_i32_0 = arith.constant 0 : i32
    %c0_i32_1 = arith.constant 0 : i32
    return %c0_i32, %c0_i32_0 : i32, i32
  }
  func.func @transform_6(%arg0: i32) -> (i32, i32) {
    %c0_i32 = arith.constant 0 : i32
    %c0_i32_0 = arith.constant 0 : i32
    %c0_i32_1 = arith.constant 0 : i32
    return %c0_i32, %c0_i32_0 : i32, i32
  }
  func.func @transform_7(%arg0: i32) -> (i32, i32) {
    %c0_i32 = arith.constant 0 : i32
    %c0_i32_0 = arith.constant 0 : i32
    return %arg0, %c0_i32 : i32, i32
  }
}

</mosaic_0001>

<llo_original>
// kernel: tpu_custom_call.1
$region0: #{tpu_custom_call.1}
  #allocation0 [shape = 'u32[]', space=smem, size = 0x4, offset = 0x4, fixed_abs, tag = 'smem constant byte address 0x4 - core index']
  #allocation1 [shape = 'u32[144,128]{1,0:T(1,128)}', space=vmem, size = 0x12000, scoped, tag = 'internal scratch']
  #allocation2 [shape = 'bf16[128,1024]{1,0:T(8,128)(2,1)}', space=vmem, size = 0x40000, scoped, tag = 'scratch operand']
  #allocation3 [shape = 'f32[128,1024]{1,0:T(8,128)}', space=vmem, size = 0x80000, scoped, tag = 'scratch operand']
  #allocation4 [shape = 'f32[1,1]{1,0:T(1,128)S(1)}', space=vmem, size = 0x200, scoped, tag = 'scoped memory for tpu_custom_call.1']
  %s0 = inlined_call_operand.hbm [shape: bf16[128,384], index: 0, kind: input, shape index: {}]
  %s1 = inlined_call_operand.hbm [shape: bf16[384,1024], index: 1, kind: input, shape index: {}]
  %s2 = inlined_call_operand.hbm [shape: f32[1,1024], index: 2, kind: input, shape index: {}]
  %s3 = inlined_call_operand.hbm [shape: bf16[1024,1024], index: 3, kind: input, shape index: {}]
  %s4 = inlined_call_operand.hbm [shape: f32[1,1024], index: 4, kind: input, shape index: {}]
  %s5 = inlined_call_operand.hbm [shape: f32[1,1024], index: 5, kind: input, shape index: {}]
  %s6 = inlined_call_operand.<no memory space> [shape: f32[1,1], index: 6, kind: input, shape index: {}]
  %s7 = inlined_call_operand.vmem [shape: f32[128,1], index: 7, kind: output, shape index: {}]
  %s8 = sld [smem:[#allocation0]]
  $region62: #{tpu_custom_call.1} parent=0
    _
  %s10 = ssub.s32 1, %s8
  %s11 = scalar_select 0, %s10, %s8
  %v12 = vstv %s6
  %13 = vst [vmem:[#allocation4] sm:$0x1] %v12
  $region1: #{tpu_custom_call.1} parent=0
    #allocation5 [shape = 'u8[98304]{0}', space=vmem, size = 0x18000, scoped, tag = 'input window, operand 0, single buffered']
    #allocation6 [shape = 's32[1]{0}', space=sflag, size = 0x4, scoped, tag = 'scoped memory for tpu_custom_call.1']
    #allocation7 [shape = 'u8[786432]{0}', space=vmem, size = 0xc0000, scoped, tag = 'input window, operand 1, single buffered']
    #allocation8 [shape = 's32[1]{0}', space=sflag, size = 0x4, scoped, tag = 'scoped memory for tpu_custom_call.1']
    #allocation9 [shape = 'u8[4096]{0}', space=vmem, size = 0x1000, scoped, tag = 'input window, operand 2, single buffered']
    #allocation10 [shape = 'u8[2097152]{0}', space=vmem, size = 0x200000, scoped, tag = 'input window, operand 3, single buffered']
    #allocation11 [shape = 's32[1]{0}', space=sflag, size = 0x4, scoped, tag = 'scoped memory for tpu_custom_call.1']
    #allocation12 [shape = 'u8[4096]{0}', space=vmem, size = 0x1000, scoped, tag = 'input window, operand 4, single buffered']
    #allocation13 [shape = 'u8[4096]{0}', space=vmem, size = 0x1000, scoped, tag = 'input window, operand 5, single buffered']
    #allocation14 [shape = 's32[1]{0}', space=sflag, size = 0x4, scoped, tag = 'scoped memory for tpu_custom_call.1']
    %14 = vsyncpa [#allocation6], 0
    %15 = vsyncpa [#allocation8], 0
    %16 = vsyncpa [#allocation11], 0
    %17 = vsyncpa [#allocation14], 0
    // Predicated region
    $region2: #{tpu_custom_call.1} parent=1 // pred_check
      _
    $region3: #{tpu_custom_call.1} parent=1 // pred_check_branch
      %19 = sbr.rel (0) target = $region5
    $region4: #{tpu_custom_call.1} parent=1 // pred_region
      %s21 = ssub.s32 3072, 3072
      %22 = vsyncadd [#allocation6], %s21
      %s23 = sshll.u32 [#allocation5], 4
      %s24 = int_to_ptr.vmem [resolvable:$true] %s23
      %29 = dma.hbm_to_vmem [thread:$0]  %s0, 3072, %s24, [#allocation6], 192, 192, 12
    $region5: #{tpu_custom_call.1} parent=1 // pred_fallthru
      _
    // Predicated region
    $region6: #{tpu_custom_call.1} parent=1 // pred_check
      _
    $region7: #{tpu_custom_call.1} parent=1 // pred_check_branch
      %31 = sbr.rel (0) target = $region9
    $region8: #{tpu_custom_call.1} parent=1 // pred_region
      %s33 = ssub.s32 24576, 24576
      %34 = vsyncadd [#allocation8], %s33
      %s35 = sshll.u32 [#allocation7], 4
      %s36 = int_to_ptr.vmem [resolvable:$true] %s35
      %41 = dma.hbm_to_vmem [thread:$0]  %s1, 24576, %s36, [#allocation8], 512, 512, 32
    $region9: #{tpu_custom_call.1} parent=1 // pred_fallthru
      _
    // Predicated region
    $region10: #{tpu_custom_call.1} parent=1 // pred_check
      _
    $region11: #{tpu_custom_call.1} parent=1 // pred_check_branch
      %43 = sbr.rel (0) target = $region13
    $region12: #{tpu_custom_call.1} parent=1 // pred_region
      %s45 = ssub.s32 128, 128
      %46 = vsyncadd [#allocation8], %s45
      %s48 = sshll.u32 [#allocation9], 4
      %s49 = int_to_ptr.vmem [resolvable:$true] %s48
      %51 = dma.hbm_to_vmem [thread:$0]  %s2, 128, %s49, [#allocation8]
    $region13: #{tpu_custom_call.1} parent=1 // pred_fallthru
      _
    // Predicated region
    $region14: #{tpu_custom_call.1} parent=1 // pred_check
      _
    $region15: #{tpu_custom_call.1} parent=1 // pred_check_branch
      %53 = sbr.rel (0) target = $region17
    $region16: #{tpu_custom_call.1} parent=1 // pred_region
      %s55 = ssub.s32 65536, 65536
      %56 = vsyncadd [#allocation11], %s55
      %s57 = sshll.u32 [#allocation10], 4
      %s58 = int_to_ptr.vmem [resolvable:$true] %s57
      %63 = dma.hbm_to_vmem [thread:$0]  %s3, 65536, %s58, [#allocation11], 512, 512, 32
    $region17: #{tpu_custom_call.1} parent=1 // pred_fallthru
      _
    // Predicated region
    $region18: #{tpu_custom_call.1} parent=1 // pred_check
      _
    $region19: #{tpu_custom_call.1} parent=1 // pred_check_branch
      %65 = sbr.rel (0) target = $region21
    $region20: #{tpu_custom_call.1} parent=1 // pred_region
      %s67 = ssub.s32 128, 128
      %68 = vsyncadd [#allocation11], %s67
      %s70 = sshll.u32 [#allocation12], 4
      %s71 = int_to_ptr.vmem [resolvable:$true] %s70
      %73 = dma.hbm_to_vmem [thread:$0]  %s4, 128, %s71, [#allocation11]
    $region21: #{tpu_custom_call.1} parent=1 // pred_fallthru
      _
    // Predicated region
    $region22: #{tpu_custom_call.1} parent=1 // pred_check
      _
    $region23: #{tpu_custom_call.1} parent=1 // pred_check_branch
      %75 = sbr.rel (0) target = $region25
    $region24: #{tpu_custom_call.1} parent=1 // pred_region
      %s77 = ssub.s32 128, 128
      %78 = vsyncadd [#allocation14], %s77
      %s80 = sshll.u32 [#allocation13], 4
      %s81 = int_to_ptr.vmem [resolvable:$true] %s80
      %83 = dma.hbm_to_vmem [thread:$0]  %s5, 128, %s81, [#allocation14]
    $region25: #{tpu_custom_call.1} parent=1 // pred_fallthru
      _
    // Predicated region
    $region26: #{tpu_custom_call.1} parent=1 // pred_check
      _
    $region27: #{tpu_custom_call.1} parent=1 // pred_check_branch
      %85 = sbr.rel (0) target = $region29
    $region28: #{tpu_custom_call.1} parent=1 // pred_region
      _
    $region29: #{tpu_custom_call.1} parent=1 // pred_fallthru
      _
    // Predicated region
    $region30: #{tpu_custom_call.1} parent=1 // pred_check
      _
    $region31: #{tpu_custom_call.1} parent=1 // pred_check_branch
      %87 = sbr.rel (0) target = $region33
    $region32: #{tpu_custom_call.1} parent=1 // pred_region
      %88 = dma.done [#allocation6], 3072
    $region33: #{tpu_custom_call.1} parent=1 // pred_fallthru
      _
    // Predicated region
    $region34: #{tpu_custom_call.1} parent=1 // pred_check
      _
    $region35: #{tpu_custom_call.1} parent=1 // pred_check_branch
      %90 = sbr.rel (0) target = $region37
    $region36: #{tpu_custom_call.1} parent=1 // pred_region
      %91 = dma.done [#allocation8], 24576
    $region37: #{tpu_custom_call.1} parent=1 // pred_fallthru
      _
    // Predicated region
    $region38: #{tpu_custom_call.1} parent=1 // pred_check
      _
    $region39: #{tpu_custom_call.1} parent=1 // pred_check_branch
      %93 = sbr.rel (0) target = $region41
    $region40: #{tpu_custom_call.1} parent=1 // pred_region
      %94 = dma.done [#allocation8], 128
    $region41: #{tpu_custom_call.1} parent=1 // pred_fallthru
      _
    // Predicated region
    $region42: #{tpu_custom_call.1} parent=1 // pred_check
      _
    $region43: #{tpu_custom_call.1} parent=1 // pred_check_branch
      %96 = sbr.rel (0) target = $region45
    $region44: #{tpu_custom_call.1} parent=1 // pred_region
      %97 = dma.done [#allocation11], 65536
    $region45: #{tpu_custom_call.1} parent=1 // pred_fallthru
      _
    // Predicated region
    $region46: #{tpu_custom_call.1} parent=1 // pred_check
      _
    $region47: #{tpu_custom_call.1} parent=1 // pred_check_branch
      %99 = sbr.rel (0) target = $region49
    $region48: #{tpu_custom_call.1} parent=1 // pred_region
      %100 = dma.done [#allocation11], 128
    $region49: #{tpu_custom_call.1} parent=1 // pred_fallthru
      _
    // Predicated region
    $region50: #{tpu_custom_call.1} parent=1 // pred_check
      _
    $region51: #{tpu_custom_call.1} parent=1 // pred_check_branch
      %102 = sbr.rel (0) target = $region53
    $region52: #{tpu_custom_call.1} parent=1 // pred_region
      %103 = dma.done [#allocation14], 128
    $region53: #{tpu_custom_call.1} parent=1 // pred_fallthru
      _
    %v105 = vld [vmem:[#allocation5] sm:$0xff]
    %v106 = vld [vmem:[#allocation5 + $0x8] sm:$0xf]
    %v107 = vld [vmem:[#allocation5 + $0xc] sm:$0xff]
    %v108 = vld [vmem:[#allocation5 + $0x14] sm:$0xf]
    %v109 = vld [vmem:[#allocation5 + $0x18] sm:$0xff]
    %v110 = vld [vmem:[#allocation5 + $0x20] sm:$0xf]
    %v111 = vld [vmem:[#allocation5 + $0x24] sm:$0xff]
    %v112 = vld [vmem:[#allocation5 + $0x2c] sm:$0xf]
    %v113 = vld [vmem:[#allocation5 + $0x30] sm:$0xff]
    %v114 = vld [vmem:[#allocation5 + $0x38] sm:$0xf]
    %v115 = vld [vmem:[#allocation5 + $0x3c] sm:$0xff]
    %v116 = vld [vmem:[#allocation5 + $0x44] sm:$0xf]
    %v117 = vld [vmem:[#allocation5 + $0x48] sm:$0xff]
    %v118 = vld [vmem:[#allocation5 + $0x50] sm:$0xf]
    %v119 = vld [vmem:[#allocation5 + $0x54] sm:$0xff]
    %v120 = vld [vmem:[#allocation5 + $0x5c] sm:$0xf]
    %v121 = vld [vmem:[#allocation5 + $0x60] sm:$0xff]
    %v122 = vld [vmem:[#allocation5 + $0x68] sm:$0xf]
    %v123 = vld [vmem:[#allocation5 + $0x6c] sm:$0xff]
    %v124 = vld [vmem:[#allocation5 + $0x74] sm:$0xf]
    %v125 = vld [vmem:[#allocation5 + $0x78] sm:$0xff]
    %v126 = vld [vmem:[#allocation5 + $0x80] sm:$0xf]
    %v127 = vld [vmem:[#allocation5 + $0x84] sm:$0xff]
    %v128 = vld [vmem:[#allocation5 + $0x8c] sm:$0xf]
    %v129 = vld [vmem:[#allocation5 + $0x90] sm:$0xff]
    %v130 = vld [vmem:[#allocation5 + $0x98] sm:$0xf]
    %v131 = vld [vmem:[#allocation5 + $0x9c] sm:$0xff]
    %v132 = vld [vmem:[#allocation5 + $0xa4] sm:$0xf]
    %v133 = vld [vmem:[#allocation5 + $0xa8] sm:$0xff]
    %v134 = vld [vmem:[#allocation5 + $0xb0] sm:$0xf]
    %v135 = vld [vmem:[#allocation5 + $0xb4] sm:$0xff]
    %v136 = vld [vmem:[#allocation5 + $0xbc] sm:$0xf]
    %v137 = vld [vmem:[#allocation7] sm:$0xff]
    %v138 = vld [vmem:[#allocation7 + $0x8] sm:$0xff]
    %v139 = vld [vmem:[#allocation7 + $0x10] sm:$0xff]
    %v140 = vld [vmem:[#allocation7 + $0x18] sm:$0xff]
    %v141 = vld [vmem:[#allocation7 + $0x20] sm:$0xff]
    %v142 = vld [vmem:[#allocation7 + $0x28] sm:$0xff]
    %v143 = vld [vmem:[#allocation7 + $0x30] sm:$0xff]
    %v144 = vld [vmem:[#allocation7 + $0x38] sm:$0xff]
    %v145 = vld [vmem:[#allocation7 + $0x40] sm:$0xff]
    %v146 = vld [vmem:[#allocation7 + $0x48] sm:$0xff]
    %v147 = vld [vmem:[#allocation7 + $0x50] sm:$0xff]
    %v148 = vld [vmem:[#allocation7 + $0x58] sm:$0xff]
    %v149 = vld [vmem:[#allocation7 + $0x60] sm:$0xff]
    %v150 = vld [vmem:[#allocation7 + $0x68] sm:$0xff]
    %v151 = vld [vmem:[#allocation7 + $0x70] sm:$0xff]
    %v152 = vld [vmem:[#allocation7 + $0x78] sm:$0xff]
    %v153 = vld [vmem:[#allocation7 + $0x80] sm:$0xff]
    %v154 = vld [vmem:[#allocation7 + $0x88] sm:$0xff]
    %v155 = vld [vmem:[#allocation7 + $0x90] sm:$0xff]
    %v156 = vld [vmem:[#allocation7 + $0x98] sm:$0xff]
    %v157 = vld [vmem:[#allocation7 + $0xa0] sm:$0xff]
    %v158 = vld [vmem:[#allocation7 + $0xa8] sm:$0xff]
    %v159 = vld [vmem:[#allocation7 + $0xb0] sm:$0xff]
    %v160 = vld [vmem:[#allocation7 + $0xb8] sm:$0xff]
    %v161 = vld [vmem:[#allocation7 + $0xc0] sm:$0xff]
    %v162 = vld [vmem:[#allocation7 + $0xc8] sm:$0xff]
    %v163 = vld [vmem:[#allocation7 + $0xd0] sm:$0xff]
    %v164 = vld [vmem:[#allocation7 + $0xd8] sm:$0xff]
    %v165 = vld [vmem:[#allocation7 + $0xe0] sm:$0xff]
    %v166 = vld [vmem:[#allocation7 + $0xe8] sm:$0xff]
    %v167 = vld [vmem:[#allocation7 + $0xf0] sm:$0xff]
    %v168 = vld [vmem:[#allocation7 + $0xf8] sm:$0xff]
    %v169 = vld [vmem:[#allocation7 + $0x100] sm:$0xff]
    %v170 = vld [vmem:[#allocation7 + $0x108] sm:$0xff]
    %v171 = vld [vmem:[#allocation7 + $0x110] sm:$0xff]
    %v172 = vld [vmem:[#allocation7 + $0x118] sm:$0xff]
    %v173 = vld [vmem:[#allocation7 + $0x120] sm:$0xff]
    %v174 = vld [vmem:[#allocation7 + $0x128] sm:$0xff]
    %v175 = vld [vmem:[#allocation7 + $0x130] sm:$0xff]
    %v176 = vld [vmem:[#allocation7 + $0x138] sm:$0xff]
    %v177 = vld [vmem:[#allocation7 + $0x140] sm:$0xff]
    %v178 = vld [vmem:[#allocation7 + $0x148] sm:$0xff]
    %v179 = vld [vmem:[#allocation7 + $0x150] sm:$0xff]
    %v180 = vld [vmem:[#allocation7 + $0x158] sm:$0xff]
    %v181 = vld [vmem:[#allocation7 + $0x160] sm:$0xff]
    %v182 = vld [vmem:[#allocation7 + $0x168] sm:$0xff]
    %v183 = vld [vmem:[#allocation7 + $0x170] sm:$0xff]
    %v184 = vld [vmem:[#allocation7 + $0x178] sm:$0xff]
    %v185 = vld [vmem:[#allocation7 + $0x180] sm:$0xff]
    %v186 = vld [vmem:[#allocation7 + $0x188] sm:$0xff]
    %v187 = vld [vmem:[#allocation7 + $0x190] sm:$0xff]
    %v188 = vld [vmem:[#allocation7 + $0x198] sm:$0xff]
    %v189 = vld [vmem:[#allocation7 + $0x1a0] sm:$0xff]
    %v190 = vld [vmem:[#allocation7 + $0x1a8] sm:$0xff]
    %v191 = vld [vmem:[#allocation7 + $0x1b0] sm:$0xff]
    %v192 = vld [vmem:[#allocation7 + $0x1b8] sm:$0xff]
    %v193 = vld [vmem:[#allocation7 + $0x1c0] sm:$0xff]
    %v194 = vld [vmem:[#allocation7 + $0x1c8] sm:$0xff]
    %v195 = vld [vmem:[#allocation7 + $0x1d0] sm:$0xff]
    %v196 = vld [vmem:[#allocation7 + $0x1d8] sm:$0xff]
    %v197 = vld [vmem:[#allocation7 + $0x1e0] sm:$0xff]
    %v198 = vld [vmem:[#allocation7 + $0x1e8] sm:$0xff]
    %v199 = vld [vmem:[#allocation7 + $0x1f0] sm:$0xff]
    %v200 = vld [vmem:[#allocation7 + $0x1f8] sm:$0xff]
    %v201 = vld [vmem:[#allocation7 + $0x200] sm:$0xff]
    %v202 = vld [vmem:[#allocation7 + $0x208] sm:$0xff]
    %v203 = vld [vmem:[#allocation7 + $0x210] sm:$0xff]
    %v204 = vld [vmem:[#allocation7 + $0x218] sm:$0xff]
    %v205 = vld [vmem:[#allocation7 + $0x220] sm:$0xff]
    %v206 = vld [vmem:[#allocation7 + $0x228] sm:$0xff]
    %v207 = vld [vmem:[#allocation7 + $0x230] sm:$0xff]
    %v208 = vld [vmem:[#allocation7 + $0x238] sm:$0xff]
    %v209 = vld [vmem:[#allocation7 + $0x240] sm:$0xff]
    %v210 = vld [vmem:[#allocation7 + $0x248] sm:$0xff]
    %v211 = vld [vmem:[#allocation7 + $0x250] sm:$0xff]
    %v212 = vld [vmem:[#allocation7 + $0x258] sm:$0xff]
    %v213 = vld [vmem:[#allocation7 + $0x260] sm:$0xff]
    %v214 = vld [vmem:[#allocation7 + $0x268] sm:$0xff]
    %v215 = vld [vmem:[#allocation7 + $0x270] sm:$0xff]
    %v216 = vld [vmem:[#allocation7 + $0x278] sm:$0xff]
    %v217 = vld [vmem:[#allocation7 + $0x280] sm:$0xff]
    %v218 = vld [vmem:[#allocation7 + $0x288] sm:$0xff]
    %v219 = vld [vmem:[#allocation7 + $0x290] sm:$0xff]
    %v220 = vld [vmem:[#allocation7 + $0x298] sm:$0xff]
    %v221 = vld [vmem:[#allocation7 + $0x2a0] sm:$0xff]
    %v222 = vld [vmem:[#allocation7 + $0x2a8] sm:$0xff]
    %v223 = vld [vmem:[#allocation7 + $0x2b0] sm:$0xff]
    %v224 = vld [vmem:[#allocation7 + $0x2b8] sm:$0xff]
    %v225 = vld [vmem:[#allocation7 + $0x2c0] sm:$0xff]
    %v226 = vld [vmem:[#allocation7 + $0x2c8] sm:$0xff]
    %v227 = vld [vmem:[#allocation7 + $0x2d0] sm:$0xff]
    %v228 = vld [vmem:[#allocation7 + $0x2d8] sm:$0xff]
    %v229 = vld [vmem:[#allocation7 + $0x2e0] sm:$0xff]
    %v230 = vld [vmem:[#allocation7 + $0x2e8] sm:$0xff]
    %v231 = vld [vmem:[#allocation7 + $0x2f0] sm:$0xff]
    %v232 = vld [vmem:[#allocation7 + $0x2f8] sm:$0xff]
    %v233 = vld [vmem:[#allocation7 + $0x300] sm:$0xff]
    %v234 = vld [vmem:[#allocation7 + $0x308] sm:$0xff]
    %v235 = vld [vmem:[#allocation7 + $0x310] sm:$0xff]
    %v236 = vld [vmem:[#allocation7 + $0x318] sm:$0xff]
    %v237 = vld [vmem:[#allocation7 + $0x320] sm:$0xff]
    %v238 = vld [vmem:[#allocation7 + $0x328] sm:$0xff]
    %v239 = vld [vmem:[#allocation7 + $0x330] sm:$0xff]
    %v240 = vld [vmem:[#allocation7 + $0x338] sm:$0xff]
    %v241 = vld [vmem:[#allocation7 + $0x340] sm:$0xff]
    %v242 = vld [vmem:[#allocation7 + $0x348] sm:$0xff]
    %v243 = vld [vmem:[#allocation7 + $0x350] sm:$0xff]
    %v244 = vld [vmem:[#allocation7 + $0x358] sm:$0xff]
    %v245 = vld [vmem:[#allocation7 + $0x360] sm:$0xff]
    %v246 = vld [vmem:[#allocation7 + $0x368] sm:$0xff]
    %v247 = vld [vmem:[#allocation7 + $0x370] sm:$0xff]
    %v248 = vld [vmem:[#allocation7 + $0x378] sm:$0xff]
    %v249 = vld [vmem:[#allocation7 + $0x380] sm:$0xff]
    %v250 = vld [vmem:[#allocation7 + $0x388] sm:$0xff]
    %v251 = vld [vmem:[#allocation7 + $0x390] sm:$0xff]
    %v252 = vld [vmem:[#allocation7 + $0x398] sm:$0xff]
    %v253 = vld [vmem:[#allocation7 + $0x3a0] sm:$0xff]
    %v254 = vld [vmem:[#allocation7 + $0x3a8] sm:$0xff]
    %v255 = vld [vmem:[#allocation7 + $0x3b0] sm:$0xff]
    %v256 = vld [vmem:[#allocation7 + $0x3b8] sm:$0xff]
    %v257 = vld [vmem:[#allocation7 + $0x3c0] sm:$0xff]
    %v258 = vld [vmem:[#allocation7 + $0x3c8] sm:$0xff]
    %v259 = vld [vmem:[#allocation7 + $0x3d0] sm:$0xff]
    %v260 = vld [vmem:[#allocation7 + $0x3d8] sm:$0xff]
    %v261 = vld [vmem:[#allocation7 + $0x3e0] sm:$0xff]
    %v262 = vld [vmem:[#allocation7 + $0x3e8] sm:$0xff]
    %v263 = vld [vmem:[#allocation7 + $0x3f0] sm:$0xff]
    %v264 = vld [vmem:[#allocation7 + $0x3f8] sm:$0xff]
    %v265 = vld [vmem:[#allocation7 + $0x400] sm:$0xff]
    %v266 = vld [vmem:[#allocation7 + $0x408] sm:$0xff]
    %v267 = vld [vmem:[#allocation7 + $0x410] sm:$0xff]
    %v268 = vld [vmem:[#allocation7 + $0x418] sm:$0xff]
    %v269 = vld [vmem:[#allocation7 + $0x420] sm:$0xff]
    %v270 = vld [vmem:[#allocation7 + $0x428] sm:$0xff]
    %v271 = vld [vmem:[#allocation7 + $0x430] sm:$0xff]
    %v272 = vld [vmem:[#allocation7 + $0x438] sm:$0xff]
    %v273 = vld [vmem:[#allocation7 + $0x440] sm:$0xff]
    %v274 = vld [vmem:[#allocation7 + $0x448] sm:$0xff]
    %v275 = vld [vmem:[#allocation7 + $0x450] sm:$0xff]
    %v276 = vld [vmem:[#allocation7 + $0x458] sm:$0xff]
    %v277 = vld [vmem:[#allocation7 + $0x460] sm:$0xff]
    %v278 = vld [vmem:[#allocation7 + $0x468] sm:$0xff]
    %v279 = vld [vmem:[#allocation7 + $0x470] sm:$0xff]
    %v280 = vld [vmem:[#allocation7 + $0x478] sm:$0xff]
    %v281 = vld [vmem:[#allocation7 + $0x480] sm:$0xff]
    %v282 = vld [vmem:[#allocation7 + $0x488] sm:$0xff]
    %v283 = vld [vmem:[#allocation7 + $0x490] sm:$0xff]
    %v284 = vld [vmem:[#allocation7 + $0x498] sm:$0xff]
    %v285 = vld [vmem:[#allocation7 + $0x4a0] sm:$0xff]
    %v286 = vld [vmem:[#allocation7 + $0x4a8] sm:$0xff]
    %v287 = vld [vmem:[#allocation7 + $0x4b0] sm:$0xff]
    %v288 = vld [vmem:[#allocation7 + $0x4b8] sm:$0xff]
    %v289 = vld [vmem:[#allocation7 + $0x4c0] sm:$0xff]
    %v290 = vld [vmem:[#allocation7 + $0x4c8] sm:$0xff]
    %v291 = vld [vmem:[#allocation7 + $0x4d0] sm:$0xff]
    %v292 = vld [vmem:[#allocation7 + $0x4d8] sm:$0xff]
    %v293 = vld [vmem:[#allocation7 + $0x4e0] sm:$0xff]
    %v294 = vld [vmem:[#allocation7 + $0x4e8] sm:$0xff]
    %v295 = vld [vmem:[#allocation7 + $0x4f0] sm:$0xff]
    %v296 = vld [vmem:[#allocation7 + $0x4f8] sm:$0xff]
    %v297 = vld [vmem:[#allocation7 + $0x500] sm:$0xff]
    %v298 = vld [vmem:[#allocation7 + $0x508] sm:$0xff]
    %v299 = vld [vmem:[#allocation7 + $0x510] sm:$0xff]
    %v300 = vld [vmem:[#allocation7 + $0x518] sm:$0xff]
    %v301 = vld [vmem:[#allocation7 + $0x520] sm:$0xff]
    %v302 = vld [vmem:[#allocation7 + $0x528] sm:$0xff]
    %v303 = vld [vmem:[#allocation7 + $0x530] sm:$0xff]
    %v304 = vld [vmem:[#allocation7 + $0x538] sm:$0xff]
    %v305 = vld [vmem:[#allocation7 + $0x540] sm:$0xff]
    %v306 = vld [vmem:[#allocation7 + $0x548] sm:$0xff]
    %v307 = vld [vmem:[#allocation7 + $0x550] sm:$0xff]
    %v308 = vld [vmem:[#allocation7 + $0x558] sm:$0xff]
    %v309 = vld [vmem:[#allocation7 + $0x560] sm:$0xff]
    %v310 = vld [vmem:[#allocation7 + $0x568] sm:$0xff]
    %v311 = vld [vmem:[#allocation7 + $0x570] sm:$0xff]
    %v312 = vld [vmem:[#allocation7 + $0x578] sm:$0xff]
    %v313 = vld [vmem:[#allocation7 + $0x580] sm:$0xff]
    %v314 = vld [vmem:[#allocation7 + $0x588] sm:$0xff]
    %v315 = vld [vmem:[#allocation7 + $0x590] sm:$0xff]
    %v316 = vld [vmem:[#allocation7 + $0x598] sm:$0xff]
    %v317 = vld [vmem:[#allocation7 + $0x5a0] sm:$0xff]
    %v318 = vld [vmem:[#allocation7 + $0x5a8] sm:$0xff]
    %v319 = vld [vmem:[#allocation7 + $0x5b0] sm:$0xff]
    %v320 = vld [vmem:[#allocation7 + $0x5b8] sm:$0xff]
    %v321 = vld [vmem:[#allocation7 + $0x5c0] sm:$0xff]
    %v322 = vld [vmem:[#allocation7 + $0x5c8] sm:$0xff]
    %v323 = vld [vmem:[#allocation7 + $0x5d0] sm:$0xff]
    %v324 = vld [vmem:[#allocation7 + $0x5d8] sm:$0xff]
    %v325 = vld [vmem:[#allocation7 + $0x5e0] sm:$0xff]
    %v326 = vld [vmem:[#allocation7 + $0x5e8] sm:$0xff]
    %v327 = vld [vmem:[#allocation7 + $0x5f0] sm:$0xff]
    %v328 = vld [vmem:[#allocation7 + $0x5f8] sm:$0xff]
    %v329 = vld [vmem:[#allocation9] sm:$0xff]
    %v331 = vlaneseq
    %v332 = vshrl.u32 %v331, 7
    %v333 = vsub.s32 0, %v332
    %v334 = vrot.slane %v329, %v333
    %v335 = vlaneseq
    %v336 = vshrl.u32 %v335, 7
    %v337 = vsub.s32 1, %v336
    %v338 = vrot.slane %v329, %v337
    %v339 = vlaneseq
    %v340 = vshrl.u32 %v339, 7
    %v341 = vsub.s32 2, %v340
    %v342 = vrot.slane %v329, %v341
    %v343 = vlaneseq
    %v344 = vshrl.u32 %v343, 7
    %v345 = vsub.s32 3, %v344
    %v346 = vrot.slane %v329, %v345
    %v347 = vlaneseq
    %v348 = vshrl.u32 %v347, 7
    %v349 = vsub.s32 4, %v348
    %v350 = vrot.slane %v329, %v349
    %v351 = vlaneseq
    %v352 = vshrl.u32 %v351, 7
    %v353 = vsub.s32 5, %v352
    %v354 = vrot.slane %v329, %v353
    %v355 = vlaneseq
    %v356 = vshrl.u32 %v355, 7
    %v357 = vsub.s32 6, %v356
    %v358 = vrot.slane %v329, %v357
    %v359 = vlaneseq
    %v360 = vshrl.u32 %v359, 7
    %v361 = vsub.s32 7, %v360
    %v362 = vrot.slane %v329, %v361
    %v403 = vunpack.c.l.b16 %v105
    %v404 = vunpack.c.h.b16 %v105
    %v405 = vunpack.c.l.b16 %v106
    %v406 = vunpack.c.l.b16 %v107
    %v407 = vunpack.c.h.b16 %v107
    %v408 = vunpack.c.l.b16 %v108
    %v409 = vunpack.c.l.b16 %v109
    %v410 = vunpack.c.h.b16 %v109
    %v411 = vunpack.c.l.b16 %v110
    %v412 = vunpack.c.l.b16 %v111
    %v413 = vunpack.c.h.b16 %v111
    %v414 = vunpack.c.l.b16 %v112
    %v415 = vunpack.c.l.b16 %v113
    %v416 = vunpack.c.h.b16 %v113
    %v417 = vunpack.c.l.b16 %v114
    %v418 = vunpack.c.l.b16 %v115
    %v419 = vunpack.c.h.b16 %v115
    %v420 = vunpack.c.l.b16 %v116
    %v421 = vunpack.c.l.b16 %v117
    %v422 = vunpack.c.h.b16 %v117
    %v423 = vunpack.c.l.b16 %v118
    %v424 = vunpack.c.l.b16 %v119
    %v425 = vunpack.c.h.b16 %v119
    %v426 = vunpack.c.l.b16 %v120
    %v427 = vunpack.c.l.b16 %v121
    %v428 = vunpack.c.h.b16 %v121
    %v429 = vunpack.c.l.b16 %v122
    %v430 = vunpack.c.l.b16 %v123
    %v431 = vunpack.c.h.b16 %v123
    %v432 = vunpack.c.l.b16 %v124
    %v433 = vunpack.c.l.b16 %v125
    %v434 = vunpack.c.h.b16 %v125
    %v435 = vunpack.c.l.b16 %v126
    %v436 = vunpack.c.l.b16 %v127
    %v437 = vunpack.c.h.b16 %v127
    %v438 = vunpack.c.l.b16 %v128
    %v439 = vunpack.c.l.b16 %v129
    %v440 = vunpack.c.h.b16 %v129
    %v441 = vunpack.c.l.b16 %v130
    %v442 = vunpack.c.l.b16 %v131
    %v443 = vunpack.c.h.b16 %v131
    %v444 = vunpack.c.l.b16 %v132
    %v445 = vunpack.c.l.b16 %v133
    %v446 = vunpack.c.h.b16 %v133
    %v447 = vunpack.c.l.b16 %v134
    %v448 = vunpack.c.l.b16 %v135
    %v449 = vunpack.c.h.b16 %v135
    %v450 = vunpack.c.l.b16 %v136
    %v451 = vpack.c.b16 %v406, %v403
    %v452 = vpack.c.b16 %v407, %v404
    %v453 = vpack.c.b16 %v408, %v405
    %v454 = vpack.c.b16 %v412, %v409
    %v455 = vpack.c.b16 %v413, %v410
    %v456 = vpack.c.b16 %v414, %v411
    %v457 = vpack.c.b16 %v418, %v415
    %v458 = vpack.c.b16 %v419, %v416
    %v459 = vpack.c.b16 %v420, %v417
    %v460 = vpack.c.b16 %v424, %v421
    %v461 = vpack.c.b16 %v425, %v422
    %v462 = vpack.c.b16 %v426, %v423
    %v463 = vpack.c.b16 %v430, %v427
    %v464 = vpack.c.b16 %v431, %v428
    %v465 = vpack.c.b16 %v432, %v429
    %v466 = vpack.c.b16 %v436, %v433
    %v467 = vpack.c.b16 %v437, %v434
    %v468 = vpack.c.b16 %v438, %v435
    %v469 = vpack.c.b16 %v442, %v439
    %v470 = vpack.c.b16 %v443, %v440
    %v471 = vpack.c.b16 %v444, %v441
    %v472 = vpack.c.b16 %v448, %v445
    %v473 = vpack.c.b16 %v449, %v446
    %v474 = vpack.c.b16 %v450, %v447
    %v691 = vunpack.c.l.b16 %v137
    %v692 = vunpack.c.h.b16 %v137
    %v693 = vunpack.c.l.b16 %v138
    %v694 = vunpack.c.h.b16 %v138
    %v695 = vunpack.c.l.b16 %v139
    %v696 = vunpack.c.h.b16 %v139
    %v697 = vunpack.c.l.b16 %v140
    %v698 = vunpack.c.h.b16 %v140
    %v699 = vunpack.c.l.b16 %v141
    %v700 = vunpack.c.h.b16 %v141
    %v701 = vunpack.c.l.b16 %v142
    %v702 = vunpack.c.h.b16 %v142
    %v703 = vunpack.c.l.b16 %v143
    %v704 = vunpack.c.h.b16 %v143
    %v705 = vunpack.c.l.b16 %v144
    %v706 = vunpack.c.h.b16 %v144
    %v707 = vunpack.c.l.b16 %v145
    %v708 = vunpack.c.h.b16 %v145
    %v709 = vunpack.c.l.b16 %v146
    %v710 = vunpack.c.h.b16 %v146
    %v711 = vunpack.c.l.b16 %v147
    %v712 = vunpack.c.h.b16 %v147
    %v713 = vunpack.c.l.b16 %v148
    %v714 = vunpack.c.h.b16 %v148
    %v715 = vunpack.c.l.b16 %v149
    %v716 = vunpack.c.h.b16 %v149
    %v717 = vunpack.c.l.b16 %v150
    %v718 = vunpack.c.h.b16 %v150
    %v719 = vunpack.c.l.b16 %v151
    %v720 = vunpack.c.h.b16 %v151
    %v721 = vunpack.c.l.b16 %v152
    %v722 = vunpack.c.h.b16 %v152
    %v723 = vunpack.c.l.b16 %v153
    %v724 = vunpack.c.h.b16 %v153
    %v725 = vunpack.c.l.b16 %v154
    %v726 = vunpack.c.h.b16 %v154
    %v727 = vunpack.c.l.b16 %v155
    %v728 = vunpack.c.h.b16 %v155
    %v729 = vunpack.c.l.b16 %v156
    %v730 = vunpack.c.h.b16 %v156
    %v731 = vunpack.c.l.b16 %v157
    %v732 = vunpack.c.h.b16 %v157
    %v733 = vunpack.c.l.b16 %v158
    %v734 = vunpack.c.h.b16 %v158
    %v735 = vunpack.c.l.b16 %v159
    %v736 = vunpack.c.h.b16 %v159
    %v737 = vunpack.c.l.b16 %v160
    %v738 = vunpack.c.h.b16 %v160
    %v739 = vunpack.c.l.b16 %v161
    %v740 = vunpack.c.h.b16 %v161
    %v741 = vunpack.c.l.b16 %v162
    %v742 = vunpack.c.h.b16 %v162
    %v743 = vunpack.c.l.b16 %v163
    %v744 = vunpack.c.h.b16 %v163
    %v745 = vunpack.c.l.b16 %v164
    %v746 = vunpack.c.h.b16 %v164
    %v747 = vunpack.c.l.b16 %v165
    %v748 = vunpack.c.h.b16 %v165
    %v749 = vunpack.c.l.b16 %v166
    %v750 = vunpack.c.h.b16 %v166
    %v751 = vunpack.c.l.b16 %v167
    %v752 = vunpack.c.h.b16 %v167
    %v753 = vunpack.c.l.b16 %v168
    %v754 = vunpack.c.h.b16 %v168
    %v755 = vunpack.c.l.b16 %v169
    %v756 = vunpack.c.h.b16 %v169
    %v757 = vunpack.c.l.b16 %v170
    %v758 = vunpack.c.h.b16 %v170
    %v759 = vunpack.c.l.b16 %v171
    %v760 = vunpack.c.h.b16 %v171
    %v761 = vunpack.c.l.b16 %v172
    %v762 = vunpack.c.h.b16 %v172
    %v763 = vunpack.c.l.b16 %v173
    %v764 = vunpack.c.h.b16 %v173
    %v765 = vunpack.c.l.b16 %v174
    %v766 = vunpack.c.h.b16 %v174
    %v767 = vunpack.c.l.b16 %v175
    %v768 = vunpack.c.h.b16 %v175
    %v769 = vunpack.c.l.b16 %v176
    %v770 = vunpack.c.h.b16 %v176
    %v771 = vunpack.c.l.b16 %v177
    %v772 = vunpack.c.h.b16 %v177
    %v773 = vunpack.c.l.b16 %v178
    %v774 = vunpack.c.h.b16 %v178
    %v775 = vunpack.c.l.b16 %v179
    %v776 = vunpack.c.h.b16 %v179
    %v777 = vunpack.c.l.b16 %v180
    %v778 = vunpack.c.h.b16 %v180
    %v779 = vunpack.c.l.b16 %v181
    %v780 = vunpack.c.h.b16 %v181
    %v781 = vunpack.c.l.b16 %v182
    %v782 = vunpack.c.h.b16 %v182
    %v783 = vunpack.c.l.b16 %v183
    %v784 = vunpack.c.h.b16 %v183
    %v785 = vunpack.c.l.b16 %v184
    %v786 = vunpack.c.h.b16 %v184
    %v787 = vunpack.c.l.b16 %v185
    %v788 = vunpack.c.h.b16 %v185
    %v789 = vunpack.c.l.b16 %v186
    %v790 = vunpack.c.h.b16 %v186
    %v791 = vunpack.c.l.b16 %v187
    %v792 = vunpack.c.h.b16 %v187
    %v793 = vunpack.c.l.b16 %v188
    %v794 = vunpack.c.h.b16 %v188
    %v795 = vunpack.c.l.b16 %v189
    %v796 = vunpack.c.h.b16 %v189
    %v797 = vunpack.c.l.b16 %v190
    %v798 = vunpack.c.h.b16 %v190
    %v799 = vunpack.c.l.b16 %v191
    %v800 = vunpack.c.h.b16 %v191
    %v801 = vunpack.c.l.b16 %v192
    %v802 = vunpack.c.h.b16 %v192
    %v803 = vunpack.c.l.b16 %v193
    %v804 = vunpack.c.h.b16 %v193
    %v805 = vunpack.c.l.b16 %v194
    %v806 = vunpack.c.h.b16 %v194
    %v807 = vunpack.c.l.b16 %v195
    %v808 = vunpack.c.h.b16 %v195
    %v809 = vunpack.c.l.b16 %v196
    %v810 = vunpack.c.h.b16 %v196
    %v811 = vunpack.c.l.b16 %v197
    %v812 = vunpack.c.h.b16 %v197
    %v813 = vunpack.c.l.b16 %v198
    %v814 = vunpack.c.h.b16 %v198
    %v815 = vunpack.c.l.b16 %v199
    %v816 = vunpack.c.h.b16 %v199
    %v817 = vunpack.c.l.b16 %v200
    %v818 = vunpack.c.h.b16 %v200
    %v819 = vunpack.c.l.b16 %v201
    %v820 = vunpack.c.h.b16 %v201
    %v821 = vunpack.c.l.b16 %v202
    %v822 = vunpack.c.h.b16 %v202
    %v823 = vunpack.c.l.b16 %v203
    %v824 = vunpack.c.h.b16 %v203
    %v825 = vunpack.c.l.b16 %v204
    %v826 = vunpack.c.h.b16 %v204
    %v827 = vunpack.c.l.b16 %v205
    %v828 = vunpack.c.h.b16 %v205
    %v829 = vunpack.c.l.b16 %v206
    %v830 = vunpack.c.h.b16 %v206
    %v831 = vunpack.c.l.b16 %v207
    %v832 = vunpack.c.h.b16 %v207
    %v833 = vunpack.c.l.b16 %v208
    %v834 = vunpack.c.h.b16 %v208
    %v835 = vunpack.c.l.b16 %v209
    %v836 = vunpack.c.h.b16 %v209
    %v837 = vunpack.c.l.b16 %v210
    %v838 = vunpack.c.h.b16 %v210
    %v839 = vunpack.c.l.b16 %v211
    %v840 = vunpack.c.h.b16 %v211
    %v841 = vunpack.c.l.b16 %v212
    %v842 = vunpack.c.h.b16 %v212
    %v843 = vunpack.c.l.b16 %v213
    %v844 = vunpack.c.h.b16 %v213
    %v845 = vunpack.c.l.b16 %v214
    %v846 = vunpack.c.h.b16 %v214
    %v847 = vunpack.c.l.b16 %v215
    %v848 = vunpack.c.h.b16 %v215
    %v849 = vunpack.c.l.b16 %v216
    %v850 = vunpack.c.h.b16 %v216
    %v851 = vunpack.c.l.b16 %v217
    %v852 = vunpack.c.h.b16 %v217
    %v853 = vunpack.c.l.b16 %v218
    %v854 = vunpack.c.h.b16 %v218
    %v855 = vunpack.c.l.b16 %v219
    %v856 = vunpack.c.h.b16 %v219
    %v857 = vunpack.c.l.b16 %v220
    %v858 = vunpack.c.h.b16 %v220
    %v859 = vunpack.c.l.b16 %v221
    %v860 = vunpack.c.h.b16 %v221
    %v861 = vunpack.c.l.b16 %v222
    %v862 = vunpack.c.h.b16 %v222
    %v863 = vunpack.c.l.b16 %v223
    %v864 = vunpack.c.h.b16 %v223
    %v865 = vunpack.c.l.b16 %v224
    %v866 = vunpack.c.h.b16 %v224
    %v867 = vunpack.c.l.b16 %v225
    %v868 = vunpack.c.h.b16 %v225
    %v869 = vunpack.c.l.b16 %v226
    %v870 = vunpack.c.h.b16 %v226
    %v871 = vunpack.c.l.b16 %v227
    %v872 = vunpack.c.h.b16 %v227
    %v873 = vunpack.c.l.b16 %v228
    %v874 = vunpack.c.h.b16 %v228
    %v875 = vunpack.c.l.b16 %v229
    %v876 = vunpack.c.h.b16 %v229
    %v877 = vunpack.c.l.b16 %v230
    %v878 = vunpack.c.h.b16 %v230
    %v879 = vunpack.c.l.b16 %v231
    %v880 = vunpack.c.h.b16 %v231
    %v881 = vunpack.c.l.b16 %v232
    %v882 = vunpack.c.h.b16 %v232
    %v883 = vunpack.c.l.b16 %v233
    %v884 = vunpack.c.h.b16 %v233
    %v885 = vunpack.c.l.b16 %v234
    %v886 = vunpack.c.h.b16 %v234
    %v887 = vunpack.c.l.b16 %v235
    %v888 = vunpack.c.h.b16 %v235
    %v889 = vunpack.c.l.b16 %v236
    %v890 = vunpack.c.h.b16 %v236
    %v891 = vunpack.c.l.b16 %v237
    %v892 = vunpack.c.h.b16 %v237
    %v893 = vunpack.c.l.b16 %v238
    %v894 = vunpack.c.h.b16 %v238
    %v895 = vunpack.c.l.b16 %v239
    %v896 = vunpack.c.h.b16 %v239
    %v897 = vunpack.c.l.b16 %v240
    %v898 = vunpack.c.h.b16 %v240
    %v899 = vunpack.c.l.b16 %v241
    %v900 = vunpack.c.h.b16 %v241
    %v901 = vunpack.c.l.b16 %v242
    %v902 = vunpack.c.h.b16 %v242
    %v903 = vunpack.c.l.b16 %v243
    %v904 = vunpack.c.h.b16 %v243
    %v905 = vunpack.c.l.b16 %v244
    %v906 = vunpack.c.h.b16 %v244
    %v907 = vunpack.c.l.b16 %v245
    %v908 = vunpack.c.h.b16 %v245
    %v909 = vunpack.c.l.b16 %v246
    %v910 = vunpack.c.h.b16 %v246
    %v911 = vunpack.c.l.b16 %v247
    %v912 = vunpack.c.h.b16 %v247
    %v913 = vunpack.c.l.b16 %v248
    %v914 = vunpack.c.h.b16 %v248
    %v915 = vunpack.c.l.b16 %v249
    %v916 = vunpack.c.h.b16 %v249
    %v917 = vunpack.c.l.b16 %v250
    %v918 = vunpack.c.h.b16 %v250
    %v919 = vunpack.c.l.b16 %v251
    %v920 = vunpack.c.h.b16 %v251
    %v921 = vunpack.c.l.b16 %v252
    %v922 = vunpack.c.h.b16 %v252
    %v923 = vunpack.c.l.b16 %v253
    %v924 = vunpack.c.h.b16 %v253
    %v925 = vunpack.c.l.b16 %v254
    %v926 = vunpack.c.h.b16 %v254
    %v927 = vunpack.c.l.b16 %v255
    %v928 = vunpack.c.h.b16 %v255
    %v929 = vunpack.c.l.b16 %v256
    %v930 = vunpack.c.h.b16 %v256
    %v931 = vunpack.c.l.b16 %v257
    %v932 = vunpack.c.h.b16 %v257
    %v933 = vunpack.c.l.b16 %v258
    %v934 = vunpack.c.h.b16 %v258
    %v935 = vunpack.c.l.b16 %v259
    %v936 = vunpack.c.h.b16 %v259
    %v937 = vunpack.c.l.b16 %v260
    %v938 = vunpack.c.h.b16 %v260
    %v939 = vunpack.c.l.b16 %v261
    %v940 = vunpack.c.h.b16 %v261
    %v941 = vunpack.c.l.b16 %v262
    %v942 = vunpack.c.h.b16 %v262
    %v943 = vunpack.c.l.b16 %v263
    %v944 = vunpack.c.h.b16 %v263
    %v945 = vunpack.c.l.b16 %v264
    %v946 = vunpack.c.h.b16 %v264
    %v947 = vunpack.c.l.b16 %v265
    %v948 = vunpack.c.h.b16 %v265
    %v949 = vunpack.c.l.b16 %v266
    %v950 = vunpack.c.h.b16 %v266
    %v951 = vunpack.c.l.b16 %v267
    %v952 = vunpack.c.h.b16 %v267
    %v953 = vunpack.c.l.b16 %v268
    %v954 = vunpack.c.h.b16 %v268
    %v955 = vunpack.c.l.b16 %v269
    %v956 = vunpack.c.h.b16 %v269
    %v957 = vunpack.c.l.b16 %v270
    %v958 = vunpack.c.h.b16 %v270
    %v959 = vunpack.c.l.b16 %v271
    %v960 = vunpack.c.h.b16 %v271
    %v961 = vunpack.c.l.b16 %v272
    %v962 = vunpack.c.h.b16 %v272
    %v963 = vunpack.c.l.b16 %v273
    %v964 = vunpack.c.h.b16 %v273
    %v965 = vunpack.c.l.b16 %v274
    %v966 = vunpack.c.h.b16 %v274
    %v967 = vunpack.c.l.b16 %v275
    %v968 = vunpack.c.h.b16 %v275
    %v969 = vunpack.c.l.b16 %v276
    %v970 = vunpack.c.h.b16 %v276
    %v971 = vunpack.c.l.b16 %v277
    %v972 = vunpack.c.h.b16 %v277
    %v973 = vunpack.c.l.b16 %v278
    %v974 = vunpack.c.h.b16 %v278
    %v975 = vunpack.c.l.b16 %v279
    %v976 = vunpack.c.h.b16 %v279
    %v977 = vunpack.c.l.b16 %v280
    %v978 = vunpack.c.h.b16 %v280
    %v979 = vunpack.c.l.b16 %v281
    %v980 = vunpack.c.h.b16 %v281
    %v981 = vunpack.c.l.b16 %v282
    %v982 = vunpack.c.h.b16 %v282
    %v983 = vunpack.c.l.b16 %v283
    %v984 = vunpack.c.h.b16 %v283
    %v985 = vunpack.c.l.b16 %v284
    %v986 = vunpack.c.h.b16 %v284
    %v987 = vunpack.c.l.b16 %v285
    %v988 = vunpack.c.h.b16 %v285
    %v989 = vunpack.c.l.b16 %v286
    %v990 = vunpack.c.h.b16 %v286
    %v991 = vunpack.c.l.b16 %v287
    %v992 = vunpack.c.h.b16 %v287
    %v993 = vunpack.c.l.b16 %v288
    %v994 = vunpack.c.h.b16 %v288
    %v995 = vunpack.c.l.b16 %v289
    %v996 = vunpack.c.h.b16 %v289
    %v997 = vunpack.c.l.b16 %v290
    %v998 = vunpack.c.h.b16 %v290
    %v999 = vunpack.c.l.b16 %v291
    %v1000 = vunpack.c.h.b16 %v291
    %v1001 = vunpack.c.l.b16 %v292
    %v1002 = vunpack.c.h.b16 %v292
    %v1003 = vunpack.c.l.b16 %v293
    %v1004 = vunpack.c.h.b16 %v293
    %v1005 = vunpack.c.l.b16 %v294
    %v1006 = vunpack.c.h.b16 %v294
    %v1007 = vunpack.c.l.b16 %v295
    %v1008 = vunpack.c.h.b16 %v295
    %v1009 = vunpack.c.l.b16 %v296
    %v1010 = vunpack.c.h.b16 %v296
    %v1011 = vunpack.c.l.b16 %v297
    %v1012 = vunpack.c.h.b16 %v297
    %v1013 = vunpack.c.l.b16 %v298
    %v1014 = vunpack.c.h.b16 %v298
    %v1015 = vunpack.c.l.b16 %v299
    %v1016 = vunpack.c.h.b16 %v299
    %v1017 = vunpack.c.l.b16 %v300
    %v1018 = vunpack.c.h.b16 %v300
    %v1019 = vunpack.c.l.b16 %v301
    %v1020 = vunpack.c.h.b16 %v301
    %v1021 = vunpack.c.l.b16 %v302
    %v1022 = vunpack.c.h.b16 %v302
    %v1023 = vunpack.c.l.b16 %v303
    %v1024 = vunpack.c.h.b16 %v303
    %v1025 = vunpack.c.l.b16 %v304
    %v1026 = vunpack.c.h.b16 %v304
    %v1027 = vunpack.c.l.b16 %v305
    %v1028 = vunpack.c.h.b16 %v305
    %v1029 = vunpack.c.l.b16 %v306
    %v1030 = vunpack.c.h.b16 %v306
    %v1031 = vunpack.c.l.b16 %v307
    %v1032 = vunpack.c.h.b16 %v307
    %v1033 = vunpack.c.l.b16 %v308
    %v1034 = vunpack.c.h.b16 %v308
    %v1035 = vunpack.c.l.b16 %v309
    %v1036 = vunpack.c.h.b16 %v309
    %v1037 = vunpack.c.l.b16 %v310
    %v1038 = vunpack.c.h.b16 %v310
    %v1039 = vunpack.c.l.b16 %v311
    %v1040 = vunpack.c.h.b16 %v311
    %v1041 = vunpack.c.l.b16 %v312
    %v1042 = vunpack.c.h.b16 %v312
    %v1043 = vunpack.c.l.b16 %v313
    %v1044 = vunpack.c.h.b16 %v313
    %v1045 = vunpack.c.l.b16 %v314
    %v1046 = vunpack.c.h.b16 %v314
    %v1047 = vunpack.c.l.b16 %v315
    %v1048 = vunpack.c.h.b16 %v315
    %v1049 = vunpack.c.l.b16 %v316
    %v1050 = vunpack.c.h.b16 %v316
    %v1051 = vunpack.c.l.b16 %v317
    %v1052 = vunpack.c.h.b16 %v317
    %v1053 = vunpack.c.l.b16 %v318
    %v1054 = vunpack.c.h.b16 %v318
    %v1055 = vunpack.c.l.b16 %v319
    %v1056 = vunpack.c.h.b16 %v319
    %v1057 = vunpack.c.l.b16 %v320
    %v1058 = vunpack.c.h.b16 %v320
    %v1059 = vunpack.c.l.b16 %v321
    %v1060 = vunpack.c.h.b16 %v321
    %v1061 = vunpack.c.l.b16 %v322
    %v1062 = vunpack.c.h.b16 %v322
    %v1063 = vunpack.c.l.b16 %v323
    %v1064 = vunpack.c.h.b16 %v323
    %v1065 = vunpack.c.l.b16 %v324
    %v1066 = vunpack.c.h.b16 %v324
    %v1067 = vunpack.c.l.b16 %v325
    %v1068 = vunpack.c.h.b16 %v325
    %v1069 = vunpack.c.l.b16 %v326
    %v1070 = vunpack.c.h.b16 %v326
    %v1071 = vunpack.c.l.b16 %v327
    %v1072 = vunpack.c.h.b16 %v327
    %v1073 = vunpack.c.l.b16 %v328
    %v1074 = vunpack.c.h.b16 %v328
    %v1075 = vpack.c.b16 %v699, %v691
    %v1076 = vpack.c.b16 %v700, %v692
    %v1077 = vpack.c.b16 %v701, %v693
    %v1078 = vpack.c.b16 %v702, %v694
    %v1079 = vpack.c.b16 %v703, %v695
    %v1080 = vpack.c.b16 %v704, %v696
    %v1081 = vpack.c.b16 %v705, %v697
    %v1082 = vpack.c.b16 %v706, %v698
    %v1083 = vpack.c.b16 %v715, %v707
    %v1084 = vpack.c.b16 %v716, %v708
    %v1085 = vpack.c.b16 %v717, %v709
    %v1086 = vpack.c.b16 %v718, %v710
    %v1087 = vpack.c.b16 %v719, %v711
    %v1088 = vpack.c.b16 %v720, %v712
    %v1089 = vpack.c.b16 %v721, %v713
    %v1090 = vpack.c.b16 %v722, %v714
    %v1091 = vpack.c.b16 %v731, %v723
    %v1092 = vpack.c.b16 %v732, %v724
    %v1093 = vpack.c.b16 %v733, %v725
    %v1094 = vpack.c.b16 %v734, %v726
    %v1095 = vpack.c.b16 %v735, %v727
    %v1096 = vpack.c.b16 %v736, %v728
    %v1097 = vpack.c.b16 %v737, %v729
    %v1098 = vpack.c.b16 %v738, %v730
    %v1099 = vpack.c.b16 %v747, %v739
    %v1100 = vpack.c.b16 %v748, %v740
    %v1101 = vpack.c.b16 %v749, %v741
    %v1102 = vpack.c.b16 %v750, %v742
    %v1103 = vpack.c.b16 %v751, %v743
    %v1104 = vpack.c.b16 %v752, %v744
    %v1105 = vpack.c.b16 %v753, %v745
    %v1106 = vpack.c.b16 %v754, %v746
    %v1107 = vpack.c.b16 %v763, %v755
    %v1108 = vpack.c.b16 %v764, %v756
    %v1109 = vpack.c.b16 %v765, %v757
    %v1110 = vpack.c.b16 %v766, %v758
    %v1111 = vpack.c.b16 %v767, %v759
    %v1112 = vpack.c.b16 %v768, %v760
    %v1113 = vpack.c.b16 %v769, %v761
    %v1114 = vpack.c.b16 %v770, %v762
    %v1115 = vpack.c.b16 %v779, %v771
    %v1116 = vpack.c.b16 %v780, %v772
    %v1117 = vpack.c.b16 %v781, %v773
    %v1118 = vpack.c.b16 %v782, %v774
    %v1119 = vpack.c.b16 %v783, %v775
    %v1120 = vpack.c.b16 %v784, %v776
    %v1121 = vpack.c.b16 %v785, %v777
    %v1122 = vpack.c.b16 %v786, %v778
    %v1123 = vpack.c.b16 %v795, %v787
    %v1124 = vpack.c.b16 %v796, %v788
    %v1125 = vpack.c.b16 %v797, %v789
    %v1126 = vpack.c.b16 %v798, %v790
    %v1127 = vpack.c.b16 %v799, %v791
    %v1128 = vpack.c.b16 %v800, %v792
    %v1129 = vpack.c.b16 %v801, %v793
    %v1130 = vpack.c.b16 %v802, %v794
    %v1131 = vpack.c.b16 %v811, %v803
    %v1132 = vpack.c.b16 %v812, %v804
    %v1133 = vpack.c.b16 %v813, %v805
    %v1134 = vpack.c.b16 %v814, %v806
    %v1135 = vpack.c.b16 %v815, %v807
    %v1136 = vpack.c.b16 %v816, %v808
    %v1137 = vpack.c.b16 %v817, %v809
    %v1138 = vpack.c.b16 %v818, %v810
    %v1139 = vpack.c.b16 %v827, %v819
    %v1140 = vpack.c.b16 %v828, %v820
    %v1141 = vpack.c.b16 %v829, %v821
    %v1142 = vpack.c.b16 %v830, %v822
    %v1143 = vpack.c.b16 %v831, %v823
    %v1144 = vpack.c.b16 %v832, %v824
    %v1145 = vpack.c.b16 %v833, %v825
    %v1146 = vpack.c.b16 %v834, %v826
    %v1147 = vpack.c.b16 %v843, %v835
    %v1148 = vpack.c.b16 %v844, %v836
    %v1149 = vpack.c.b16 %v845, %v837
    %v1150 = vpack.c.b16 %v846, %v838
    %v1151 = vpack.c.b16 %v847, %v839
    %v1152 = vpack.c.b16 %v848, %v840
    %v1153 = vpack.c.b16 %v849, %v841
    %v1154 = vpack.c.b16 %v850, %v842
    %v1155 = vpack.c.b16 %v859, %v851
    %v1156 = vpack.c.b16 %v860, %v852
    %v1157 = vpack.c.b16 %v861, %v853
    %v1158 = vpack.c.b16 %v862, %v854
    %v1159 = vpack.c.b16 %v863, %v855
    %v1160 = vpack.c.b16 %v864, %v856
    %v1161 = vpack.c.b16 %v865, %v857
    %v1162 = vpack.c.b16 %v866, %v858
    %v1163 = vpack.c.b16 %v875, %v867
    %v1164 = vpack.c.b16 %v876, %v868
    %v1165 = vpack.c.b16 %v877, %v869
    %v1166 = vpack.c.b16 %v878, %v870
    %v1167 = vpack.c.b16 %v879, %v871
    %v1168 = vpack.c.b16 %v880, %v872
    %v1169 = vpack.c.b16 %v881, %v873
    %v1170 = vpack.c.b16 %v882, %v874
    %v1171 = vpack.c.b16 %v891, %v883
    %v1172 = vpack.c.b16 %v892, %v884
    %v1173 = vpack.c.b16 %v893, %v885
    %v1174 = vpack.c.b16 %v894, %v886
    %v1175 = vpack.c.b16 %v895, %v887
    %v1176 = vpack.c.b16 %v896, %v888
    %v1177 = vpack.c.b16 %v897, %v889
    %v1178 = vpack.c.b16 %v898, %v890
    %v1179 = vpack.c.b16 %v907, %v899
    %v1180 = vpack.c.b16 %v908, %v900
    %v1181 = vpack.c.b16 %v909, %v901
    %v1182 = vpack.c.b16 %v910, %v902
    %v1183 = vpack.c.b16 %v911, %v903
    %v1184 = vpack.c.b16 %v912, %v904
    %v1185 = vpack.c.b16 %v913, %v905
    %v1186 = vpack.c.b16 %v914, %v906
    %v1187 = vpack.c.b16 %v923, %v915
    %v1188 = vpack.c.b16 %v924, %v916
    %v1189 = vpack.c.b16 %v925, %v917
    %v1190 = vpack.c.b16 %v926, %v918
    %v1191 = vpack.c.b16 %v927, %v919
    %v1192 = vpack.c.b16 %v928, %v920
    %v1193 = vpack.c.b16 %v929, %v921
    %v1194 = vpack.c.b16 %v930, %v922
    %v1195 = vpack.c.b16 %v939, %v931
    %v1196 = vpack.c.b16 %v940, %v932
    %v1197 = vpack.c.b16 %v941, %v933
    %v1198 = vpack.c.b16 %v942, %v934
    %v1199 = vpack.c.b16 %v943, %v935
    %v1200 = vpack.c.b16 %v944, %v936
    %v1201 = vpack.c.b16 %v945, %v937
    %v1202 = vpack.c.b16 %v946, %v938
    %v1203 = vpack.c.b16 %v955, %v947
    %v1204 = vpack.c.b16 %v956, %v948
    %v1205 = vpack.c.b16 %v957, %v949
    %v1206 = vpack.c.b16 %v958, %v950
    %v1207 = vpack.c.b16 %v959, %v951
    %v1208 = vpack.c.b16 %v960, %v952
    %v1209 = vpack.c.b16 %v961, %v953
    %v1210 = vpack.c.b16 %v962, %v954
    %v1211 = vpack.c.b16 %v971, %v963
    %v1212 = vpack.c.b16 %v972, %v964
    %v1213 = vpack.c.b16 %v973, %v965
    %v1214 = vpack.c.b16 %v974, %v966
    %v1215 = vpack.c.b16 %v975, %v967
    %v1216 = vpack.c.b16 %v976, %v968
    %v1217 = vpack.c.b16 %v977, %v969
    %v1218 = vpack.c.b16 %v978, %v970
    %v1219 = vpack.c.b16 %v987, %v979
    %v1220 = vpack.c.b16 %v988, %v980
    %v1221 = vpack.c.b16 %v989, %v981
    %v1222 = vpack.c.b16 %v990, %v982
    %v1223 = vpack.c.b16 %v991, %v983
    %v1224 = vpack.c.b16 %v992, %v984
    %v1225 = vpack.c.b16 %v993, %v985
    %v1226 = vpack.c.b16 %v994, %v986
    %v1227 = vpack.c.b16 %v1003, %v995
    %v1228 = vpack.c.b16 %v1004, %v996
    %v1229 = vpack.c.b16 %v1005, %v997
    %v1230 = vpack.c.b16 %v1006, %v998
    %v1231 = vpack.c.b16 %v1007, %v999
    %v1232 = vpack.c.b16 %v1008, %v1000
    %v1233 = vpack.c.b16 %v1009, %v1001
    %v1234 = vpack.c.b16 %v1010, %v1002
    %v1235 = vpack.c.b16 %v1019, %v1011
    %v1236 = vpack.c.b16 %v1020, %v1012
    %v1237 = vpack.c.b16 %v1021, %v1013
    %v1238 = vpack.c.b16 %v1022, %v1014
    %v1239 = vpack.c.b16 %v1023, %v1015
    %v1240 = vpack.c.b16 %v1024, %v1016
    %v1241 = vpack.c.b16 %v1025, %v1017
    %v1242 = vpack.c.b16 %v1026, %v1018
    %v1243 = vpack.c.b16 %v1035, %v1027
    %v1244 = vpack.c.b16 %v1036, %v1028
    %v1245 = vpack.c.b16 %v1037, %v1029
    %v1246 = vpack.c.b16 %v1038, %v1030
    %v1247 = vpack.c.b16 %v1039, %v1031
    %v1248 = vpack.c.b16 %v1040, %v1032
    %v1249 = vpack.c.b16 %v1041, %v1033
    %v1250 = vpack.c.b16 %v1042, %v1034
    %v1251 = vpack.c.b16 %v1051, %v1043
    %v1252 = vpack.c.b16 %v1052, %v1044
    %v1253 = vpack.c.b16 %v1053, %v1045
    %v1254 = vpack.c.b16 %v1054, %v1046
    %v1255 = vpack.c.b16 %v1055, %v1047
    %v1256 = vpack.c.b16 %v1056, %v1048
    %v1257 = vpack.c.b16 %v1057, %v1049
    %v1258 = vpack.c.b16 %v1058, %v1050
    %v1259 = vpack.c.b16 %v1067, %v1059
    %v1260 = vpack.c.b16 %v1068, %v1060
    %v1261 = vpack.c.b16 %v1069, %v1061
    %v1262 = vpack.c.b16 %v1070, %v1062
    %v1263 = vpack.c.b16 %v1071, %v1063
    %v1264 = vpack.c.b16 %v1072, %v1064
    %v1265 = vpack.c.b16 %v1073, %v1065
    %v1266 = vpack.c.b16 %v1074, %v1066
    %1459 = vmatprep.subr.bf16.mxu0 %v1132
    %1460 = vmatpush1.bf16.msra.mxu0 %v1131
    %1461 = vmatprep.subr.bf16.mxu0 %v1124
    %1462 = vmatpush1.bf16.msra.mxu0 %v1123
    %1463 = vmatprep.subr.bf16.mxu0 %v1116
    %1464 = vmatpush1.bf16.msra.mxu0 %v1115
    %1465 = vmatprep.subr.bf16.mxu0 %v1108
    %1466 = vmatpush1.bf16.msra.mxu0 %v1107
    %1467 = vmatprep.subr.bf16.mxu0 %v1100
    %1468 = vmatpush1.bf16.msra.mxu0 %v1099
    %1469 = vmatprep.subr.bf16.mxu0 %v1092
    %1470 = vmatpush1.bf16.msra.mxu0 %v1091
    %1471 = vmatprep.subr.bf16.mxu0 %v1084
    %1472 = vmatpush1.bf16.msra.mxu0 %v1083
    %1473 = vmatprep.subr.bf16.mxu0 %v1076
    %1474 = vmatpush1.bf16.msra.mxu0 %v1075
    %1475 = vmatprep.subr.bf16.mxu0 %v1196
    %1476 = vmatpush2.bf16.msra.mxu0 %v1195
    %1477 = vmatprep.subr.bf16.mxu0 %v1188
    %1478 = vmatpush2.bf16.msra.mxu0 %v1187
    %1479 = vmatprep.subr.bf16.mxu0 %v1180
    %1480 = vmatpush2.bf16.msra.mxu0 %v1179
    %1481 = vmatprep.subr.bf16.mxu0 %v1172
    %1482 = vmatpush2.bf16.msra.mxu0 %v1171
    %1483 = vmatprep.subr.bf16.mxu0 %v1164
    %1484 = vmatpush2.bf16.msra.mxu0 %v1163
    %1485 = vmatprep.subr.bf16.mxu0 %v1156
    %1486 = vmatpush2.bf16.msra.mxu0 %v1155
    %1487 = vmatprep.subr.bf16.mxu0 %v1148
    %1488 = vmatpush2.bf16.msra.mxu0 %v1147
    %1489 = vmatprep.subr.bf16.mxu0 %v1140
    %1490 = vmatpush2.bf16.msra.mxu0 %v1139
    %1491 = vmatprep.mubr.bf16.mxu0 %v452
    %1492 = vmatmul.mubr.bf16.gmra.mxu0 %v451
    %v1493 = vpop.f32.mrf.mxu0
    %v1494 = vadd.f32 %v334, %v1493
    %v1495 = vpop.f32.mrf.mxu0
    %v1496 = vadd.f32 %v338, %v1495
    %v1497 = vpop.f32.mrf.mxu0
    %v1498 = vadd.f32 %v334, %v1497
    %v1499 = vpop.f32.mrf.mxu0
    %v1500 = vadd.f32 %v338, %v1499
    %1501 = vmatprep.mubr.bf16.mxu0 %v455
    %1502 = vmatmul.mubr.bf16.gmra.mxu0 %v454
    %v1503 = vpop.f32.mrf.mxu0
    %v1504 = vadd.f32 %v334, %v1503
    %v1505 = vpop.f32.mrf.mxu0
    %v1506 = vadd.f32 %v338, %v1505
    %v1507 = vpop.f32.mrf.mxu0
    %v1508 = vadd.f32 %v334, %v1507
    %v1509 = vpop.f32.mrf.mxu0
    %v1510 = vadd.f32 %v338, %v1509
    %1511 = vmatprep.mubr.bf16.mxu0 %v458
    %1512 = vmatmul.mubr.bf16.gmra.mxu0 %v457
    %v1513 = vpop.f32.mrf.mxu0
    %v1514 = vadd.f32 %v334, %v1513
    %v1515 = vpop.f32.mrf.mxu0
    %v1516 = vadd.f32 %v338, %v1515
    %v1517 = vpop.f32.mrf.mxu0
    %v1518 = vadd.f32 %v334, %v1517
    %v1519 = vpop.f32.mrf.mxu0
    %v1520 = vadd.f32 %v338, %v1519
    %1521 = vmatprep.mubr.bf16.mxu0 %v461
    %1522 = vmatmul.mubr.bf16.gmra.mxu0 %v460
    %v1523 = vpop.f32.mrf.mxu0
    %v1524 = vadd.f32 %v334, %v1523
    %v1525 = vpop.f32.mrf.mxu0
    %v1526 = vadd.f32 %v338, %v1525
    %v1527 = vpop.f32.mrf.mxu0
    %v1528 = vadd.f32 %v334, %v1527
    %v1529 = vpop.f32.mrf.mxu0
    %v1530 = vadd.f32 %v338, %v1529
    %1531 = vmatprep.mubr.bf16.mxu0 %v464
    %1532 = vmatmul.mubr.bf16.gmra.mxu0 %v463
    %v1533 = vpop.f32.mrf.mxu0
    %v1534 = vadd.f32 %v334, %v1533
    %v1535 = vpop.f32.mrf.mxu0
    %v1536 = vadd.f32 %v338, %v1535
    %v1537 = vpop.f32.mrf.mxu0
    %v1538 = vadd.f32 %v334, %v1537
    %v1539 = vpop.f32.mrf.mxu0
    %v1540 = vadd.f32 %v338, %v1539
    %1541 = vmatprep.mubr.bf16.mxu0 %v467
    %1542 = vmatmul.mubr.bf16.gmra.mxu0 %v466
    %v1543 = vpop.f32.mrf.mxu0
    %v1544 = vadd.f32 %v334, %v1543
    %v1545 = vpop.f32.mrf.mxu0
    %v1546 = vadd.f32 %v338, %v1545
    %v1547 = vpop.f32.mrf.mxu0
    %v1548 = vadd.f32 %v334, %v1547
    %v1549 = vpop.f32.mrf.mxu0
    %v1550 = vadd.f32 %v338, %v1549
    %1551 = vmatprep.mubr.bf16.mxu0 %v470
    %1552 = vmatmul.mubr.bf16.gmra.mxu0 %v469
    %v1553 = vpop.f32.mrf.mxu0
    %v1554 = vadd.f32 %v334, %v1553
    %v1555 = vpop.f32.mrf.mxu0
    %v1556 = vadd.f32 %v338, %v1555
    %v1557 = vpop.f32.mrf.mxu0
    %v1558 = vadd.f32 %v334, %v1557
    %v1559 = vpop.f32.mrf.mxu0
    %v1560 = vadd.f32 %v338, %v1559
    %1561 = vmatprep.mubr.bf16.mxu0 %v473
    %1562 = vmatmul.mubr.bf16.gmra.mxu0 %v472
    %v1563 = vpop.f32.mrf.mxu0
    %v1564 = vadd.f32 %v334, %v1563
    %v1565 = vpop.f32.mrf.mxu0
    %v1566 = vadd.f32 %v338, %v1565
    %v1567 = vpop.f32.mrf.mxu0
    %v1568 = vadd.f32 %v334, %v1567
    %v1569 = vpop.f32.mrf.mxu0
    %v1570 = vadd.f32 %v338, %v1569
    %1571 = vdwg.mxu0
    %1572 = vmatprep.subr.bf16.mxu0 %v1260
    %1573 = vmatpush1.bf16.msra.mxu0 %v1259
    %1574 = vmatprep.subr.bf16.mxu0 %v1252
    %1575 = vmatpush1.bf16.msra.mxu0 %v1251
    %1576 = vmatprep.subr.bf16.mxu0 %v1244
    %1577 = vmatpush1.bf16.msra.mxu0 %v1243
    %1578 = vmatprep.subr.bf16.mxu0 %v1236
    %1579 = vmatpush1.bf16.msra.mxu0 %v1235
    %1580 = vmatprep.subr.bf16.mxu0 %v1228
    %1581 = vmatpush1.bf16.msra.mxu0 %v1227
    %1582 = vmatprep.subr.bf16.mxu0 %v1220
    %1583 = vmatpush1.bf16.msra.mxu0 %v1219
    %1584 = vmatprep.subr.bf16.mxu0 %v1212
    %1585 = vmatpush1.bf16.msra.mxu0 %v1211
    %1586 = vmatprep.subr.bf16.mxu0 %v1204
    %1587 = vmatpush1.bf16.msra.mxu0 %v1203
    %1588 = vmatprep.subr.bf16.mxu0 0
    %1589 = vmatpush2.bf16.msra.mxu0 0
    %1590 = vmatprep.subr.bf16.mxu0 0
    %1591 = vmatpush2.bf16.msra.mxu0 0
    %1592 = vmatprep.subr.bf16.mxu0 0
    %1593 = vmatpush2.bf16.msra.mxu0 0
    %1594 = vmatprep.subr.bf16.mxu0 0
    %1595 = vmatpush2.bf16.msra.mxu0 0
    %1596 = vmatprep.subr.bf16.mxu0 0
    %1597 = vmatpush2.bf16.msra.mxu0 0
    %1598 = vmatprep.subr.bf16.mxu0 0
    %1599 = vmatpush2.bf16.msra.mxu0 0
    %1600 = vmatprep.subr.bf16.mxu0 0
    %1601 = vmatpush2.bf16.msra.mxu0 0
    %1602 = vmatprep.subr.bf16.mxu0 0
    %1603 = vmatpush2.bf16.msra.mxu0 0
    %1604 = vmatprep.mubr.bf16.mxu0 0
    %1605 = vmatmul.mubr.bf16.gmra.mxu0 %v453
    %v1606 = vpop.f32.mrf.mxu0
    %v1607 = vadd.f32 %v1494, %v1606
    %v1608 = vpop.f32.mrf.mxu0
    %v1609 = vadd.f32 %v1496, %v1608
    %v1610 = vpop.f32.mrf.mxu0
    %v1611 = vadd.f32 %v1498, %v1610
    %v1612 = vpop.f32.mrf.mxu0
    %v1613 = vadd.f32 %v1500, %v1612
    %1614 = vmatprep.mubr.bf16.mxu0 0
    %1615 = vmatmul.mubr.bf16.gmra.mxu0 %v456
    %v1616 = vpop.f32.mrf.mxu0
    %v1617 = vadd.f32 %v1504, %v1616
    %v1618 = vpop.f32.mrf.mxu0
    %v1619 = vadd.f32 %v1506, %v1618
    %v1620 = vpop.f32.mrf.mxu0
    %v1621 = vadd.f32 %v1508, %v1620
    %v1622 = vpop.f32.mrf.mxu0
    %v1623 = vadd.f32 %v1510, %v1622
    %1624 = vmatprep.mubr.bf16.mxu0 0
    %1625 = vmatmul.mubr.bf16.gmra.mxu0 %v459
    %v1626 = vpop.f32.mrf.mxu0
    %v1627 = vadd.f32 %v1514, %v1626
    %v1628 = vpop.f32.mrf.mxu0
    %v1629 = vadd.f32 %v1516, %v1628
    %v1630 = vpop.f32.mrf.mxu0
    %v1631 = vadd.f32 %v1518, %v1630
    %v1632 = vpop.f32.mrf.mxu0
    %v1633 = vadd.f32 %v1520, %v1632
    %1634 = vmatprep.mubr.bf16.mxu0 0
    %1635 = vmatmul.mubr.bf16.gmra.mxu0 %v462
    %v1636 = vpop.f32.mrf.mxu0
    %v1637 = vadd.f32 %v1524, %v1636
    %v1638 = vpop.f32.mrf.mxu0
    %v1639 = vadd.f32 %v1526, %v1638
    %v1640 = vpop.f32.mrf.mxu0
    %v1641 = vadd.f32 %v1528, %v1640
    %v1642 = vpop.f32.mrf.mxu0
    %v1643 = vadd.f32 %v1530, %v1642
    %1644 = vmatprep.mubr.bf16.mxu0 0
    %1645 = vmatmul.mubr.bf16.gmra.mxu0 %v465
    %v1646 = vpop.f32.mrf.mxu0
    %v1647 = vadd.f32 %v1534, %v1646
    %v1648 = vpop.f32.mrf.mxu0
    %v1649 = vadd.f32 %v1536, %v1648
    %v1650 = vpop.f32.mrf.mxu0
    %v1651 = vadd.f32 %v1538, %v1650
    %v1652 = vpop.f32.mrf.mxu0
    %v1653 = vadd.f32 %v1540, %v1652
    %1654 = vmatprep.mubr.bf16.mxu0 0
    %1655 = vmatmul.mubr.bf16.gmra.mxu0 %v468
    %v1656 = vpop.f32.mrf.mxu0
    %v1657 = vadd.f32 %v1544, %v1656
    %v1658 = vpop.f32.mrf.mxu0
    %v1659 = vadd.f32 %v1546, %v1658
    %v1660 = vpop.f32.mrf.mxu0
    %v1661 = vadd.f32 %v1548, %v1660
    %v1662 = vpop.f32.mrf.mxu0
    %v1663 = vadd.f32 %v1550, %v1662
    %1664 = vmatprep.mubr.bf16.mxu0 0
    %1665 = vmatmul.mubr.bf16.gmra.mxu0 %v471
    %v1666 = vpop.f32.mrf.mxu0
    %v1667 = vadd.f32 %v1554, %v1666
    %v1668 = vpop.f32.mrf.mxu0
    %v1669 = vadd.f32 %v1556, %v1668
    %v1670 = vpop.f32.mrf.mxu0
    %v1671 = vadd.f32 %v1558, %v1670
    %v1672 = vpop.f32.mrf.mxu0
    %v1673 = vadd.f32 %v1560, %v1672
    %1674 = vmatprep.mubr.bf16.mxu0 0
    %1675 = vmatmul.mubr.bf16.gmra.mxu0 %v474
    %v1676 = vpop.f32.mrf.mxu0
    %v1677 = vadd.f32 %v1564, %v1676
    %v1678 = vpop.f32.mrf.mxu0
    %v1679 = vadd.f32 %v1566, %v1678
    %v1680 = vpop.f32.mrf.mxu0
    %v1681 = vadd.f32 %v1568, %v1680
    %v1682 = vpop.f32.mrf.mxu0
    %v1683 = vadd.f32 %v1570, %v1682
    %1684 = vdwg.mxu0
    %1685 = vmatprep.subr.bf16.mxu0 %v1134
    %1686 = vmatpush1.bf16.msra.mxu0 %v1133
    %1687 = vmatprep.subr.bf16.mxu0 %v1126
    %1688 = vmatpush1.bf16.msra.mxu0 %v1125
    %1689 = vmatprep.subr.bf16.mxu0 %v1118
    %1690 = vmatpush1.bf16.msra.mxu0 %v1117
    %1691 = vmatprep.subr.bf16.mxu0 %v1110
    %1692 = vmatpush1.bf16.msra.mxu0 %v1109
    %1693 = vmatprep.subr.bf16.mxu0 %v1102
    %1694 = vmatpush1.bf16.msra.mxu0 %v1101
    %1695 = vmatprep.subr.bf16.mxu0 %v1094
    %1696 = vmatpush1.bf16.msra.mxu0 %v1093
    %1697 = vmatprep.subr.bf16.mxu0 %v1086
    %1698 = vmatpush1.bf16.msra.mxu0 %v1085
    %1699 = vmatprep.subr.bf16.mxu0 %v1078
    %1700 = vmatpush1.bf16.msra.mxu0 %v1077
    %1701 = vmatprep.subr.bf16.mxu0 %v1198
    %1702 = vmatpush2.bf16.msra.mxu0 %v1197
    %1703 = vmatprep.subr.bf16.mxu0 %v1190
    %1704 = vmatpush2.bf16.msra.mxu0 %v1189
    %1705 = vmatprep.subr.bf16.mxu0 %v1182
    %1706 = vmatpush2.bf16.msra.mxu0 %v1181
    %1707 = vmatprep.subr.bf16.mxu0 %v1174
    %1708 = vmatpush2.bf16.msra.mxu0 %v1173
    %1709 = vmatprep.subr.bf16.mxu0 %v1166
    %1710 = vmatpush2.bf16.msra.mxu0 %v1165
    %1711 = vmatprep.subr.bf16.mxu0 %v1158
    %1712 = vmatpush2.bf16.msra.mxu0 %v1157
    %1713 = vmatprep.subr.bf16.mxu0 %v1150
    %1714 = vmatpush2.bf16.msra.mxu0 %v1149
    %1715 = vmatprep.subr.bf16.mxu0 %v1142
    %1716 = vmatpush2.bf16.msra.mxu0 %v1141
    %1717 = vmatprep.mubr.bf16.mxu0 %v452
    %1718 = vmatmul.mubr.bf16.gmra.mxu0 %v451
    %v1719 = vpop.f32.mrf.mxu0
    %v1720 = vadd.f32 %v342, %v1719
    %v1721 = vpop.f32.mrf.mxu0
    %v1722 = vadd.f32 %v346, %v1721
    %v1723 = vpop.f32.mrf.mxu0
    %v1724 = vadd.f32 %v342, %v1723
    %v1725 = vpop.f32.mrf.mxu0
    %v1726 = vadd.f32 %v346, %v1725
    %1727 = vmatprep.mubr.bf16.mxu0 %v455
    %1728 = vmatmul.mubr.bf16.gmra.mxu0 %v454
    %v1729 = vpop.f32.mrf.mxu0
    %v1730 = vadd.f32 %v342, %v1729
    %v1731 = vpop.f32.mrf.mxu0
    %v1732 = vadd.f32 %v346, %v1731
    %v1733 = vpop.f32.mrf.mxu0
    %v1734 = vadd.f32 %v342, %v1733
    %v1735 = vpop.f32.mrf.mxu0
    %v1736 = vadd.f32 %v346, %v1735
    %1737 = vmatprep.mubr.bf16.mxu0 %v458
    %1738 = vmatmul.mubr.bf16.gmra.mxu0 %v457
    %v1739 = vpop.f32.mrf.mxu0
    %v1740 = vadd.f32 %v342, %v1739
    %v1741 = vpop.f32.mrf.mxu0
    %v1742 = vadd.f32 %v346, %v1741
    %v1743 = vpop.f32.mrf.mxu0
    %v1744 = vadd.f32 %v342, %v1743
    %v1745 = vpop.f32.mrf.mxu0
    %v1746 = vadd.f32 %v346, %v1745
    %1747 = vmatprep.mubr.bf16.mxu0 %v461
    %1748 = vmatmul.mubr.bf16.gmra.mxu0 %v460
    %v1749 = vpop.f32.mrf.mxu0
    %v1750 = vadd.f32 %v342, %v1749
    %v1751 = vpop.f32.mrf.mxu0
    %v1752 = vadd.f32 %v346, %v1751
    %v1753 = vpop.f32.mrf.mxu0
    %v1754 = vadd.f32 %v342, %v1753
    %v1755 = vpop.f32.mrf.mxu0
    %v1756 = vadd.f32 %v346, %v1755
    %1757 = vmatprep.mubr.bf16.mxu0 %v464
    %1758 = vmatmul.mubr.bf16.gmra.mxu0 %v463
    %v1759 = vpop.f32.mrf.mxu0
    %v1760 = vadd.f32 %v342, %v1759
    %v1761 = vpop.f32.mrf.mxu0
    %v1762 = vadd.f32 %v346, %v1761
    %v1763 = vpop.f32.mrf.mxu0
    %v1764 = vadd.f32 %v342, %v1763
    %v1765 = vpop.f32.mrf.mxu0
    %v1766 = vadd.f32 %v346, %v1765
    %1767 = vmatprep.mubr.bf16.mxu0 %v467
    %1768 = vmatmul.mubr.bf16.gmra.mxu0 %v466
    %v1769 = vpop.f32.mrf.mxu0
    %v1770 = vadd.f32 %v342, %v1769
    %v1771 = vpop.f32.mrf.mxu0
    %v1772 = vadd.f32 %v346, %v1771
    %v1773 = vpop.f32.mrf.mxu0
    %v1774 = vadd.f32 %v342, %v1773
    %v1775 = vpop.f32.mrf.mxu0
    %v1776 = vadd.f32 %v346, %v1775
    %1777 = vmatprep.mubr.bf16.mxu0 %v470
    %1778 = vmatmul.mubr.bf16.gmra.mxu0 %v469
    %v1779 = vpop.f32.mrf.mxu0
    %v1780 = vadd.f32 %v342, %v1779
    %v1781 = vpop.f32.mrf.mxu0
    %v1782 = vadd.f32 %v346, %v1781
    %v1783 = vpop.f32.mrf.mxu0
    %v1784 = vadd.f32 %v342, %v1783
    %v1785 = vpop.f32.mrf.mxu0
    %v1786 = vadd.f32 %v346, %v1785
    %1787 = vmatprep.mubr.bf16.mxu0 %v473
    %1788 = vmatmul.mubr.bf16.gmra.mxu0 %v472
    %v1789 = vpop.f32.mrf.mxu0
    %v1790 = vadd.f32 %v342, %v1789
    %v1791 = vpop.f32.mrf.mxu0
    %v1792 = vadd.f32 %v346, %v1791
    %v1793 = vpop.f32.mrf.mxu0
    %v1794 = vadd.f32 %v342, %v1793
    %v1795 = vpop.f32.mrf.mxu0
    %v1796 = vadd.f32 %v346, %v1795
    %1797 = vdwg.mxu0
    %1798 = vmatprep.subr.bf16.mxu0 %v1262
    %1799 = vmatpush1.bf16.msra.mxu0 %v1261
    %1800 = vmatprep.subr.bf16.mxu0 %v1254
    %1801 = vmatpush1.bf16.msra.mxu0 %v1253
    %1802 = vmatprep.subr.bf16.mxu0 %v1246
    %1803 = vmatpush1.bf16.msra.mxu0 %v1245
    %1804 = vmatprep.subr.bf16.mxu0 %v1238
    %1805 = vmatpush1.bf16.msra.mxu0 %v1237
    %1806 = vmatprep.subr.bf16.mxu0 %v1230
    %1807 = vmatpush1.bf16.msra.mxu0 %v1229
    %1808 = vmatprep.subr.bf16.mxu0 %v1222
    %1809 = vmatpush1.bf16.msra.mxu0 %v1221
    %1810 = vmatprep.subr.bf16.mxu0 %v1214
    %1811 = vmatpush1.bf16.msra.mxu0 %v1213
    %1812 = vmatprep.subr.bf16.mxu0 %v1206
    %1813 = vmatpush1.bf16.msra.mxu0 %v1205
    %1814 = vmatprep.subr.bf16.mxu0 0
    %1815 = vmatpush2.bf16.msra.mxu0 0
    %1816 = vmatprep.subr.bf16.mxu0 0
    %1817 = vmatpush2.bf16.msra.mxu0 0
    %1818 = vmatprep.subr.bf16.mxu0 0
    %1819 = vmatpush2.bf16.msra.mxu0 0
    %1820 = vmatprep.subr.bf16.mxu0 0
    %1821 = vmatpush2.bf16.msra.mxu0 0
    %1822 = vmatprep.subr.bf16.mxu0 0
    %1823 = vmatpush2.bf16.msra.mxu0 0
    %1824 = vmatprep.subr.bf16.mxu0 0
    %1825 = vmatpush2.bf16.msra.mxu0 0
    %1826 = vmatprep.subr.bf16.mxu0 0
    %1827 = vmatpush2.bf16.msra.mxu0 0
    %1828 = vmatprep.subr.bf16.mxu0 0
    %1829 = vmatpush2.bf16.msra.mxu0 0
    %1830 = vmatprep.mubr.bf16.mxu0 0
    %1831 = vmatmul.mubr.bf16.gmra.mxu0 %v453
    %v1832 = vpop.f32.mrf.mxu0
    %v1833 = vadd.f32 %v1720, %v1832
    %v1834 = vpop.f32.mrf.mxu0
    %v1835 = vadd.f32 %v1722, %v1834
    %v1836 = vpop.f32.mrf.mxu0
    %v1837 = vadd.f32 %v1724, %v1836
    %v1838 = vpop.f32.mrf.mxu0
    %v1839 = vadd.f32 %v1726, %v1838
    %1840 = vmatprep.mubr.bf16.mxu0 0
    %1841 = vmatmul.mubr.bf16.gmra.mxu0 %v456
    %v1842 = vpop.f32.mrf.mxu0
    %v1843 = vadd.f32 %v1730, %v1842
    %v1844 = vpop.f32.mrf.mxu0
    %v1845 = vadd.f32 %v1732, %v1844
    %v1846 = vpop.f32.mrf.mxu0
    %v1847 = vadd.f32 %v1734, %v1846
    %v1848 = vpop.f32.mrf.mxu0
    %v1849 = vadd.f32 %v1736, %v1848
    %1850 = vmatprep.mubr.bf16.mxu0 0
    %1851 = vmatmul.mubr.bf16.gmra.mxu0 %v459
    %v1852 = vpop.f32.mrf.mxu0
    %v1853 = vadd.f32 %v1740, %v1852
    %v1854 = vpop.f32.mrf.mxu0
    %v1855 = vadd.f32 %v1742, %v1854
    %v1856 = vpop.f32.mrf.mxu0
    %v1857 = vadd.f32 %v1744, %v1856
    %v1858 = vpop.f32.mrf.mxu0
    %v1859 = vadd.f32 %v1746, %v1858
    %1860 = vmatprep.mubr.bf16.mxu0 0
    %1861 = vmatmul.mubr.bf16.gmra.mxu0 %v462
    %v1862 = vpop.f32.mrf.mxu0
    %v1863 = vadd.f32 %v1750, %v1862
    %v1864 = vpop.f32.mrf.mxu0
    %v1865 = vadd.f32 %v1752, %v1864
    %v1866 = vpop.f32.mrf.mxu0
    %v1867 = vadd.f32 %v1754, %v1866
    %v1868 = vpop.f32.mrf.mxu0
    %v1869 = vadd.f32 %v1756, %v1868
    %1870 = vmatprep.mubr.bf16.mxu0 0
    %1871 = vmatmul.mubr.bf16.gmra.mxu0 %v465
    %v1872 = vpop.f32.mrf.mxu0
    %v1873 = vadd.f32 %v1760, %v1872
    %v1874 = vpop.f32.mrf.mxu0
    %v1875 = vadd.f32 %v1762, %v1874
    %v1876 = vpop.f32.mrf.mxu0
    %v1877 = vadd.f32 %v1764, %v1876
    %v1878 = vpop.f32.mrf.mxu0
    %v1879 = vadd.f32 %v1766, %v1878
    %1880 = vmatprep.mubr.bf16.mxu0 0
    %1881 = vmatmul.mubr.bf16.gmra.mxu0 %v468
    %v1882 = vpop.f32.mrf.mxu0
    %v1883 = vadd.f32 %v1770, %v1882
    %v1884 = vpop.f32.mrf.mxu0
    %v1885 = vadd.f32 %v1772, %v1884
    %v1886 = vpop.f32.mrf.mxu0
    %v1887 = vadd.f32 %v1774, %v1886
    %v1888 = vpop.f32.mrf.mxu0
    %v1889 = vadd.f32 %v1776, %v1888
    %1890 = vmatprep.mubr.bf16.mxu0 0
    %1891 = vmatmul.mubr.bf16.gmra.mxu0 %v471
    %v1892 = vpop.f32.mrf.mxu0
    %v1893 = vadd.f32 %v1780, %v1892
    %v1894 = vpop.f32.mrf.mxu0
    %v1895 = vadd.f32 %v1782, %v1894
    %v1896 = vpop.f32.mrf.mxu0
    %v1897 = vadd.f32 %v1784, %v1896
    %v1898 = vpop.f32.mrf.mxu0
    %v1899 = vadd.f32 %v1786, %v1898
    %1900 = vmatprep.mubr.bf16.mxu0 0
    %1901 = vmatmul.mubr.bf16.gmra.mxu0 %v474
    %v1902 = vpop.f32.mrf.mxu0
    %v1903 = vadd.f32 %v1790, %v1902
    %v1904 = vpop.f32.mrf.mxu0
    %v1905 = vadd.f32 %v1792, %v1904
    %v1906 = vpop.f32.mrf.mxu0
    %v1907 = vadd.f32 %v1794, %v1906
    %v1908 = vpop.f32.mrf.mxu0
    %v1909 = vadd.f32 %v1796, %v1908
    %1910 = vdwg.mxu0
    %1911 = vmatprep.subr.bf16.mxu0 %v1136
    %1912 = vmatpush1.bf16.msra.mxu0 %v1135
    %1913 = vmatprep.subr.bf16.mxu0 %v1128
    %1914 = vmatpush1.bf16.msra.mxu0 %v1127
    %1915 = vmatprep.subr.bf16.mxu0 %v1120
    %1916 = vmatpush1.bf16.msra.mxu0 %v1119
    %1917 = vmatprep.subr.bf16.mxu0 %v1112
    %1918 = vmatpush1.bf16.msra.mxu0 %v1111
    %1919 = vmatprep.subr.bf16.mxu0 %v1104
    %1920 = vmatpush1.bf16.msra.mxu0 %v1103
    %1921 = vmatprep.subr.bf16.mxu0 %v1096
    %1922 = vmatpush1.bf16.msra.mxu0 %v1095
    %1923 = vmatprep.subr.bf16.mxu0 %v1088
    %1924 = vmatpush1.bf16.msra.mxu0 %v1087
    %1925 = vmatprep.subr.bf16.mxu0 %v1080
    %1926 = vmatpush1.bf16.msra.mxu0 %v1079
    %1927 = vmatprep.subr.bf16.mxu0 %v1200
    %1928 = vmatpush2.bf16.msra.mxu0 %v1199
    %1929 = vmatprep.subr.bf16.mxu0 %v1192
    %1930 = vmatpush2.bf16.msra.mxu0 %v1191
    %1931 = vmatprep.subr.bf16.mxu0 %v1184
    %1932 = vmatpush2.bf16.msra.mxu0 %v1183
    %1933 = vmatprep.subr.bf16.mxu0 %v1176
    %1934 = vmatpush2.bf16.msra.mxu0 %v1175
    %1935 = vmatprep.subr.bf16.mxu0 %v1168
    %1936 = vmatpush2.bf16.msra.mxu0 %v1167
    %1937 = vmatprep.subr.bf16.mxu0 %v1160
    %1938 = vmatpush2.bf16.msra.mxu0 %v1159
    %1939 = vmatprep.subr.bf16.mxu0 %v1152
    %1940 = vmatpush2.bf16.msra.mxu0 %v1151
    %1941 = vmatprep.subr.bf16.mxu0 %v1144
    %1942 = vmatpush2.bf16.msra.mxu0 %v1143
    %1943 = vmatprep.mubr.bf16.mxu0 %v452
    %1944 = vmatmul.mubr.bf16.gmra.mxu0 %v451
    %v1945 = vpop.f32.mrf.mxu0
    %v1946 = vadd.f32 %v350, %v1945
    %v1947 = vpop.f32.mrf.mxu0
    %v1948 = vadd.f32 %v354, %v1947
    %v1949 = vpop.f32.mrf.mxu0
    %v1950 = vadd.f32 %v350, %v1949
    %v1951 = vpop.f32.mrf.mxu0
    %v1952 = vadd.f32 %v354, %v1951
    %1953 = vmatprep.mubr.bf16.mxu0 %v455
    %1954 = vmatmul.mubr.bf16.gmra.mxu0 %v454
    %v1955 = vpop.f32.mrf.mxu0
    %v1956 = vadd.f32 %v350, %v1955
    %v1957 = vpop.f32.mrf.mxu0
    %v1958 = vadd.f32 %v354, %v1957
    %v1959 = vpop.f32.mrf.mxu0
    %v1960 = vadd.f32 %v350, %v1959
    %v1961 = vpop.f32.mrf.mxu0
    %v1962 = vadd.f32 %v354, %v1961
    %1963 = vmatprep.mubr.bf16.mxu0 %v458
    %1964 = vmatmul.mubr.bf16.gmra.mxu0 %v457
    %v1965 = vpop.f32.mrf.mxu0
    %v1966 = vadd.f32 %v350, %v1965
    %v1967 = vpop.f32.mrf.mxu0
    %v1968 = vadd.f32 %v354, %v1967
    %v1969 = vpop.f32.mrf.mxu0
    %v1970 = vadd.f32 %v350, %v1969
    %v1971 = vpop.f32.mrf.mxu0
    %v1972 = vadd.f32 %v354, %v1971
    %1973 = vmatprep.mubr.bf16.mxu0 %v461
    %1974 = vmatmul.mubr.bf16.gmra.mxu0 %v460
    %v1975 = vpop.f32.mrf.mxu0
    %v1976 = vadd.f32 %v350, %v1975
    %v1977 = vpop.f32.mrf.mxu0
    %v1978 = vadd.f32 %v354, %v1977
    %v1979 = vpop.f32.mrf.mxu0
    %v1980 = vadd.f32 %v350, %v1979
    %v1981 = vpop.f32.mrf.mxu0
    %v1982 = vadd.f32 %v354, %v1981
    %1983 = vmatprep.mubr.bf16.mxu0 %v464
    %1984 = vmatmul.mubr.bf16.gmra.mxu0 %v463
    %v1985 = vpop.f32.mrf.mxu0
    %v1986 = vadd.f32 %v350, %v1985
    %v1987 = vpop.f32.mrf.mxu0
    %v1988 = vadd.f32 %v354, %v1987
    %v1989 = vpop.f32.mrf.mxu0
    %v1990 = vadd.f32 %v350, %v1989
    %v1991 = vpop.f32.mrf.mxu0
    %v1992 = vadd.f32 %v354, %v1991
    %1993 = vmatprep.mubr.bf16.mxu0 %v467
    %1994 = vmatmul.mubr.bf16.gmra.mxu0 %v466
    %v1995 = vpop.f32.mrf.mxu0
    %v1996 = vadd.f32 %v350, %v1995
    %v1997 = vpop.f32.mrf.mxu0
    %v1998 = vadd.f32 %v354, %v1997
    %v1999 = vpop.f32.mrf.mxu0
    %v2000 = vadd.f32 %v350, %v1999
    %v2001 = vpop.f32.mrf.mxu0
    %v2002 = vadd.f32 %v354, %v2001
    %2003 = vmatprep.mubr.bf16.mxu0 %v470
    %2004 = vmatmul.mubr.bf16.gmra.mxu0 %v469
    %v2005 = vpop.f32.mrf.mxu0
    %v2006 = vadd.f32 %v350, %v2005
    %v2007 = vpop.f32.mrf.mxu0
    %v2008 = vadd.f32 %v354, %v2007
    %v2009 = vpop.f32.mrf.mxu0
    %v2010 = vadd.f32 %v350, %v2009
    %v2011 = vpop.f32.mrf.mxu0
    %v2012 = vadd.f32 %v354, %v2011
    %2013 = vmatprep.mubr.bf16.mxu0 %v473
    %2014 = vmatmul.mubr.bf16.gmra.mxu0 %v472
    %v2015 = vpop.f32.mrf.mxu0
    %v2016 = vadd.f32 %v350, %v2015
    %v2017 = vpop.f32.mrf.mxu0
    %v2018 = vadd.f32 %v354, %v2017
    %v2019 = vpop.f32.mrf.mxu0
    %v2020 = vadd.f32 %v350, %v2019
    %v2021 = vpop.f32.mrf.mxu0
    %v2022 = vadd.f32 %v354, %v2021
    %2023 = vdwg.mxu0
    %2024 = vmatprep.subr.bf16.mxu0 %v1264
    %2025 = vmatpush1.bf16.msra.mxu0 %v1263
    %2026 = vmatprep.subr.bf16.mxu0 %v1256
    %2027 = vmatpush1.bf16.msra.mxu0 %v1255
    %2028 = vmatprep.subr.bf16.mxu0 %v1248
    %2029 = vmatpush1.bf16.msra.mxu0 %v1247
    %2030 = vmatprep.subr.bf16.mxu0 %v1240
    %2031 = vmatpush1.bf16.msra.mxu0 %v1239
    %2032 = vmatprep.subr.bf16.mxu0 %v1232
    %2033 = vmatpush1.bf16.msra.mxu0 %v1231
    %2034 = vmatprep.subr.bf16.mxu0 %v1224
    %2035 = vmatpush1.bf16.msra.mxu0 %v1223
    %2036 = vmatprep.subr.bf16.mxu0 %v1216
    %2037 = vmatpush1.bf16.msra.mxu0 %v1215
    %2038 = vmatprep.subr.bf16.mxu0 %v1208
    %2039 = vmatpush1.bf16.msra.mxu0 %v1207
    %2040 = vmatprep.subr.bf16.mxu0 0
    %2041 = vmatpush2.bf16.msra.mxu0 0
    %2042 = vmatprep.subr.bf16.mxu0 0
    %2043 = vmatpush2.bf16.msra.mxu0 0
    %2044 = vmatprep.subr.bf16.mxu0 0
    %2045 = vmatpush2.bf16.msra.mxu0 0
    %2046 = vmatprep.subr.bf16.mxu0 0
    %2047 = vmatpush2.bf16.msra.mxu0 0
    %2048 = vmatprep.subr.bf16.mxu0 0
    %2049 = vmatpush2.bf16.msra.mxu0 0
    %2050 = vmatprep.subr.bf16.mxu0 0
    %2051 = vmatpush2.bf16.msra.mxu0 0
    %2052 = vmatprep.subr.bf16.mxu0 0
    %2053 = vmatpush2.bf16.msra.mxu0 0
    %2054 = vmatprep.subr.bf16.mxu0 0
    %2055 = vmatpush2.bf16.msra.mxu0 0
    %2056 = vmatprep.mubr.bf16.mxu0 0
    %2057 = vmatmul.mubr.bf16.gmra.mxu0 %v453
    %v2058 = vpop.f32.mrf.mxu0
    %v2059 = vadd.f32 %v1946, %v2058
    %v2060 = vpop.f32.mrf.mxu0
    %v2061 = vadd.f32 %v1948, %v2060
    %v2062 = vpop.f32.mrf.mxu0
    %v2063 = vadd.f32 %v1950, %v2062
    %v2064 = vpop.f32.mrf.mxu0
    %v2065 = vadd.f32 %v1952, %v2064
    %2066 = vmatprep.mubr.bf16.mxu0 0
    %2067 = vmatmul.mubr.bf16.gmra.mxu0 %v456
    %v2068 = vpop.f32.mrf.mxu0
    %v2069 = vadd.f32 %v1956, %v2068
    %v2070 = vpop.f32.mrf.mxu0
    %v2071 = vadd.f32 %v1958, %v2070
    %v2072 = vpop.f32.mrf.mxu0
    %v2073 = vadd.f32 %v1960, %v2072
    %v2074 = vpop.f32.mrf.mxu0
    %v2075 = vadd.f32 %v1962, %v2074
    %2076 = vmatprep.mubr.bf16.mxu0 0
    %2077 = vmatmul.mubr.bf16.gmra.mxu0 %v459
    %v2078 = vpop.f32.mrf.mxu0
    %v2079 = vadd.f32 %v1966, %v2078
    %v2080 = vpop.f32.mrf.mxu0
    %v2081 = vadd.f32 %v1968, %v2080
    %v2082 = vpop.f32.mrf.mxu0
    %v2083 = vadd.f32 %v1970, %v2082
    %v2084 = vpop.f32.mrf.mxu0
    %v2085 = vadd.f32 %v1972, %v2084
    %2086 = vmatprep.mubr.bf16.mxu0 0
    %2087 = vmatmul.mubr.bf16.gmra.mxu0 %v462
    %v2088 = vpop.f32.mrf.mxu0
    %v2089 = vadd.f32 %v1976, %v2088
    %v2090 = vpop.f32.mrf.mxu0
    %v2091 = vadd.f32 %v1978, %v2090
    %v2092 = vpop.f32.mrf.mxu0
    %v2093 = vadd.f32 %v1980, %v2092
    %v2094 = vpop.f32.mrf.mxu0
    %v2095 = vadd.f32 %v1982, %v2094
    %2096 = vmatprep.mubr.bf16.mxu0 0
    %2097 = vmatmul.mubr.bf16.gmra.mxu0 %v465
    %v2098 = vpop.f32.mrf.mxu0
    %v2099 = vadd.f32 %v1986, %v2098
    %v2100 = vpop.f32.mrf.mxu0
    %v2101 = vadd.f32 %v1988, %v2100
    %v2102 = vpop.f32.mrf.mxu0
    %v2103 = vadd.f32 %v1990, %v2102
    %v2104 = vpop.f32.mrf.mxu0
    %v2105 = vadd.f32 %v1992, %v2104
    %2106 = vmatprep.mubr.bf16.mxu0 0
    %2107 = vmatmul.mubr.bf16.gmra.mxu0 %v468
    %v2108 = vpop.f32.mrf.mxu0
    %v2109 = vadd.f32 %v1996, %v2108
    %v2110 = vpop.f32.mrf.mxu0
    %v2111 = vadd.f32 %v1998, %v2110
    %v2112 = vpop.f32.mrf.mxu0
    %v2113 = vadd.f32 %v2000, %v2112
    %v2114 = vpop.f32.mrf.mxu0
    %v2115 = vadd.f32 %v2002, %v2114
    %2116 = vmatprep.mubr.bf16.mxu0 0
    %2117 = vmatmul.mubr.bf16.gmra.mxu0 %v471
    %v2118 = vpop.f32.mrf.mxu0
    %v2119 = vadd.f32 %v2006, %v2118
    %v2120 = vpop.f32.mrf.mxu0
    %v2121 = vadd.f32 %v2008, %v2120
    %v2122 = vpop.f32.mrf.mxu0
    %v2123 = vadd.f32 %v2010, %v2122
    %v2124 = vpop.f32.mrf.mxu0
    %v2125 = vadd.f32 %v2012, %v2124
    %2126 = vmatprep.mubr.bf16.mxu0 0
    %2127 = vmatmul.mubr.bf16.gmra.mxu0 %v474
    %v2128 = vpop.f32.mrf.mxu0
    %v2129 = vadd.f32 %v2016, %v2128
    %v2130 = vpop.f32.mrf.mxu0
    %v2131 = vadd.f32 %v2018, %v2130
    %v2132 = vpop.f32.mrf.mxu0
    %v2133 = vadd.f32 %v2020, %v2132
    %v2134 = vpop.f32.mrf.mxu0
    %v2135 = vadd.f32 %v2022, %v2134
    %2136 = vdwg.mxu0
    %2137 = vmatprep.subr.bf16.mxu0 %v1138
    %2138 = vmatpush1.bf16.msra.mxu0 %v1137
    %2139 = vmatprep.subr.bf16.mxu0 %v1130
    %2140 = vmatpush1.bf16.msra.mxu0 %v1129
    %2141 = vmatprep.subr.bf16.mxu0 %v1122
    %2142 = vmatpush1.bf16.msra.mxu0 %v1121
    %2143 = vmatprep.subr.bf16.mxu0 %v1114
    %2144 = vmatpush1.bf16.msra.mxu0 %v1113
    %2145 = vmatprep.subr.bf16.mxu0 %v1106
    %2146 = vmatpush1.bf16.msra.mxu0 %v1105
    %2147 = vmatprep.subr.bf16.mxu0 %v1098
    %2148 = vmatpush1.bf16.msra.mxu0 %v1097
    %2149 = vmatprep.subr.bf16.mxu0 %v1090
    %2150 = vmatpush1.bf16.msra.mxu0 %v1089
    %2151 = vmatprep.subr.bf16.mxu0 %v1082
    %2152 = vmatpush1.bf16.msra.mxu0 %v1081
    %2153 = vmatprep.subr.bf16.mxu0 %v1202
    %2154 = vmatpush2.bf16.msra.mxu0 %v1201
    %2155 = vmatprep.subr.bf16.mxu0 %v1194
    %2156 = vmatpush2.bf16.msra.mxu0 %v1193
    %2157 = vmatprep.subr.bf16.mxu0 %v1186
    %2158 = vmatpush2.bf16.msra.mxu0 %v1185
    %2159 = vmatprep.subr.bf16.mxu0 %v1178
    %2160 = vmatpush2.bf16.msra.mxu0 %v1177
    %2161 = vmatprep.subr.bf16.mxu0 %v1170
    %2162 = vmatpush2.bf16.msra.mxu0 %v1169
    %2163 = vmatprep.subr.bf16.mxu0 %v1162
    %2164 = vmatpush2.bf16.msra.mxu0 %v1161
    %2165 = vmatprep.subr.bf16.mxu0 %v1154
    %2166 = vmatpush2.bf16.msra.mxu0 %v1153
    %2167 = vmatprep.subr.bf16.mxu0 %v1146
    %2168 = vmatpush2.bf16.msra.mxu0 %v1145
    %2169 = vmatprep.mubr.bf16.mxu0 %v452
    %2170 = vmatmul.mubr.bf16.gmra.mxu0 %v451
    %v2171 = vpop.f32.mrf.mxu0
    %v2172 = vadd.f32 %v358, %v2171
    %v2173 = vpop.f32.mrf.mxu0
    %v2174 = vadd.f32 %v362, %v2173
    %v2175 = vpop.f32.mrf.mxu0
    %v2176 = vadd.f32 %v358, %v2175
    %v2177 = vpop.f32.mrf.mxu0
    %v2178 = vadd.f32 %v362, %v2177
    %2179 = vmatprep.mubr.bf16.mxu0 %v455
    %2180 = vmatmul.mubr.bf16.gmra.mxu0 %v454
    %v2181 = vpop.f32.mrf.mxu0
    %v2182 = vadd.f32 %v358, %v2181
    %v2183 = vpop.f32.mrf.mxu0
    %v2184 = vadd.f32 %v362, %v2183
    %v2185 = vpop.f32.mrf.mxu0
    %v2186 = vadd.f32 %v358, %v2185
    %v2187 = vpop.f32.mrf.mxu0
    %v2188 = vadd.f32 %v362, %v2187
    %2189 = vmatprep.mubr.bf16.mxu0 %v458
    %2190 = vmatmul.mubr.bf16.gmra.mxu0 %v457
    %v2191 = vpop.f32.mrf.mxu0
    %v2192 = vadd.f32 %v358, %v2191
    %v2193 = vpop.f32.mrf.mxu0
    %v2194 = vadd.f32 %v362, %v2193
    %v2195 = vpop.f32.mrf.mxu0
    %v2196 = vadd.f32 %v358, %v2195
    %v2197 = vpop.f32.mrf.mxu0
    %v2198 = vadd.f32 %v362, %v2197
    %2199 = vmatprep.mubr.bf16.mxu0 %v461
    %2200 = vmatmul.mubr.bf16.gmra.mxu0 %v460
    %v2201 = vpop.f32.mrf.mxu0
    %v2202 = vadd.f32 %v358, %v2201
    %v2203 = vpop.f32.mrf.mxu0
    %v2204 = vadd.f32 %v362, %v2203
    %v2205 = vpop.f32.mrf.mxu0
    %v2206 = vadd.f32 %v358, %v2205
    %v2207 = vpop.f32.mrf.mxu0
    %v2208 = vadd.f32 %v362, %v2207
    %2209 = vmatprep.mubr.bf16.mxu0 %v464
    %2210 = vmatmul.mubr.bf16.gmra.mxu0 %v463
    %v2211 = vpop.f32.mrf.mxu0
    %v2212 = vadd.f32 %v358, %v2211
    %v2213 = vpop.f32.mrf.mxu0
    %v2214 = vadd.f32 %v362, %v2213
    %v2215 = vpop.f32.mrf.mxu0
    %v2216 = vadd.f32 %v358, %v2215
    %v2217 = vpop.f32.mrf.mxu0
    %v2218 = vadd.f32 %v362, %v2217
    %2219 = vmatprep.mubr.bf16.mxu0 %v467
    %2220 = vmatmul.mubr.bf16.gmra.mxu0 %v466
    %v2221 = vpop.f32.mrf.mxu0
    %v2222 = vadd.f32 %v358, %v2221
    %v2223 = vpop.f32.mrf.mxu0
    %v2224 = vadd.f32 %v362, %v2223
    %v2225 = vpop.f32.mrf.mxu0
    %v2226 = vadd.f32 %v358, %v2225
    %v2227 = vpop.f32.mrf.mxu0
    %v2228 = vadd.f32 %v362, %v2227
    %2229 = vmatprep.mubr.bf16.mxu0 %v470
    %2230 = vmatmul.mubr.bf16.gmra.mxu0 %v469
    %v2231 = vpop.f32.mrf.mxu0
    %v2232 = vadd.f32 %v358, %v2231
    %v2233 = vpop.f32.mrf.mxu0
    %v2234 = vadd.f32 %v362, %v2233
    %v2235 = vpop.f32.mrf.mxu0
    %v2236 = vadd.f32 %v358, %v2235
    %v2237 = vpop.f32.mrf.mxu0
    %v2238 = vadd.f32 %v362, %v2237
    %2239 = vmatprep.mubr.bf16.mxu0 %v473
    %2240 = vmatmul.mubr.bf16.gmra.mxu0 %v472
    %v2241 = vpop.f32.mrf.mxu0
    %v2242 = vadd.f32 %v358, %v2241
    %v2243 = vpop.f32.mrf.mxu0
    %v2244 = vadd.f32 %v362, %v2243
    %v2245 = vpop.f32.mrf.mxu0
    %v2246 = vadd.f32 %v358, %v2245
    %v2247 = vpop.f32.mrf.mxu0
    %v2248 = vadd.f32 %v362, %v2247
    %2249 = vdwg.mxu0
    %2250 = vmatprep.subr.bf16.mxu0 %v1266
    %2251 = vmatpush1.bf16.msra.mxu0 %v1265
    %2252 = vmatprep.subr.bf16.mxu0 %v1258
    %2253 = vmatpush1.bf16.msra.mxu0 %v1257
    %2254 = vmatprep.subr.bf16.mxu0 %v1250
    %2255 = vmatpush1.bf16.msra.mxu0 %v1249
    %2256 = vmatprep.subr.bf16.mxu0 %v1242
    %2257 = vmatpush1.bf16.msra.mxu0 %v1241
    %2258 = vmatprep.subr.bf16.mxu0 %v1234
    %2259 = vmatpush1.bf16.msra.mxu0 %v1233
    %2260 = vmatprep.subr.bf16.mxu0 %v1226
    %2261 = vmatpush1.bf16.msra.mxu0 %v1225
    %2262 = vmatprep.subr.bf16.mxu0 %v1218
    %2263 = vmatpush1.bf16.msra.mxu0 %v1217
    %2264 = vmatprep.subr.bf16.mxu0 %v1210
    %2265 = vmatpush1.bf16.msra.mxu0 %v1209
    %2266 = vmatprep.subr.bf16.mxu0 0
    %2267 = vmatpush2.bf16.msra.mxu0 0
    %2268 = vmatprep.subr.bf16.mxu0 0
    %2269 = vmatpush2.bf16.msra.mxu0 0
    %2270 = vmatprep.subr.bf16.mxu0 0
    %2271 = vmatpush2.bf16.msra.mxu0 0
    %2272 = vmatprep.subr.bf16.mxu0 0
    %2273 = vmatpush2.bf16.msra.mxu0 0
    %2274 = vmatprep.subr.bf16.mxu0 0
    %2275 = vmatpush2.bf16.msra.mxu0 0
    %2276 = vmatprep.subr.bf16.mxu0 0
    %2277 = vmatpush2.bf16.msra.mxu0 0
    %2278 = vmatprep.subr.bf16.mxu0 0
    %2279 = vmatpush2.bf16.msra.mxu0 0
    %2280 = vmatprep.subr.bf16.mxu0 0
    %2281 = vmatpush2.bf16.msra.mxu0 0
    %2282 = vmatprep.mubr.bf16.mxu0 0
    %2283 = vmatmul.mubr.bf16.gmra.mxu0 %v453
    %v2284 = vpop.f32.mrf.mxu0
    %v2285 = vadd.f32 %v2172, %v2284
    %v2286 = vpop.f32.mrf.mxu0
    %v2287 = vadd.f32 %v2174, %v2286
    %v2288 = vpop.f32.mrf.mxu0
    %v2289 = vadd.f32 %v2176, %v2288
    %v2290 = vpop.f32.mrf.mxu0
    %v2291 = vadd.f32 %v2178, %v2290
    %2292 = vmatprep.mubr.bf16.mxu0 0
    %2293 = vmatmul.mubr.bf16.gmra.mxu0 %v456
    %v2294 = vpop.f32.mrf.mxu0
    %v2295 = vadd.f32 %v2182, %v2294
    %v2296 = vpop.f32.mrf.mxu0
    %v2297 = vadd.f32 %v2184, %v2296
    %v2298 = vpop.f32.mrf.mxu0
    %v2299 = vadd.f32 %v2186, %v2298
    %v2300 = vpop.f32.mrf.mxu0
    %v2301 = vadd.f32 %v2188, %v2300
    %2302 = vmatprep.mubr.bf16.mxu0 0
    %2303 = vmatmul.mubr.bf16.gmra.mxu0 %v459
    %v2304 = vpop.f32.mrf.mxu0
    %v2305 = vadd.f32 %v2192, %v2304
    %v2306 = vpop.f32.mrf.mxu0
    %v2307 = vadd.f32 %v2194, %v2306
    %v2308 = vpop.f32.mrf.mxu0
    %v2309 = vadd.f32 %v2196, %v2308
    %v2310 = vpop.f32.mrf.mxu0
    %v2311 = vadd.f32 %v2198, %v2310
    %2312 = vmatprep.mubr.bf16.mxu0 0
    %2313 = vmatmul.mubr.bf16.gmra.mxu0 %v462
    %v2314 = vpop.f32.mrf.mxu0
    %v2315 = vadd.f32 %v2202, %v2314
    %v2316 = vpop.f32.mrf.mxu0
    %v2317 = vadd.f32 %v2204, %v2316
    %v2318 = vpop.f32.mrf.mxu0
    %v2319 = vadd.f32 %v2206, %v2318
    %v2320 = vpop.f32.mrf.mxu0
    %v2321 = vadd.f32 %v2208, %v2320
    %2322 = vmatprep.mubr.bf16.mxu0 0
    %2323 = vmatmul.mubr.bf16.gmra.mxu0 %v465
    %v2324 = vpop.f32.mrf.mxu0
    %v2325 = vadd.f32 %v2212, %v2324
    %v2326 = vpop.f32.mrf.mxu0
    %v2327 = vadd.f32 %v2214, %v2326
    %v2328 = vpop.f32.mrf.mxu0
    %v2329 = vadd.f32 %v2216, %v2328
    %v2330 = vpop.f32.mrf.mxu0
    %v2331 = vadd.f32 %v2218, %v2330
    %2332 = vmatprep.mubr.bf16.mxu0 0
    %2333 = vmatmul.mubr.bf16.gmra.mxu0 %v468
    %v2334 = vpop.f32.mrf.mxu0
    %v2335 = vadd.f32 %v2222, %v2334
    %v2336 = vpop.f32.mrf.mxu0
    %v2337 = vadd.f32 %v2224, %v2336
    %v2338 = vpop.f32.mrf.mxu0
    %v2339 = vadd.f32 %v2226, %v2338
    %v2340 = vpop.f32.mrf.mxu0
    %v2341 = vadd.f32 %v2228, %v2340
    %2342 = vmatprep.mubr.bf16.mxu0 0
    %2343 = vmatmul.mubr.bf16.gmra.mxu0 %v471
    %v2344 = vpop.f32.mrf.mxu0
    %v2345 = vadd.f32 %v2232, %v2344
    %v2346 = vpop.f32.mrf.mxu0
    %v2347 = vadd.f32 %v2234, %v2346
    %v2348 = vpop.f32.mrf.mxu0
    %v2349 = vadd.f32 %v2236, %v2348
    %v2350 = vpop.f32.mrf.mxu0
    %v2351 = vadd.f32 %v2238, %v2350
    %2352 = vmatprep.mubr.bf16.mxu0 0
    %2353 = vmatmul.mubr.bf16.gmra.mxu0 %v474
    %v2354 = vpop.f32.mrf.mxu0
    %v2355 = vadd.f32 %v2242, %v2354
    %v2356 = vpop.f32.mrf.mxu0
    %v2357 = vadd.f32 %v2244, %v2356
    %v2358 = vpop.f32.mrf.mxu0
    %v2359 = vadd.f32 %v2246, %v2358
    %v2360 = vpop.f32.mrf.mxu0
    %v2361 = vadd.f32 %v2248, %v2360
    %2362 = vdwg.mxu0
    %v2363 = vmax.f32 %v1607, 0.0
    %v2364 = vmax.f32 %v1609, 0.0
    %v2365 = vmax.f32 %v1833, 0.0
    %v2366 = vmax.f32 %v1835, 0.0
    %v2367 = vmax.f32 %v2059, 0.0
    %v2368 = vmax.f32 %v2061, 0.0
    %v2369 = vmax.f32 %v2285, 0.0
    %v2370 = vmax.f32 %v2287, 0.0
    %v2371 = vmax.f32 %v1611, 0.0
    %v2372 = vmax.f32 %v1613, 0.0
    %v2373 = vmax.f32 %v1837, 0.0
    %v2374 = vmax.f32 %v1839, 0.0
    %v2375 = vmax.f32 %v2063, 0.0
    %v2376 = vmax.f32 %v2065, 0.0
    %v2377 = vmax.f32 %v2289, 0.0
    %v2378 = vmax.f32 %v2291, 0.0
    %v2379 = vmax.f32 %v1617, 0.0
    %v2380 = vmax.f32 %v1619, 0.0
    %v2381 = vmax.f32 %v1843, 0.0
    %v2382 = vmax.f32 %v1845, 0.0
    %v2383 = vmax.f32 %v2069, 0.0
    %v2384 = vmax.f32 %v2071, 0.0
    %v2385 = vmax.f32 %v2295, 0.0
    %v2386 = vmax.f32 %v2297, 0.0
    %v2387 = vmax.f32 %v1621, 0.0
    %v2388 = vmax.f32 %v1623, 0.0
    %v2389 = vmax.f32 %v1847, 0.0
    %v2390 = vmax.f32 %v1849, 0.0
    %v2391 = vmax.f32 %v2073, 0.0
    %v2392 = vmax.f32 %v2075, 0.0
    %v2393 = vmax.f32 %v2299, 0.0
    %v2394 = vmax.f32 %v2301, 0.0
    %v2395 = vmax.f32 %v1627, 0.0
    %v2396 = vmax.f32 %v1629, 0.0
    %v2397 = vmax.f32 %v1853, 0.0
    %v2398 = vmax.f32 %v1855, 0.0
    %v2399 = vmax.f32 %v2079, 0.0
    %v2400 = vmax.f32 %v2081, 0.0
    %v2401 = vmax.f32 %v2305, 0.0
    %v2402 = vmax.f32 %v2307, 0.0
    %v2403 = vmax.f32 %v1631, 0.0
    %v2404 = vmax.f32 %v1633, 0.0
    %v2405 = vmax.f32 %v1857, 0.0
    %v2406 = vmax.f32 %v1859, 0.0
    %v2407 = vmax.f32 %v2083, 0.0
    %v2408 = vmax.f32 %v2085, 0.0
    %v2409 = vmax.f32 %v2309, 0.0
    %v2410 = vmax.f32 %v2311, 0.0
    %v2411 = vmax.f32 %v1637, 0.0
    %v2412 = vmax.f32 %v1639, 0.0
    %v2413 = vmax.f32 %v1863, 0.0
    %v2414 = vmax.f32 %v1865, 0.0
    %v2415 = vmax.f32 %v2089, 0.0
    %v2416 = vmax.f32 %v2091, 0.0
    %v2417 = vmax.f32 %v2315, 0.0
    %v2418 = vmax.f32 %v2317, 0.0
    %v2419 = vmax.f32 %v1641, 0.0
    %v2420 = vmax.f32 %v1643, 0.0
    %v2421 = vmax.f32 %v1867, 0.0
    %v2422 = vmax.f32 %v1869, 0.0
    %v2423 = vmax.f32 %v2093, 0.0
    %v2424 = vmax.f32 %v2095, 0.0
    %v2425 = vmax.f32 %v2319, 0.0
    %v2426 = vmax.f32 %v2321, 0.0
    %v2427 = vmax.f32 %v1647, 0.0
    %v2428 = vmax.f32 %v1649, 0.0
    %v2429 = vmax.f32 %v1873, 0.0
    %v2430 = vmax.f32 %v1875, 0.0
    %v2431 = vmax.f32 %v2099, 0.0
    %v2432 = vmax.f32 %v2101, 0.0
    %v2433 = vmax.f32 %v2325, 0.0
    %v2434 = vmax.f32 %v2327, 0.0
    %v2435 = vmax.f32 %v1651, 0.0
    %v2436 = vmax.f32 %v1653, 0.0
    %v2437 = vmax.f32 %v1877, 0.0
    %v2438 = vmax.f32 %v1879, 0.0
    %v2439 = vmax.f32 %v2103, 0.0
    %v2440 = vmax.f32 %v2105, 0.0
    %v2441 = vmax.f32 %v2329, 0.0
    %v2442 = vmax.f32 %v2331, 0.0
    %v2443 = vmax.f32 %v1657, 0.0
    %v2444 = vmax.f32 %v1659, 0.0
    %v2445 = vmax.f32 %v1883, 0.0
    %v2446 = vmax.f32 %v1885, 0.0
    %v2447 = vmax.f32 %v2109, 0.0
    %v2448 = vmax.f32 %v2111, 0.0
    %v2449 = vmax.f32 %v2335, 0.0
    %v2450 = vmax.f32 %v2337, 0.0
    %v2451 = vmax.f32 %v1661, 0.0
    %v2452 = vmax.f32 %v1663, 0.0
    %v2453 = vmax.f32 %v1887, 0.0
    %v2454 = vmax.f32 %v1889, 0.0
    %v2455 = vmax.f32 %v2113, 0.0
    %v2456 = vmax.f32 %v2115, 0.0
    %v2457 = vmax.f32 %v2339, 0.0
    %v2458 = vmax.f32 %v2341, 0.0
    %v2459 = vmax.f32 %v1667, 0.0
    %v2460 = vmax.f32 %v1669, 0.0
    %v2461 = vmax.f32 %v1893, 0.0
    %v2462 = vmax.f32 %v1895, 0.0
    %v2463 = vmax.f32 %v2119, 0.0
    %v2464 = vmax.f32 %v2121, 0.0
    %v2465 = vmax.f32 %v2345, 0.0
    %v2466 = vmax.f32 %v2347, 0.0
    %v2467 = vmax.f32 %v1671, 0.0
    %v2468 = vmax.f32 %v1673, 0.0
    %v2469 = vmax.f32 %v1897, 0.0
    %v2470 = vmax.f32 %v1899, 0.0
    %v2471 = vmax.f32 %v2123, 0.0
    %v2472 = vmax.f32 %v2125, 0.0
    %v2473 = vmax.f32 %v2349, 0.0
    %v2474 = vmax.f32 %v2351, 0.0
    %v2475 = vmax.f32 %v1677, 0.0
    %v2476 = vmax.f32 %v1679, 0.0
    %v2477 = vmax.f32 %v1903, 0.0
    %v2478 = vmax.f32 %v1905, 0.0
    %v2479 = vmax.f32 %v2129, 0.0
    %v2480 = vmax.f32 %v2131, 0.0
    %v2481 = vmax.f32 %v2355, 0.0
    %v2482 = vmax.f32 %v2357, 0.0
    %v2483 = vmax.f32 %v1681, 0.0
    %v2484 = vmax.f32 %v1683, 0.0
    %v2485 = vmax.f32 %v1907, 0.0
    %v2486 = vmax.f32 %v1909, 0.0
    %v2487 = vmax.f32 %v2133, 0.0
    %v2488 = vmax.f32 %v2135, 0.0
    %v2489 = vmax.f32 %v2359, 0.0
    %v2490 = vmax.f32 %v2361, 0.0
    %v2491 = vpack.c.bf16 %v2371, %v2363
    %v2492 = vpack.c.bf16 %v2372, %v2364
    %v2493 = vpack.c.bf16 %v2373, %v2365
    %v2494 = vpack.c.bf16 %v2374, %v2366
    %v2495 = vpack.c.bf16 %v2375, %v2367
    %v2496 = vpack.c.bf16 %v2376, %v2368
    %v2497 = vpack.c.bf16 %v2377, %v2369
    %v2498 = vpack.c.bf16 %v2378, %v2370
    %v2499 = vpack.c.bf16 %v2387, %v2379
    %v2500 = vpack.c.bf16 %v2388, %v2380
    %v2501 = vpack.c.bf16 %v2389, %v2381
    %v2502 = vpack.c.bf16 %v2390, %v2382
    %v2503 = vpack.c.bf16 %v2391, %v2383
    %v2504 = vpack.c.bf16 %v2392, %v2384
    %v2505 = vpack.c.bf16 %v2393, %v2385
    %v2506 = vpack.c.bf16 %v2394, %v2386
    %v2507 = vpack.c.bf16 %v2403, %v2395
    %v2508 = vpack.c.bf16 %v2404, %v2396
    %v2509 = vpack.c.bf16 %v2405, %v2397
    %v2510 = vpack.c.bf16 %v2406, %v2398
    %v2511 = vpack.c.bf16 %v2407, %v2399
    %v2512 = vpack.c.bf16 %v2408, %v2400
    %v2513 = vpack.c.bf16 %v2409, %v2401
    %v2514 = vpack.c.bf16 %v2410, %v2402
    %v2515 = vpack.c.bf16 %v2419, %v2411
    %v2516 = vpack.c.bf16 %v2420, %v2412
    %v2517 = vpack.c.bf16 %v2421, %v2413
    %v2518 = vpack.c.bf16 %v2422, %v2414
    %v2519 = vpack.c.bf16 %v2423, %v2415
    %v2520 = vpack.c.bf16 %v2424, %v2416
    %v2521 = vpack.c.bf16 %v2425, %v2417
    %v2522 = vpack.c.bf16 %v2426, %v2418
    %v2523 = vpack.c.bf16 %v2435, %v2427
    %v2524 = vpack.c.bf16 %v2436, %v2428
    %v2525 = vpack.c.bf16 %v2437, %v2429
    %v2526 = vpack.c.bf16 %v2438, %v2430
    %v2527 = vpack.c.bf16 %v2439, %v2431
    %v2528 = vpack.c.bf16 %v2440, %v2432
    %v2529 = vpack.c.bf16 %v2441, %v2433
    %v2530 = vpack.c.bf16 %v2442, %v2434
    %v2531 = vpack.c.bf16 %v2451, %v2443
    %v2532 = vpack.c.bf16 %v2452, %v2444
    %v2533 = vpack.c.bf16 %v2453, %v2445
    %v2534 = vpack.c.bf16 %v2454, %v2446
    %v2535 = vpack.c.bf16 %v2455, %v2447
    %v2536 = vpack.c.bf16 %v2456, %v2448
    %v2537 = vpack.c.bf16 %v2457, %v2449
    %v2538 = vpack.c.bf16 %v2458, %v2450
    %v2539 = vpack.c.bf16 %v2467, %v2459
    %v2540 = vpack.c.bf16 %v2468, %v2460
    %v2541 = vpack.c.bf16 %v2469, %v2461
    %v2542 = vpack.c.bf16 %v2470, %v2462
    %v2543 = vpack.c.bf16 %v2471, %v2463
    %v2544 = vpack.c.bf16 %v2472, %v2464
    %v2545 = vpack.c.bf16 %v2473, %v2465
    %v2546 = vpack.c.bf16 %v2474, %v2466
    %v2547 = vpack.c.bf16 %v2483, %v2475
    %v2548 = vpack.c.bf16 %v2484, %v2476
    %v2549 = vpack.c.bf16 %v2485, %v2477
    %v2550 = vpack.c.bf16 %v2486, %v2478
    %v2551 = vpack.c.bf16 %v2487, %v2479
    %v2552 = vpack.c.bf16 %v2488, %v2480
    %v2553 = vpack.c.bf16 %v2489, %v2481
    %v2554 = vpack.c.bf16 %v2490, %v2482
    %v2619 = vunpack.c.l.b16 %v2491
    %v2620 = vunpack.c.l.b16 %v2492
    %v2621 = vunpack.c.l.b16 %v2493
    %v2622 = vunpack.c.l.b16 %v2494
    %v2623 = vunpack.c.l.b16 %v2495
    %v2624 = vunpack.c.l.b16 %v2496
    %v2625 = vunpack.c.l.b16 %v2497
    %v2626 = vunpack.c.l.b16 %v2498
    %v2627 = vunpack.c.h.b16 %v2491
    %v2628 = vunpack.c.h.b16 %v2492
    %v2629 = vunpack.c.h.b16 %v2493
    %v2630 = vunpack.c.h.b16 %v2494
    %v2631 = vunpack.c.h.b16 %v2495
    %v2632 = vunpack.c.h.b16 %v2496
    %v2633 = vunpack.c.h.b16 %v2497
    %v2634 = vunpack.c.h.b16 %v2498
    %v2635 = vunpack.c.l.b16 %v2499
    %v2636 = vunpack.c.l.b16 %v2500
    %v2637 = vunpack.c.l.b16 %v2501
    %v2638 = vunpack.c.l.b16 %v2502
    %v2639 = vunpack.c.l.b16 %v2503
    %v2640 = vunpack.c.l.b16 %v2504
    %v2641 = vunpack.c.l.b16 %v2505
    %v2642 = vunpack.c.l.b16 %v2506
    %v2643 = vunpack.c.h.b16 %v2499
    %v2644 = vunpack.c.h.b16 %v2500
    %v2645 = vunpack.c.h.b16 %v2501
    %v2646 = vunpack.c.h.b16 %v2502
    %v2647 = vunpack.c.h.b16 %v2503
    %v2648 = vunpack.c.h.b16 %v2504
    %v2649 = vunpack.c.h.b16 %v2505
    %v2650 = vunpack.c.h.b16 %v2506
    %v2651 = vunpack.c.l.b16 %v2507
    %v2652 = vunpack.c.l.b16 %v2508
    %v2653 = vunpack.c.l.b16 %v2509
    %v2654 = vunpack.c.l.b16 %v2510
    %v2655 = vunpack.c.l.b16 %v2511
    %v2656 = vunpack.c.l.b16 %v2512
    %v2657 = vunpack.c.l.b16 %v2513
    %v2658 = vunpack.c.l.b16 %v2514
    %v2659 = vunpack.c.h.b16 %v2507
    %v2660 = vunpack.c.h.b16 %v2508
    %v2661 = vunpack.c.h.b16 %v2509
    %v2662 = vunpack.c.h.b16 %v2510
    %v2663 = vunpack.c.h.b16 %v2511
    %v2664 = vunpack.c.h.b16 %v2512
    %v2665 = vunpack.c.h.b16 %v2513
    %v2666 = vunpack.c.h.b16 %v2514
    %v2667 = vunpack.c.l.b16 %v2515
    %v2668 = vunpack.c.l.b16 %v2516
    %v2669 = vunpack.c.l.b16 %v2517
    %v2670 = vunpack.c.l.b16 %v2518
    %v2671 = vunpack.c.l.b16 %v2519
    %v2672 = vunpack.c.l.b16 %v2520
    %v2673 = vunpack.c.l.b16 %v2521
    %v2674 = vunpack.c.l.b16 %v2522
    %v2675 = vunpack.c.h.b16 %v2515
    %v2676 = vunpack.c.h.b16 %v2516
    %v2677 = vunpack.c.h.b16 %v2517
    %v2678 = vunpack.c.h.b16 %v2518
    %v2679 = vunpack.c.h.b16 %v2519
    %v2680 = vunpack.c.h.b16 %v2520
    %v2681 = vunpack.c.h.b16 %v2521
    %v2682 = vunpack.c.h.b16 %v2522
    %v2683 = vunpack.c.l.b16 %v2523
    %v2684 = vunpack.c.l.b16 %v2524
    %v2685 = vunpack.c.l.b16 %v2525
    %v2686 = vunpack.c.l.b16 %v2526
    %v2687 = vunpack.c.l.b16 %v2527
    %v2688 = vunpack.c.l.b16 %v2528
    %v2689 = vunpack.c.l.b16 %v2529
    %v2690 = vunpack.c.l.b16 %v2530
    %v2691 = vunpack.c.h.b16 %v2523
    %v2692 = vunpack.c.h.b16 %v2524
    %v2693 = vunpack.c.h.b16 %v2525
    %v2694 = vunpack.c.h.b16 %v2526
    %v2695 = vunpack.c.h.b16 %v2527
    %v2696 = vunpack.c.h.b16 %v2528
    %v2697 = vunpack.c.h.b16 %v2529
    %v2698 = vunpack.c.h.b16 %v2530
    %v2699 = vunpack.c.l.b16 %v2531
    %v2700 = vunpack.c.l.b16 %v2532
    %v2701 = vunpack.c.l.b16 %v2533
    %v2702 = vunpack.c.l.b16 %v2534
    %v2703 = vunpack.c.l.b16 %v2535
    %v2704 = vunpack.c.l.b16 %v2536
    %v2705 = vunpack.c.l.b16 %v2537
    %v2706 = vunpack.c.l.b16 %v2538
    %v2707 = vunpack.c.h.b16 %v2531
    %v2708 = vunpack.c.h.b16 %v2532
    %v2709 = vunpack.c.h.b16 %v2533
    %v2710 = vunpack.c.h.b16 %v2534
    %v2711 = vunpack.c.h.b16 %v2535
    %v2712 = vunpack.c.h.b16 %v2536
    %v2713 = vunpack.c.h.b16 %v2537
    %v2714 = vunpack.c.h.b16 %v2538
    %v2715 = vunpack.c.l.b16 %v2539
    %v2716 = vunpack.c.l.b16 %v2540
    %v2717 = vunpack.c.l.b16 %v2541
    %v2718 = vunpack.c.l.b16 %v2542
    %v2719 = vunpack.c.l.b16 %v2543
    %v2720 = vunpack.c.l.b16 %v2544
    %v2721 = vunpack.c.l.b16 %v2545
    %v2722 = vunpack.c.l.b16 %v2546
    %v2723 = vunpack.c.h.b16 %v2539
    %v2724 = vunpack.c.h.b16 %v2540
    %v2725 = vunpack.c.h.b16 %v2541
    %v2726 = vunpack.c.h.b16 %v2542
    %v2727 = vunpack.c.h.b16 %v2543
    %v2728 = vunpack.c.h.b16 %v2544
    %v2729 = vunpack.c.h.b16 %v2545
    %v2730 = vunpack.c.h.b16 %v2546
    %v2731 = vunpack.c.l.b16 %v2547
    %v2732 = vunpack.c.l.b16 %v2548
    %v2733 = vunpack.c.l.b16 %v2549
    %v2734 = vunpack.c.l.b16 %v2550
    %v2735 = vunpack.c.l.b16 %v2551
    %v2736 = vunpack.c.l.b16 %v2552
    %v2737 = vunpack.c.l.b16 %v2553
    %v2738 = vunpack.c.l.b16 %v2554
    %v2739 = vunpack.c.h.b16 %v2547
    %v2740 = vunpack.c.h.b16 %v2548
    %v2741 = vunpack.c.h.b16 %v2549
    %v2742 = vunpack.c.h.b16 %v2550
    %v2743 = vunpack.c.h.b16 %v2551
    %v2744 = vunpack.c.h.b16 %v2552
    %v2745 = vunpack.c.h.b16 %v2553
    %v2746 = vunpack.c.h.b16 %v2554
    %v2747 = vpack.c.b16 %v2620, %v2619
    %v2748 = vpack.c.b16 %v2622, %v2621
    %v2749 = vpack.c.b16 %v2624, %v2623
    %v2750 = vpack.c.b16 %v2626, %v2625
    %v2751 = vpack.c.b16 %v2628, %v2627
    %v2752 = vpack.c.b16 %v2630, %v2629
    %v2753 = vpack.c.b16 %v2632, %v2631
    %v2754 = vpack.c.b16 %v2634, %v2633
    %v2755 = vpack.c.b16 %v2636, %v2635
    %v2756 = vpack.c.b16 %v2638, %v2637
    %v2757 = vpack.c.b16 %v2640, %v2639
    %v2758 = vpack.c.b16 %v2642, %v2641
    %v2759 = vpack.c.b16 %v2644, %v2643
    %v2760 = vpack.c.b16 %v2646, %v2645
    %v2761 = vpack.c.b16 %v2648, %v2647
    %v2762 = vpack.c.b16 %v2650, %v2649
    %v2763 = vpack.c.b16 %v2652, %v2651
    %v2764 = vpack.c.b16 %v2654, %v2653
    %v2765 = vpack.c.b16 %v2656, %v2655
    %v2766 = vpack.c.b16 %v2658, %v2657
    %v2767 = vpack.c.b16 %v2660, %v2659
    %v2768 = vpack.c.b16 %v2662, %v2661
    %v2769 = vpack.c.b16 %v2664, %v2663
    %v2770 = vpack.c.b16 %v2666, %v2665
    %v2771 = vpack.c.b16 %v2668, %v2667
    %v2772 = vpack.c.b16 %v2670, %v2669
    %v2773 = vpack.c.b16 %v2672, %v2671
    %v2774 = vpack.c.b16 %v2674, %v2673
    %v2775 = vpack.c.b16 %v2676, %v2675
    %v2776 = vpack.c.b16 %v2678, %v2677
    %v2777 = vpack.c.b16 %v2680, %v2679
    %v2778 = vpack.c.b16 %v2682, %v2681
    %v2779 = vpack.c.b16 %v2684, %v2683
    %v2780 = vpack.c.b16 %v2686, %v2685
    %v2781 = vpack.c.b16 %v2688, %v2687
    %v2782 = vpack.c.b16 %v2690, %v2689
    %v2783 = vpack.c.b16 %v2692, %v2691
    %v2784 = vpack.c.b16 %v2694, %v2693
    %v2785 = vpack.c.b16 %v2696, %v2695
    %v2786 = vpack.c.b16 %v2698, %v2697
    %v2787 = vpack.c.b16 %v2700, %v2699
    %v2788 = vpack.c.b16 %v2702, %v2701
    %v2789 = vpack.c.b16 %v2704, %v2703
    %v2790 = vpack.c.b16 %v2706, %v2705
    %v2791 = vpack.c.b16 %v2708, %v2707
    %v2792 = vpack.c.b16 %v2710, %v2709
    %v2793 = vpack.c.b16 %v2712, %v2711
    %v2794 = vpack.c.b16 %v2714, %v2713
    %v2795 = vpack.c.b16 %v2716, %v2715
    %v2796 = vpack.c.b16 %v2718, %v2717
    %v2797 = vpack.c.b16 %v2720, %v2719
    %v2798 = vpack.c.b16 %v2722, %v2721
    %v2799 = vpack.c.b16 %v2724, %v2723
    %v2800 = vpack.c.b16 %v2726, %v2725
    %v2801 = vpack.c.b16 %v2728, %v2727
    %v2802 = vpack.c.b16 %v2730, %v2729
    %v2803 = vpack.c.b16 %v2732, %v2731
    %v2804 = vpack.c.b16 %v2734, %v2733
    %v2805 = vpack.c.b16 %v2736, %v2735
    %v2806 = vpack.c.b16 %v2738, %v2737
    %v2807 = vpack.c.b16 %v2740, %v2739
    %v2808 = vpack.c.b16 %v2742, %v2741
    %v2809 = vpack.c.b16 %v2744, %v2743
    %v2810 = vpack.c.b16 %v2746, %v2745
    %2875 = vst [vmem:[#allocation2] sm:$0xff] %v2747
    %2876 = vst [vmem:[#allocation2 + $0x8] sm:$0xff] %v2748
    %2877 = vst [vmem:[#allocation2 + $0x10] sm:$0xff] %v2749
    %2878 = vst [vmem:[#allocation2 + $0x18] sm:$0xff] %v2750
    %2879 = vst [vmem:[#allocation2 + $0x20] sm:$0xff] %v2751
    %2880 = vst [vmem:[#allocation2 + $0x28] sm:$0xff] %v2752
    %2881 = vst [vmem:[#allocation2 + $0x30] sm:$0xff] %v2753
    %2882 = vst [vmem:[#allocation2 + $0x38] sm:$0xff] %v2754
    %2883 = vst [vmem:[#allocation2 + $0x40] sm:$0xff] %v2755
    %2884 = vst [vmem:[#allocation2 + $0x48] sm:$0xff] %v2756
    %2885 = vst [vmem:[#allocation2 + $0x50] sm:$0xff] %v2757
    %2886 = vst [vmem:[#allocation2 + $0x58] sm:$0xff] %v2758
    %2887 = vst [vmem:[#allocation2 + $0x60] sm:$0xff] %v2759
    %2888 = vst [vmem:[#allocation2 + $0x68] sm:$0xff] %v2760
    %2889 = vst [vmem:[#allocation2 + $0x70] sm:$0xff] %v2761
    %2890 = vst [vmem:[#allocation2 + $0x78] sm:$0xff] %v2762
    %2891 = vst [vmem:[#allocation2 + $0x80] sm:$0xff] %v2763
    %2892 = vst [vmem:[#allocation2 + $0x88] sm:$0xff] %v2764
    %2893 = vst [vmem:[#allocation2 + $0x90] sm:$0xff] %v2765
    %2894 = vst [vmem:[#allocation2 + $0x98] sm:$0xff] %v2766
    %2895 = vst [vmem:[#allocation2 + $0xa0] sm:$0xff] %v2767
    %2896 = vst [vmem:[#allocation2 + $0xa8] sm:$0xff] %v2768
    %2897 = vst [vmem:[#allocation2 + $0xb0] sm:$0xff] %v2769
    %2898 = vst [vmem:[#allocation2 + $0xb8] sm:$0xff] %v2770
    %2899 = vst [vmem:[#allocation2 + $0xc0] sm:$0xff] %v2771
    %2900 = vst [vmem:[#allocation2 + $0xc8] sm:$0xff] %v2772
    %2901 = vst [vmem:[#allocation2 + $0xd0] sm:$0xff] %v2773
    %2902 = vst [vmem:[#allocation2 + $0xd8] sm:$0xff] %v2774
    %2903 = vst [vmem:[#allocation2 + $0xe0] sm:$0xff] %v2775
    %2904 = vst [vmem:[#allocation2 + $0xe8] sm:$0xff] %v2776
    %2905 = vst [vmem:[#allocation2 + $0xf0] sm:$0xff] %v2777
    %2906 = vst [vmem:[#allocation2 + $0xf8] sm:$0xff] %v2778
    %2907 = vst [vmem:[#allocation2 + $0x100] sm:$0xff] %v2779
    %2908 = vst [vmem:[#allocation2 + $0x108] sm:$0xff] %v2780
    %2909 = vst [vmem:[#allocation2 + $0x110] sm:$0xff] %v2781
    %2910 = vst [vmem:[#allocation2 + $0x118] sm:$0xff] %v2782
    %2911 = vst [vmem:[#allocation2 + $0x120] sm:$0xff] %v2783
    %2912 = vst [vmem:[#allocation2 + $0x128] sm:$0xff] %v2784
    %2913 = vst [vmem:[#allocation2 + $0x130] sm:$0xff] %v2785
    %2914 = vst [vmem:[#allocation2 + $0x138] sm:$0xff] %v2786
    %2915 = vst [vmem:[#allocation2 + $0x140] sm:$0xff] %v2787
    %2916 = vst [vmem:[#allocation2 + $0x148] sm:$0xff] %v2788
    %2917 = vst [vmem:[#allocation2 + $0x150] sm:$0xff] %v2789
    %2918 = vst [vmem:[#allocation2 + $0x158] sm:$0xff] %v2790
    %2919 = vst [vmem:[#allocation2 + $0x160] sm:$0xff] %v2791
    %2920 = vst [vmem:[#allocation2 + $0x168] sm:$0xff] %v2792
    %2921 = vst [vmem:[#allocation2 + $0x170] sm:$0xff] %v2793
    %2922 = vst [vmem:[#allocation2 + $0x178] sm:$0xff] %v2794
    %2923 = vst [vmem:[#allocation2 + $0x180] sm:$0xff] %v2795
    %2924 = vst [vmem:[#allocation2 + $0x188] sm:$0xff] %v2796
    %2925 = vst [vmem:[#allocation2 + $0x190] sm:$0xff] %v2797
    %2926 = vst [vmem:[#allocation2 + $0x198] sm:$0xff] %v2798
    %2927 = vst [vmem:[#allocation2 + $0x1a0] sm:$0xff] %v2799
    %2928 = vst [vmem:[#allocation2 + $0x1a8] sm:$0xff] %v2800
    %2929 = vst [vmem:[#allocation2 + $0x1b0] sm:$0xff] %v2801
    %2930 = vst [vmem:[#allocation2 + $0x1b8] sm:$0xff] %v2802
    %2931 = vst [vmem:[#allocation2 + $0x1c0] sm:$0xff] %v2803
    %2932 = vst [vmem:[#allocation2 + $0x1c8] sm:$0xff] %v2804
    %2933 = vst [vmem:[#allocation2 + $0x1d0] sm:$0xff] %v2805
    %2934 = vst [vmem:[#allocation2 + $0x1d8] sm:$0xff] %v2806
    %2935 = vst [vmem:[#allocation2 + $0x1e0] sm:$0xff] %v2807
    %2936 = vst [vmem:[#allocation2 + $0x1e8] sm:$0xff] %v2808
    %2937 = vst [vmem:[#allocation2 + $0x1f0] sm:$0xff] %v2809
    %2938 = vst [vmem:[#allocation2 + $0x1f8] sm:$0xff] %v2810
    %v2939 = vld [vmem:[#allocation2] sm:$0xff]
    %v2940 = vld [vmem:[#allocation2 + $0x8] sm:$0xff]
    %v2941 = vld [vmem:[#allocation2 + $0x10] sm:$0xff]
    %v2942 = vld [vmem:[#allocation2 + $0x18] sm:$0xff]
    %v2943 = vld [vmem:[#allocation2 + $0x20] sm:$0xff]
    %v2944 = vld [vmem:[#allocation2 + $0x28] sm:$0xff]
    %v2945 = vld [vmem:[#allocation2 + $0x30] sm:$0xff]
    %v2946 = vld [vmem:[#allocation2 + $0x38] sm:$0xff]
    %v2947 = vld [vmem:[#allocation2 + $0x40] sm:$0xff]
    %v2948 = vld [vmem:[#allocation2 + $0x48] sm:$0xff]
    %v2949 = vld [vmem:[#allocation2 + $0x50] sm:$0xff]
    %v2950 = vld [vmem:[#allocation2 + $0x58] sm:$0xff]
    %v2951 = vld [vmem:[#allocation2 + $0x60] sm:$0xff]
    %v2952 = vld [vmem:[#allocation2 + $0x68] sm:$0xff]
    %v2953 = vld [vmem:[#allocation2 + $0x70] sm:$0xff]
    %v2954 = vld [vmem:[#allocation2 + $0x78] sm:$0xff]
    %v2955 = vld [vmem:[#allocation2 + $0x80] sm:$0xff]
    %v2956 = vld [vmem:[#allocation2 + $0x88] sm:$0xff]
    %v2957 = vld [vmem:[#allocation2 + $0x90] sm:$0xff]
    %v2958 = vld [vmem:[#allocation2 + $0x98] sm:$0xff]
    %v2959 = vld [vmem:[#allocation2 + $0xa0] sm:$0xff]
    %v2960 = vld [vmem:[#allocation2 + $0xa8] sm:$0xff]
    %v2961 = vld [vmem:[#allocation2 + $0xb0] sm:$0xff]
    %v2962 = vld [vmem:[#allocation2 + $0xb8] sm:$0xff]
    %v2963 = vld [vmem:[#allocation2 + $0xc0] sm:$0xff]
    %v2964 = vld [vmem:[#allocation2 + $0xc8] sm:$0xff]
    %v2965 = vld [vmem:[#allocation2 + $0xd0] sm:$0xff]
    %v2966 = vld [vmem:[#allocation2 + $0xd8] sm:$0xff]
    %v2967 = vld [vmem:[#allocation2 + $0xe0] sm:$0xff]
    %v2968 = vld [vmem:[#allocation2 + $0xe8] sm:$0xff]
    %v2969 = vld [vmem:[#allocation2 + $0xf0] sm:$0xff]
    %v2970 = vld [vmem:[#allocation2 + $0xf8] sm:$0xff]
    %v2971 = vld [vmem:[#allocation2 + $0x100] sm:$0xff]
    %v2972 = vld [vmem:[#allocation2 + $0x108] sm:$0xff]
    %v2973 = vld [vmem:[#allocation2 + $0x110] sm:$0xff]
    %v2974 = vld [vmem:[#allocation2 + $0x118] sm:$0xff]
    %v2975 = vld [vmem:[#allocation2 + $0x120] sm:$0xff]
    %v2976 = vld [vmem:[#allocation2 + $0x128] sm:$0xff]
    %v2977 = vld [vmem:[#allocation2 + $0x130] sm:$0xff]
    %v2978 = vld [vmem:[#allocation2 + $0x138] sm:$0xff]
    %v2979 = vld [vmem:[#allocation2 + $0x140] sm:$0xff]
    %v2980 = vld [vmem:[#allocation2 + $0x148] sm:$0xff]
    %v2981 = vld [vmem:[#allocation2 + $0x150] sm:$0xff]
    %v2982 = vld [vmem:[#allocation2 + $0x158] sm:$0xff]
    %v2983 = vld [vmem:[#allocation2 + $0x160] sm:$0xff]
    %v2984 = vld [vmem:[#allocation2 + $0x168] sm:$0xff]
    %v2985 = vld [vmem:[#allocation2 + $0x170] sm:$0xff]
    %v2986 = vld [vmem:[#allocation2 + $0x178] sm:$0xff]
    %v2987 = vld [vmem:[#allocation2 + $0x180] sm:$0xff]
    %v2988 = vld [vmem:[#allocation2 + $0x188] sm:$0xff]
    %v2989 = vld [vmem:[#allocation2 + $0x190] sm:$0xff]
    %v2990 = vld [vmem:[#allocation2 + $0x198] sm:$0xff]
    %v2991 = vld [vmem:[#allocation2 + $0x1a0] sm:$0xff]
    %v2992 = vld [vmem:[#allocation2 + $0x1a8] sm:$0xff]
    %v2993 = vld [vmem:[#allocation2 + $0x1b0] sm:$0xff]
    %v2994 = vld [vmem:[#allocation2 + $0x1b8] sm:$0xff]
    %v2995 = vld [vmem:[#allocation2 + $0x1c0] sm:$0xff]
    %v2996 = vld [vmem:[#allocation2 + $0x1c8] sm:$0xff]
    %v2997 = vld [vmem:[#allocation2 + $0x1d0] sm:$0xff]
    %v2998 = vld [vmem:[#allocation2 + $0x1d8] sm:$0xff]
    %v2999 = vld [vmem:[#allocation2 + $0x1e0] sm:$0xff]
    %v3000 = vld [vmem:[#allocation2 + $0x1e8] sm:$0xff]
    %v3001 = vld [vmem:[#allocation2 + $0x1f0] sm:$0xff]
    %v3002 = vld [vmem:[#allocation2 + $0x1f8] sm:$0xff]
    %v3003 = vld [vmem:[#allocation10] sm:$0xff]
    %v3004 = vld [vmem:[#allocation10 + $0x8] sm:$0xff]
    %v3005 = vld [vmem:[#allocation10 + $0x10] sm:$0xff]
    %v3006 = vld [vmem:[#allocation10 + $0x18] sm:$0xff]
    %v3007 = vld [vmem:[#allocation10 + $0x20] sm:$0xff]
    %v3008 = vld [vmem:[#allocation10 + $0x28] sm:$0xff]
    %v3009 = vld [vmem:[#allocation10 + $0x30] sm:$0xff]
    %v3010 = vld [vmem:[#allocation10 + $0x38] sm:$0xff]
    %v3011 = vld [vmem:[#allocation10 + $0x40] sm:$0xff]
    %v3012 = vld [vmem:[#allocation10 + $0x48] sm:$0xff]
    %v3013 = vld [vmem:[#allocation10 + $0x50] sm:$0xff]
    %v3014 = vld [vmem:[#allocation10 + $0x58] sm:$0xff]
    %v3015 = vld [vmem:[#allocation10 + $0x60] sm:$0xff]
    %v3016 = vld [vmem:[#allocation10 + $0x68] sm:$0xff]
    %v3017 = vld [vmem:[#allocation10 + $0x70] sm:$0xff]
    %v3018 = vld [vmem:[#allocation10 + $0x78] sm:$0xff]
    %v3019 = vld [vmem:[#allocation10 + $0x80] sm:$0xff]
    %v3020 = vld [vmem:[#allocation10 + $0x88] sm:$0xff]
    %v3021 = vld [vmem:[#allocation10 + $0x90] sm:$0xff]
    %v3022 = vld [vmem:[#allocation10 + $0x98] sm:$0xff]
    %v3023 = vld [vmem:[#allocation10 + $0xa0] sm:$0xff]
    %v3024 = vld [vmem:[#allocation10 + $0xa8] sm:$0xff]
    %v3025 = vld [vmem:[#allocation10 + $0xb0] sm:$0xff]
    %v3026 = vld [vmem:[#allocation10 + $0xb8] sm:$0xff]
    %v3027 = vld [vmem:[#allocation10 + $0xc0] sm:$0xff]
    %v3028 = vld [vmem:[#allocation10 + $0xc8] sm:$0xff]
    %v3029 = vld [vmem:[#allocation10 + $0xd0] sm:$0xff]
    %v3030 = vld [vmem:[#allocation10 + $0xd8] sm:$0xff]
    %v3031 = vld [vmem:[#allocation10 + $0xe0] sm:$0xff]
    %v3032 = vld [vmem:[#allocation10 + $0xe8] sm:$0xff]
    %v3033 = vld [vmem:[#allocation10 + $0xf0] sm:$0xff]
    %v3034 = vld [vmem:[#allocation10 + $0xf8] sm:$0xff]
    %v3035 = vld [vmem:[#allocation10 + $0x100] sm:$0xff]
    %v3036 = vld [vmem:[#allocation10 + $0x108] sm:$0xff]
    %v3037 = vld [vmem:[#allocation10 + $0x110] sm:$0xff]
    %v3038 = vld [vmem:[#allocation10 + $0x118] sm:$0xff]
    %v3039 = vld [vmem:[#allocation10 + $0x120] sm:$0xff]
    %v3040 = vld [vmem:[#allocation10 + $0x128] sm:$0xff]
    %v3041 = vld [vmem:[#allocation10 + $0x130] sm:$0xff]
    %v3042 = vld [vmem:[#allocation10 + $0x138] sm:$0xff]
    %v3043 = vld [vmem:[#allocation10 + $0x140] sm:$0xff]
    %v3044 = vld [vmem:[#allocation10 + $0x148] sm:$0xff]
    %v3045 = vld [vmem:[#allocation10 + $0x150] sm:$0xff]
    %v3046 = vld [vmem:[#allocation10 + $0x158] sm:$0xff]
    %v3047 = vld [vmem:[#allocation10 + $0x160] sm:$0xff]
    %v3048 = vld [vmem:[#allocation10 + $0x168] sm:$0xff]
    %v3049 = vld [vmem:[#allocation10 + $0x170] sm:$0xff]
    %v3050 = vld [vmem:[#allocation10 + $0x178] sm:$0xff]
    %v3051 = vld [vmem:[#allocation10 + $0x180] sm:$0xff]
    %v3052 = vld [vmem:[#allocation10 + $0x188] sm:$0xff]
    %v3053 = vld [vmem:[#allocation10 + $0x190] sm:$0xff]
    %v3054 = vld [vmem:[#allocation10 + $0x198] sm:$0xff]
    %v3055 = vld [vmem:[#allocation10 + $0x1a0] sm:$0xff]
    %v3056 = vld [vmem:[#allocation10 + $0x1a8] sm:$0xff]
    %v3057 = vld [vmem:[#allocation10 + $0x1b0] sm:$0xff]
    %v3058 = vld [vmem:[#allocation10 + $0x1b8] sm:$0xff]
    %v3059 = vld [vmem:[#allocation10 + $0x1c0] sm:$0xff]
    %v3060 = vld [vmem:[#allocation10 + $0x1c8] sm:$0xff]
    %v3061 = vld [vmem:[#allocation10 + $0x1d0] sm:$0xff]
    %v3062 = vld [vmem:[#allocation10 + $0x1d8] sm:$0xff]
    %v3063 = vld [vmem:[#allocation10 + $0x1e0] sm:$0xff]
    %v3064 = vld [vmem:[#allocation10 + $0x1e8] sm:$0xff]
    %v3065 = vld [vmem:[#allocation10 + $0x1f0] sm:$0xff]
    %v3066 = vld [vmem:[#allocation10 + $0x1f8] sm:$0xff]
    %v3067 = vld [vmem:[#allocation10 + $0x200] sm:$0xff]
    %v3068 = vld [vmem:[#allocation10 + $0x208] sm:$0xff]
    %v3069 = vld [vmem:[#allocation10 + $0x210] sm:$0xff]
    %v3070 = vld [vmem:[#allocation10 + $0x218] sm:$0xff]
    %v3071 = vld [vmem:[#allocation10 + $0x220] sm:$0xff]
    %v3072 = vld [vmem:[#allocation10 + $0x228] sm:$0xff]
    %v3073 = vld [vmem:[#allocation10 + $0x230] sm:$0xff]
    %v3074 = vld [vmem:[#allocation10 + $0x238] sm:$0xff]
    %v3075 = vld [vmem:[#allocation10 + $0x240] sm:$0xff]
    %v3076 = vld [vmem:[#allocation10 + $0x248] sm:$0xff]
    %v3077 = vld [vmem:[#allocation10 + $0x250] sm:$0xff]
    %v3078 = vld [vmem:[#allocation10 + $0x258] sm:$0xff]
    %v3079 = vld [vmem:[#allocation10 + $0x260] sm:$0xff]
    %v3080 = vld [vmem:[#allocation10 + $0x268] sm:$0xff]
    %v3081 = vld [vmem:[#allocation10 + $0x270] sm:$0xff]
    %v3082 = vld [vmem:[#allocation10 + $0x278] sm:$0xff]
    %v3083 = vld [vmem:[#allocation10 + $0x280] sm:$0xff]
    %v3084 = vld [vmem:[#allocation10 + $0x288] sm:$0xff]
    %v3085 = vld [vmem:[#allocation10 + $0x290] sm:$0xff]
    %v3086 = vld [vmem:[#allocation10 + $0x298] sm:$0xff]
    %v3087 = vld [vmem:[#allocation10 + $0x2a0] sm:$0xff]
    %v3088 = vld [vmem:[#allocation10 + $0x2a8] sm:$0xff]
    %v3089 = vld [vmem:[#allocation10 + $0x2b0] sm:$0xff]
    %v3090 = vld [vmem:[#allocation10 + $0x2b8] sm:$0xff]
    %v3091 = vld [vmem:[#allocation10 + $0x2c0] sm:$0xff]
    %v3092 = vld [vmem:[#allocation10 + $0x2c8] sm:$0xff]
    %v3093 = vld [vmem:[#allocation10 + $0x2d0] sm:$0xff]
    %v3094 = vld [vmem:[#allocation10 + $0x2d8] sm:$0xff]
    %v3095 = vld [vmem:[#allocation10 + $0x2e0] sm:$0xff]
    %v3096 = vld [vmem:[#allocation10 + $0x2e8] sm:$0xff]
    %v3097 = vld [vmem:[#allocation10 + $0x2f0] sm:$0xff]
    %v3098 = vld [vmem:[#allocation10 + $0x2f8] sm:$0xff]
    %v3099 = vld [vmem:[#allocation10 + $0x300] sm:$0xff]
    %v3100 = vld [vmem:[#allocation10 + $0x308] sm:$0xff]
    %v3101 = vld [vmem:[#allocation10 + $0x310] sm:$0xff]
    %v3102 = vld [vmem:[#allocation10 + $0x318] sm:$0xff]
    %v3103 = vld [vmem:[#allocation10 + $0x320] sm:$0xff]
    %v3104 = vld [vmem:[#allocation10 + $0x328] sm:$0xff]
    %v3105 = vld [vmem:[#allocation10 + $0x330] sm:$0xff]
    %v3106 = vld [vmem:[#allocation10 + $0x338] sm:$0xff]
    %v3107 = vld [vmem:[#allocation10 + $0x340] sm:$0xff]
    %v3108 = vld [vmem:[#allocation10 + $0x348] sm:$0xff]
    %v3109 = vld [vmem:[#allocation10 + $0x350] sm:$0xff]
    %v3110 = vld [vmem:[#allocation10 + $0x358] sm:$0xff]
    %v3111 = vld [vmem:[#allocation10 + $0x360] sm:$0xff]
    %v3112 = vld [vmem:[#allocation10 + $0x368] sm:$0xff]
    %v3113 = vld [vmem:[#allocation10 + $0x370] sm:$0xff]
    %v3114 = vld [vmem:[#allocation10 + $0x378] sm:$0xff]
    %v3115 = vld [vmem:[#allocation10 + $0x380] sm:$0xff]
    %v3116 = vld [vmem:[#allocation10 + $0x388] sm:$0xff]
    %v3117 = vld [vmem:[#allocation10 + $0x390] sm:$0xff]
    %v3118 = vld [vmem:[#allocation10 + $0x398] sm:$0xff]
    %v3119 = vld [vmem:[#allocation10 + $0x3a0] sm:$0xff]
    %v3120 = vld [vmem:[#allocation10 + $0x3a8] sm:$0xff]
    %v3121 = vld [vmem:[#allocation10 + $0x3b0] sm:$0xff]
    %v3122 = vld [vmem:[#allocation10 + $0x3b8] sm:$0xff]
    %v3123 = vld [vmem:[#allocation10 + $0x3c0] sm:$0xff]
    %v3124 = vld [vmem:[#allocation10 + $0x3c8] sm:$0xff]
    %v3125 = vld [vmem:[#allocation10 + $0x3d0] sm:$0xff]
    %v3126 = vld [vmem:[#allocation10 + $0x3d8] sm:$0xff]
    %v3127 = vld [vmem:[#allocation10 + $0x3e0] sm:$0xff]
    %v3128 = vld [vmem:[#allocation10 + $0x3e8] sm:$0xff]
    %v3129 = vld [vmem:[#allocation10 + $0x3f0] sm:$0xff]
    %v3130 = vld [vmem:[#allocation10 + $0x3f8] sm:$0xff]
    %v3131 = vld [vmem:[#allocation10 + $0x400] sm:$0xff]
    %v3132 = vld [vmem:[#allocation10 + $0x408] sm:$0xff]
    %v3133 = vld [vmem:[#allocation10 + $0x410] sm:$0xff]
    %v3134 = vld [vmem:[#allocation10 + $0x418] sm:$0xff]
    %v3135 = vld [vmem:[#allocation10 + $0x420] sm:$0xff]
    %v3136 = vld [vmem:[#allocation10 + $0x428] sm:$0xff]
    %v3137 = vld [vmem:[#allocation10 + $0x430] sm:$0xff]
    %v3138 = vld [vmem:[#allocation10 + $0x438] sm:$0xff]
    %v3139 = vld [vmem:[#allocation10 + $0x440] sm:$0xff]
    %v3140 = vld [vmem:[#allocation10 + $0x448] sm:$0xff]
    %v3141 = vld [vmem:[#allocation10 + $0x450] sm:$0xff]
    %v3142 = vld [vmem:[#allocation10 + $0x458] sm:$0xff]
    %v3143 = vld [vmem:[#allocation10 + $0x460] sm:$0xff]
    %v3144 = vld [vmem:[#allocation10 + $0x468] sm:$0xff]
    %v3145 = vld [vmem:[#allocation10 + $0x470] sm:$0xff]
    %v3146 = vld [vmem:[#allocation10 + $0x478] sm:$0xff]
    %v3147 = vld [vmem:[#allocation10 + $0x480] sm:$0xff]
    %v3148 = vld [vmem:[#allocation10 + $0x488] sm:$0xff]
    %v3149 = vld [vmem:[#allocation10 + $0x490] sm:$0xff]
    %v3150 = vld [vmem:[#allocation10 + $0x498] sm:$0xff]
    %v3151 = vld [vmem:[#allocation10 + $0x4a0] sm:$0xff]
    %v3152 = vld [vmem:[#allocation10 + $0x4a8] sm:$0xff]
    %v3153 = vld [vmem:[#allocation10 + $0x4b0] sm:$0xff]
    %v3154 = vld [vmem:[#allocation10 + $0x4b8] sm:$0xff]
    %v3155 = vld [vmem:[#allocation10 + $0x4c0] sm:$0xff]
    %v3156 = vld [vmem:[#allocation10 + $0x4c8] sm:$0xff]
    %v3157 = vld [vmem:[#allocation10 + $0x4d0] sm:$0xff]
    %v3158 = vld [vmem:[#allocation10 + $0x4d8] sm:$0xff]
    %v3159 = vld [vmem:[#allocation10 + $0x4e0] sm:$0xff]
    %v3160 = vld [vmem:[#allocation10 + $0x4e8] sm:$0xff]
    %v3161 = vld [vmem:[#allocation10 + $0x4f0] sm:$0xff]
    %v3162 = vld [vmem:[#allocation10 + $0x4f8] sm:$0xff]
    %v3163 = vld [vmem:[#allocation10 + $0x500] sm:$0xff]
    %v3164 = vld [vmem:[#allocation10 + $0x508] sm:$0xff]
    %v3165 = vld [vmem:[#allocation10 + $0x510] sm:$0xff]
    %v3166 = vld [vmem:[#allocation10 + $0x518] sm:$0xff]
    %v3167 = vld [vmem:[#allocation10 + $0x520] sm:$0xff]
    %v3168 = vld [vmem:[#allocation10 + $0x528] sm:$0xff]
    %v3169 = vld [vmem:[#allocation10 + $0x530] sm:$0xff]
    %v3170 = vld [vmem:[#allocation10 + $0x538] sm:$0xff]
    %v3171 = vld [vmem:[#allocation10 + $0x540] sm:$0xff]
    %v3172 = vld [vmem:[#allocation10 + $0x548] sm:$0xff]
    %v3173 = vld [vmem:[#allocation10 + $0x550] sm:$0xff]
    %v3174 = vld [vmem:[#allocation10 + $0x558] sm:$0xff]
    %v3175 = vld [vmem:[#allocation10 + $0x560] sm:$0xff]
    %v3176 = vld [vmem:[#allocation10 + $0x568] sm:$0xff]
    %v3177 = vld [vmem:[#allocation10 + $0x570] sm:$0xff]
    %v3178 = vld [vmem:[#allocation10 + $0x578] sm:$0xff]
    %v3179 = vld [vmem:[#allocation10 + $0x580] sm:$0xff]
    %v3180 = vld [vmem:[#allocation10 + $0x588] sm:$0xff]
    %v3181 = vld [vmem:[#allocation10 + $0x590] sm:$0xff]
    %v3182 = vld [vmem:[#allocation10 + $0x598] sm:$0xff]
    %v3183 = vld [vmem:[#allocation10 + $0x5a0] sm:$0xff]
    %v3184 = vld [vmem:[#allocation10 + $0x5a8] sm:$0xff]
    %v3185 = vld [vmem:[#allocation10 + $0x5b0] sm:$0xff]
    %v3186 = vld [vmem:[#allocation10 + $0x5b8] sm:$0xff]
    %v3187 = vld [vmem:[#allocation10 + $0x5c0] sm:$0xff]
    %v3188 = vld [vmem:[#allocation10 + $0x5c8] sm:$0xff]
    %v3189 = vld [vmem:[#allocation10 + $0x5d0] sm:$0xff]
    %v3190 = vld [vmem:[#allocation10 + $0x5d8] sm:$0xff]
    %v3191 = vld [vmem:[#allocation10 + $0x5e0] sm:$0xff]
    %v3192 = vld [vmem:[#allocation10 + $0x5e8] sm:$0xff]
    %v3193 = vld [vmem:[#allocation10 + $0x5f0] sm:$0xff]
    %v3194 = vld [vmem:[#allocation10 + $0x5f8] sm:$0xff]
    %v3195 = vld [vmem:[#allocation10 + $0x600] sm:$0xff]
    %v3196 = vld [vmem:[#allocation10 + $0x608] sm:$0xff]
    %v3197 = vld [vmem:[#allocation10 + $0x610] sm:$0xff]
    %v3198 = vld [vmem:[#allocation10 + $0x618] sm:$0xff]
    %v3199 = vld [vmem:[#allocation10 + $0x620] sm:$0xff]
    %v3200 = vld [vmem:[#allocation10 + $0x628] sm:$0xff]
    %v3201 = vld [vmem:[#allocation10 + $0x630] sm:$0xff]
    %v3202 = vld [vmem:[#allocation10 + $0x638] sm:$0xff]
    %v3203 = vld [vmem:[#allocation10 + $0x640] sm:$0xff]
    %v3204 = vld [vmem:[#allocation10 + $0x648] sm:$0xff]
    %v3205 = vld [vmem:[#allocation10 + $0x650] sm:$0xff]
    %v3206 = vld [vmem:[#allocation10 + $0x658] sm:$0xff]
    %v3207 = vld [vmem:[#allocation10 + $0x660] sm:$0xff]
    %v3208 = vld [vmem:[#allocation10 + $0x668] sm:$0xff]
    %v3209 = vld [vmem:[#allocation10 + $0x670] sm:$0xff]
    %v3210 = vld [vmem:[#allocation10 + $0x678] sm:$0xff]
    %v3211 = vld [vmem:[#allocation10 + $0x680] sm:$0xff]
    %v3212 = vld [vmem:[#allocation10 + $0x688] sm:$0xff]
    %v3213 = vld [vmem:[#allocation10 + $0x690] sm:$0xff]
    %v3214 = vld [vmem:[#allocation10 + $0x698] sm:$0xff]
    %v3215 = vld [vmem:[#allocation10 + $0x6a0] sm:$0xff]
    %v3216 = vld [vmem:[#allocation10 + $0x6a8] sm:$0xff]
    %v3217 = vld [vmem:[#allocation10 + $0x6b0] sm:$0xff]
    %v3218 = vld [vmem:[#allocation10 + $0x6b8] sm:$0xff]
    %v3219 = vld [vmem:[#allocation10 + $0x6c0] sm:$0xff]
    %v3220 = vld [vmem:[#allocation10 + $0x6c8] sm:$0xff]
    %v3221 = vld [vmem:[#allocation10 + $0x6d0] sm:$0xff]
    %v3222 = vld [vmem:[#allocation10 + $0x6d8] sm:$0xff]
    %v3223 = vld [vmem:[#allocation10 + $0x6e0] sm:$0xff]
    %v3224 = vld [vmem:[#allocation10 + $0x6e8] sm:$0xff]
    %v3225 = vld [vmem:[#allocation10 + $0x6f0] sm:$0xff]
    %v3226 = vld [vmem:[#allocation10 + $0x6f8] sm:$0xff]
    %v3227 = vld [vmem:[#allocation10 + $0x700] sm:$0xff]
    %v3228 = vld [vmem:[#allocation10 + $0x708] sm:$0xff]
    %v3229 = vld [vmem:[#allocation10 + $0x710] sm:$0xff]
    %v3230 = vld [vmem:[#allocation10 + $0x718] sm:$0xff]
    %v3231 = vld [vmem:[#allocation10 + $0x720] sm:$0xff]
    %v3232 = vld [vmem:[#allocation10 + $0x728] sm:$0xff]
    %v3233 = vld [vmem:[#allocation10 + $0x730] sm:$0xff]
    %v3234 = vld [vmem:[#allocation10 + $0x738] sm:$0xff]
    %v3235 = vld [vmem:[#allocation10 + $0x740] sm:$0xff]
    %v3236 = vld [vmem:[#allocation10 + $0x748] sm:$0xff]
    %v3237 = vld [vmem:[#allocation10 + $0x750] sm:$0xff]
    %v3238 = vld [vmem:[#allocation10 + $0x758] sm:$0xff]
    %v3239 = vld [vmem:[#allocation10 + $0x760] sm:$0xff]
    %v3240 = vld [vmem:[#allocation10 + $0x768] sm:$0xff]
    %v3241 = vld [vmem:[#allocation10 + $0x770] sm:$0xff]
    %v3242 = vld [vmem:[#allocation10 + $0x778] sm:$0xff]
    %v3243 = vld [vmem:[#allocation10 + $0x780] sm:$0xff]
    %v3244 = vld [vmem:[#allocation10 + $0x788] sm:$0xff]
    %v3245 = vld [vmem:[#allocation10 + $0x790] sm:$0xff]
    %v3246 = vld [vmem:[#allocation10 + $0x798] sm:$0xff]
    %v3247 = vld [vmem:[#allocation10 + $0x7a0] sm:$0xff]
    %v3248 = vld [vmem:[#allocation10 + $0x7a8] sm:$0xff]
    %v3249 = vld [vmem:[#allocation10 + $0x7b0] sm:$0xff]
    %v3250 = vld [vmem:[#allocation10 + $0x7b8] sm:$0xff]
    %v3251 = vld [vmem:[#allocation10 + $0x7c0] sm:$0xff]
    %v3252 = vld [vmem:[#allocation10 + $0x7c8] sm:$0xff]
    %v3253 = vld [vmem:[#allocation10 + $0x7d0] sm:$0xff]
    %v3254 = vld [vmem:[#allocation10 + $0x7d8] sm:$0xff]
    %v3255 = vld [vmem:[#allocation10 + $0x7e0] sm:$0xff]
    %v3256 = vld [vmem:[#allocation10 + $0x7e8] sm:$0xff]
    %v3257 = vld [vmem:[#allocation10 + $0x7f0] sm:$0xff]
    %v3258 = vld [vmem:[#allocation10 + $0x7f8] sm:$0xff]
    %v3259 = vld [vmem:[#allocation10 + $0x800] sm:$0xff]
    %v3260 = vld [vmem:[#allocation10 + $0x808] sm:$0xff]
    %v3261 = vld [vmem:[#allocation10 + $0x810] sm:$0xff]
    %v3262 = vld [vmem:[#allocation10 + $0x818] sm:$0xff]
    %v3263 = vld [vmem:[#allocation10 + $0x820] sm:$0xff]
    %v3264 = vld [vmem:[#allocation10 + $0x828] sm:$0xff]
    %v3265 = vld [vmem:[#allocation10 + $0x830] sm:$0xff]
    %v3266 = vld [vmem:[#allocation10 + $0x838] sm:$0xff]
    %v3267 = vld [vmem:[#allocation10 + $0x840] sm:$0xff]
    %v3268 = vld [vmem:[#allocation10 + $0x848] sm:$0xff]
    %v3269 = vld [vmem:[#allocation10 + $0x850] sm:$0xff]
    %v3270 = vld [vmem:[#allocation10 + $0x858] sm:$0xff]
    %v3271 = vld [vmem:[#allocation10 + $0x860] sm:$0xff]
    %v3272 = vld [vmem:[#allocation10 + $0x868] sm:$0xff]
    %v3273 = vld [vmem:[#allocation10 + $0x870] sm:$0xff]
    %v3274 = vld [vmem:[#allocation10 + $0x878] sm:$0xff]
    %v3275 = vld [vmem:[#allocation10 + $0x880] sm:$0xff]
    %v3276 = vld [vmem:[#allocation10 + $0x888] sm:$0xff]
    %v3277 = vld [vmem:[#allocation10 + $0x890] sm:$0xff]
    %v3278 = vld [vmem:[#allocation10 + $0x898] sm:$0xff]
    %v3279 = vld [vmem:[#allocation10 + $0x8a0] sm:$0xff]
    %v3280 = vld [vmem:[#allocation10 + $0x8a8] sm:$0xff]
    %v3281 = vld [vmem:[#allocation10 + $0x8b0] sm:$0xff]
    %v3282 = vld [vmem:[#allocation10 + $0x8b8] sm:$0xff]
    %v3283 = vld [vmem:[#allocation10 + $0x8c0] sm:$0xff]
    %v3284 = vld [vmem:[#allocation10 + $0x8c8] sm:$0xff]
    %v3285 = vld [vmem:[#allocation10 + $0x8d0] sm:$0xff]
    %v3286 = vld [vmem:[#allocation10 + $0x8d8] sm:$0xff]
    %v3287 = vld [vmem:[#allocation10 + $0x8e0] sm:$0xff]
    %v3288 = vld [vmem:[#allocation10 + $0x8e8] sm:$0xff]
    %v3289 = vld [vmem:[#allocation10 + $0x8f0] sm:$0xff]
    %v3290 = vld [vmem:[#allocation10 + $0x8f8] sm:$0xff]
    %v3291 = vld [vmem:[#allocation10 + $0x900] sm:$0xff]
    %v3292 = vld [vmem:[#allocation10 + $0x908] sm:$0xff]
    %v3293 = vld [vmem:[#allocation10 + $0x910] sm:$0xff]
    %v3294 = vld [vmem:[#allocation10 + $0x918] sm:$0xff]
    %v3295 = vld [vmem:[#allocation10 + $0x920] sm:$0xff]
    %v3296 = vld [vmem:[#allocation10 + $0x928] sm:$0xff]
    %v3297 = vld [vmem:[#allocation10 + $0x930] sm:$0xff]
    %v3298 = vld [vmem:[#allocation10 + $0x938] sm:$0xff]
    %v3299 = vld [vmem:[#allocation10 + $0x940] sm:$0xff]
    %v3300 = vld [vmem:[#allocation10 + $0x948] sm:$0xff]
    %v3301 = vld [vmem:[#allocation10 + $0x950] sm:$0xff]
    %v3302 = vld [vmem:[#allocation10 + $0x958] sm:$0xff]
    %v3303 = vld [vmem:[#allocation10 + $0x960] sm:$0xff]
    %v3304 = vld [vmem:[#allocation10 + $0x968] sm:$0xff]
    %v3305 = vld [vmem:[#allocation10 + $0x970] sm:$0xff]
    %v3306 = vld [vmem:[#allocation10 + $0x978] sm:$0xff]
    %v3307 = vld [vmem:[#allocation10 + $0x980] sm:$0xff]
    %v3308 = vld [vmem:[#allocation10 + $0x988] sm:$0xff]
    %v3309 = vld [vmem:[#allocation10 + $0x990] sm:$0xff]
    %v3310 = vld [vmem:[#allocation10 + $0x998] sm:$0xff]
    %v3311 = vld [vmem:[#allocation10 + $0x9a0] sm:$0xff]
    %v3312 = vld [vmem:[#allocation10 + $0x9a8] sm:$0xff]
    %v3313 = vld [vmem:[#allocation10 + $0x9b0] sm:$0xff]
    %v3314 = vld [vmem:[#allocation10 + $0x9b8] sm:$0xff]
    %v3315 = vld [vmem:[#allocation10 + $0x9c0] sm:$0xff]
    %v3316 = vld [vmem:[#allocation10 + $0x9c8] sm:$0xff]
    %v3317 = vld [vmem:[#allocation10 + $0x9d0] sm:$0xff]
    %v3318 = vld [vmem:[#allocation10 + $0x9d8] sm:$0xff]
    %v3319 = vld [vmem:[#allocation10 + $0x9e0] sm:$0xff]
    %v3320 = vld [vmem:[#allocation10 + $0x9e8] sm:$0xff]
    %v3321 = vld [vmem:[#allocation10 + $0x9f0] sm:$0xff]
    %v3322 = vld [vmem:[#allocation10 + $0x9f8] sm:$0xff]
    %v3323 = vld [vmem:[#allocation10 + $0xa00] sm:$0xff]
    %v3324 = vld [vmem:[#allocation10 + $0xa08] sm:$0xff]
    %v3325 = vld [vmem:[#allocation10 + $0xa10] sm:$0xff]
    %v3326 = vld [vmem:[#allocation10 + $0xa18] sm:$0xff]
    %v3327 = vld [vmem:[#allocation10 + $0xa20] sm:$0xff]
    %v3328 = vld [vmem:[#allocation10 + $0xa28] sm:$0xff]
    %v3329 = vld [vmem:[#allocation10 + $0xa30] sm:$0xff]
    %v3330 = vld [vmem:[#allocation10 + $0xa38] sm:$0xff]
    %v3331 = vld [vmem:[#allocation10 + $0xa40] sm:$0xff]
    %v3332 = vld [vmem:[#allocation10 + $0xa48] sm:$0xff]
    %v3333 = vld [vmem:[#allocation10 + $0xa50] sm:$0xff]
    %v3334 = vld [vmem:[#allocation10 + $0xa58] sm:$0xff]
    %v3335 = vld [vmem:[#allocation10 + $0xa60] sm:$0xff]
    %v3336 = vld [vmem:[#allocation10 + $0xa68] sm:$0xff]
    %v3337 = vld [vmem:[#allocation10 + $0xa70] sm:$0xff]
    %v3338 = vld [vmem:[#allocation10 + $0xa78] sm:$0xff]
    %v3339 = vld [vmem:[#allocation10 + $0xa80] sm:$0xff]
    %v3340 = vld [vmem:[#allocation10 + $0xa88] sm:$0xff]
    %v3341 = vld [vmem:[#allocation10 + $0xa90] sm:$0xff]
    %v3342 = vld [vmem:[#allocation10 + $0xa98] sm:$0xff]
    %v3343 = vld [vmem:[#allocation10 + $0xaa0] sm:$0xff]
    %v3344 = vld [vmem:[#allocation10 + $0xaa8] sm:$0xff]
    %v3345 = vld [vmem:[#allocation10 + $0xab0] sm:$0xff]
    %v3346 = vld [vmem:[#allocation10 + $0xab8] sm:$0xff]
    %v3347 = vld [vmem:[#allocation10 + $0xac0] sm:$0xff]
    %v3348 = vld [vmem:[#allocation10 + $0xac8] sm:$0xff]
    %v3349 = vld [vmem:[#allocation10 + $0xad0] sm:$0xff]
    %v3350 = vld [vmem:[#allocation10 + $0xad8] sm:$0xff]
    %v3351 = vld [vmem:[#allocation10 + $0xae0] sm:$0xff]
    %v3352 = vld [vmem:[#allocation10 + $0xae8] sm:$0xff]
    %v3353 = vld [vmem:[#allocation10 + $0xaf0] sm:$0xff]
    %v3354 = vld [vmem:[#allocation10 + $0xaf8] sm:$0xff]
    %v3355 = vld [vmem:[#allocation10 + $0xb00] sm:$0xff]
    %v3356 = vld [vmem:[#allocation10 + $0xb08] sm:$0xff]
    %v3357 = vld [vmem:[#allocation10 + $0xb10] sm:$0xff]
    %v3358 = vld [vmem:[#allocation10 + $0xb18] sm:$0xff]
    %v3359 = vld [vmem:[#allocation10 + $0xb20] sm:$0xff]
    %v3360 = vld [vmem:[#allocation10 + $0xb28] sm:$0xff]
    %v3361 = vld [vmem:[#allocation10 + $0xb30] sm:$0xff]
    %v3362 = vld [vmem:[#allocation10 + $0xb38] sm:$0xff]
    %v3363 = vld [vmem:[#allocation10 + $0xb40] sm:$0xff]
    %v3364 = vld [vmem:[#allocation10 + $0xb48] sm:$0xff]
    %v3365 = vld [vmem:[#allocation10 + $0xb50] sm:$0xff]
    %v3366 = vld [vmem:[#allocation10 + $0xb58] sm:$0xff]
    %v3367 = vld [vmem:[#allocation10 + $0xb60] sm:$0xff]
    %v3368 = vld [vmem:[#allocation10 + $0xb68] sm:$0xff]
    %v3369 = vld [vmem:[#allocation10 + $0xb70] sm:$0xff]
    %v3370 = vld [vmem:[#allocation10 + $0xb78] sm:$0xff]
    %v3371 = vld [vmem:[#allocation10 + $0xb80] sm:$0xff]
    %v3372 = vld [vmem:[#allocation10 + $0xb88] sm:$0xff]
    %v3373 = vld [vmem:[#allocation10 + $0xb90] sm:$0xff]
    %v3374 = vld [vmem:[#allocation10 + $0xb98] sm:$0xff]
    %v3375 = vld [vmem:[#allocation10 + $0xba0] sm:$0xff]
    %v3376 = vld [vmem:[#allocation10 + $0xba8] sm:$0xff]
    %v3377 = vld [vmem:[#allocation10 + $0xbb0] sm:$0xff]
    %v3378 = vld [vmem:[#allocation10 + $0xbb8] sm:$0xff]
    %v3379 = vld [vmem:[#allocation10 + $0xbc0] sm:$0xff]
    %v3380 = vld [vmem:[#allocation10 + $0xbc8] sm:$0xff]
    %v3381 = vld [vmem:[#allocation10 + $0xbd0] sm:$0xff]
    %v3382 = vld [vmem:[#allocation10 + $0xbd8] sm:$0xff]
    %v3383 = vld [vmem:[#allocation10 + $0xbe0] sm:$0xff]
    %v3384 = vld [vmem:[#allocation10 + $0xbe8] sm:$0xff]
    %v3385 = vld [vmem:[#allocation10 + $0xbf0] sm:$0xff]
    %v3386 = vld [vmem:[#allocation10 + $0xbf8] sm:$0xff]
    %v3387 = vld [vmem:[#allocation10 + $0xc00] sm:$0xff]
    %v3388 = vld [vmem:[#allocation10 + $0xc08] sm:$0xff]
    %v3389 = vld [vmem:[#allocation10 + $0xc10] sm:$0xff]
    %v3390 = vld [vmem:[#allocation10 + $0xc18] sm:$0xff]
    %v3391 = vld [vmem:[#allocation10 + $0xc20] sm:$0xff]
    %v3392 = vld [vmem:[#allocation10 + $0xc28] sm:$0xff]
    %v3393 = vld [vmem:[#allocation10 + $0xc30] sm:$0xff]
    %v3394 = vld [vmem:[#allocation10 + $0xc38] sm:$0xff]
    %v3395 = vld [vmem:[#allocation10 + $0xc40] sm:$0xff]
    %v3396 = vld [vmem:[#allocation10 + $0xc48] sm:$0xff]
    %v3397 = vld [vmem:[#allocation10 + $0xc50] sm:$0xff]
    %v3398 = vld [vmem:[#allocation10 + $0xc58] sm:$0xff]
    %v3399 = vld [vmem:[#allocation10 + $0xc60] sm:$0xff]
    %v3400 = vld [vmem:[#allocation10 + $0xc68] sm:$0xff]
    %v3401 = vld [vmem:[#allocation10 + $0xc70] sm:$0xff]
    %v3402 = vld [vmem:[#allocation10 + $0xc78] sm:$0xff]
    %v3403 = vld [vmem:[#allocation10 + $0xc80] sm:$0xff]
    %v3404 = vld [vmem:[#allocation10 + $0xc88] sm:$0xff]
    %v3405 = vld [vmem:[#allocation10 + $0xc90] sm:$0xff]
    %v3406 = vld [vmem:[#allocation10 + $0xc98] sm:$0xff]
    %v3407 = vld [vmem:[#allocation10 + $0xca0] sm:$0xff]
    %v3408 = vld [vmem:[#allocation10 + $0xca8] sm:$0xff]
    %v3409 = vld [vmem:[#allocation10 + $0xcb0] sm:$0xff]
    %v3410 = vld [vmem:[#allocation10 + $0xcb8] sm:$0xff]
    %v3411 = vld [vmem:[#allocation10 + $0xcc0] sm:$0xff]
    %v3412 = vld [vmem:[#allocation10 + $0xcc8] sm:$0xff]
    %v3413 = vld [vmem:[#allocation10 + $0xcd0] sm:$0xff]
    %v3414 = vld [vmem:[#allocation10 + $0xcd8] sm:$0xff]
    %v3415 = vld [vmem:[#allocation10 + $0xce0] sm:$0xff]
    %v3416 = vld [vmem:[#allocation10 + $0xce8] sm:$0xff]
    %v3417 = vld [vmem:[#allocation10 + $0xcf0] sm:$0xff]
    %v3418 = vld [vmem:[#allocation10 + $0xcf8] sm:$0xff]
    %v3419 = vld [vmem:[#allocation10 + $0xd00] sm:$0xff]
    %v3420 = vld [vmem:[#allocation10 + $0xd08] sm:$0xff]
    %v3421 = vld [vmem:[#allocation10 + $0xd10] sm:$0xff]
    %v3422 = vld [vmem:[#allocation10 + $0xd18] sm:$0xff]
    %v3423 = vld [vmem:[#allocation10 + $0xd20] sm:$0xff]
    %v3424 = vld [vmem:[#allocation10 + $0xd28] sm:$0xff]
    %v3425 = vld [vmem:[#allocation10 + $0xd30] sm:$0xff]
    %v3426 = vld [vmem:[#allocation10 + $0xd38] sm:$0xff]
    %v3427 = vld [vmem:[#allocation10 + $0xd40] sm:$0xff]
    %v3428 = vld [vmem:[#allocation10 + $0xd48] sm:$0xff]
    %v3429 = vld [vmem:[#allocation10 + $0xd50] sm:$0xff]
    %v3430 = vld [vmem:[#allocation10 + $0xd58] sm:$0xff]
    %v3431 = vld [vmem:[#allocation10 + $0xd60] sm:$0xff]
    %v3432 = vld [vmem:[#allocation10 + $0xd68] sm:$0xff]
    %v3433 = vld [vmem:[#allocation10 + $0xd70] sm:$0xff]
    %v3434 = vld [vmem:[#allocation10 + $0xd78] sm:$0xff]
    %v3435 = vld [vmem:[#allocation10 + $0xd80] sm:$0xff]
    %v3436 = vld [vmem:[#allocation10 + $0xd88] sm:$0xff]
    %v3437 = vld [vmem:[#allocation10 + $0xd90] sm:$0xff]
    %v3438 = vld [vmem:[#allocation10 + $0xd98] sm:$0xff]
    %v3439 = vld [vmem:[#allocation10 + $0xda0] sm:$0xff]
    %v3440 = vld [vmem:[#allocation10 + $0xda8] sm:$0xff]
    %v3441 = vld [vmem:[#allocation10 + $0xdb0] sm:$0xff]
    %v3442 = vld [vmem:[#allocation10 + $0xdb8] sm:$0xff]
    %v3443 = vld [vmem:[#allocation10 + $0xdc0] sm:$0xff]
    %v3444 = vld [vmem:[#allocation10 + $0xdc8] sm:$0xff]
    %v3445 = vld [vmem:[#allocation10 + $0xdd0] sm:$0xff]
    %v3446 = vld [vmem:[#allocation10 + $0xdd8] sm:$0xff]
    %v3447 = vld [vmem:[#allocation10 + $0xde0] sm:$0xff]
    %v3448 = vld [vmem:[#allocation10 + $0xde8] sm:$0xff]
    %v3449 = vld [vmem:[#allocation10 + $0xdf0] sm:$0xff]
    %v3450 = vld [vmem:[#allocation10 + $0xdf8] sm:$0xff]
    %v3451 = vld [vmem:[#allocation10 + $0xe00] sm:$0xff]
    %v3452 = vld [vmem:[#allocation10 + $0xe08] sm:$0xff]
    %v3453 = vld [vmem:[#allocation10 + $0xe10] sm:$0xff]
    %v3454 = vld [vmem:[#allocation10 + $0xe18] sm:$0xff]
    %v3455 = vld [vmem:[#allocation10 + $0xe20] sm:$0xff]
    %v3456 = vld [vmem:[#allocation10 + $0xe28] sm:$0xff]
    %v3457 = vld [vmem:[#allocation10 + $0xe30] sm:$0xff]
    %v3458 = vld [vmem:[#allocation10 + $0xe38] sm:$0xff]
    %v3459 = vld [vmem:[#allocation10 + $0xe40] sm:$0xff]
    %v3460 = vld [vmem:[#allocation10 + $0xe48] sm:$0xff]
    %v3461 = vld [vmem:[#allocation10 + $0xe50] sm:$0xff]
    %v3462 = vld [vmem:[#allocation10 + $0xe58] sm:$0xff]
    %v3463 = vld [vmem:[#allocation10 + $0xe60] sm:$0xff]
    %v3464 = vld [vmem:[#allocation10 + $0xe68] sm:$0xff]
    %v3465 = vld [vmem:[#allocation10 + $0xe70] sm:$0xff]
    %v3466 = vld [vmem:[#allocation10 + $0xe78] sm:$0xff]
    %v3467 = vld [vmem:[#allocation10 + $0xe80] sm:$0xff]
    %v3468 = vld [vmem:[#allocation10 + $0xe88] sm:$0xff]
    %v3469 = vld [vmem:[#allocation10 + $0xe90] sm:$0xff]
    %v3470 = vld [vmem:[#allocation10 + $0xe98] sm:$0xff]
    %v3471 = vld [vmem:[#allocation10 + $0xea0] sm:$0xff]
    %v3472 = vld [vmem:[#allocation10 + $0xea8] sm:$0xff]
    %v3473 = vld [vmem:[#allocation10 + $0xeb0] sm:$0xff]
    %v3474 = vld [vmem:[#allocation10 + $0xeb8] sm:$0xff]
    %v3475 = vld [vmem:[#allocation10 + $0xec0] sm:$0xff]
    %v3476 = vld [vmem:[#allocation10 + $0xec8] sm:$0xff]
    %v3477 = vld [vmem:[#allocation10 + $0xed0] sm:$0xff]
    %v3478 = vld [vmem:[#allocation10 + $0xed8] sm:$0xff]
    %v3479 = vld [vmem:[#allocation10 + $0xee0] sm:$0xff]
    %v3480 = vld [vmem:[#allocation10 + $0xee8] sm:$0xff]
    %v3481 = vld [vmem:[#allocation10 + $0xef0] sm:$0xff]
    %v3482 = vld [vmem:[#allocation10 + $0xef8] sm:$0xff]
    %v3483 = vld [vmem:[#allocation10 + $0xf00] sm:$0xff]
    %v3484 = vld [vmem:[#allocation10 + $0xf08] sm:$0xff]
    %v3485 = vld [vmem:[#allocation10 + $0xf10] sm:$0xff]
    %v3486 = vld [vmem:[#allocation10 + $0xf18] sm:$0xff]
    %v3487 = vld [vmem:[#allocation10 + $0xf20] sm:$0xff]
    %v3488 = vld [vmem:[#allocation10 + $0xf28] sm:$0xff]
    %v3489 = vld [vmem:[#allocation10 + $0xf30] sm:$0xff]
    %v3490 = vld [vmem:[#allocation10 + $0xf38] sm:$0xff]
    %v3491 = vld [vmem:[#allocation10 + $0xf40] sm:$0xff]
    %v3492 = vld [vmem:[#allocation10 + $0xf48] sm:$0xff]
    %v3493 = vld [vmem:[#allocation10 + $0xf50] sm:$0xff]
    %v3494 = vld [vmem:[#allocation10 + $0xf58] sm:$0xff]
    %v3495 = vld [vmem:[#allocation10 + $0xf60] sm:$0xff]
    %v3496 = vld [vmem:[#allocation10 + $0xf68] sm:$0xff]
    %v3497 = vld [vmem:[#allocation10 + $0xf70] sm:$0xff]
    %v3498 = vld [vmem:[#allocation10 + $0xf78] sm:$0xff]
    %v3499 = vld [vmem:[#allocation10 + $0xf80] sm:$0xff]
    %v3500 = vld [vmem:[#allocation10 + $0xf88] sm:$0xff]
    %v3501 = vld [vmem:[#allocation10 + $0xf90] sm:$0xff]
    %v3502 = vld [vmem:[#allocation10 + $0xf98] sm:$0xff]
    %v3503 = vld [vmem:[#allocation10 + $0xfa0] sm:$0xff]
    %v3504 = vld [vmem:[#allocation10 + $0xfa8] sm:$0xff]
    %v3505 = vld [vmem:[#allocation10 + $0xfb0] sm:$0xff]
    %v3506 = vld [vmem:[#allocation10 + $0xfb8] sm:$0xff]
    %v3507 = vld [vmem:[#allocation10 + $0xfc0] sm:$0xff]
    %v3508 = vld [vmem:[#allocation10 + $0xfc8] sm:$0xff]
    %v3509 = vld [vmem:[#allocation10 + $0xfd0] sm:$0xff]
    %v3510 = vld [vmem:[#allocation10 + $0xfd8] sm:$0xff]
    %v3511 = vld [vmem:[#allocation10 + $0xfe0] sm:$0xff]
    %v3512 = vld [vmem:[#allocation10 + $0xfe8] sm:$0xff]
    %v3513 = vld [vmem:[#allocation10 + $0xff0] sm:$0xff]
    %v3514 = vld [vmem:[#allocation10 + $0xff8] sm:$0xff]
    %v3515 = vld [vmem:[#allocation12] sm:$0xff]
    %v3517 = vlaneseq
    %v3518 = vshrl.u32 %v3517, 7
    %v3519 = vsub.s32 0, %v3518
    %v3520 = vrot.slane %v3515, %v3519
    %v3521 = vlaneseq
    %v3522 = vshrl.u32 %v3521, 7
    %v3523 = vsub.s32 1, %v3522
    %v3524 = vrot.slane %v3515, %v3523
    %v3525 = vlaneseq
    %v3526 = vshrl.u32 %v3525, 7
    %v3527 = vsub.s32 2, %v3526
    %v3528 = vrot.slane %v3515, %v3527
    %v3529 = vlaneseq
    %v3530 = vshrl.u32 %v3529, 7
    %v3531 = vsub.s32 3, %v3530
    %v3532 = vrot.slane %v3515, %v3531
    %v3533 = vlaneseq
    %v3534 = vshrl.u32 %v3533, 7
    %v3535 = vsub.s32 4, %v3534
    %v3536 = vrot.slane %v3515, %v3535
    %v3537 = vlaneseq
    %v3538 = vshrl.u32 %v3537, 7
    %v3539 = vsub.s32 5, %v3538
    %v3540 = vrot.slane %v3515, %v3539
    %v3541 = vlaneseq
    %v3542 = vshrl.u32 %v3541, 7
    %v3543 = vsub.s32 6, %v3542
    %v3544 = vrot.slane %v3515, %v3543
    %v3545 = vlaneseq
    %v3546 = vshrl.u32 %v3545, 7
    %v3547 = vsub.s32 7, %v3546
    %v3548 = vrot.slane %v3515, %v3547
    %v3621 = vunpack.c.l.b16 %v2939
    %v3622 = vunpack.c.h.b16 %v2939
    %v3623 = vunpack.c.l.b16 %v2940
    %v3624 = vunpack.c.h.b16 %v2940
    %v3625 = vunpack.c.l.b16 %v2941
    %v3626 = vunpack.c.h.b16 %v2941
    %v3627 = vunpack.c.l.b16 %v2942
    %v3628 = vunpack.c.h.b16 %v2942
    %v3629 = vunpack.c.l.b16 %v2943
    %v3630 = vunpack.c.h.b16 %v2943
    %v3631 = vunpack.c.l.b16 %v2944
    %v3632 = vunpack.c.h.b16 %v2944
    %v3633 = vunpack.c.l.b16 %v2945
    %v3634 = vunpack.c.h.b16 %v2945
    %v3635 = vunpack.c.l.b16 %v2946
    %v3636 = vunpack.c.h.b16 %v2946
    %v3637 = vunpack.c.l.b16 %v2947
    %v3638 = vunpack.c.h.b16 %v2947
    %v3639 = vunpack.c.l.b16 %v2948
    %v3640 = vunpack.c.h.b16 %v2948
    %v3641 = vunpack.c.l.b16 %v2949
    %v3642 = vunpack.c.h.b16 %v2949
    %v3643 = vunpack.c.l.b16 %v2950
    %v3644 = vunpack.c.h.b16 %v2950
    %v3645 = vunpack.c.l.b16 %v2951
    %v3646 = vunpack.c.h.b16 %v2951
    %v3647 = vunpack.c.l.b16 %v2952
    %v3648 = vunpack.c.h.b16 %v2952
    %v3649 = vunpack.c.l.b16 %v2953
    %v3650 = vunpack.c.h.b16 %v2953
    %v3651 = vunpack.c.l.b16 %v2954
    %v3652 = vunpack.c.h.b16 %v2954
    %v3653 = vunpack.c.l.b16 %v2955
    %v3654 = vunpack.c.h.b16 %v2955
    %v3655 = vunpack.c.l.b16 %v2956
    %v3656 = vunpack.c.h.b16 %v2956
    %v3657 = vunpack.c.l.b16 %v2957
    %v3658 = vunpack.c.h.b16 %v2957
    %v3659 = vunpack.c.l.b16 %v2958
    %v3660 = vunpack.c.h.b16 %v2958
    %v3661 = vunpack.c.l.b16 %v2959
    %v3662 = vunpack.c.h.b16 %v2959
    %v3663 = vunpack.c.l.b16 %v2960
    %v3664 = vunpack.c.h.b16 %v2960
    %v3665 = vunpack.c.l.b16 %v2961
    %v3666 = vunpack.c.h.b16 %v2961
    %v3667 = vunpack.c.l.b16 %v2962
    %v3668 = vunpack.c.h.b16 %v2962
    %v3669 = vunpack.c.l.b16 %v2963
    %v3670 = vunpack.c.h.b16 %v2963
    %v3671 = vunpack.c.l.b16 %v2964
    %v3672 = vunpack.c.h.b16 %v2964
    %v3673 = vunpack.c.l.b16 %v2965
    %v3674 = vunpack.c.h.b16 %v2965
    %v3675 = vunpack.c.l.b16 %v2966
    %v3676 = vunpack.c.h.b16 %v2966
    %v3677 = vunpack.c.l.b16 %v2967
    %v3678 = vunpack.c.h.b16 %v2967
    %v3679 = vunpack.c.l.b16 %v2968
    %v3680 = vunpack.c.h.b16 %v2968
    %v3681 = vunpack.c.l.b16 %v2969
    %v3682 = vunpack.c.h.b16 %v2969
    %v3683 = vunpack.c.l.b16 %v2970
    %v3684 = vunpack.c.h.b16 %v2970
    %v3685 = vunpack.c.l.b16 %v2971
    %v3686 = vunpack.c.h.b16 %v2971
    %v3687 = vunpack.c.l.b16 %v2972
    %v3688 = vunpack.c.h.b16 %v2972
    %v3689 = vunpack.c.l.b16 %v2973
    %v3690 = vunpack.c.h.b16 %v2973
    %v3691 = vunpack.c.l.b16 %v2974
    %v3692 = vunpack.c.h.b16 %v2974
    %v3693 = vunpack.c.l.b16 %v2975
    %v3694 = vunpack.c.h.b16 %v2975
    %v3695 = vunpack.c.l.b16 %v2976
    %v3696 = vunpack.c.h.b16 %v2976
    %v3697 = vunpack.c.l.b16 %v2977
    %v3698 = vunpack.c.h.b16 %v2977
    %v3699 = vunpack.c.l.b16 %v2978
    %v3700 = vunpack.c.h.b16 %v2978
    %v3701 = vunpack.c.l.b16 %v2979
    %v3702 = vunpack.c.h.b16 %v2979
    %v3703 = vunpack.c.l.b16 %v2980
    %v3704 = vunpack.c.h.b16 %v2980
    %v3705 = vunpack.c.l.b16 %v2981
    %v3706 = vunpack.c.h.b16 %v2981
    %v3707 = vunpack.c.l.b16 %v2982
    %v3708 = vunpack.c.h.b16 %v2982
    %v3709 = vunpack.c.l.b16 %v2983
    %v3710 = vunpack.c.h.b16 %v2983
    %v3711 = vunpack.c.l.b16 %v2984
    %v3712 = vunpack.c.h.b16 %v2984
    %v3713 = vunpack.c.l.b16 %v2985
    %v3714 = vunpack.c.h.b16 %v2985
    %v3715 = vunpack.c.l.b16 %v2986
    %v3716 = vunpack.c.h.b16 %v2986
    %v3717 = vunpack.c.l.b16 %v2987
    %v3718 = vunpack.c.h.b16 %v2987
    %v3719 = vunpack.c.l.b16 %v2988
    %v3720 = vunpack.c.h.b16 %v2988
    %v3721 = vunpack.c.l.b16 %v2989
    %v3722 = vunpack.c.h.b16 %v2989
    %v3723 = vunpack.c.l.b16 %v2990
    %v3724 = vunpack.c.h.b16 %v2990
    %v3725 = vunpack.c.l.b16 %v2991
    %v3726 = vunpack.c.h.b16 %v2991
    %v3727 = vunpack.c.l.b16 %v2992
    %v3728 = vunpack.c.h.b16 %v2992
    %v3729 = vunpack.c.l.b16 %v2993
    %v3730 = vunpack.c.h.b16 %v2993
    %v3731 = vunpack.c.l.b16 %v2994
    %v3732 = vunpack.c.h.b16 %v2994
    %v3733 = vunpack.c.l.b16 %v2995
    %v3734 = vunpack.c.h.b16 %v2995
    %v3735 = vunpack.c.l.b16 %v2996
    %v3736 = vunpack.c.h.b16 %v2996
    %v3737 = vunpack.c.l.b16 %v2997
    %v3738 = vunpack.c.h.b16 %v2997
    %v3739 = vunpack.c.l.b16 %v2998
    %v3740 = vunpack.c.h.b16 %v2998
    %v3741 = vunpack.c.l.b16 %v2999
    %v3742 = vunpack.c.h.b16 %v2999
    %v3743 = vunpack.c.l.b16 %v3000
    %v3744 = vunpack.c.h.b16 %v3000
    %v3745 = vunpack.c.l.b16 %v3001
    %v3746 = vunpack.c.h.b16 %v3001
    %v3747 = vunpack.c.l.b16 %v3002
    %v3748 = vunpack.c.h.b16 %v3002
    %v3749 = vpack.c.b16 %v3629, %v3621
    %v3750 = vpack.c.b16 %v3630, %v3622
    %v3751 = vpack.c.b16 %v3631, %v3623
    %v3752 = vpack.c.b16 %v3632, %v3624
    %v3753 = vpack.c.b16 %v3633, %v3625
    %v3754 = vpack.c.b16 %v3634, %v3626
    %v3755 = vpack.c.b16 %v3635, %v3627
    %v3756 = vpack.c.b16 %v3636, %v3628
    %v3757 = vpack.c.b16 %v3645, %v3637
    %v3758 = vpack.c.b16 %v3646, %v3638
    %v3759 = vpack.c.b16 %v3647, %v3639
    %v3760 = vpack.c.b16 %v3648, %v3640
    %v3761 = vpack.c.b16 %v3649, %v3641
    %v3762 = vpack.c.b16 %v3650, %v3642
    %v3763 = vpack.c.b16 %v3651, %v3643
    %v3764 = vpack.c.b16 %v3652, %v3644
    %v3765 = vpack.c.b16 %v3661, %v3653
    %v3766 = vpack.c.b16 %v3662, %v3654
    %v3767 = vpack.c.b16 %v3663, %v3655
    %v3768 = vpack.c.b16 %v3664, %v3656
    %v3769 = vpack.c.b16 %v3665, %v3657
    %v3770 = vpack.c.b16 %v3666, %v3658
    %v3771 = vpack.c.b16 %v3667, %v3659
    %v3772 = vpack.c.b16 %v3668, %v3660
    %v3773 = vpack.c.b16 %v3677, %v3669
    %v3774 = vpack.c.b16 %v3678, %v3670
    %v3775 = vpack.c.b16 %v3679, %v3671
    %v3776 = vpack.c.b16 %v3680, %v3672
    %v3777 = vpack.c.b16 %v3681, %v3673
    %v3778 = vpack.c.b16 %v3682, %v3674
    %v3779 = vpack.c.b16 %v3683, %v3675
    %v3780 = vpack.c.b16 %v3684, %v3676
    %v3781 = vpack.c.b16 %v3693, %v3685
    %v3782 = vpack.c.b16 %v3694, %v3686
    %v3783 = vpack.c.b16 %v3695, %v3687
    %v3784 = vpack.c.b16 %v3696, %v3688
    %v3785 = vpack.c.b16 %v3697, %v3689
    %v3786 = vpack.c.b16 %v3698, %v3690
    %v3787 = vpack.c.b16 %v3699, %v3691
    %v3788 = vpack.c.b16 %v3700, %v3692
    %v3789 = vpack.c.b16 %v3709, %v3701
    %v3790 = vpack.c.b16 %v3710, %v3702
    %v3791 = vpack.c.b16 %v3711, %v3703
    %v3792 = vpack.c.b16 %v3712, %v3704
    %v3793 = vpack.c.b16 %v3713, %v3705
    %v3794 = vpack.c.b16 %v3714, %v3706
    %v3795 = vpack.c.b16 %v3715, %v3707
    %v3796 = vpack.c.b16 %v3716, %v3708
    %v3797 = vpack.c.b16 %v3725, %v3717
    %v3798 = vpack.c.b16 %v3726, %v3718
    %v3799 = vpack.c.b16 %v3727, %v3719
    %v3800 = vpack.c.b16 %v3728, %v3720
    %v3801 = vpack.c.b16 %v3729, %v3721
    %v3802 = vpack.c.b16 %v3730, %v3722
    %v3803 = vpack.c.b16 %v3731, %v3723
    %v3804 = vpack.c.b16 %v3732, %v3724
    %v3805 = vpack.c.b16 %v3741, %v3733
    %v3806 = vpack.c.b16 %v3742, %v3734
    %v3807 = vpack.c.b16 %v3743, %v3735
    %v3808 = vpack.c.b16 %v3744, %v3736
    %v3809 = vpack.c.b16 %v3745, %v3737
    %v3810 = vpack.c.b16 %v3746, %v3738
    %v3811 = vpack.c.b16 %v3747, %v3739
    %v3812 = vpack.c.b16 %v3748, %v3740
    %v4389 = vunpack.c.l.b16 %v3003
    %v4390 = vunpack.c.h.b16 %v3003
    %v4391 = vunpack.c.l.b16 %v3004
    %v4392 = vunpack.c.h.b16 %v3004
    %v4393 = vunpack.c.l.b16 %v3005
    %v4394 = vunpack.c.h.b16 %v3005
    %v4395 = vunpack.c.l.b16 %v3006
    %v4396 = vunpack.c.h.b16 %v3006
    %v4397 = vunpack.c.l.b16 %v3007
    %v4398 = vunpack.c.h.b16 %v3007
    %v4399 = vunpack.c.l.b16 %v3008
    %v4400 = vunpack.c.h.b16 %v3008
    %v4401 = vunpack.c.l.b16 %v3009
    %v4402 = vunpack.c.h.b16 %v3009
    %v4403 = vunpack.c.l.b16 %v3010
    %v4404 = vunpack.c.h.b16 %v3010
    %v4405 = vunpack.c.l.b16 %v3011
    %v4406 = vunpack.c.h.b16 %v3011
    %v4407 = vunpack.c.l.b16 %v3012
    %v4408 = vunpack.c.h.b16 %v3012
    %v4409 = vunpack.c.l.b16 %v3013
    %v4410 = vunpack.c.h.b16 %v3013
    %v4411 = vunpack.c.l.b16 %v3014
    %v4412 = vunpack.c.h.b16 %v3014
    %v4413 = vunpack.c.l.b16 %v3015
    %v4414 = vunpack.c.h.b16 %v3015
    %v4415 = vunpack.c.l.b16 %v3016
    %v4416 = vunpack.c.h.b16 %v3016
    %v4417 = vunpack.c.l.b16 %v3017
    %v4418 = vunpack.c.h.b16 %v3017
    %v4419 = vunpack.c.l.b16 %v3018
    %v4420 = vunpack.c.h.b16 %v3018
    %v4421 = vunpack.c.l.b16 %v3019
    %v4422 = vunpack.c.h.b16 %v3019
    %v4423 = vunpack.c.l.b16 %v3020
    %v4424 = vunpack.c.h.b16 %v3020
    %v4425 = vunpack.c.l.b16 %v3021
    %v4426 = vunpack.c.h.b16 %v3021
    %v4427 = vunpack.c.l.b16 %v3022
    %v4428 = vunpack.c.h.b16 %v3022
    %v4429 = vunpack.c.l.b16 %v3023
    %v4430 = vunpack.c.h.b16 %v3023
    %v4431 = vunpack.c.l.b16 %v3024
    %v4432 = vunpack.c.h.b16 %v3024
    %v4433 = vunpack.c.l.b16 %v3025
    %v4434 = vunpack.c.h.b16 %v3025
    %v4435 = vunpack.c.l.b16 %v3026
    %v4436 = vunpack.c.h.b16 %v3026
    %v4437 = vunpack.c.l.b16 %v3027
    %v4438 = vunpack.c.h.b16 %v3027
    %v4439 = vunpack.c.l.b16 %v3028
    %v4440 = vunpack.c.h.b16 %v3028
    %v4441 = vunpack.c.l.b16 %v3029
    %v4442 = vunpack.c.h.b16 %v3029
    %v4443 = vunpack.c.l.b16 %v3030
    %v4444 = vunpack.c.h.b16 %v3030
    %v4445 = vunpack.c.l.b16 %v3031
    %v4446 = vunpack.c.h.b16 %v3031
    %v4447 = vunpack.c.l.b16 %v3032
    %v4448 = vunpack.c.h.b16 %v3032
    %v4449 = vunpack.c.l.b16 %v3033
    %v4450 = vunpack.c.h.b16 %v3033
    %v4451 = vunpack.c.l.b16 %v3034
    %v4452 = vunpack.c.h.b16 %v3034
    %v4453 = vunpack.c.l.b16 %v3035
    %v4454 = vunpack.c.h.b16 %v3035
    %v4455 = vunpack.c.l.b16 %v3036
    %v4456 = vunpack.c.h.b16 %v3036
    %v4457 = vunpack.c.l.b16 %v3037
    %v4458 = vunpack.c.h.b16 %v3037
    %v4459 = vunpack.c.l.b16 %v3038
    %v4460 = vunpack.c.h.b16 %v3038
    %v4461 = vunpack.c.l.b16 %v3039
    %v4462 = vunpack.c.h.b16 %v3039
    %v4463 = vunpack.c.l.b16 %v3040
    %v4464 = vunpack.c.h.b16 %v3040
    %v4465 = vunpack.c.l.b16 %v3041
    %v4466 = vunpack.c.h.b16 %v3041
    %v4467 = vunpack.c.l.b16 %v3042
    %v4468 = vunpack.c.h.b16 %v3042
    %v4469 = vunpack.c.l.b16 %v3043
    %v4470 = vunpack.c.h.b16 %v3043
    %v4471 = vunpack.c.l.b16 %v3044
    %v4472 = vunpack.c.h.b16 %v3044
    %v4473 = vunpack.c.l.b16 %v3045
    %v4474 = vunpack.c.h.b16 %v3045
    %v4475 = vunpack.c.l.b16 %v3046
    %v4476 = vunpack.c.h.b16 %v3046
    %v4477 = vunpack.c.l.b16 %v3047
    %v4478 = vunpack.c.h.b16 %v3047
    %v4479 = vunpack.c.l.b16 %v3048
    %v4480 = vunpack.c.h.b16 %v3048
    %v4481 = vunpack.c.l.b16 %v3049
    %v4482 = vunpack.c.h.b16 %v3049
    %v4483 = vunpack.c.l.b16 %v3050
    %v4484 = vunpack.c.h.b16 %v3050
    %v4485 = vunpack.c.l.b16 %v3051
    %v4486 = vunpack.c.h.b16 %v3051
    %v4487 = vunpack.c.l.b16 %v3052
    %v4488 = vunpack.c.h.b16 %v3052
    %v4489 = vunpack.c.l.b16 %v3053
    %v4490 = vunpack.c.h.b16 %v3053
    %v4491 = vunpack.c.l.b16 %v3054
    %v4492 = vunpack.c.h.b16 %v3054
    %v4493 = vunpack.c.l.b16 %v3055
    %v4494 = vunpack.c.h.b16 %v3055
    %v4495 = vunpack.c.l.b16 %v3056
    %v4496 = vunpack.c.h.b16 %v3056
    %v4497 = vunpack.c.l.b16 %v3057
    %v4498 = vunpack.c.h.b16 %v3057
    %v4499 = vunpack.c.l.b16 %v3058
    %v4500 = vunpack.c.h.b16 %v3058
    %v4501 = vunpack.c.l.b16 %v3059
    %v4502 = vunpack.c.h.b16 %v3059
    %v4503 = vunpack.c.l.b16 %v3060
    %v4504 = vunpack.c.h.b16 %v3060
    %v4505 = vunpack.c.l.b16 %v3061
    %v4506 = vunpack.c.h.b16 %v3061
    %v4507 = vunpack.c.l.b16 %v3062
    %v4508 = vunpack.c.h.b16 %v3062
    %v4509 = vunpack.c.l.b16 %v3063
    %v4510 = vunpack.c.h.b16 %v3063
    %v4511 = vunpack.c.l.b16 %v3064
    %v4512 = vunpack.c.h.b16 %v3064
    %v4513 = vunpack.c.l.b16 %v3065
    %v4514 = vunpack.c.h.b16 %v3065
    %v4515 = vunpack.c.l.b16 %v3066
    %v4516 = vunpack.c.h.b16 %v3066
    %v4517 = vunpack.c.l.b16 %v3067
    %v4518 = vunpack.c.h.b16 %v3067
    %v4519 = vunpack.c.l.b16 %v3068
    %v4520 = vunpack.c.h.b16 %v3068
    %v4521 = vunpack.c.l.b16 %v3069
    %v4522 = vunpack.c.h.b16 %v3069
    %v4523 = vunpack.c.l.b16 %v3070
    %v4524 = vunpack.c.h.b16 %v3070
    %v4525 = vunpack.c.l.b16 %v3071
    %v4526 = vunpack.c.h.b16 %v3071
    %v4527 = vunpack.c.l.b16 %v3072
    %v4528 = vunpack.c.h.b16 %v3072
    %v4529 = vunpack.c.l.b16 %v3073
    %v4530 = vunpack.c.h.b16 %v3073
    %v4531 = vunpack.c.l.b16 %v3074
    %v4532 = vunpack.c.h.b16 %v3074
    %v4533 = vunpack.c.l.b16 %v3075
    %v4534 = vunpack.c.h.b16 %v3075
    %v4535 = vunpack.c.l.b16 %v3076
    %v4536 = vunpack.c.h.b16 %v3076
    %v4537 = vunpack.c.l.b16 %v3077
    %v4538 = vunpack.c.h.b16 %v3077
    %v4539 = vunpack.c.l.b16 %v3078
    %v4540 = vunpack.c.h.b16 %v3078
    %v4541 = vunpack.c.l.b16 %v3079
    %v4542 = vunpack.c.h.b16 %v3079
    %v4543 = vunpack.c.l.b16 %v3080
    %v4544 = vunpack.c.h.b16 %v3080
    %v4545 = vunpack.c.l.b16 %v3081
    %v4546 = vunpack.c.h.b16 %v3081
    %v4547 = vunpack.c.l.b16 %v3082
    %v4548 = vunpack.c.h.b16 %v3082
    %v4549 = vunpack.c.l.b16 %v3083
    %v4550 = vunpack.c.h.b16 %v3083
    %v4551 = vunpack.c.l.b16 %v3084
    %v4552 = vunpack.c.h.b16 %v3084
    %v4553 = vunpack.c.l.b16 %v3085
    %v4554 = vunpack.c.h.b16 %v3085
    %v4555 = vunpack.c.l.b16 %v3086
    %v4556 = vunpack.c.h.b16 %v3086
    %v4557 = vunpack.c.l.b16 %v3087
    %v4558 = vunpack.c.h.b16 %v3087
    %v4559 = vunpack.c.l.b16 %v3088
    %v4560 = vunpack.c.h.b16 %v3088
    %v4561 = vunpack.c.l.b16 %v3089
    %v4562 = vunpack.c.h.b16 %v3089
    %v4563 = vunpack.c.l.b16 %v3090
    %v4564 = vunpack.c.h.b16 %v3090
    %v4565 = vunpack.c.l.b16 %v3091
    %v4566 = vunpack.c.h.b16 %v3091
    %v4567 = vunpack.c.l.b16 %v3092
    %v4568 = vunpack.c.h.b16 %v3092
    %v4569 = vunpack.c.l.b16 %v3093
    %v4570 = vunpack.c.h.b16 %v3093
    %v4571 = vunpack.c.l.b16 %v3094
    %v4572 = vunpack.c.h.b16 %v3094
    %v4573 = vunpack.c.l.b16 %v3095
    %v4574 = vunpack.c.h.b16 %v3095
    %v4575 = vunpack.c.l.b16 %v3096
    %v4576 = vunpack.c.h.b16 %v3096
    %v4577 = vunpack.c.l.b16 %v3097
    %v4578 = vunpack.c.h.b16 %v3097
    %v4579 = vunpack.c.l.b16 %v3098
    %v4580 = vunpack.c.h.b16 %v3098
    %v4581 = vunpack.c.l.b16 %v3099
    %v4582 = vunpack.c.h.b16 %v3099
    %v4583 = vunpack.c.l.b16 %v3100
    %v4584 = vunpack.c.h.b16 %v3100
    %v4585 = vunpack.c.l.b16 %v3101
    %v4586 = vunpack.c.h.b16 %v3101
    %v4587 = vunpack.c.l.b16 %v3102
    %v4588 = vunpack.c.h.b16 %v3102
    %v4589 = vunpack.c.l.b16 %v3103
    %v4590 = vunpack.c.h.b16 %v3103
    %v4591 = vunpack.c.l.b16 %v3104
    %v4592 = vunpack.c.h.b16 %v3104
    %v4593 = vunpack.c.l.b16 %v3105
    %v4594 = vunpack.c.h.b16 %v3105
    %v4595 = vunpack.c.l.b16 %v3106
    %v4596 = vunpack.c.h.b16 %v3106
    %v4597 = vunpack.c.l.b16 %v3107
    %v4598 = vunpack.c.h.b16 %v3107
    %v4599 = vunpack.c.l.b16 %v3108
    %v4600 = vunpack.c.h.b16 %v3108
    %v4601 = vunpack.c.l.b16 %v3109
    %v4602 = vunpack.c.h.b16 %v3109
    %v4603 = vunpack.c.l.b16 %v3110
    %v4604 = vunpack.c.h.b16 %v3110
    %v4605 = vunpack.c.l.b16 %v3111
    %v4606 = vunpack.c.h.b16 %v3111
    %v4607 = vunpack.c.l.b16 %v3112
    %v4608 = vunpack.c.h.b16 %v3112
    %v4609 = vunpack.c.l.b16 %v3113
    %v4610 = vunpack.c.h.b16 %v3113
    %v4611 = vunpack.c.l.b16 %v3114
    %v4612 = vunpack.c.h.b16 %v3114
    %v4613 = vunpack.c.l.b16 %v3115
    %v4614 = vunpack.c.h.b16 %v3115
    %v4615 = vunpack.c.l.b16 %v3116
    %v4616 = vunpack.c.h.b16 %v3116
    %v4617 = vunpack.c.l.b16 %v3117
    %v4618 = vunpack.c.h.b16 %v3117
    %v4619 = vunpack.c.l.b16 %v3118
    %v4620 = vunpack.c.h.b16 %v3118
    %v4621 = vunpack.c.l.b16 %v3119
    %v4622 = vunpack.c.h.b16 %v3119
    %v4623 = vunpack.c.l.b16 %v3120
    %v4624 = vunpack.c.h.b16 %v3120
    %v4625 = vunpack.c.l.b16 %v3121
    %v4626 = vunpack.c.h.b16 %v3121
    %v4627 = vunpack.c.l.b16 %v3122
    %v4628 = vunpack.c.h.b16 %v3122
    %v4629 = vunpack.c.l.b16 %v3123
    %v4630 = vunpack.c.h.b16 %v3123
    %v4631 = vunpack.c.l.b16 %v3124
    %v4632 = vunpack.c.h.b16 %v3124
    %v4633 = vunpack.c.l.b16 %v3125
    %v4634 = vunpack.c.h.b16 %v3125
    %v4635 = vunpack.c.l.b16 %v3126
    %v4636 = vunpack.c.h.b16 %v3126
    %v4637 = vunpack.c.l.b16 %v3127
    %v4638 = vunpack.c.h.b16 %v3127
    %v4639 = vunpack.c.l.b16 %v3128
    %v4640 = vunpack.c.h.b16 %v3128
    %v4641 = vunpack.c.l.b16 %v3129
    %v4642 = vunpack.c.h.b16 %v3129
    %v4643 = vunpack.c.l.b16 %v3130
    %v4644 = vunpack.c.h.b16 %v3130
    %v4645 = vunpack.c.l.b16 %v3131
    %v4646 = vunpack.c.h.b16 %v3131
    %v4647 = vunpack.c.l.b16 %v3132
    %v4648 = vunpack.c.h.b16 %v3132
    %v4649 = vunpack.c.l.b16 %v3133
    %v4650 = vunpack.c.h.b16 %v3133
    %v4651 = vunpack.c.l.b16 %v3134
    %v4652 = vunpack.c.h.b16 %v3134
    %v4653 = vunpack.c.l.b16 %v3135
    %v4654 = vunpack.c.h.b16 %v3135
    %v4655 = vunpack.c.l.b16 %v3136
    %v4656 = vunpack.c.h.b16 %v3136
    %v4657 = vunpack.c.l.b16 %v3137
    %v4658 = vunpack.c.h.b16 %v3137
    %v4659 = vunpack.c.l.b16 %v3138
    %v4660 = vunpack.c.h.b16 %v3138
    %v4661 = vunpack.c.l.b16 %v3139
    %v4662 = vunpack.c.h.b16 %v3139
    %v4663 = vunpack.c.l.b16 %v3140
    %v4664 = vunpack.c.h.b16 %v3140
    %v4665 = vunpack.c.l.b16 %v3141
    %v4666 = vunpack.c.h.b16 %v3141
    %v4667 = vunpack.c.l.b16 %v3142
    %v4668 = vunpack.c.h.b16 %v3142
    %v4669 = vunpack.c.l.b16 %v3143
    %v4670 = vunpack.c.h.b16 %v3143
    %v4671 = vunpack.c.l.b16 %v3144
    %v4672 = vunpack.c.h.b16 %v3144
    %v4673 = vunpack.c.l.b16 %v3145
    %v4674 = vunpack.c.h.b16 %v3145
    %v4675 = vunpack.c.l.b16 %v3146
    %v4676 = vunpack.c.h.b16 %v3146
    %v4677 = vunpack.c.l.b16 %v3147
    %v4678 = vunpack.c.h.b16 %v3147
    %v4679 = vunpack.c.l.b16 %v3148
    %v4680 = vunpack.c.h.b16 %v3148
    %v4681 = vunpack.c.l.b16 %v3149
    %v4682 = vunpack.c.h.b16 %v3149
    %v4683 = vunpack.c.l.b16 %v3150
    %v4684 = vunpack.c.h.b16 %v3150
    %v4685 = vunpack.c.l.b16 %v3151
    %v4686 = vunpack.c.h.b16 %v3151
    %v4687 = vunpack.c.l.b16 %v3152
    %v4688 = vunpack.c.h.b16 %v3152
    %v4689 = vunpack.c.l.b16 %v3153
    %v4690 = vunpack.c.h.b16 %v3153
    %v4691 = vunpack.c.l.b16 %v3154
    %v4692 = vunpack.c.h.b16 %v3154
    %v4693 = vunpack.c.l.b16 %v3155
    %v4694 = vunpack.c.h.b16 %v3155
    %v4695 = vunpack.c.l.b16 %v3156
    %v4696 = vunpack.c.h.b16 %v3156
    %v4697 = vunpack.c.l.b16 %v3157
    %v4698 = vunpack.c.h.b16 %v3157
    %v4699 = vunpack.c.l.b16 %v3158
    %v4700 = vunpack.c.h.b16 %v3158
    %v4701 = vunpack.c.l.b16 %v3159
    %v4702 = vunpack.c.h.b16 %v3159
    %v4703 = vunpack.c.l.b16 %v3160
    %v4704 = vunpack.c.h.b16 %v3160
    %v4705 = vunpack.c.l.b16 %v3161
    %v4706 = vunpack.c.h.b16 %v3161
    %v4707 = vunpack.c.l.b16 %v3162
    %v4708 = vunpack.c.h.b16 %v3162
    %v4709 = vunpack.c.l.b16 %v3163
    %v4710 = vunpack.c.h.b16 %v3163
    %v4711 = vunpack.c.l.b16 %v3164
    %v4712 = vunpack.c.h.b16 %v3164
    %v4713 = vunpack.c.l.b16 %v3165
    %v4714 = vunpack.c.h.b16 %v3165
    %v4715 = vunpack.c.l.b16 %v3166
    %v4716 = vunpack.c.h.b16 %v3166
    %v4717 = vunpack.c.l.b16 %v3167
    %v4718 = vunpack.c.h.b16 %v3167
    %v4719 = vunpack.c.l.b16 %v3168
    %v4720 = vunpack.c.h.b16 %v3168
    %v4721 = vunpack.c.l.b16 %v3169
    %v4722 = vunpack.c.h.b16 %v3169
    %v4723 = vunpack.c.l.b16 %v3170
    %v4724 = vunpack.c.h.b16 %v3170
    %v4725 = vunpack.c.l.b16 %v3171
    %v4726 = vunpack.c.h.b16 %v3171
    %v4727 = vunpack.c.l.b16 %v3172
    %v4728 = vunpack.c.h.b16 %v3172
    %v4729 = vunpack.c.l.b16 %v3173
    %v4730 = vunpack.c.h.b16 %v3173
    %v4731 = vunpack.c.l.b16 %v3174
    %v4732 = vunpack.c.h.b16 %v3174
    %v4733 = vunpack.c.l.b16 %v3175
    %v4734 = vunpack.c.h.b16 %v3175
    %v4735 = vunpack.c.l.b16 %v3176
    %v4736 = vunpack.c.h.b16 %v3176
    %v4737 = vunpack.c.l.b16 %v3177
    %v4738 = vunpack.c.h.b16 %v3177
    %v4739 = vunpack.c.l.b16 %v3178
    %v4740 = vunpack.c.h.b16 %v3178
    %v4741 = vunpack.c.l.b16 %v3179
    %v4742 = vunpack.c.h.b16 %v3179
    %v4743 = vunpack.c.l.b16 %v3180
    %v4744 = vunpack.c.h.b16 %v3180
    %v4745 = vunpack.c.l.b16 %v3181
    %v4746 = vunpack.c.h.b16 %v3181
    %v4747 = vunpack.c.l.b16 %v3182
    %v4748 = vunpack.c.h.b16 %v3182
    %v4749 = vunpack.c.l.b16 %v3183
    %v4750 = vunpack.c.h.b16 %v3183
    %v4751 = vunpack.c.l.b16 %v3184
    %v4752 = vunpack.c.h.b16 %v3184
    %v4753 = vunpack.c.l.b16 %v3185
    %v4754 = vunpack.c.h.b16 %v3185
    %v4755 = vunpack.c.l.b16 %v3186
    %v4756 = vunpack.c.h.b16 %v3186
    %v4757 = vunpack.c.l.b16 %v3187
    %v4758 = vunpack.c.h.b16 %v3187
    %v4759 = vunpack.c.l.b16 %v3188
    %v4760 = vunpack.c.h.b16 %v3188
    %v4761 = vunpack.c.l.b16 %v3189
    %v4762 = vunpack.c.h.b16 %v3189
    %v4763 = vunpack.c.l.b16 %v3190
    %v4764 = vunpack.c.h.b16 %v3190
    %v4765 = vunpack.c.l.b16 %v3191
    %v4766 = vunpack.c.h.b16 %v3191
    %v4767 = vunpack.c.l.b16 %v3192
    %v4768 = vunpack.c.h.b16 %v3192
    %v4769 = vunpack.c.l.b16 %v3193
    %v4770 = vunpack.c.h.b16 %v3193
    %v4771 = vunpack.c.l.b16 %v3194
    %v4772 = vunpack.c.h.b16 %v3194
    %v4773 = vunpack.c.l.b16 %v3195
    %v4774 = vunpack.c.h.b16 %v3195
    %v4775 = vunpack.c.l.b16 %v3196
    %v4776 = vunpack.c.h.b16 %v3196
    %v4777 = vunpack.c.l.b16 %v3197
    %v4778 = vunpack.c.h.b16 %v3197
    %v4779 = vunpack.c.l.b16 %v3198
    %v4780 = vunpack.c.h.b16 %v3198
    %v4781 = vunpack.c.l.b16 %v3199
    %v4782 = vunpack.c.h.b16 %v3199
    %v4783 = vunpack.c.l.b16 %v3200
    %v4784 = vunpack.c.h.b16 %v3200
    %v4785 = vunpack.c.l.b16 %v3201
    %v4786 = vunpack.c.h.b16 %v3201
    %v4787 = vunpack.c.l.b16 %v3202
    %v4788 = vunpack.c.h.b16 %v3202
    %v4789 = vunpack.c.l.b16 %v3203
    %v4790 = vunpack.c.h.b16 %v3203
    %v4791 = vunpack.c.l.b16 %v3204
    %v4792 = vunpack.c.h.b16 %v3204
    %v4793 = vunpack.c.l.b16 %v3205
    %v4794 = vunpack.c.h.b16 %v3205
    %v4795 = vunpack.c.l.b16 %v3206
    %v4796 = vunpack.c.h.b16 %v3206
    %v4797 = vunpack.c.l.b16 %v3207
    %v4798 = vunpack.c.h.b16 %v3207
    %v4799 = vunpack.c.l.b16 %v3208
    %v4800 = vunpack.c.h.b16 %v3208
    %v4801 = vunpack.c.l.b16 %v3209
    %v4802 = vunpack.c.h.b16 %v3209
    %v4803 = vunpack.c.l.b16 %v3210
    %v4804 = vunpack.c.h.b16 %v3210
    %v4805 = vunpack.c.l.b16 %v3211
    %v4806 = vunpack.c.h.b16 %v3211
    %v4807 = vunpack.c.l.b16 %v3212
    %v4808 = vunpack.c.h.b16 %v3212
    %v4809 = vunpack.c.l.b16 %v3213
    %v4810 = vunpack.c.h.b16 %v3213
    %v4811 = vunpack.c.l.b16 %v3214
    %v4812 = vunpack.c.h.b16 %v3214
    %v4813 = vunpack.c.l.b16 %v3215
    %v4814 = vunpack.c.h.b16 %v3215
    %v4815 = vunpack.c.l.b16 %v3216
    %v4816 = vunpack.c.h.b16 %v3216
    %v4817 = vunpack.c.l.b16 %v3217
    %v4818 = vunpack.c.h.b16 %v3217
    %v4819 = vunpack.c.l.b16 %v3218
    %v4820 = vunpack.c.h.b16 %v3218
    %v4821 = vunpack.c.l.b16 %v3219
    %v4822 = vunpack.c.h.b16 %v3219
    %v4823 = vunpack.c.l.b16 %v3220
    %v4824 = vunpack.c.h.b16 %v3220
    %v4825 = vunpack.c.l.b16 %v3221
    %v4826 = vunpack.c.h.b16 %v3221
    %v4827 = vunpack.c.l.b16 %v3222
    %v4828 = vunpack.c.h.b16 %v3222
    %v4829 = vunpack.c.l.b16 %v3223
    %v4830 = vunpack.c.h.b16 %v3223
    %v4831 = vunpack.c.l.b16 %v3224
    %v4832 = vunpack.c.h.b16 %v3224
    %v4833 = vunpack.c.l.b16 %v3225
    %v4834 = vunpack.c.h.b16 %v3225
    %v4835 = vunpack.c.l.b16 %v3226
    %v4836 = vunpack.c.h.b16 %v3226
    %v4837 = vunpack.c.l.b16 %v3227
    %v4838 = vunpack.c.h.b16 %v3227
    %v4839 = vunpack.c.l.b16 %v3228
    %v4840 = vunpack.c.h.b16 %v3228
    %v4841 = vunpack.c.l.b16 %v3229
    %v4842 = vunpack.c.h.b16 %v3229
    %v4843 = vunpack.c.l.b16 %v3230
    %v4844 = vunpack.c.h.b16 %v3230
    %v4845 = vunpack.c.l.b16 %v3231
    %v4846 = vunpack.c.h.b16 %v3231
    %v4847 = vunpack.c.l.b16 %v3232
    %v4848 = vunpack.c.h.b16 %v3232
    %v4849 = vunpack.c.l.b16 %v3233
    %v4850 = vunpack.c.h.b16 %v3233
    %v4851 = vunpack.c.l.b16 %v3234
    %v4852 = vunpack.c.h.b16 %v3234
    %v4853 = vunpack.c.l.b16 %v3235
    %v4854 = vunpack.c.h.b16 %v3235
    %v4855 = vunpack.c.l.b16 %v3236
    %v4856 = vunpack.c.h.b16 %v3236
    %v4857 = vunpack.c.l.b16 %v3237
    %v4858 = vunpack.c.h.b16 %v3237
    %v4859 = vunpack.c.l.b16 %v3238
    %v4860 = vunpack.c.h.b16 %v3238
    %v4861 = vunpack.c.l.b16 %v3239
    %v4862 = vunpack.c.h.b16 %v3239
    %v4863 = vunpack.c.l.b16 %v3240
    %v4864 = vunpack.c.h.b16 %v3240
    %v4865 = vunpack.c.l.b16 %v3241
    %v4866 = vunpack.c.h.b16 %v3241
    %v4867 = vunpack.c.l.b16 %v3242
    %v4868 = vunpack.c.h.b16 %v3242
    %v4869 = vunpack.c.l.b16 %v3243
    %v4870 = vunpack.c.h.b16 %v3243
    %v4871 = vunpack.c.l.b16 %v3244
    %v4872 = vunpack.c.h.b16 %v3244
    %v4873 = vunpack.c.l.b16 %v3245
    %v4874 = vunpack.c.h.b16 %v3245
    %v4875 = vunpack.c.l.b16 %v3246
    %v4876 = vunpack.c.h.b16 %v3246
    %v4877 = vunpack.c.l.b16 %v3247
    %v4878 = vunpack.c.h.b16 %v3247
    %v4879 = vunpack.c.l.b16 %v3248
    %v4880 = vunpack.c.h.b16 %v3248
    %v4881 = vunpack.c.l.b16 %v3249
    %v4882 = vunpack.c.h.b16 %v3249
    %v4883 = vunpack.c.l.b16 %v3250
    %v4884 = vunpack.c.h.b16 %v3250
    %v4885 = vunpack.c.l.b16 %v3251
    %v4886 = vunpack.c.h.b16 %v3251
    %v4887 = vunpack.c.l.b16 %v3252
    %v4888 = vunpack.c.h.b16 %v3252
    %v4889 = vunpack.c.l.b16 %v3253
    %v4890 = vunpack.c.h.b16 %v3253
    %v4891 = vunpack.c.l.b16 %v3254
    %v4892 = vunpack.c.h.b16 %v3254
    %v4893 = vunpack.c.l.b16 %v3255
    %v4894 = vunpack.c.h.b16 %v3255
    %v4895 = vunpack.c.l.b16 %v3256
    %v4896 = vunpack.c.h.b16 %v3256
    %v4897 = vunpack.c.l.b16 %v3257
    %v4898 = vunpack.c.h.b16 %v3257
    %v4899 = vunpack.c.l.b16 %v3258
    %v4900 = vunpack.c.h.b16 %v3258
    %v4901 = vunpack.c.l.b16 %v3259
    %v4902 = vunpack.c.h.b16 %v3259
    %v4903 = vunpack.c.l.b16 %v3260
    %v4904 = vunpack.c.h.b16 %v3260
    %v4905 = vunpack.c.l.b16 %v3261
    %v4906 = vunpack.c.h.b16 %v3261
    %v4907 = vunpack.c.l.b16 %v3262
    %v4908 = vunpack.c.h.b16 %v3262
    %v4909 = vunpack.c.l.b16 %v3263
    %v4910 = vunpack.c.h.b16 %v3263
    %v4911 = vunpack.c.l.b16 %v3264
    %v4912 = vunpack.c.h.b16 %v3264
    %v4913 = vunpack.c.l.b16 %v3265
    %v4914 = vunpack.c.h.b16 %v3265
    %v4915 = vunpack.c.l.b16 %v3266
    %v4916 = vunpack.c.h.b16 %v3266
    %v4917 = vunpack.c.l.b16 %v3267
    %v4918 = vunpack.c.h.b16 %v3267
    %v4919 = vunpack.c.l.b16 %v3268
    %v4920 = vunpack.c.h.b16 %v3268
    %v4921 = vunpack.c.l.b16 %v3269
    %v4922 = vunpack.c.h.b16 %v3269
    %v4923 = vunpack.c.l.b16 %v3270
    %v4924 = vunpack.c.h.b16 %v3270
    %v4925 = vunpack.c.l.b16 %v3271
    %v4926 = vunpack.c.h.b16 %v3271
    %v4927 = vunpack.c.l.b16 %v3272
    %v4928 = vunpack.c.h.b16 %v3272
    %v4929 = vunpack.c.l.b16 %v3273
    %v4930 = vunpack.c.h.b16 %v3273
    %v4931 = vunpack.c.l.b16 %v3274
    %v4932 = vunpack.c.h.b16 %v3274
    %v4933 = vunpack.c.l.b16 %v3275
    %v4934 = vunpack.c.h.b16 %v3275
    %v4935 = vunpack.c.l.b16 %v3276
    %v4936 = vunpack.c.h.b16 %v3276
    %v4937 = vunpack.c.l.b16 %v3277
    %v4938 = vunpack.c.h.b16 %v3277
    %v4939 = vunpack.c.l.b16 %v3278
    %v4940 = vunpack.c.h.b16 %v3278
    %v4941 = vunpack.c.l.b16 %v3279
    %v4942 = vunpack.c.h.b16 %v3279
    %v4943 = vunpack.c.l.b16 %v3280
    %v4944 = vunpack.c.h.b16 %v3280
    %v4945 = vunpack.c.l.b16 %v3281
    %v4946 = vunpack.c.h.b16 %v3281
    %v4947 = vunpack.c.l.b16 %v3282
    %v4948 = vunpack.c.h.b16 %v3282
    %v4949 = vunpack.c.l.b16 %v3283
    %v4950 = vunpack.c.h.b16 %v3283
    %v4951 = vunpack.c.l.b16 %v3284
    %v4952 = vunpack.c.h.b16 %v3284
    %v4953 = vunpack.c.l.b16 %v3285
    %v4954 = vunpack.c.h.b16 %v3285
    %v4955 = vunpack.c.l.b16 %v3286
    %v4956 = vunpack.c.h.b16 %v3286
    %v4957 = vunpack.c.l.b16 %v3287
    %v4958 = vunpack.c.h.b16 %v3287
    %v4959 = vunpack.c.l.b16 %v3288
    %v4960 = vunpack.c.h.b16 %v3288
    %v4961 = vunpack.c.l.b16 %v3289
    %v4962 = vunpack.c.h.b16 %v3289
    %v4963 = vunpack.c.l.b16 %v3290
    %v4964 = vunpack.c.h.b16 %v3290
    %v4965 = vunpack.c.l.b16 %v3291
    %v4966 = vunpack.c.h.b16 %v3291
    %v4967 = vunpack.c.l.b16 %v3292
    %v4968 = vunpack.c.h.b16 %v3292
    %v4969 = vunpack.c.l.b16 %v3293
    %v4970 = vunpack.c.h.b16 %v3293
    %v4971 = vunpack.c.l.b16 %v3294
    %v4972 = vunpack.c.h.b16 %v3294
    %v4973 = vunpack.c.l.b16 %v3295
    %v4974 = vunpack.c.h.b16 %v3295
    %v4975 = vunpack.c.l.b16 %v3296
    %v4976 = vunpack.c.h.b16 %v3296
    %v4977 = vunpack.c.l.b16 %v3297
    %v4978 = vunpack.c.h.b16 %v3297
    %v4979 = vunpack.c.l.b16 %v3298
    %v4980 = vunpack.c.h.b16 %v3298
    %v4981 = vunpack.c.l.b16 %v3299
    %v4982 = vunpack.c.h.b16 %v3299
    %v4983 = vunpack.c.l.b16 %v3300
    %v4984 = vunpack.c.h.b16 %v3300
    %v4985 = vunpack.c.l.b16 %v3301
    %v4986 = vunpack.c.h.b16 %v3301
    %v4987 = vunpack.c.l.b16 %v3302
    %v4988 = vunpack.c.h.b16 %v3302
    %v4989 = vunpack.c.l.b16 %v3303
    %v4990 = vunpack.c.h.b16 %v3303
    %v4991 = vunpack.c.l.b16 %v3304
    %v4992 = vunpack.c.h.b16 %v3304
    %v4993 = vunpack.c.l.b16 %v3305
    %v4994 = vunpack.c.h.b16 %v3305
    %v4995 = vunpack.c.l.b16 %v3306
    %v4996 = vunpack.c.h.b16 %v3306
    %v4997 = vunpack.c.l.b16 %v3307
    %v4998 = vunpack.c.h.b16 %v3307
    %v4999 = vunpack.c.l.b16 %v3308
    %v5000 = vunpack.c.h.b16 %v3308
    %v5001 = vunpack.c.l.b16 %v3309
    %v5002 = vunpack.c.h.b16 %v3309
    %v5003 = vunpack.c.l.b16 %v3310
    %v5004 = vunpack.c.h.b16 %v3310
    %v5005 = vunpack.c.l.b16 %v3311
    %v5006 = vunpack.c.h.b16 %v3311
    %v5007 = vunpack.c.l.b16 %v3312
    %v5008 = vunpack.c.h.b16 %v3312
    %v5009 = vunpack.c.l.b16 %v3313
    %v5010 = vunpack.c.h.b16 %v3313
    %v5011 = vunpack.c.l.b16 %v3314
    %v5012 = vunpack.c.h.b16 %v3314
    %v5013 = vunpack.c.l.b16 %v3315
    %v5014 = vunpack.c.h.b16 %v3315
    %v5015 = vunpack.c.l.b16 %v3316
    %v5016 = vunpack.c.h.b16 %v3316
    %v5017 = vunpack.c.l.b16 %v3317
    %v5018 = vunpack.c.h.b16 %v3317
    %v5019 = vunpack.c.l.b16 %v3318
    %v5020 = vunpack.c.h.b16 %v3318
    %v5021 = vunpack.c.l.b16 %v3319
    %v5022 = vunpack.c.h.b16 %v3319
    %v5023 = vunpack.c.l.b16 %v3320
    %v5024 = vunpack.c.h.b16 %v3320
    %v5025 = vunpack.c.l.b16 %v3321
    %v5026 = vunpack.c.h.b16 %v3321
    %v5027 = vunpack.c.l.b16 %v3322
    %v5028 = vunpack.c.h.b16 %v3322
    %v5029 = vunpack.c.l.b16 %v3323
    %v5030 = vunpack.c.h.b16 %v3323
    %v5031 = vunpack.c.l.b16 %v3324
    %v5032 = vunpack.c.h.b16 %v3324
    %v5033 = vunpack.c.l.b16 %v3325
    %v5034 = vunpack.c.h.b16 %v3325
    %v5035 = vunpack.c.l.b16 %v3326
    %v5036 = vunpack.c.h.b16 %v3326
    %v5037 = vunpack.c.l.b16 %v3327
    %v5038 = vunpack.c.h.b16 %v3327
    %v5039 = vunpack.c.l.b16 %v3328
    %v5040 = vunpack.c.h.b16 %v3328
    %v5041 = vunpack.c.l.b16 %v3329
    %v5042 = vunpack.c.h.b16 %v3329
    %v5043 = vunpack.c.l.b16 %v3330
    %v5044 = vunpack.c.h.b16 %v3330
    %v5045 = vunpack.c.l.b16 %v3331
    %v5046 = vunpack.c.h.b16 %v3331
    %v5047 = vunpack.c.l.b16 %v3332
    %v5048 = vunpack.c.h.b16 %v3332
    %v5049 = vunpack.c.l.b16 %v3333
    %v5050 = vunpack.c.h.b16 %v3333
    %v5051 = vunpack.c.l.b16 %v3334
    %v5052 = vunpack.c.h.b16 %v3334
    %v5053 = vunpack.c.l.b16 %v3335
    %v5054 = vunpack.c.h.b16 %v3335
    %v5055 = vunpack.c.l.b16 %v3336
    %v5056 = vunpack.c.h.b16 %v3336
    %v5057 = vunpack.c.l.b16 %v3337
    %v5058 = vunpack.c.h.b16 %v3337
    %v5059 = vunpack.c.l.b16 %v3338
    %v5060 = vunpack.c.h.b16 %v3338
    %v5061 = vunpack.c.l.b16 %v3339
    %v5062 = vunpack.c.h.b16 %v3339
    %v5063 = vunpack.c.l.b16 %v3340
    %v5064 = vunpack.c.h.b16 %v3340
    %v5065 = vunpack.c.l.b16 %v3341
    %v5066 = vunpack.c.h.b16 %v3341
    %v5067 = vunpack.c.l.b16 %v3342
    %v5068 = vunpack.c.h.b16 %v3342
    %v5069 = vunpack.c.l.b16 %v3343
    %v5070 = vunpack.c.h.b16 %v3343
    %v5071 = vunpack.c.l.b16 %v3344
    %v5072 = vunpack.c.h.b16 %v3344
    %v5073 = vunpack.c.l.b16 %v3345
    %v5074 = vunpack.c.h.b16 %v3345
    %v5075 = vunpack.c.l.b16 %v3346
    %v5076 = vunpack.c.h.b16 %v3346
    %v5077 = vunpack.c.l.b16 %v3347
    %v5078 = vunpack.c.h.b16 %v3347
    %v5079 = vunpack.c.l.b16 %v3348
    %v5080 = vunpack.c.h.b16 %v3348
    %v5081 = vunpack.c.l.b16 %v3349
    %v5082 = vunpack.c.h.b16 %v3349
    %v5083 = vunpack.c.l.b16 %v3350
    %v5084 = vunpack.c.h.b16 %v3350
    %v5085 = vunpack.c.l.b16 %v3351
    %v5086 = vunpack.c.h.b16 %v3351
    %v5087 = vunpack.c.l.b16 %v3352
    %v5088 = vunpack.c.h.b16 %v3352
    %v5089 = vunpack.c.l.b16 %v3353
    %v5090 = vunpack.c.h.b16 %v3353
    %v5091 = vunpack.c.l.b16 %v3354
    %v5092 = vunpack.c.h.b16 %v3354
    %v5093 = vunpack.c.l.b16 %v3355
    %v5094 = vunpack.c.h.b16 %v3355
    %v5095 = vunpack.c.l.b16 %v3356
    %v5096 = vunpack.c.h.b16 %v3356
    %v5097 = vunpack.c.l.b16 %v3357
    %v5098 = vunpack.c.h.b16 %v3357
    %v5099 = vunpack.c.l.b16 %v3358
    %v5100 = vunpack.c.h.b16 %v3358
    %v5101 = vunpack.c.l.b16 %v3359
    %v5102 = vunpack.c.h.b16 %v3359
    %v5103 = vunpack.c.l.b16 %v3360
    %v5104 = vunpack.c.h.b16 %v3360
    %v5105 = vunpack.c.l.b16 %v3361
    %v5106 = vunpack.c.h.b16 %v3361
    %v5107 = vunpack.c.l.b16 %v3362
    %v5108 = vunpack.c.h.b16 %v3362
    %v5109 = vunpack.c.l.b16 %v3363
    %v5110 = vunpack.c.h.b16 %v3363
    %v5111 = vunpack.c.l.b16 %v3364
    %v5112 = vunpack.c.h.b16 %v3364
    %v5113 = vunpack.c.l.b16 %v3365
    %v5114 = vunpack.c.h.b16 %v3365
    %v5115 = vunpack.c.l.b16 %v3366
    %v5116 = vunpack.c.h.b16 %v3366
    %v5117 = vunpack.c.l.b16 %v3367
    %v5118 = vunpack.c.h.b16 %v3367
    %v5119 = vunpack.c.l.b16 %v3368
    %v5120 = vunpack.c.h.b16 %v3368
    %v5121 = vunpack.c.l.b16 %v3369
    %v5122 = vunpack.c.h.b16 %v3369
    %v5123 = vunpack.c.l.b16 %v3370
    %v5124 = vunpack.c.h.b16 %v3370
    %v5125 = vunpack.c.l.b16 %v3371
    %v5126 = vunpack.c.h.b16 %v3371
    %v5127 = vunpack.c.l.b16 %v3372
    %v5128 = vunpack.c.h.b16 %v3372
    %v5129 = vunpack.c.l.b16 %v3373
    %v5130 = vunpack.c.h.b16 %v3373
    %v5131 = vunpack.c.l.b16 %v3374
    %v5132 = vunpack.c.h.b16 %v3374
    %v5133 = vunpack.c.l.b16 %v3375
    %v5134 = vunpack.c.h.b16 %v3375
    %v5135 = vunpack.c.l.b16 %v3376
    %v5136 = vunpack.c.h.b16 %v3376
    %v5137 = vunpack.c.l.b16 %v3377
    %v5138 = vunpack.c.h.b16 %v3377
    %v5139 = vunpack.c.l.b16 %v3378
    %v5140 = vunpack.c.h.b16 %v3378
    %v5141 = vunpack.c.l.b16 %v3379
    %v5142 = vunpack.c.h.b16 %v3379
    %v5143 = vunpack.c.l.b16 %v3380
    %v5144 = vunpack.c.h.b16 %v3380
    %v5145 = vunpack.c.l.b16 %v3381
    %v5146 = vunpack.c.h.b16 %v3381
    %v5147 = vunpack.c.l.b16 %v3382
    %v5148 = vunpack.c.h.b16 %v3382
    %v5149 = vunpack.c.l.b16 %v3383
    %v5150 = vunpack.c.h.b16 %v3383
    %v5151 = vunpack.c.l.b16 %v3384
    %v5152 = vunpack.c.h.b16 %v3384
    %v5153 = vunpack.c.l.b16 %v3385
    %v5154 = vunpack.c.h.b16 %v3385
    %v5155 = vunpack.c.l.b16 %v3386
    %v5156 = vunpack.c.h.b16 %v3386
    %v5157 = vunpack.c.l.b16 %v3387
    %v5158 = vunpack.c.h.b16 %v3387
    %v5159 = vunpack.c.l.b16 %v3388
    %v5160 = vunpack.c.h.b16 %v3388
    %v5161 = vunpack.c.l.b16 %v3389
    %v5162 = vunpack.c.h.b16 %v3389
    %v5163 = vunpack.c.l.b16 %v3390
    %v5164 = vunpack.c.h.b16 %v3390
    %v5165 = vunpack.c.l.b16 %v3391
    %v5166 = vunpack.c.h.b16 %v3391
    %v5167 = vunpack.c.l.b16 %v3392
    %v5168 = vunpack.c.h.b16 %v3392
    %v5169 = vunpack.c.l.b16 %v3393
    %v5170 = vunpack.c.h.b16 %v3393
    %v5171 = vunpack.c.l.b16 %v3394
    %v5172 = vunpack.c.h.b16 %v3394
    %v5173 = vunpack.c.l.b16 %v3395
    %v5174 = vunpack.c.h.b16 %v3395
    %v5175 = vunpack.c.l.b16 %v3396
    %v5176 = vunpack.c.h.b16 %v3396
    %v5177 = vunpack.c.l.b16 %v3397
    %v5178 = vunpack.c.h.b16 %v3397
    %v5179 = vunpack.c.l.b16 %v3398
    %v5180 = vunpack.c.h.b16 %v3398
    %v5181 = vunpack.c.l.b16 %v3399
    %v5182 = vunpack.c.h.b16 %v3399
    %v5183 = vunpack.c.l.b16 %v3400
    %v5184 = vunpack.c.h.b16 %v3400
    %v5185 = vunpack.c.l.b16 %v3401
    %v5186 = vunpack.c.h.b16 %v3401
    %v5187 = vunpack.c.l.b16 %v3402
    %v5188 = vunpack.c.h.b16 %v3402
    %v5189 = vunpack.c.l.b16 %v3403
    %v5190 = vunpack.c.h.b16 %v3403
    %v5191 = vunpack.c.l.b16 %v3404
    %v5192 = vunpack.c.h.b16 %v3404
    %v5193 = vunpack.c.l.b16 %v3405
    %v5194 = vunpack.c.h.b16 %v3405
    %v5195 = vunpack.c.l.b16 %v3406
    %v5196 = vunpack.c.h.b16 %v3406
    %v5197 = vunpack.c.l.b16 %v3407
    %v5198 = vunpack.c.h.b16 %v3407
    %v5199 = vunpack.c.l.b16 %v3408
    %v5200 = vunpack.c.h.b16 %v3408
    %v5201 = vunpack.c.l.b16 %v3409
    %v5202 = vunpack.c.h.b16 %v3409
    %v5203 = vunpack.c.l.b16 %v3410
    %v5204 = vunpack.c.h.b16 %v3410
    %v5205 = vunpack.c.l.b16 %v3411
    %v5206 = vunpack.c.h.b16 %v3411
    %v5207 = vunpack.c.l.b16 %v3412
    %v5208 = vunpack.c.h.b16 %v3412
    %v5209 = vunpack.c.l.b16 %v3413
    %v5210 = vunpack.c.h.b16 %v3413
    %v5211 = vunpack.c.l.b16 %v3414
    %v5212 = vunpack.c.h.b16 %v3414
    %v5213 = vunpack.c.l.b16 %v3415
    %v5214 = vunpack.c.h.b16 %v3415
    %v5215 = vunpack.c.l.b16 %v3416
    %v5216 = vunpack.c.h.b16 %v3416
    %v5217 = vunpack.c.l.b16 %v3417
    %v5218 = vunpack.c.h.b16 %v3417
    %v5219 = vunpack.c.l.b16 %v3418
    %v5220 = vunpack.c.h.b16 %v3418
    %v5221 = vunpack.c.l.b16 %v3419
    %v5222 = vunpack.c.h.b16 %v3419
    %v5223 = vunpack.c.l.b16 %v3420
    %v5224 = vunpack.c.h.b16 %v3420
    %v5225 = vunpack.c.l.b16 %v3421
    %v5226 = vunpack.c.h.b16 %v3421
    %v5227 = vunpack.c.l.b16 %v3422
    %v5228 = vunpack.c.h.b16 %v3422
    %v5229 = vunpack.c.l.b16 %v3423
    %v5230 = vunpack.c.h.b16 %v3423
    %v5231 = vunpack.c.l.b16 %v3424
    %v5232 = vunpack.c.h.b16 %v3424
    %v5233 = vunpack.c.l.b16 %v3425
    %v5234 = vunpack.c.h.b16 %v3425
    %v5235 = vunpack.c.l.b16 %v3426
    %v5236 = vunpack.c.h.b16 %v3426
    %v5237 = vunpack.c.l.b16 %v3427
    %v5238 = vunpack.c.h.b16 %v3427
    %v5239 = vunpack.c.l.b16 %v3428
    %v5240 = vunpack.c.h.b16 %v3428
    %v5241 = vunpack.c.l.b16 %v3429
    %v5242 = vunpack.c.h.b16 %v3429
    %v5243 = vunpack.c.l.b16 %v3430
    %v5244 = vunpack.c.h.b16 %v3430
    %v5245 = vunpack.c.l.b16 %v3431
    %v5246 = vunpack.c.h.b16 %v3431
    %v5247 = vunpack.c.l.b16 %v3432
    %v5248 = vunpack.c.h.b16 %v3432
    %v5249 = vunpack.c.l.b16 %v3433
    %v5250 = vunpack.c.h.b16 %v3433
    %v5251 = vunpack.c.l.b16 %v3434
    %v5252 = vunpack.c.h.b16 %v3434
    %v5253 = vunpack.c.l.b16 %v3435
    %v5254 = vunpack.c.h.b16 %v3435
    %v5255 = vunpack.c.l.b16 %v3436
    %v5256 = vunpack.c.h.b16 %v3436
    %v5257 = vunpack.c.l.b16 %v3437
    %v5258 = vunpack.c.h.b16 %v3437
    %v5259 = vunpack.c.l.b16 %v3438
    %v5260 = vunpack.c.h.b16 %v3438
    %v5261 = vunpack.c.l.b16 %v3439
    %v5262 = vunpack.c.h.b16 %v3439
    %v5263 = vunpack.c.l.b16 %v3440
    %v5264 = vunpack.c.h.b16 %v3440
    %v5265 = vunpack.c.l.b16 %v3441
    %v5266 = vunpack.c.h.b16 %v3441
    %v5267 = vunpack.c.l.b16 %v3442
    %v5268 = vunpack.c.h.b16 %v3442
    %v5269 = vunpack.c.l.b16 %v3443
    %v5270 = vunpack.c.h.b16 %v3443
    %v5271 = vunpack.c.l.b16 %v3444
    %v5272 = vunpack.c.h.b16 %v3444
    %v5273 = vunpack.c.l.b16 %v3445
    %v5274 = vunpack.c.h.b16 %v3445
    %v5275 = vunpack.c.l.b16 %v3446
    %v5276 = vunpack.c.h.b16 %v3446
    %v5277 = vunpack.c.l.b16 %v3447
    %v5278 = vunpack.c.h.b16 %v3447
    %v5279 = vunpack.c.l.b16 %v3448
    %v5280 = vunpack.c.h.b16 %v3448
    %v5281 = vunpack.c.l.b16 %v3449
    %v5282 = vunpack.c.h.b16 %v3449
    %v5283 = vunpack.c.l.b16 %v3450
    %v5284 = vunpack.c.h.b16 %v3450
    %v5285 = vunpack.c.l.b16 %v3451
    %v5286 = vunpack.c.h.b16 %v3451
    %v5287 = vunpack.c.l.b16 %v3452
    %v5288 = vunpack.c.h.b16 %v3452
    %v5289 = vunpack.c.l.b16 %v3453
    %v5290 = vunpack.c.h.b16 %v3453
    %v5291 = vunpack.c.l.b16 %v3454
    %v5292 = vunpack.c.h.b16 %v3454
    %v5293 = vunpack.c.l.b16 %v3455
    %v5294 = vunpack.c.h.b16 %v3455
    %v5295 = vunpack.c.l.b16 %v3456
    %v5296 = vunpack.c.h.b16 %v3456
    %v5297 = vunpack.c.l.b16 %v3457
    %v5298 = vunpack.c.h.b16 %v3457
    %v5299 = vunpack.c.l.b16 %v3458
    %v5300 = vunpack.c.h.b16 %v3458
    %v5301 = vunpack.c.l.b16 %v3459
    %v5302 = vunpack.c.h.b16 %v3459
    %v5303 = vunpack.c.l.b16 %v3460
    %v5304 = vunpack.c.h.b16 %v3460
    %v5305 = vunpack.c.l.b16 %v3461
    %v5306 = vunpack.c.h.b16 %v3461
    %v5307 = vunpack.c.l.b16 %v3462
    %v5308 = vunpack.c.h.b16 %v3462
    %v5309 = vunpack.c.l.b16 %v3463
    %v5310 = vunpack.c.h.b16 %v3463
    %v5311 = vunpack.c.l.b16 %v3464
    %v5312 = vunpack.c.h.b16 %v3464
    %v5313 = vunpack.c.l.b16 %v3465
    %v5314 = vunpack.c.h.b16 %v3465
    %v5315 = vunpack.c.l.b16 %v3466
    %v5316 = vunpack.c.h.b16 %v3466
    %v5317 = vunpack.c.l.b16 %v3467
    %v5318 = vunpack.c.h.b16 %v3467
    %v5319 = vunpack.c.l.b16 %v3468
    %v5320 = vunpack.c.h.b16 %v3468
    %v5321 = vunpack.c.l.b16 %v3469
    %v5322 = vunpack.c.h.b16 %v3469
    %v5323 = vunpack.c.l.b16 %v3470
    %v5324 = vunpack.c.h.b16 %v3470
    %v5325 = vunpack.c.l.b16 %v3471
    %v5326 = vunpack.c.h.b16 %v3471
    %v5327 = vunpack.c.l.b16 %v3472
    %v5328 = vunpack.c.h.b16 %v3472
    %v5329 = vunpack.c.l.b16 %v3473
    %v5330 = vunpack.c.h.b16 %v3473
    %v5331 = vunpack.c.l.b16 %v3474
    %v5332 = vunpack.c.h.b16 %v3474
    %v5333 = vunpack.c.l.b16 %v3475
    %v5334 = vunpack.c.h.b16 %v3475
    %v5335 = vunpack.c.l.b16 %v3476
    %v5336 = vunpack.c.h.b16 %v3476
    %v5337 = vunpack.c.l.b16 %v3477
    %v5338 = vunpack.c.h.b16 %v3477
    %v5339 = vunpack.c.l.b16 %v3478
    %v5340 = vunpack.c.h.b16 %v3478
    %v5341 = vunpack.c.l.b16 %v3479
    %v5342 = vunpack.c.h.b16 %v3479
    %v5343 = vunpack.c.l.b16 %v3480
    %v5344 = vunpack.c.h.b16 %v3480
    %v5345 = vunpack.c.l.b16 %v3481
    %v5346 = vunpack.c.h.b16 %v3481
    %v5347 = vunpack.c.l.b16 %v3482
    %v5348 = vunpack.c.h.b16 %v3482
    %v5349 = vunpack.c.l.b16 %v3483
    %v5350 = vunpack.c.h.b16 %v3483
    %v5351 = vunpack.c.l.b16 %v3484
    %v5352 = vunpack.c.h.b16 %v3484
    %v5353 = vunpack.c.l.b16 %v3485
    %v5354 = vunpack.c.h.b16 %v3485
    %v5355 = vunpack.c.l.b16 %v3486
    %v5356 = vunpack.c.h.b16 %v3486
    %v5357 = vunpack.c.l.b16 %v3487
    %v5358 = vunpack.c.h.b16 %v3487
    %v5359 = vunpack.c.l.b16 %v3488
    %v5360 = vunpack.c.h.b16 %v3488
    %v5361 = vunpack.c.l.b16 %v3489
    %v5362 = vunpack.c.h.b16 %v3489
    %v5363 = vunpack.c.l.b16 %v3490
    %v5364 = vunpack.c.h.b16 %v3490
    %v5365 = vunpack.c.l.b16 %v3491
    %v5366 = vunpack.c.h.b16 %v3491
    %v5367 = vunpack.c.l.b16 %v3492
    %v5368 = vunpack.c.h.b16 %v3492
    %v5369 = vunpack.c.l.b16 %v3493
    %v5370 = vunpack.c.h.b16 %v3493
    %v5371 = vunpack.c.l.b16 %v3494
    %v5372 = vunpack.c.h.b16 %v3494
    %v5373 = vunpack.c.l.b16 %v3495
    %v5374 = vunpack.c.h.b16 %v3495
    %v5375 = vunpack.c.l.b16 %v3496
    %v5376 = vunpack.c.h.b16 %v3496
    %v5377 = vunpack.c.l.b16 %v3497
    %v5378 = vunpack.c.h.b16 %v3497
    %v5379 = vunpack.c.l.b16 %v3498
    %v5380 = vunpack.c.h.b16 %v3498
    %v5381 = vunpack.c.l.b16 %v3499
    %v5382 = vunpack.c.h.b16 %v3499
    %v5383 = vunpack.c.l.b16 %v3500
    %v5384 = vunpack.c.h.b16 %v3500
    %v5385 = vunpack.c.l.b16 %v3501
    %v5386 = vunpack.c.h.b16 %v3501
    %v5387 = vunpack.c.l.b16 %v3502
    %v5388 = vunpack.c.h.b16 %v3502
    %v5389 = vunpack.c.l.b16 %v3503
    %v5390 = vunpack.c.h.b16 %v3503
    %v5391 = vunpack.c.l.b16 %v3504
    %v5392 = vunpack.c.h.b16 %v3504
    %v5393 = vunpack.c.l.b16 %v3505
    %v5394 = vunpack.c.h.b16 %v3505
    %v5395 = vunpack.c.l.b16 %v3506
    %v5396 = vunpack.c.h.b16 %v3506
    %v5397 = vunpack.c.l.b16 %v3507
    %v5398 = vunpack.c.h.b16 %v3507
    %v5399 = vunpack.c.l.b16 %v3508
    %v5400 = vunpack.c.h.b16 %v3508
    %v5401 = vunpack.c.l.b16 %v3509
    %v5402 = vunpack.c.h.b16 %v3509
    %v5403 = vunpack.c.l.b16 %v3510
    %v5404 = vunpack.c.h.b16 %v3510
    %v5405 = vunpack.c.l.b16 %v3511
    %v5406 = vunpack.c.h.b16 %v3511
    %v5407 = vunpack.c.l.b16 %v3512
    %v5408 = vunpack.c.h.b16 %v3512
    %v5409 = vunpack.c.l.b16 %v3513
    %v5410 = vunpack.c.h.b16 %v3513
    %v5411 = vunpack.c.l.b16 %v3514
    %v5412 = vunpack.c.h.b16 %v3514
    %v5413 = vpack.c.b16 %v4397, %v4389
    %v5414 = vpack.c.b16 %v4398, %v4390
    %v5415 = vpack.c.b16 %v4399, %v4391
    %v5416 = vpack.c.b16 %v4400, %v4392
    %v5417 = vpack.c.b16 %v4401, %v4393
    %v5418 = vpack.c.b16 %v4402, %v4394
    %v5419 = vpack.c.b16 %v4403, %v4395
    %v5420 = vpack.c.b16 %v4404, %v4396
    %v5421 = vpack.c.b16 %v4413, %v4405
    %v5422 = vpack.c.b16 %v4414, %v4406
    %v5423 = vpack.c.b16 %v4415, %v4407
    %v5424 = vpack.c.b16 %v4416, %v4408
    %v5425 = vpack.c.b16 %v4417, %v4409
    %v5426 = vpack.c.b16 %v4418, %v4410
    %v5427 = vpack.c.b16 %v4419, %v4411
    %v5428 = vpack.c.b16 %v4420, %v4412
    %v5429 = vpack.c.b16 %v4429, %v4421
    %v5430 = vpack.c.b16 %v4430, %v4422
    %v5431 = vpack.c.b16 %v4431, %v4423
    %v5432 = vpack.c.b16 %v4432, %v4424
    %v5433 = vpack.c.b16 %v4433, %v4425
    %v5434 = vpack.c.b16 %v4434, %v4426
    %v5435 = vpack.c.b16 %v4435, %v4427
    %v5436 = vpack.c.b16 %v4436, %v4428
    %v5437 = vpack.c.b16 %v4445, %v4437
    %v5438 = vpack.c.b16 %v4446, %v4438
    %v5439 = vpack.c.b16 %v4447, %v4439
    %v5440 = vpack.c.b16 %v4448, %v4440
    %v5441 = vpack.c.b16 %v4449, %v4441
    %v5442 = vpack.c.b16 %v4450, %v4442
    %v5443 = vpack.c.b16 %v4451, %v4443
    %v5444 = vpack.c.b16 %v4452, %v4444
    %v5445 = vpack.c.b16 %v4461, %v4453
    %v5446 = vpack.c.b16 %v4462, %v4454
    %v5447 = vpack.c.b16 %v4463, %v4455
    %v5448 = vpack.c.b16 %v4464, %v4456
    %v5449 = vpack.c.b16 %v4465, %v4457
    %v5450 = vpack.c.b16 %v4466, %v4458
    %v5451 = vpack.c.b16 %v4467, %v4459
    %v5452 = vpack.c.b16 %v4468, %v4460
    %v5453 = vpack.c.b16 %v4477, %v4469
    %v5454 = vpack.c.b16 %v4478, %v4470
    %v5455 = vpack.c.b16 %v4479, %v4471
    %v5456 = vpack.c.b16 %v4480, %v4472
    %v5457 = vpack.c.b16 %v4481, %v4473
    %v5458 = vpack.c.b16 %v4482, %v4474
    %v5459 = vpack.c.b16 %v4483, %v4475
    %v5460 = vpack.c.b16 %v4484, %v4476
    %v5461 = vpack.c.b16 %v4493, %v4485
    %v5462 = vpack.c.b16 %v4494, %v4486
    %v5463 = vpack.c.b16 %v4495, %v4487
    %v5464 = vpack.c.b16 %v4496, %v4488
    %v5465 = vpack.c.b16 %v4497, %v4489
    %v5466 = vpack.c.b16 %v4498, %v4490
    %v5467 = vpack.c.b16 %v4499, %v4491
    %v5468 = vpack.c.b16 %v4500, %v4492
    %v5469 = vpack.c.b16 %v4509, %v4501
    %v5470 = vpack.c.b16 %v4510, %v4502
    %v5471 = vpack.c.b16 %v4511, %v4503
    %v5472 = vpack.c.b16 %v4512, %v4504
    %v5473 = vpack.c.b16 %v4513, %v4505
    %v5474 = vpack.c.b16 %v4514, %v4506
    %v5475 = vpack.c.b16 %v4515, %v4507
    %v5476 = vpack.c.b16 %v4516, %v4508
    %v5477 = vpack.c.b16 %v4525, %v4517
    %v5478 = vpack.c.b16 %v4526, %v4518
    %v5479 = vpack.c.b16 %v4527, %v4519
    %v5480 = vpack.c.b16 %v4528, %v4520
    %v5481 = vpack.c.b16 %v4529, %v4521
    %v5482 = vpack.c.b16 %v4530, %v4522
    %v5483 = vpack.c.b16 %v4531, %v4523
    %v5484 = vpack.c.b16 %v4532, %v4524
    %v5485 = vpack.c.b16 %v4541, %v4533
    %v5486 = vpack.c.b16 %v4542, %v4534
    %v5487 = vpack.c.b16 %v4543, %v4535
    %v5488 = vpack.c.b16 %v4544, %v4536
    %v5489 = vpack.c.b16 %v4545, %v4537
    %v5490 = vpack.c.b16 %v4546, %v4538
    %v5491 = vpack.c.b16 %v4547, %v4539
    %v5492 = vpack.c.b16 %v4548, %v4540
    %v5493 = vpack.c.b16 %v4557, %v4549
    %v5494 = vpack.c.b16 %v4558, %v4550
    %v5495 = vpack.c.b16 %v4559, %v4551
    %v5496 = vpack.c.b16 %v4560, %v4552
    %v5497 = vpack.c.b16 %v4561, %v4553
    %v5498 = vpack.c.b16 %v4562, %v4554
    %v5499 = vpack.c.b16 %v4563, %v4555
    %v5500 = vpack.c.b16 %v4564, %v4556
    %v5501 = vpack.c.b16 %v4573, %v4565
    %v5502 = vpack.c.b16 %v4574, %v4566
    %v5503 = vpack.c.b16 %v4575, %v4567
    %v5504 = vpack.c.b16 %v4576, %v4568
    %v5505 = vpack.c.b16 %v4577, %v4569
    %v5506 = vpack.c.b16 %v4578, %v4570
    %v5507 = vpack.c.b16 %v4579, %v4571
    %v5508 = vpack.c.b16 %v4580, %v4572
    %v5509 = vpack.c.b16 %v4589, %v4581
    %v5510 = vpack.c.b16 %v4590, %v4582
    %v5511 = vpack.c.b16 %v4591, %v4583
    %v5512 = vpack.c.b16 %v4592, %v4584
    %v5513 = vpack.c.b16 %v4593, %v4585
    %v5514 = vpack.c.b16 %v4594, %v4586
    %v5515 = vpack.c.b16 %v4595, %v4587
    %v5516 = vpack.c.b16 %v4596, %v4588
    %v5517 = vpack.c.b16 %v4605, %v4597
    %v5518 = vpack.c.b16 %v4606, %v4598
    %v5519 = vpack.c.b16 %v4607, %v4599
    %v5520 = vpack.c.b16 %v4608, %v4600
    %v5521 = vpack.c.b16 %v4609, %v4601
    %v5522 = vpack.c.b16 %v4610, %v4602
    %v5523 = vpack.c.b16 %v4611, %v4603
    %v5524 = vpack.c.b16 %v4612, %v4604
    %v5525 = vpack.c.b16 %v4621, %v4613
    %v5526 = vpack.c.b16 %v4622, %v4614
    %v5527 = vpack.c.b16 %v4623, %v4615
    %v5528 = vpack.c.b16 %v4624, %v4616
    %v5529 = vpack.c.b16 %v4625, %v4617
    %v5530 = vpack.c.b16 %v4626, %v4618
    %v5531 = vpack.c.b16 %v4627, %v4619
    %v5532 = vpack.c.b16 %v4628, %v4620
    %v5533 = vpack.c.b16 %v4637, %v4629
    %v5534 = vpack.c.b16 %v4638, %v4630
    %v5535 = vpack.c.b16 %v4639, %v4631
    %v5536 = vpack.c.b16 %v4640, %v4632
    %v5537 = vpack.c.b16 %v4641, %v4633
    %v5538 = vpack.c.b16 %v4642, %v4634
    %v5539 = vpack.c.b16 %v4643, %v4635
    %v5540 = vpack.c.b16 %v4644, %v4636
    %v5541 = vpack.c.b16 %v4653, %v4645
    %v5542 = vpack.c.b16 %v4654, %v4646
    %v5543 = vpack.c.b16 %v4655, %v4647
    %v5544 = vpack.c.b16 %v4656, %v4648
    %v5545 = vpack.c.b16 %v4657, %v4649
    %v5546 = vpack.c.b16 %v4658, %v4650
    %v5547 = vpack.c.b16 %v4659, %v4651
    %v5548 = vpack.c.b16 %v4660, %v4652
    %v5549 = vpack.c.b16 %v4669, %v4661
    %v5550 = vpack.c.b16 %v4670, %v4662
    %v5551 = vpack.c.b16 %v4671, %v4663
    %v5552 = vpack.c.b16 %v4672, %v4664
    %v5553 = vpack.c.b16 %v4673, %v4665
    %v5554 = vpack.c.b16 %v4674, %v4666
    %v5555 = vpack.c.b16 %v4675, %v4667
    %v5556 = vpack.c.b16 %v4676, %v4668
    %v5557 = vpack.c.b16 %v4685, %v4677
    %v5558 = vpack.c.b16 %v4686, %v4678
    %v5559 = vpack.c.b16 %v4687, %v4679
    %v5560 = vpack.c.b16 %v4688, %v4680
    %v5561 = vpack.c.b16 %v4689, %v4681
    %v5562 = vpack.c.b16 %v4690, %v4682
    %v5563 = vpack.c.b16 %v4691, %v4683
    %v5564 = vpack.c.b16 %v4692, %v4684
    %v5565 = vpack.c.b16 %v4701, %v4693
    %v5566 = vpack.c.b16 %v4702, %v4694
    %v5567 = vpack.c.b16 %v4703, %v4695
    %v5568 = vpack.c.b16 %v4704, %v4696
    %v5569 = vpack.c.b16 %v4705, %v4697
    %v5570 = vpack.c.b16 %v4706, %v4698
    %v5571 = vpack.c.b16 %v4707, %v4699
    %v5572 = vpack.c.b16 %v4708, %v4700
    %v5573 = vpack.c.b16 %v4717, %v4709
    %v5574 = vpack.c.b16 %v4718, %v4710
    %v5575 = vpack.c.b16 %v4719, %v4711
    %v5576 = vpack.c.b16 %v4720, %v4712
    %v5577 = vpack.c.b16 %v4721, %v4713
    %v5578 = vpack.c.b16 %v4722, %v4714
    %v5579 = vpack.c.b16 %v4723, %v4715
    %v5580 = vpack.c.b16 %v4724, %v4716
    %v5581 = vpack.c.b16 %v4733, %v4725
    %v5582 = vpack.c.b16 %v4734, %v4726
    %v5583 = vpack.c.b16 %v4735, %v4727
    %v5584 = vpack.c.b16 %v4736, %v4728
    %v5585 = vpack.c.b16 %v4737, %v4729
    %v5586 = vpack.c.b16 %v4738, %v4730
    %v5587 = vpack.c.b16 %v4739, %v4731
    %v5588 = vpack.c.b16 %v4740, %v4732
    %v5589 = vpack.c.b16 %v4749, %v4741
    %v5590 = vpack.c.b16 %v4750, %v4742
    %v5591 = vpack.c.b16 %v4751, %v4743
    %v5592 = vpack.c.b16 %v4752, %v4744
    %v5593 = vpack.c.b16 %v4753, %v4745
    %v5594 = vpack.c.b16 %v4754, %v4746
    %v5595 = vpack.c.b16 %v4755, %v4747
    %v5596 = vpack.c.b16 %v4756, %v4748
    %v5597 = vpack.c.b16 %v4765, %v4757
    %v5598 = vpack.c.b16 %v4766, %v4758
    %v5599 = vpack.c.b16 %v4767, %v4759
    %v5600 = vpack.c.b16 %v4768, %v4760
    %v5601 = vpack.c.b16 %v4769, %v4761
    %v5602 = vpack.c.b16 %v4770, %v4762
    %v5603 = vpack.c.b16 %v4771, %v4763
    %v5604 = vpack.c.b16 %v4772, %v4764
    %v5605 = vpack.c.b16 %v4781, %v4773
    %v5606 = vpack.c.b16 %v4782, %v4774
    %v5607 = vpack.c.b16 %v4783, %v4775
    %v5608 = vpack.c.b16 %v4784, %v4776
    %v5609 = vpack.c.b16 %v4785, %v4777
    %v5610 = vpack.c.b16 %v4786, %v4778
    %v5611 = vpack.c.b16 %v4787, %v4779
    %v5612 = vpack.c.b16 %v4788, %v4780
    %v5613 = vpack.c.b16 %v4797, %v4789
    %v5614 = vpack.c.b16 %v4798, %v4790
    %v5615 = vpack.c.b16 %v4799, %v4791
    %v5616 = vpack.c.b16 %v4800, %v4792
    %v5617 = vpack.c.b16 %v4801, %v4793
    %v5618 = vpack.c.b16 %v4802, %v4794
    %v5619 = vpack.c.b16 %v4803, %v4795
    %v5620 = vpack.c.b16 %v4804, %v4796
    %v5621 = vpack.c.b16 %v4813, %v4805
    %v5622 = vpack.c.b16 %v4814, %v4806
    %v5623 = vpack.c.b16 %v4815, %v4807
    %v5624 = vpack.c.b16 %v4816, %v4808
    %v5625 = vpack.c.b16 %v4817, %v4809
    %v5626 = vpack.c.b16 %v4818, %v4810
    %v5627 = vpack.c.b16 %v4819, %v4811
    %v5628 = vpack.c.b16 %v4820, %v4812
    %v5629 = vpack.c.b16 %v4829, %v4821
    %v5630 = vpack.c.b16 %v4830, %v4822
    %v5631 = vpack.c.b16 %v4831, %v4823
    %v5632 = vpack.c.b16 %v4832, %v4824
    %v5633 = vpack.c.b16 %v4833, %v4825
    %v5634 = vpack.c.b16 %v4834, %v4826
    %v5635 = vpack.c.b16 %v4835, %v4827
    %v5636 = vpack.c.b16 %v4836, %v4828
    %v5637 = vpack.c.b16 %v4845, %v4837
    %v5638 = vpack.c.b16 %v4846, %v4838
    %v5639 = vpack.c.b16 %v4847, %v4839
    %v5640 = vpack.c.b16 %v4848, %v4840
    %v5641 = vpack.c.b16 %v4849, %v4841
    %v5642 = vpack.c.b16 %v4850, %v4842
    %v5643 = vpack.c.b16 %v4851, %v4843
    %v5644 = vpack.c.b16 %v4852, %v4844
    %v5645 = vpack.c.b16 %v4861, %v4853
    %v5646 = vpack.c.b16 %v4862, %v4854
    %v5647 = vpack.c.b16 %v4863, %v4855
    %v5648 = vpack.c.b16 %v4864, %v4856
    %v5649 = vpack.c.b16 %v4865, %v4857
    %v5650 = vpack.c.b16 %v4866, %v4858
    %v5651 = vpack.c.b16 %v4867, %v4859
    %v5652 = vpack.c.b16 %v4868, %v4860
    %v5653 = vpack.c.b16 %v4877, %v4869
    %v5654 = vpack.c.b16 %v4878, %v4870
    %v5655 = vpack.c.b16 %v4879, %v4871
    %v5656 = vpack.c.b16 %v4880, %v4872
    %v5657 = vpack.c.b16 %v4881, %v4873
    %v5658 = vpack.c.b16 %v4882, %v4874
    %v5659 = vpack.c.b16 %v4883, %v4875
    %v5660 = vpack.c.b16 %v4884, %v4876
    %v5661 = vpack.c.b16 %v4893, %v4885
    %v5662 = vpack.c.b16 %v4894, %v4886
    %v5663 = vpack.c.b16 %v4895, %v4887
    %v5664 = vpack.c.b16 %v4896, %v4888
    %v5665 = vpack.c.b16 %v4897, %v4889
    %v5666 = vpack.c.b16 %v4898, %v4890
    %v5667 = vpack.c.b16 %v4899, %v4891
    %v5668 = vpack.c.b16 %v4900, %v4892
    %v5669 = vpack.c.b16 %v4909, %v4901
    %v5670 = vpack.c.b16 %v4910, %v4902
    %v5671 = vpack.c.b16 %v4911, %v4903
    %v5672 = vpack.c.b16 %v4912, %v4904
    %v5673 = vpack.c.b16 %v4913, %v4905
    %v5674 = vpack.c.b16 %v4914, %v4906
    %v5675 = vpack.c.b16 %v4915, %v4907
    %v5676 = vpack.c.b16 %v4916, %v4908
    %v5677 = vpack.c.b16 %v4925, %v4917
    %v5678 = vpack.c.b16 %v4926, %v4918
    %v5679 = vpack.c.b16 %v4927, %v4919
    %v5680 = vpack.c.b16 %v4928, %v4920
    %v5681 = vpack.c.b16 %v4929, %v4921
    %v5682 = vpack.c.b16 %v4930, %v4922
    %v5683 = vpack.c.b16 %v4931, %v4923
    %v5684 = vpack.c.b16 %v4932, %v4924
    %v5685 = vpack.c.b16 %v4941, %v4933
    %v5686 = vpack.c.b16 %v4942, %v4934
    %v5687 = vpack.c.b16 %v4943, %v4935
    %v5688 = vpack.c.b16 %v4944, %v4936
    %v5689 = vpack.c.b16 %v4945, %v4937
    %v5690 = vpack.c.b16 %v4946, %v4938
    %v5691 = vpack.c.b16 %v4947, %v4939
    %v5692 = vpack.c.b16 %v4948, %v4940
    %v5693 = vpack.c.b16 %v4957, %v4949
    %v5694 = vpack.c.b16 %v4958, %v4950
    %v5695 = vpack.c.b16 %v4959, %v4951
    %v5696 = vpack.c.b16 %v4960, %v4952
    %v5697 = vpack.c.b16 %v4961, %v4953
    %v5698 = vpack.c.b16 %v4962, %v4954
    %v5699 = vpack.c.b16 %v4963, %v4955
    %v5700 = vpack.c.b16 %v4964, %v4956
    %v5701 = vpack.c.b16 %v4973, %v4965
    %v5702 = vpack.c.b16 %v4974, %v4966
    %v5703 = vpack.c.b16 %v4975, %v4967
    %v5704 = vpack.c.b16 %v4976, %v4968
    %v5705 = vpack.c.b16 %v4977, %v4969
    %v5706 = vpack.c.b16 %v4978, %v4970
    %v5707 = vpack.c.b16 %v4979, %v4971
    %v5708 = vpack.c.b16 %v4980, %v4972
    %v5709 = vpack.c.b16 %v4989, %v4981
    %v5710 = vpack.c.b16 %v4990, %v4982
    %v5711 = vpack.c.b16 %v4991, %v4983
    %v5712 = vpack.c.b16 %v4992, %v4984
    %v5713 = vpack.c.b16 %v4993, %v4985
    %v5714 = vpack.c.b16 %v4994, %v4986
    %v5715 = vpack.c.b16 %v4995, %v4987
    %v5716 = vpack.c.b16 %v4996, %v4988
    %v5717 = vpack.c.b16 %v5005, %v4997
    %v5718 = vpack.c.b16 %v5006, %v4998
    %v5719 = vpack.c.b16 %v5007, %v4999
    %v5720 = vpack.c.b16 %v5008, %v5000
    %v5721 = vpack.c.b16 %v5009, %v5001
    %v5722 = vpack.c.b16 %v5010, %v5002
    %v5723 = vpack.c.b16 %v5011, %v5003
    %v5724 = vpack.c.b16 %v5012, %v5004
    %v5725 = vpack.c.b16 %v5021, %v5013
    %v5726 = vpack.c.b16 %v5022, %v5014
    %v5727 = vpack.c.b16 %v5023, %v5015
    %v5728 = vpack.c.b16 %v5024, %v5016
    %v5729 = vpack.c.b16 %v5025, %v5017
    %v5730 = vpack.c.b16 %v5026, %v5018
    %v5731 = vpack.c.b16 %v5027, %v5019
    %v5732 = vpack.c.b16 %v5028, %v5020
    %v5733 = vpack.c.b16 %v5037, %v5029
    %v5734 = vpack.c.b16 %v5038, %v5030
    %v5735 = vpack.c.b16 %v5039, %v5031
    %v5736 = vpack.c.b16 %v5040, %v5032
    %v5737 = vpack.c.b16 %v5041, %v5033
    %v5738 = vpack.c.b16 %v5042, %v5034
    %v5739 = vpack.c.b16 %v5043, %v5035
    %v5740 = vpack.c.b16 %v5044, %v5036
    %v5741 = vpack.c.b16 %v5053, %v5045
    %v5742 = vpack.c.b16 %v5054, %v5046
    %v5743 = vpack.c.b16 %v5055, %v5047
    %v5744 = vpack.c.b16 %v5056, %v5048
    %v5745 = vpack.c.b16 %v5057, %v5049
    %v5746 = vpack.c.b16 %v5058, %v5050
    %v5747 = vpack.c.b16 %v5059, %v5051
    %v5748 = vpack.c.b16 %v5060, %v5052
    %v5749 = vpack.c.b16 %v5069, %v5061
    %v5750 = vpack.c.b16 %v5070, %v5062
    %v5751 = vpack.c.b16 %v5071, %v5063
    %v5752 = vpack.c.b16 %v5072, %v5064
    %v5753 = vpack.c.b16 %v5073, %v5065
    %v5754 = vpack.c.b16 %v5074, %v5066
    %v5755 = vpack.c.b16 %v5075, %v5067
    %v5756 = vpack.c.b16 %v5076, %v5068
    %v5757 = vpack.c.b16 %v5085, %v5077
    %v5758 = vpack.c.b16 %v5086, %v5078
    %v5759 = vpack.c.b16 %v5087, %v5079
    %v5760 = vpack.c.b16 %v5088, %v5080
    %v5761 = vpack.c.b16 %v5089, %v5081
    %v5762 = vpack.c.b16 %v5090, %v5082
    %v5763 = vpack.c.b16 %v5091, %v5083
    %v5764 = vpack.c.b16 %v5092, %v5084
    %v5765 = vpack.c.b16 %v5101, %v5093
    %v5766 = vpack.c.b16 %v5102, %v5094
    %v5767 = vpack.c.b16 %v5103, %v5095
    %v5768 = vpack.c.b16 %v5104, %v5096
    %v5769 = vpack.c.b16 %v5105, %v5097
    %v5770 = vpack.c.b16 %v5106, %v5098
    %v5771 = vpack.c.b16 %v5107, %v5099
    %v5772 = vpack.c.b16 %v5108, %v5100
    %v5773 = vpack.c.b16 %v5117, %v5109
    %v5774 = vpack.c.b16 %v5118, %v5110
    %v5775 = vpack.c.b16 %v5119, %v5111
    %v5776 = vpack.c.b16 %v5120, %v5112
    %v5777 = vpack.c.b16 %v5121, %v5113
    %v5778 = vpack.c.b16 %v5122, %v5114
    %v5779 = vpack.c.b16 %v5123, %v5115
    %v5780 = vpack.c.b16 %v5124, %v5116
    %v5781 = vpack.c.b16 %v5133, %v5125
    %v5782 = vpack.c.b16 %v5134, %v5126
    %v5783 = vpack.c.b16 %v5135, %v5127
    %v5784 = vpack.c.b16 %v5136, %v5128
    %v5785 = vpack.c.b16 %v5137, %v5129
    %v5786 = vpack.c.b16 %v5138, %v5130
    %v5787 = vpack.c.b16 %v5139, %v5131
    %v5788 = vpack.c.b16 %v5140, %v5132
    %v5789 = vpack.c.b16 %v5149, %v5141
    %v5790 = vpack.c.b16 %v5150, %v5142
    %v5791 = vpack.c.b16 %v5151, %v5143
    %v5792 = vpack.c.b16 %v5152, %v5144
    %v5793 = vpack.c.b16 %v5153, %v5145
    %v5794 = vpack.c.b16 %v5154, %v5146
    %v5795 = vpack.c.b16 %v5155, %v5147
    %v5796 = vpack.c.b16 %v5156, %v5148
    %v5797 = vpack.c.b16 %v5165, %v5157
    %v5798 = vpack.c.b16 %v5166, %v5158
    %v5799 = vpack.c.b16 %v5167, %v5159
    %v5800 = vpack.c.b16 %v5168, %v5160
    %v5801 = vpack.c.b16 %v5169, %v5161
    %v5802 = vpack.c.b16 %v5170, %v5162
    %v5803 = vpack.c.b16 %v5171, %v5163
    %v5804 = vpack.c.b16 %v5172, %v5164
    %v5805 = vpack.c.b16 %v5181, %v5173
    %v5806 = vpack.c.b16 %v5182, %v5174
    %v5807 = vpack.c.b16 %v5183, %v5175
    %v5808 = vpack.c.b16 %v5184, %v5176
    %v5809 = vpack.c.b16 %v5185, %v5177
    %v5810 = vpack.c.b16 %v5186, %v5178
    %v5811 = vpack.c.b16 %v5187, %v5179
    %v5812 = vpack.c.b16 %v5188, %v5180
    %v5813 = vpack.c.b16 %v5197, %v5189
    %v5814 = vpack.c.b16 %v5198, %v5190
    %v5815 = vpack.c.b16 %v5199, %v5191
    %v5816 = vpack.c.b16 %v5200, %v5192
    %v5817 = vpack.c.b16 %v5201, %v5193
    %v5818 = vpack.c.b16 %v5202, %v5194
    %v5819 = vpack.c.b16 %v5203, %v5195
    %v5820 = vpack.c.b16 %v5204, %v5196
    %v5821 = vpack.c.b16 %v5213, %v5205
    %v5822 = vpack.c.b16 %v5214, %v5206
    %v5823 = vpack.c.b16 %v5215, %v5207
    %v5824 = vpack.c.b16 %v5216, %v5208
    %v5825 = vpack.c.b16 %v5217, %v5209
    %v5826 = vpack.c.b16 %v5218, %v5210
    %v5827 = vpack.c.b16 %v5219, %v5211
    %v5828 = vpack.c.b16 %v5220, %v5212
    %v5829 = vpack.c.b16 %v5229, %v5221
    %v5830 = vpack.c.b16 %v5230, %v5222
    %v5831 = vpack.c.b16 %v5231, %v5223
    %v5832 = vpack.c.b16 %v5232, %v5224
    %v5833 = vpack.c.b16 %v5233, %v5225
    %v5834 = vpack.c.b16 %v5234, %v5226
    %v5835 = vpack.c.b16 %v5235, %v5227
    %v5836 = vpack.c.b16 %v5236, %v5228
    %v5837 = vpack.c.b16 %v5245, %v5237
    %v5838 = vpack.c.b16 %v5246, %v5238
    %v5839 = vpack.c.b16 %v5247, %v5239
    %v5840 = vpack.c.b16 %v5248, %v5240
    %v5841 = vpack.c.b16 %v5249, %v5241
    %v5842 = vpack.c.b16 %v5250, %v5242
    %v5843 = vpack.c.b16 %v5251, %v5243
    %v5844 = vpack.c.b16 %v5252, %v5244
    %v5845 = vpack.c.b16 %v5261, %v5253
    %v5846 = vpack.c.b16 %v5262, %v5254
    %v5847 = vpack.c.b16 %v5263, %v5255
    %v5848 = vpack.c.b16 %v5264, %v5256
    %v5849 = vpack.c.b16 %v5265, %v5257
    %v5850 = vpack.c.b16 %v5266, %v5258
    %v5851 = vpack.c.b16 %v5267, %v5259
    %v5852 = vpack.c.b16 %v5268, %v5260
    %v5853 = vpack.c.b16 %v5277, %v5269
    %v5854 = vpack.c.b16 %v5278, %v5270
    %v5855 = vpack.c.b16 %v5279, %v5271
    %v5856 = vpack.c.b16 %v5280, %v5272
    %v5857 = vpack.c.b16 %v5281, %v5273
    %v5858 = vpack.c.b16 %v5282, %v5274
    %v5859 = vpack.c.b16 %v5283, %v5275
    %v5860 = vpack.c.b16 %v5284, %v5276
    %v5861 = vpack.c.b16 %v5293, %v5285
    %v5862 = vpack.c.b16 %v5294, %v5286
    %v5863 = vpack.c.b16 %v5295, %v5287
    %v5864 = vpack.c.b16 %v5296, %v5288
    %v5865 = vpack.c.b16 %v5297, %v5289
    %v5866 = vpack.c.b16 %v5298, %v5290
    %v5867 = vpack.c.b16 %v5299, %v5291
    %v5868 = vpack.c.b16 %v5300, %v5292
    %v5869 = vpack.c.b16 %v5309, %v5301
    %v5870 = vpack.c.b16 %v5310, %v5302
    %v5871 = vpack.c.b16 %v5311, %v5303
    %v5872 = vpack.c.b16 %v5312, %v5304
    %v5873 = vpack.c.b16 %v5313, %v5305
    %v5874 = vpack.c.b16 %v5314, %v5306
    %v5875 = vpack.c.b16 %v5315, %v5307
    %v5876 = vpack.c.b16 %v5316, %v5308
    %v5877 = vpack.c.b16 %v5325, %v5317
    %v5878 = vpack.c.b16 %v5326, %v5318
    %v5879 = vpack.c.b16 %v5327, %v5319
    %v5880 = vpack.c.b16 %v5328, %v5320
    %v5881 = vpack.c.b16 %v5329, %v5321
    %v5882 = vpack.c.b16 %v5330, %v5322
    %v5883 = vpack.c.b16 %v5331, %v5323
    %v5884 = vpack.c.b16 %v5332, %v5324
    %v5885 = vpack.c.b16 %v5341, %v5333
    %v5886 = vpack.c.b16 %v5342, %v5334
    %v5887 = vpack.c.b16 %v5343, %v5335
    %v5888 = vpack.c.b16 %v5344, %v5336
    %v5889 = vpack.c.b16 %v5345, %v5337
    %v5890 = vpack.c.b16 %v5346, %v5338
    %v5891 = vpack.c.b16 %v5347, %v5339
    %v5892 = vpack.c.b16 %v5348, %v5340
    %v5893 = vpack.c.b16 %v5357, %v5349
    %v5894 = vpack.c.b16 %v5358, %v5350
    %v5895 = vpack.c.b16 %v5359, %v5351
    %v5896 = vpack.c.b16 %v5360, %v5352
    %v5897 = vpack.c.b16 %v5361, %v5353
    %v5898 = vpack.c.b16 %v5362, %v5354
    %v5899 = vpack.c.b16 %v5363, %v5355
    %v5900 = vpack.c.b16 %v5364, %v5356
    %v5901 = vpack.c.b16 %v5373, %v5365
    %v5902 = vpack.c.b16 %v5374, %v5366
    %v5903 = vpack.c.b16 %v5375, %v5367
    %v5904 = vpack.c.b16 %v5376, %v5368
    %v5905 = vpack.c.b16 %v5377, %v5369
    %v5906 = vpack.c.b16 %v5378, %v5370
    %v5907 = vpack.c.b16 %v5379, %v5371
    %v5908 = vpack.c.b16 %v5380, %v5372
    %v5909 = vpack.c.b16 %v5389, %v5381
    %v5910 = vpack.c.b16 %v5390, %v5382
    %v5911 = vpack.c.b16 %v5391, %v5383
    %v5912 = vpack.c.b16 %v5392, %v5384
    %v5913 = vpack.c.b16 %v5393, %v5385
    %v5914 = vpack.c.b16 %v5394, %v5386
    %v5915 = vpack.c.b16 %v5395, %v5387
    %v5916 = vpack.c.b16 %v5396, %v5388
    %v5917 = vpack.c.b16 %v5405, %v5397
    %v5918 = vpack.c.b16 %v5406, %v5398
    %v5919 = vpack.c.b16 %v5407, %v5399
    %v5920 = vpack.c.b16 %v5408, %v5400
    %v5921 = vpack.c.b16 %v5409, %v5401
    %v5922 = vpack.c.b16 %v5410, %v5402
    %v5923 = vpack.c.b16 %v5411, %v5403
    %v5924 = vpack.c.b16 %v5412, %v5404
    %6437 = vmatprep.subr.bf16.mxu0 %v5470
    %6438 = vmatpush1.bf16.msra.mxu0 %v5469
    %6439 = vmatprep.subr.bf16.mxu0 %v5462
    %6440 = vmatpush1.bf16.msra.mxu0 %v5461
    %6441 = vmatprep.subr.bf16.mxu0 %v5454
    %6442 = vmatpush1.bf16.msra.mxu0 %v5453
    %6443 = vmatprep.subr.bf16.mxu0 %v5446
    %6444 = vmatpush1.bf16.msra.mxu0 %v5445
    %6445 = vmatprep.subr.bf16.mxu0 %v5438
    %6446 = vmatpush1.bf16.msra.mxu0 %v5437
    %6447 = vmatprep.subr.bf16.mxu0 %v5430
    %6448 = vmatpush1.bf16.msra.mxu0 %v5429
    %6449 = vmatprep.subr.bf16.mxu0 %v5422
    %6450 = vmatpush1.bf16.msra.mxu0 %v5421
    %6451 = vmatprep.subr.bf16.mxu0 %v5414
    %6452 = vmatpush1.bf16.msra.mxu0 %v5413
    %6453 = vmatprep.subr.bf16.mxu0 %v5534
    %6454 = vmatpush2.bf16.msra.mxu0 %v5533
    %6455 = vmatprep.subr.bf16.mxu0 %v5526
    %6456 = vmatpush2.bf16.msra.mxu0 %v5525
    %6457 = vmatprep.subr.bf16.mxu0 %v5518
    %6458 = vmatpush2.bf16.msra.mxu0 %v5517
    %6459 = vmatprep.subr.bf16.mxu0 %v5510
    %6460 = vmatpush2.bf16.msra.mxu0 %v5509
    %6461 = vmatprep.subr.bf16.mxu0 %v5502
    %6462 = vmatpush2.bf16.msra.mxu0 %v5501
    %6463 = vmatprep.subr.bf16.mxu0 %v5494
    %6464 = vmatpush2.bf16.msra.mxu0 %v5493
    %6465 = vmatprep.subr.bf16.mxu0 %v5486
    %6466 = vmatpush2.bf16.msra.mxu0 %v5485
    %6467 = vmatprep.subr.bf16.mxu0 %v5478
    %6468 = vmatpush2.bf16.msra.mxu0 %v5477
    %6469 = vmatprep.mubr.bf16.mxu0 %v3750
    %6470 = vmatmul.mubr.bf16.gmra.mxu0 %v3749
    %v6471 = vpop.f32.mrf.mxu0
    %v6472 = vadd.f32 %v3520, %v6471
    %v6473 = vpop.f32.mrf.mxu0
    %v6474 = vadd.f32 %v3524, %v6473
    %v6475 = vpop.f32.mrf.mxu0
    %v6476 = vadd.f32 %v3520, %v6475
    %v6477 = vpop.f32.mrf.mxu0
    %v6478 = vadd.f32 %v3524, %v6477
    %6479 = vmatprep.mubr.bf16.mxu0 %v3758
    %6480 = vmatmul.mubr.bf16.gmra.mxu0 %v3757
    %v6481 = vpop.f32.mrf.mxu0
    %v6482 = vadd.f32 %v3520, %v6481
    %v6483 = vpop.f32.mrf.mxu0
    %v6484 = vadd.f32 %v3524, %v6483
    %v6485 = vpop.f32.mrf.mxu0
    %v6486 = vadd.f32 %v3520, %v6485
    %v6487 = vpop.f32.mrf.mxu0
    %v6488 = vadd.f32 %v3524, %v6487
    %6489 = vmatprep.mubr.bf16.mxu0 %v3766
    %6490 = vmatmul.mubr.bf16.gmra.mxu0 %v3765
    %v6491 = vpop.f32.mrf.mxu0
    %v6492 = vadd.f32 %v3520, %v6491
    %v6493 = vpop.f32.mrf.mxu0
    %v6494 = vadd.f32 %v3524, %v6493
    %v6495 = vpop.f32.mrf.mxu0
    %v6496 = vadd.f32 %v3520, %v6495
    %v6497 = vpop.f32.mrf.mxu0
    %v6498 = vadd.f32 %v3524, %v6497
    %6499 = vmatprep.mubr.bf16.mxu0 %v3774
    %6500 = vmatmul.mubr.bf16.gmra.mxu0 %v3773
    %v6501 = vpop.f32.mrf.mxu0
    %v6502 = vadd.f32 %v3520, %v6501
    %v6503 = vpop.f32.mrf.mxu0
    %v6504 = vadd.f32 %v3524, %v6503
    %v6505 = vpop.f32.mrf.mxu0
    %v6506 = vadd.f32 %v3520, %v6505
    %v6507 = vpop.f32.mrf.mxu0
    %v6508 = vadd.f32 %v3524, %v6507
    %6509 = vmatprep.mubr.bf16.mxu0 %v3782
    %6510 = vmatmul.mubr.bf16.gmra.mxu0 %v3781
    %v6511 = vpop.f32.mrf.mxu0
    %v6512 = vadd.f32 %v3520, %v6511
    %v6513 = vpop.f32.mrf.mxu0
    %v6514 = vadd.f32 %v3524, %v6513
    %v6515 = vpop.f32.mrf.mxu0
    %v6516 = vadd.f32 %v3520, %v6515
    %v6517 = vpop.f32.mrf.mxu0
    %v6518 = vadd.f32 %v3524, %v6517
    %6519 = vmatprep.mubr.bf16.mxu0 %v3790
    %6520 = vmatmul.mubr.bf16.gmra.mxu0 %v3789
    %v6521 = vpop.f32.mrf.mxu0
    %v6522 = vadd.f32 %v3520, %v6521
    %v6523 = vpop.f32.mrf.mxu0
    %v6524 = vadd.f32 %v3524, %v6523
    %v6525 = vpop.f32.mrf.mxu0
    %v6526 = vadd.f32 %v3520, %v6525
    %v6527 = vpop.f32.mrf.mxu0
    %v6528 = vadd.f32 %v3524, %v6527
    %6529 = vmatprep.mubr.bf16.mxu0 %v3798
    %6530 = vmatmul.mubr.bf16.gmra.mxu0 %v3797
    %v6531 = vpop.f32.mrf.mxu0
    %v6532 = vadd.f32 %v3520, %v6531
    %v6533 = vpop.f32.mrf.mxu0
    %v6534 = vadd.f32 %v3524, %v6533
    %v6535 = vpop.f32.mrf.mxu0
    %v6536 = vadd.f32 %v3520, %v6535
    %v6537 = vpop.f32.mrf.mxu0
    %v6538 = vadd.f32 %v3524, %v6537
    %6539 = vmatprep.mubr.bf16.mxu0 %v3806
    %6540 = vmatmul.mubr.bf16.gmra.mxu0 %v3805
    %v6541 = vpop.f32.mrf.mxu0
    %v6542 = vadd.f32 %v3520, %v6541
    %v6543 = vpop.f32.mrf.mxu0
    %v6544 = vadd.f32 %v3524, %v6543
    %v6545 = vpop.f32.mrf.mxu0
    %v6546 = vadd.f32 %v3520, %v6545
    %v6547 = vpop.f32.mrf.mxu0
    %v6548 = vadd.f32 %v3524, %v6547
    %6549 = vdwg.mxu0
    %6550 = vmatprep.subr.bf16.mxu0 %v5598
    %6551 = vmatpush1.bf16.msra.mxu0 %v5597
    %6552 = vmatprep.subr.bf16.mxu0 %v5590
    %6553 = vmatpush1.bf16.msra.mxu0 %v5589
    %6554 = vmatprep.subr.bf16.mxu0 %v5582
    %6555 = vmatpush1.bf16.msra.mxu0 %v5581
    %6556 = vmatprep.subr.bf16.mxu0 %v5574
    %6557 = vmatpush1.bf16.msra.mxu0 %v5573
    %6558 = vmatprep.subr.bf16.mxu0 %v5566
    %6559 = vmatpush1.bf16.msra.mxu0 %v5565
    %6560 = vmatprep.subr.bf16.mxu0 %v5558
    %6561 = vmatpush1.bf16.msra.mxu0 %v5557
    %6562 = vmatprep.subr.bf16.mxu0 %v5550
    %6563 = vmatpush1.bf16.msra.mxu0 %v5549
    %6564 = vmatprep.subr.bf16.mxu0 %v5542
    %6565 = vmatpush1.bf16.msra.mxu0 %v5541
    %6566 = vmatprep.subr.bf16.mxu0 %v5662
    %6567 = vmatpush2.bf16.msra.mxu0 %v5661
    %6568 = vmatprep.subr.bf16.mxu0 %v5654
    %6569 = vmatpush2.bf16.msra.mxu0 %v5653
    %6570 = vmatprep.subr.bf16.mxu0 %v5646
    %6571 = vmatpush2.bf16.msra.mxu0 %v5645
    %6572 = vmatprep.subr.bf16.mxu0 %v5638
    %6573 = vmatpush2.bf16.msra.mxu0 %v5637
    %6574 = vmatprep.subr.bf16.mxu0 %v5630
    %6575 = vmatpush2.bf16.msra.mxu0 %v5629
    %6576 = vmatprep.subr.bf16.mxu0 %v5622
    %6577 = vmatpush2.bf16.msra.mxu0 %v5621
    %6578 = vmatprep.subr.bf16.mxu0 %v5614
    %6579 = vmatpush2.bf16.msra.mxu0 %v5613
    %6580 = vmatprep.subr.bf16.mxu0 %v5606
    %6581 = vmatpush2.bf16.msra.mxu0 %v5605
    %6582 = vmatprep.mubr.bf16.mxu0 %v3752
    %6583 = vmatmul.mubr.bf16.gmra.mxu0 %v3751
    %v6584 = vpop.f32.mrf.mxu0
    %v6585 = vadd.f32 %v6472, %v6584
    %v6586 = vpop.f32.mrf.mxu0
    %v6587 = vadd.f32 %v6474, %v6586
    %v6588 = vpop.f32.mrf.mxu0
    %v6589 = vadd.f32 %v6476, %v6588
    %v6590 = vpop.f32.mrf.mxu0
    %v6591 = vadd.f32 %v6478, %v6590
    %6592 = vmatprep.mubr.bf16.mxu0 %v3760
    %6593 = vmatmul.mubr.bf16.gmra.mxu0 %v3759
    %v6594 = vpop.f32.mrf.mxu0
    %v6595 = vadd.f32 %v6482, %v6594
    %v6596 = vpop.f32.mrf.mxu0
    %v6597 = vadd.f32 %v6484, %v6596
    %v6598 = vpop.f32.mrf.mxu0
    %v6599 = vadd.f32 %v6486, %v6598
    %v6600 = vpop.f32.mrf.mxu0
    %v6601 = vadd.f32 %v6488, %v6600
    %6602 = vmatprep.mubr.bf16.mxu0 %v3768
    %6603 = vmatmul.mubr.bf16.gmra.mxu0 %v3767
    %v6604 = vpop.f32.mrf.mxu0
    %v6605 = vadd.f32 %v6492, %v6604
    %v6606 = vpop.f32.mrf.mxu0
    %v6607 = vadd.f32 %v6494, %v6606
    %v6608 = vpop.f32.mrf.mxu0
    %v6609 = vadd.f32 %v6496, %v6608
    %v6610 = vpop.f32.mrf.mxu0
    %v6611 = vadd.f32 %v6498, %v6610
    %6612 = vmatprep.mubr.bf16.mxu0 %v3776
    %6613 = vmatmul.mubr.bf16.gmra.mxu0 %v3775
    %v6614 = vpop.f32.mrf.mxu0
    %v6615 = vadd.f32 %v6502, %v6614
    %v6616 = vpop.f32.mrf.mxu0
    %v6617 = vadd.f32 %v6504, %v6616
    %v6618 = vpop.f32.mrf.mxu0
    %v6619 = vadd.f32 %v6506, %v6618
    %v6620 = vpop.f32.mrf.mxu0
    %v6621 = vadd.f32 %v6508, %v6620
    %6622 = vmatprep.mubr.bf16.mxu0 %v3784
    %6623 = vmatmul.mubr.bf16.gmra.mxu0 %v3783
    %v6624 = vpop.f32.mrf.mxu0
    %v6625 = vadd.f32 %v6512, %v6624
    %v6626 = vpop.f32.mrf.mxu0
    %v6627 = vadd.f32 %v6514, %v6626
    %v6628 = vpop.f32.mrf.mxu0
    %v6629 = vadd.f32 %v6516, %v6628
    %v6630 = vpop.f32.mrf.mxu0
    %v6631 = vadd.f32 %v6518, %v6630
    %6632 = vmatprep.mubr.bf16.mxu0 %v3792
    %6633 = vmatmul.mubr.bf16.gmra.mxu0 %v3791
    %v6634 = vpop.f32.mrf.mxu0
    %v6635 = vadd.f32 %v6522, %v6634
    %v6636 = vpop.f32.mrf.mxu0
    %v6637 = vadd.f32 %v6524, %v6636
    %v6638 = vpop.f32.mrf.mxu0
    %v6639 = vadd.f32 %v6526, %v6638
    %v6640 = vpop.f32.mrf.mxu0
    %v6641 = vadd.f32 %v6528, %v6640
    %6642 = vmatprep.mubr.bf16.mxu0 %v3800
    %6643 = vmatmul.mubr.bf16.gmra.mxu0 %v3799
    %v6644 = vpop.f32.mrf.mxu0
    %v6645 = vadd.f32 %v6532, %v6644
    %v6646 = vpop.f32.mrf.mxu0
    %v6647 = vadd.f32 %v6534, %v6646
    %v6648 = vpop.f32.mrf.mxu0
    %v6649 = vadd.f32 %v6536, %v6648
    %v6650 = vpop.f32.mrf.mxu0
    %v6651 = vadd.f32 %v6538, %v6650
    %6652 = vmatprep.mubr.bf16.mxu0 %v3808
    %6653 = vmatmul.mubr.bf16.gmra.mxu0 %v3807
    %v6654 = vpop.f32.mrf.mxu0
    %v6655 = vadd.f32 %v6542, %v6654
    %v6656 = vpop.f32.mrf.mxu0
    %v6657 = vadd.f32 %v6544, %v6656
    %v6658 = vpop.f32.mrf.mxu0
    %v6659 = vadd.f32 %v6546, %v6658
    %v6660 = vpop.f32.mrf.mxu0
    %v6661 = vadd.f32 %v6548, %v6660
    %6662 = vdwg.mxu0
    %6663 = vmatprep.subr.bf16.mxu0 %v5726
    %6664 = vmatpush1.bf16.msra.mxu0 %v5725
    %6665 = vmatprep.subr.bf16.mxu0 %v5718
    %6666 = vmatpush1.bf16.msra.mxu0 %v5717
    %6667 = vmatprep.subr.bf16.mxu0 %v5710
    %6668 = vmatpush1.bf16.msra.mxu0 %v5709
    %6669 = vmatprep.subr.bf16.mxu0 %v5702
    %6670 = vmatpush1.bf16.msra.mxu0 %v5701
    %6671 = vmatprep.subr.bf16.mxu0 %v5694
    %6672 = vmatpush1.bf16.msra.mxu0 %v5693
    %6673 = vmatprep.subr.bf16.mxu0 %v5686
    %6674 = vmatpush1.bf16.msra.mxu0 %v5685
    %6675 = vmatprep.subr.bf16.mxu0 %v5678
    %6676 = vmatpush1.bf16.msra.mxu0 %v5677
    %6677 = vmatprep.subr.bf16.mxu0 %v5670
    %6678 = vmatpush1.bf16.msra.mxu0 %v5669
    %6679 = vmatprep.subr.bf16.mxu0 %v5790
    %6680 = vmatpush2.bf16.msra.mxu0 %v5789
    %6681 = vmatprep.subr.bf16.mxu0 %v5782
    %6682 = vmatpush2.bf16.msra.mxu0 %v5781
    %6683 = vmatprep.subr.bf16.mxu0 %v5774
    %6684 = vmatpush2.bf16.msra.mxu0 %v5773
    %6685 = vmatprep.subr.bf16.mxu0 %v5766
    %6686 = vmatpush2.bf16.msra.mxu0 %v5765
    %6687 = vmatprep.subr.bf16.mxu0 %v5758
    %6688 = vmatpush2.bf16.msra.mxu0 %v5757
    %6689 = vmatprep.subr.bf16.mxu0 %v5750
    %6690 = vmatpush2.bf16.msra.mxu0 %v5749
    %6691 = vmatprep.subr.bf16.mxu0 %v5742
    %6692 = vmatpush2.bf16.msra.mxu0 %v5741
    %6693 = vmatprep.subr.bf16.mxu0 %v5734
    %6694 = vmatpush2.bf16.msra.mxu0 %v5733
    %6695 = vmatprep.mubr.bf16.mxu0 %v3754
    %6696 = vmatmul.mubr.bf16.gmra.mxu0 %v3753
    %v6697 = vpop.f32.mrf.mxu0
    %v6698 = vadd.f32 %v6585, %v6697
    %v6699 = vpop.f32.mrf.mxu0
    %v6700 = vadd.f32 %v6587, %v6699
    %v6701 = vpop.f32.mrf.mxu0
    %v6702 = vadd.f32 %v6589, %v6701
    %v6703 = vpop.f32.mrf.mxu0
    %v6704 = vadd.f32 %v6591, %v6703
    %6705 = vmatprep.mubr.bf16.mxu0 %v3762
    %6706 = vmatmul.mubr.bf16.gmra.mxu0 %v3761
    %v6707 = vpop.f32.mrf.mxu0
    %v6708 = vadd.f32 %v6595, %v6707
    %v6709 = vpop.f32.mrf.mxu0
    %v6710 = vadd.f32 %v6597, %v6709
    %v6711 = vpop.f32.mrf.mxu0
    %v6712 = vadd.f32 %v6599, %v6711
    %v6713 = vpop.f32.mrf.mxu0
    %v6714 = vadd.f32 %v6601, %v6713
    %6715 = vmatprep.mubr.bf16.mxu0 %v3770
    %6716 = vmatmul.mubr.bf16.gmra.mxu0 %v3769
    %v6717 = vpop.f32.mrf.mxu0
    %v6718 = vadd.f32 %v6605, %v6717
    %v6719 = vpop.f32.mrf.mxu0
    %v6720 = vadd.f32 %v6607, %v6719
    %v6721 = vpop.f32.mrf.mxu0
    %v6722 = vadd.f32 %v6609, %v6721
    %v6723 = vpop.f32.mrf.mxu0
    %v6724 = vadd.f32 %v6611, %v6723
    %6725 = vmatprep.mubr.bf16.mxu0 %v3778
    %6726 = vmatmul.mubr.bf16.gmra.mxu0 %v3777
    %v6727 = vpop.f32.mrf.mxu0
    %v6728 = vadd.f32 %v6615, %v6727
    %v6729 = vpop.f32.mrf.mxu0
    %v6730 = vadd.f32 %v6617, %v6729
    %v6731 = vpop.f32.mrf.mxu0
    %v6732 = vadd.f32 %v6619, %v6731
    %v6733 = vpop.f32.mrf.mxu0
    %v6734 = vadd.f32 %v6621, %v6733
    %6735 = vmatprep.mubr.bf16.mxu0 %v3786
    %6736 = vmatmul.mubr.bf16.gmra.mxu0 %v3785
    %v6737 = vpop.f32.mrf.mxu0
    %v6738 = vadd.f32 %v6625, %v6737
    %v6739 = vpop.f32.mrf.mxu0
    %v6740 = vadd.f32 %v6627, %v6739
    %v6741 = vpop.f32.mrf.mxu0
    %v6742 = vadd.f32 %v6629, %v6741
    %v6743 = vpop.f32.mrf.mxu0
    %v6744 = vadd.f32 %v6631, %v6743
    %6745 = vmatprep.mubr.bf16.mxu0 %v3794
    %6746 = vmatmul.mubr.bf16.gmra.mxu0 %v3793
    %v6747 = vpop.f32.mrf.mxu0
    %v6748 = vadd.f32 %v6635, %v6747
    %v6749 = vpop.f32.mrf.mxu0
    %v6750 = vadd.f32 %v6637, %v6749
    %v6751 = vpop.f32.mrf.mxu0
    %v6752 = vadd.f32 %v6639, %v6751
    %v6753 = vpop.f32.mrf.mxu0
    %v6754 = vadd.f32 %v6641, %v6753
    %6755 = vmatprep.mubr.bf16.mxu0 %v3802
    %6756 = vmatmul.mubr.bf16.gmra.mxu0 %v3801
    %v6757 = vpop.f32.mrf.mxu0
    %v6758 = vadd.f32 %v6645, %v6757
    %v6759 = vpop.f32.mrf.mxu0
    %v6760 = vadd.f32 %v6647, %v6759
    %v6761 = vpop.f32.mrf.mxu0
    %v6762 = vadd.f32 %v6649, %v6761
    %v6763 = vpop.f32.mrf.mxu0
    %v6764 = vadd.f32 %v6651, %v6763
    %6765 = vmatprep.mubr.bf16.mxu0 %v3810
    %6766 = vmatmul.mubr.bf16.gmra.mxu0 %v3809
    %v6767 = vpop.f32.mrf.mxu0
    %v6768 = vadd.f32 %v6655, %v6767
    %v6769 = vpop.f32.mrf.mxu0
    %v6770 = vadd.f32 %v6657, %v6769
    %v6771 = vpop.f32.mrf.mxu0
    %v6772 = vadd.f32 %v6659, %v6771
    %v6773 = vpop.f32.mrf.mxu0
    %v6774 = vadd.f32 %v6661, %v6773
    %6775 = vdwg.mxu0
    %6776 = vmatprep.subr.bf16.mxu0 %v5854
    %6777 = vmatpush1.bf16.msra.mxu0 %v5853
    %6778 = vmatprep.subr.bf16.mxu0 %v5846
    %6779 = vmatpush1.bf16.msra.mxu0 %v5845
    %6780 = vmatprep.subr.bf16.mxu0 %v5838
    %6781 = vmatpush1.bf16.msra.mxu0 %v5837
    %6782 = vmatprep.subr.bf16.mxu0 %v5830
    %6783 = vmatpush1.bf16.msra.mxu0 %v5829
    %6784 = vmatprep.subr.bf16.mxu0 %v5822
    %6785 = vmatpush1.bf16.msra.mxu0 %v5821
    %6786 = vmatprep.subr.bf16.mxu0 %v5814
    %6787 = vmatpush1.bf16.msra.mxu0 %v5813
    %6788 = vmatprep.subr.bf16.mxu0 %v5806
    %6789 = vmatpush1.bf16.msra.mxu0 %v5805
    %6790 = vmatprep.subr.bf16.mxu0 %v5798
    %6791 = vmatpush1.bf16.msra.mxu0 %v5797
    %6792 = vmatprep.subr.bf16.mxu0 %v5918
    %6793 = vmatpush2.bf16.msra.mxu0 %v5917
    %6794 = vmatprep.subr.bf16.mxu0 %v5910
    %6795 = vmatpush2.bf16.msra.mxu0 %v5909
    %6796 = vmatprep.subr.bf16.mxu0 %v5902
    %6797 = vmatpush2.bf16.msra.mxu0 %v5901
    %6798 = vmatprep.subr.bf16.mxu0 %v5894
    %6799 = vmatpush2.bf16.msra.mxu0 %v5893
    %6800 = vmatprep.subr.bf16.mxu0 %v5886
    %6801 = vmatpush2.bf16.msra.mxu0 %v5885
    %6802 = vmatprep.subr.bf16.mxu0 %v5878
    %6803 = vmatpush2.bf16.msra.mxu0 %v5877
    %6804 = vmatprep.subr.bf16.mxu0 %v5870
    %6805 = vmatpush2.bf16.msra.mxu0 %v5869
    %6806 = vmatprep.subr.bf16.mxu0 %v5862
    %6807 = vmatpush2.bf16.msra.mxu0 %v5861
    %6808 = vmatprep.mubr.bf16.mxu0 %v3756
    %6809 = vmatmul.mubr.bf16.gmra.mxu0 %v3755
    %v6810 = vpop.f32.mrf.mxu0
    %v6811 = vadd.f32 %v6698, %v6810
    %v6812 = vpop.f32.mrf.mxu0
    %v6813 = vadd.f32 %v6700, %v6812
    %v6814 = vpop.f32.mrf.mxu0
    %v6815 = vadd.f32 %v6702, %v6814
    %v6816 = vpop.f32.mrf.mxu0
    %v6817 = vadd.f32 %v6704, %v6816
    %6818 = vmatprep.mubr.bf16.mxu0 %v3764
    %6819 = vmatmul.mubr.bf16.gmra.mxu0 %v3763
    %v6820 = vpop.f32.mrf.mxu0
    %v6821 = vadd.f32 %v6708, %v6820
    %v6822 = vpop.f32.mrf.mxu0
    %v6823 = vadd.f32 %v6710, %v6822
    %v6824 = vpop.f32.mrf.mxu0
    %v6825 = vadd.f32 %v6712, %v6824
    %v6826 = vpop.f32.mrf.mxu0
    %v6827 = vadd.f32 %v6714, %v6826
    %6828 = vmatprep.mubr.bf16.mxu0 %v3772
    %6829 = vmatmul.mubr.bf16.gmra.mxu0 %v3771
    %v6830 = vpop.f32.mrf.mxu0
    %v6831 = vadd.f32 %v6718, %v6830
    %v6832 = vpop.f32.mrf.mxu0
    %v6833 = vadd.f32 %v6720, %v6832
    %v6834 = vpop.f32.mrf.mxu0
    %v6835 = vadd.f32 %v6722, %v6834
    %v6836 = vpop.f32.mrf.mxu0
    %v6837 = vadd.f32 %v6724, %v6836
    %6838 = vmatprep.mubr.bf16.mxu0 %v3780
    %6839 = vmatmul.mubr.bf16.gmra.mxu0 %v3779
    %v6840 = vpop.f32.mrf.mxu0
    %v6841 = vadd.f32 %v6728, %v6840
    %v6842 = vpop.f32.mrf.mxu0
    %v6843 = vadd.f32 %v6730, %v6842
    %v6844 = vpop.f32.mrf.mxu0
    %v6845 = vadd.f32 %v6732, %v6844
    %v6846 = vpop.f32.mrf.mxu0
    %v6847 = vadd.f32 %v6734, %v6846
    %6848 = vmatprep.mubr.bf16.mxu0 %v3788
    %6849 = vmatmul.mubr.bf16.gmra.mxu0 %v3787
    %v6850 = vpop.f32.mrf.mxu0
    %v6851 = vadd.f32 %v6738, %v6850
    %v6852 = vpop.f32.mrf.mxu0
    %v6853 = vadd.f32 %v6740, %v6852
    %v6854 = vpop.f32.mrf.mxu0
    %v6855 = vadd.f32 %v6742, %v6854
    %v6856 = vpop.f32.mrf.mxu0
    %v6857 = vadd.f32 %v6744, %v6856
    %6858 = vmatprep.mubr.bf16.mxu0 %v3796
    %6859 = vmatmul.mubr.bf16.gmra.mxu0 %v3795
    %v6860 = vpop.f32.mrf.mxu0
    %v6861 = vadd.f32 %v6748, %v6860
    %v6862 = vpop.f32.mrf.mxu0
    %v6863 = vadd.f32 %v6750, %v6862
    %v6864 = vpop.f32.mrf.mxu0
    %v6865 = vadd.f32 %v6752, %v6864
    %v6866 = vpop.f32.mrf.mxu0
    %v6867 = vadd.f32 %v6754, %v6866
    %6868 = vmatprep.mubr.bf16.mxu0 %v3804
    %6869 = vmatmul.mubr.bf16.gmra.mxu0 %v3803
    %v6870 = vpop.f32.mrf.mxu0
    %v6871 = vadd.f32 %v6758, %v6870
    %v6872 = vpop.f32.mrf.mxu0
    %v6873 = vadd.f32 %v6760, %v6872
    %v6874 = vpop.f32.mrf.mxu0
    %v6875 = vadd.f32 %v6762, %v6874
    %v6876 = vpop.f32.mrf.mxu0
    %v6877 = vadd.f32 %v6764, %v6876
    %6878 = vmatprep.mubr.bf16.mxu0 %v3812
    %6879 = vmatmul.mubr.bf16.gmra.mxu0 %v3811
    %v6880 = vpop.f32.mrf.mxu0
    %v6881 = vadd.f32 %v6768, %v6880
    %v6882 = vpop.f32.mrf.mxu0
    %v6883 = vadd.f32 %v6770, %v6882
    %v6884 = vpop.f32.mrf.mxu0
    %v6885 = vadd.f32 %v6772, %v6884
    %v6886 = vpop.f32.mrf.mxu0
    %v6887 = vadd.f32 %v6774, %v6886
    %6888 = vdwg.mxu0
    %6889 = vmatprep.subr.bf16.mxu0 %v5472
    %6890 = vmatpush1.bf16.msra.mxu0 %v5471
    %6891 = vmatprep.subr.bf16.mxu0 %v5464
    %6892 = vmatpush1.bf16.msra.mxu0 %v5463
    %6893 = vmatprep.subr.bf16.mxu0 %v5456
    %6894 = vmatpush1.bf16.msra.mxu0 %v5455
    %6895 = vmatprep.subr.bf16.mxu0 %v5448
    %6896 = vmatpush1.bf16.msra.mxu0 %v5447
    %6897 = vmatprep.subr.bf16.mxu0 %v5440
    %6898 = vmatpush1.bf16.msra.mxu0 %v5439
    %6899 = vmatprep.subr.bf16.mxu0 %v5432
    %6900 = vmatpush1.bf16.msra.mxu0 %v5431
    %6901 = vmatprep.subr.bf16.mxu0 %v5424
    %6902 = vmatpush1.bf16.msra.mxu0 %v5423
    %6903 = vmatprep.subr.bf16.mxu0 %v5416
    %6904 = vmatpush1.bf16.msra.mxu0 %v5415
    %6905 = vmatprep.subr.bf16.mxu0 %v5536
    %6906 = vmatpush2.bf16.msra.mxu0 %v5535
    %6907 = vmatprep.subr.bf16.mxu0 %v5528
    %6908 = vmatpush2.bf16.msra.mxu0 %v5527
    %6909 = vmatprep.subr.bf16.mxu0 %v5520
    %6910 = vmatpush2.bf16.msra.mxu0 %v5519
    %6911 = vmatprep.subr.bf16.mxu0 %v5512
    %6912 = vmatpush2.bf16.msra.mxu0 %v5511
    %6913 = vmatprep.subr.bf16.mxu0 %v5504
    %6914 = vmatpush2.bf16.msra.mxu0 %v5503
    %6915 = vmatprep.subr.bf16.mxu0 %v5496
    %6916 = vmatpush2.bf16.msra.mxu0 %v5495
    %6917 = vmatprep.subr.bf16.mxu0 %v5488
    %6918 = vmatpush2.bf16.msra.mxu0 %v5487
    %6919 = vmatprep.subr.bf16.mxu0 %v5480
    %6920 = vmatpush2.bf16.msra.mxu0 %v5479
    %6921 = vmatprep.mubr.bf16.mxu0 %v3750
    %6922 = vmatmul.mubr.bf16.gmra.mxu0 %v3749
    %v6923 = vpop.f32.mrf.mxu0
    %v6924 = vadd.f32 %v3528, %v6923
    %v6925 = vpop.f32.mrf.mxu0
    %v6926 = vadd.f32 %v3532, %v6925
    %v6927 = vpop.f32.mrf.mxu0
    %v6928 = vadd.f32 %v3528, %v6927
    %v6929 = vpop.f32.mrf.mxu0
    %v6930 = vadd.f32 %v3532, %v6929
    %6931 = vmatprep.mubr.bf16.mxu0 %v3758
    %6932 = vmatmul.mubr.bf16.gmra.mxu0 %v3757
    %v6933 = vpop.f32.mrf.mxu0
    %v6934 = vadd.f32 %v3528, %v6933
    %v6935 = vpop.f32.mrf.mxu0
    %v6936 = vadd.f32 %v3532, %v6935
    %v6937 = vpop.f32.mrf.mxu0
    %v6938 = vadd.f32 %v3528, %v6937
    %v6939 = vpop.f32.mrf.mxu0
    %v6940 = vadd.f32 %v3532, %v6939
    %6941 = vmatprep.mubr.bf16.mxu0 %v3766
    %6942 = vmatmul.mubr.bf16.gmra.mxu0 %v3765
    %v6943 = vpop.f32.mrf.mxu0
    %v6944 = vadd.f32 %v3528, %v6943
    %v6945 = vpop.f32.mrf.mxu0
    %v6946 = vadd.f32 %v3532, %v6945
    %v6947 = vpop.f32.mrf.mxu0
    %v6948 = vadd.f32 %v3528, %v6947
    %v6949 = vpop.f32.mrf.mxu0
    %v6950 = vadd.f32 %v3532, %v6949
    %6951 = vmatprep.mubr.bf16.mxu0 %v3774
    %6952 = vmatmul.mubr.bf16.gmra.mxu0 %v3773
    %v6953 = vpop.f32.mrf.mxu0
    %v6954 = vadd.f32 %v3528, %v6953
    %v6955 = vpop.f32.mrf.mxu0
    %v6956 = vadd.f32 %v3532, %v6955
    %v6957 = vpop.f32.mrf.mxu0
    %v6958 = vadd.f32 %v3528, %v6957
    %v6959 = vpop.f32.mrf.mxu0
    %v6960 = vadd.f32 %v3532, %v6959
    %6961 = vmatprep.mubr.bf16.mxu0 %v3782
    %6962 = vmatmul.mubr.bf16.gmra.mxu0 %v3781
    %v6963 = vpop.f32.mrf.mxu0
    %v6964 = vadd.f32 %v3528, %v6963
    %v6965 = vpop.f32.mrf.mxu0
    %v6966 = vadd.f32 %v3532, %v6965
    %v6967 = vpop.f32.mrf.mxu0
    %v6968 = vadd.f32 %v3528, %v6967
    %v6969 = vpop.f32.mrf.mxu0
    %v6970 = vadd.f32 %v3532, %v6969
    %6971 = vmatprep.mubr.bf16.mxu0 %v3790
    %6972 = vmatmul.mubr.bf16.gmra.mxu0 %v3789
    %v6973 = vpop.f32.mrf.mxu0
    %v6974 = vadd.f32 %v3528, %v6973
    %v6975 = vpop.f32.mrf.mxu0
    %v6976 = vadd.f32 %v3532, %v6975
    %v6977 = vpop.f32.mrf.mxu0
    %v6978 = vadd.f32 %v3528, %v6977
    %v6979 = vpop.f32.mrf.mxu0
    %v6980 = vadd.f32 %v3532, %v6979
    %6981 = vmatprep.mubr.bf16.mxu0 %v3798
    %6982 = vmatmul.mubr.bf16.gmra.mxu0 %v3797
    %v6983 = vpop.f32.mrf.mxu0
    %v6984 = vadd.f32 %v3528, %v6983
    %v6985 = vpop.f32.mrf.mxu0
    %v6986 = vadd.f32 %v3532, %v6985
    %v6987 = vpop.f32.mrf.mxu0
    %v6988 = vadd.f32 %v3528, %v6987
    %v6989 = vpop.f32.mrf.mxu0
    %v6990 = vadd.f32 %v3532, %v6989
    %6991 = vmatprep.mubr.bf16.mxu0 %v3806
    %6992 = vmatmul.mubr.bf16.gmra.mxu0 %v3805
    %v6993 = vpop.f32.mrf.mxu0
    %v6994 = vadd.f32 %v3528, %v6993
    %v6995 = vpop.f32.mrf.mxu0
    %v6996 = vadd.f32 %v3532, %v6995
    %v6997 = vpop.f32.mrf.mxu0
    %v6998 = vadd.f32 %v3528, %v6997
    %v6999 = vpop.f32.mrf.mxu0
    %v7000 = vadd.f32 %v3532, %v6999
    %7001 = vdwg.mxu0
    %7002 = vmatprep.subr.bf16.mxu0 %v5600
    %7003 = vmatpush1.bf16.msra.mxu0 %v5599
    %7004 = vmatprep.subr.bf16.mxu0 %v5592
    %7005 = vmatpush1.bf16.msra.mxu0 %v5591
    %7006 = vmatprep.subr.bf16.mxu0 %v5584
    %7007 = vmatpush1.bf16.msra.mxu0 %v5583
    %7008 = vmatprep.subr.bf16.mxu0 %v5576
    %7009 = vmatpush1.bf16.msra.mxu0 %v5575
    %7010 = vmatprep.subr.bf16.mxu0 %v5568
    %7011 = vmatpush1.bf16.msra.mxu0 %v5567
    %7012 = vmatprep.subr.bf16.mxu0 %v5560
    %7013 = vmatpush1.bf16.msra.mxu0 %v5559
    %7014 = vmatprep.subr.bf16.mxu0 %v5552
    %7015 = vmatpush1.bf16.msra.mxu0 %v5551
    %7016 = vmatprep.subr.bf16.mxu0 %v5544
    %7017 = vmatpush1.bf16.msra.mxu0 %v5543
    %7018 = vmatprep.subr.bf16.mxu0 %v5664
    %7019 = vmatpush2.bf16.msra.mxu0 %v5663
    %7020 = vmatprep.subr.bf16.mxu0 %v5656
    %7021 = vmatpush2.bf16.msra.mxu0 %v5655
    %7022 = vmatprep.subr.bf16.mxu0 %v5648
    %7023 = vmatpush2.bf16.msra.mxu0 %v5647
    %7024 = vmatprep.subr.bf16.mxu0 %v5640
    %7025 = vmatpush2.bf16.msra.mxu0 %v5639
    %7026 = vmatprep.subr.bf16.mxu0 %v5632
    %7027 = vmatpush2.bf16.msra.mxu0 %v5631
    %7028 = vmatprep.subr.bf16.mxu0 %v5624
    %7029 = vmatpush2.bf16.msra.mxu0 %v5623
    %7030 = vmatprep.subr.bf16.mxu0 %v5616
    %7031 = vmatpush2.bf16.msra.mxu0 %v5615
    %7032 = vmatprep.subr.bf16.mxu0 %v5608
    %7033 = vmatpush2.bf16.msra.mxu0 %v5607
    %7034 = vmatprep.mubr.bf16.mxu0 %v3752
    %7035 = vmatmul.mubr.bf16.gmra.mxu0 %v3751
    %v7036 = vpop.f32.mrf.mxu0
    %v7037 = vadd.f32 %v6924, %v7036
    %v7038 = vpop.f32.mrf.mxu0
    %v7039 = vadd.f32 %v6926, %v7038
    %v7040 = vpop.f32.mrf.mxu0
    %v7041 = vadd.f32 %v6928, %v7040
    %v7042 = vpop.f32.mrf.mxu0
    %v7043 = vadd.f32 %v6930, %v7042
    %7044 = vmatprep.mubr.bf16.mxu0 %v3760
    %7045 = vmatmul.mubr.bf16.gmra.mxu0 %v3759
    %v7046 = vpop.f32.mrf.mxu0
    %v7047 = vadd.f32 %v6934, %v7046
    %v7048 = vpop.f32.mrf.mxu0
    %v7049 = vadd.f32 %v6936, %v7048
    %v7050 = vpop.f32.mrf.mxu0
    %v7051 = vadd.f32 %v6938, %v7050
    %v7052 = vpop.f32.mrf.mxu0
    %v7053 = vadd.f32 %v6940, %v7052
    %7054 = vmatprep.mubr.bf16.mxu0 %v3768
    %7055 = vmatmul.mubr.bf16.gmra.mxu0 %v3767
    %v7056 = vpop.f32.mrf.mxu0
    %v7057 = vadd.f32 %v6944, %v7056
    %v7058 = vpop.f32.mrf.mxu0
    %v7059 = vadd.f32 %v6946, %v7058
    %v7060 = vpop.f32.mrf.mxu0
    %v7061 = vadd.f32 %v6948, %v7060
    %v7062 = vpop.f32.mrf.mxu0
    %v7063 = vadd.f32 %v6950, %v7062
    %7064 = vmatprep.mubr.bf16.mxu0 %v3776
    %7065 = vmatmul.mubr.bf16.gmra.mxu0 %v3775
    %v7066 = vpop.f32.mrf.mxu0
    %v7067 = vadd.f32 %v6954, %v7066
    %v7068 = vpop.f32.mrf.mxu0
    %v7069 = vadd.f32 %v6956, %v7068
    %v7070 = vpop.f32.mrf.mxu0
    %v7071 = vadd.f32 %v6958, %v7070
    %v7072 = vpop.f32.mrf.mxu0
    %v7073 = vadd.f32 %v6960, %v7072
    %7074 = vmatprep.mubr.bf16.mxu0 %v3784
    %7075 = vmatmul.mubr.bf16.gmra.mxu0 %v3783
    %v7076 = vpop.f32.mrf.mxu0
    %v7077 = vadd.f32 %v6964, %v7076
    %v7078 = vpop.f32.mrf.mxu0
    %v7079 = vadd.f32 %v6966, %v7078
    %v7080 = vpop.f32.mrf.mxu0
    %v7081 = vadd.f32 %v6968, %v7080
    %v7082 = vpop.f32.mrf.mxu0
    %v7083 = vadd.f32 %v6970, %v7082
    %7084 = vmatprep.mubr.bf16.mxu0 %v3792
    %7085 = vmatmul.mubr.bf16.gmra.mxu0 %v3791
    %v7086 = vpop.f32.mrf.mxu0
    %v7087 = vadd.f32 %v6974, %v7086
    %v7088 = vpop.f32.mrf.mxu0
    %v7089 = vadd.f32 %v6976, %v7088
    %v7090 = vpop.f32.mrf.mxu0
    %v7091 = vadd.f32 %v6978, %v7090
    %v7092 = vpop.f32.mrf.mxu0
    %v7093 = vadd.f32 %v6980, %v7092
    %7094 = vmatprep.mubr.bf16.mxu0 %v3800
    %7095 = vmatmul.mubr.bf16.gmra.mxu0 %v3799
    %v7096 = vpop.f32.mrf.mxu0
    %v7097 = vadd.f32 %v6984, %v7096
    %v7098 = vpop.f32.mrf.mxu0
    %v7099 = vadd.f32 %v6986, %v7098
    %v7100 = vpop.f32.mrf.mxu0
    %v7101 = vadd.f32 %v6988, %v7100
    %v7102 = vpop.f32.mrf.mxu0
    %v7103 = vadd.f32 %v6990, %v7102
    %7104 = vmatprep.mubr.bf16.mxu0 %v3808
    %7105 = vmatmul.mubr.bf16.gmra.mxu0 %v3807
    %v7106 = vpop.f32.mrf.mxu0
    %v7107 = vadd.f32 %v6994, %v7106
    %v7108 = vpop.f32.mrf.mxu0
    %v7109 = vadd.f32 %v6996, %v7108
    %v7110 = vpop.f32.mrf.mxu0
    %v7111 = vadd.f32 %v6998, %v7110
    %v7112 = vpop.f32.mrf.mxu0
    %v7113 = vadd.f32 %v7000, %v7112
    %7114 = vdwg.mxu0
    %7115 = vmatprep.subr.bf16.mxu0 %v5728
    %7116 = vmatpush1.bf16.msra.mxu0 %v5727
    %7117 = vmatprep.subr.bf16.mxu0 %v5720
    %7118 = vmatpush1.bf16.msra.mxu0 %v5719
    %7119 = vmatprep.subr.bf16.mxu0 %v5712
    %7120 = vmatpush1.bf16.msra.mxu0 %v5711
    %7121 = vmatprep.subr.bf16.mxu0 %v5704
    %7122 = vmatpush1.bf16.msra.mxu0 %v5703
    %7123 = vmatprep.subr.bf16.mxu0 %v5696
    %7124 = vmatpush1.bf16.msra.mxu0 %v5695
    %7125 = vmatprep.subr.bf16.mxu0 %v5688
    %7126 = vmatpush1.bf16.msra.mxu0 %v5687
    %7127 = vmatprep.subr.bf16.mxu0 %v5680
    %7128 = vmatpush1.bf16.msra.mxu0 %v5679
    %7129 = vmatprep.subr.bf16.mxu0 %v5672
    %7130 = vmatpush1.bf16.msra.mxu0 %v5671
    %7131 = vmatprep.subr.bf16.mxu0 %v5792
    %7132 = vmatpush2.bf16.msra.mxu0 %v5791
    %7133 = vmatprep.subr.bf16.mxu0 %v5784
    %7134 = vmatpush2.bf16.msra.mxu0 %v5783
    %7135 = vmatprep.subr.bf16.mxu0 %v5776
    %7136 = vmatpush2.bf16.msra.mxu0 %v5775
    %7137 = vmatprep.subr.bf16.mxu0 %v5768
    %7138 = vmatpush2.bf16.msra.mxu0 %v5767
    %7139 = vmatprep.subr.bf16.mxu0 %v5760
    %7140 = vmatpush2.bf16.msra.mxu0 %v5759
    %7141 = vmatprep.subr.bf16.mxu0 %v5752
    %7142 = vmatpush2.bf16.msra.mxu0 %v5751
    %7143 = vmatprep.subr.bf16.mxu0 %v5744
    %7144 = vmatpush2.bf16.msra.mxu0 %v5743
    %7145 = vmatprep.subr.bf16.mxu0 %v5736
    %7146 = vmatpush2.bf16.msra.mxu0 %v5735
    %7147 = vmatprep.mubr.bf16.mxu0 %v3754
    %7148 = vmatmul.mubr.bf16.gmra.mxu0 %v3753
    %v7149 = vpop.f32.mrf.mxu0
    %v7150 = vadd.f32 %v7037, %v7149
    %v7151 = vpop.f32.mrf.mxu0
    %v7152 = vadd.f32 %v7039, %v7151
    %v7153 = vpop.f32.mrf.mxu0
    %v7154 = vadd.f32 %v7041, %v7153
    %v7155 = vpop.f32.mrf.mxu0
    %v7156 = vadd.f32 %v7043, %v7155
    %7157 = vmatprep.mubr.bf16.mxu0 %v3762
    %7158 = vmatmul.mubr.bf16.gmra.mxu0 %v3761
    %v7159 = vpop.f32.mrf.mxu0
    %v7160 = vadd.f32 %v7047, %v7159
    %v7161 = vpop.f32.mrf.mxu0
    %v7162 = vadd.f32 %v7049, %v7161
    %v7163 = vpop.f32.mrf.mxu0
    %v7164 = vadd.f32 %v7051, %v7163
    %v7165 = vpop.f32.mrf.mxu0
    %v7166 = vadd.f32 %v7053, %v7165
    %7167 = vmatprep.mubr.bf16.mxu0 %v3770
    %7168 = vmatmul.mubr.bf16.gmra.mxu0 %v3769
    %v7169 = vpop.f32.mrf.mxu0
    %v7170 = vadd.f32 %v7057, %v7169
    %v7171 = vpop.f32.mrf.mxu0
    %v7172 = vadd.f32 %v7059, %v7171
    %v7173 = vpop.f32.mrf.mxu0
    %v7174 = vadd.f32 %v7061, %v7173
    %v7175 = vpop.f32.mrf.mxu0
    %v7176 = vadd.f32 %v7063, %v7175
    %7177 = vmatprep.mubr.bf16.mxu0 %v3778
    %7178 = vmatmul.mubr.bf16.gmra.mxu0 %v3777
    %v7179 = vpop.f32.mrf.mxu0
    %v7180 = vadd.f32 %v7067, %v7179
    %v7181 = vpop.f32.mrf.mxu0
    %v7182 = vadd.f32 %v7069, %v7181
    %v7183 = vpop.f32.mrf.mxu0
    %v7184 = vadd.f32 %v7071, %v7183
    %v7185 = vpop.f32.mrf.mxu0
    %v7186 = vadd.f32 %v7073, %v7185
    %7187 = vmatprep.mubr.bf16.mxu0 %v3786
    %7188 = vmatmul.mubr.bf16.gmra.mxu0 %v3785
    %v7189 = vpop.f32.mrf.mxu0
    %v7190 = vadd.f32 %v7077, %v7189
    %v7191 = vpop.f32.mrf.mxu0
    %v7192 = vadd.f32 %v7079, %v7191
    %v7193 = vpop.f32.mrf.mxu0
    %v7194 = vadd.f32 %v7081, %v7193
    %v7195 = vpop.f32.mrf.mxu0
    %v7196 = vadd.f32 %v7083, %v7195
    %7197 = vmatprep.mubr.bf16.mxu0 %v3794
    %7198 = vmatmul.mubr.bf16.gmra.mxu0 %v3793
    %v7199 = vpop.f32.mrf.mxu0
    %v7200 = vadd.f32 %v7087, %v7199
    %v7201 = vpop.f32.mrf.mxu0
    %v7202 = vadd.f32 %v7089, %v7201
    %v7203 = vpop.f32.mrf.mxu0
    %v7204 = vadd.f32 %v7091, %v7203
    %v7205 = vpop.f32.mrf.mxu0
    %v7206 = vadd.f32 %v7093, %v7205
    %7207 = vmatprep.mubr.bf16.mxu0 %v3802
    %7208 = vmatmul.mubr.bf16.gmra.mxu0 %v3801
    %v7209 = vpop.f32.mrf.mxu0
    %v7210 = vadd.f32 %v7097, %v7209
    %v7211 = vpop.f32.mrf.mxu0
    %v7212 = vadd.f32 %v7099, %v7211
    %v7213 = vpop.f32.mrf.mxu0
    %v7214 = vadd.f32 %v7101, %v7213
    %v7215 = vpop.f32.mrf.mxu0
    %v7216 = vadd.f32 %v7103, %v7215
    %7217 = vmatprep.mubr.bf16.mxu0 %v3810
    %7218 = vmatmul.mubr.bf16.gmra.mxu0 %v3809
    %v7219 = vpop.f32.mrf.mxu0
    %v7220 = vadd.f32 %v7107, %v7219
    %v7221 = vpop.f32.mrf.mxu0
    %v7222 = vadd.f32 %v7109, %v7221
    %v7223 = vpop.f32.mrf.mxu0
    %v7224 = vadd.f32 %v7111, %v7223
    %v7225 = vpop.f32.mrf.mxu0
    %v7226 = vadd.f32 %v7113, %v7225
    %7227 = vdwg.mxu0
    %7228 = vmatprep.subr.bf16.mxu0 %v5856
    %7229 = vmatpush1.bf16.msra.mxu0 %v5855
    %7230 = vmatprep.subr.bf16.mxu0 %v5848
    %7231 = vmatpush1.bf16.msra.mxu0 %v5847
    %7232 = vmatprep.subr.bf16.mxu0 %v5840
    %7233 = vmatpush1.bf16.msra.mxu0 %v5839
    %7234 = vmatprep.subr.bf16.mxu0 %v5832
    %7235 = vmatpush1.bf16.msra.mxu0 %v5831
    %7236 = vmatprep.subr.bf16.mxu0 %v5824
    %7237 = vmatpush1.bf16.msra.mxu0 %v5823
    %7238 = vmatprep.subr.bf16.mxu0 %v5816
    %7239 = vmatpush1.bf16.msra.mxu0 %v5815
    %7240 = vmatprep.subr.bf16.mxu0 %v5808
    %7241 = vmatpush1.bf16.msra.mxu0 %v5807
    %7242 = vmatprep.subr.bf16.mxu0 %v5800
    %7243 = vmatpush1.bf16.msra.mxu0 %v5799
    %7244 = vmatprep.subr.bf16.mxu0 %v5920
    %7245 = vmatpush2.bf16.msra.mxu0 %v5919
    %7246 = vmatprep.subr.bf16.mxu0 %v5912
    %7247 = vmatpush2.bf16.msra.mxu0 %v5911
    %7248 = vmatprep.subr.bf16.mxu0 %v5904
    %7249 = vmatpush2.bf16.msra.mxu0 %v5903
    %7250 = vmatprep.subr.bf16.mxu0 %v5896
    %7251 = vmatpush2.bf16.msra.mxu0 %v5895
    %7252 = vmatprep.subr.bf16.mxu0 %v5888
    %7253 = vmatpush2.bf16.msra.mxu0 %v5887
    %7254 = vmatprep.subr.bf16.mxu0 %v5880
    %7255 = vmatpush2.bf16.msra.mxu0 %v5879
    %7256 = vmatprep.subr.bf16.mxu0 %v5872
    %7257 = vmatpush2.bf16.msra.mxu0 %v5871
    %7258 = vmatprep.subr.bf16.mxu0 %v5864
    %7259 = vmatpush2.bf16.msra.mxu0 %v5863
    %7260 = vmatprep.mubr.bf16.mxu0 %v3756
    %7261 = vmatmul.mubr.bf16.gmra.mxu0 %v3755
    %v7262 = vpop.f32.mrf.mxu0
    %v7263 = vadd.f32 %v7150, %v7262
    %v7264 = vpop.f32.mrf.mxu0
    %v7265 = vadd.f32 %v7152, %v7264
    %v7266 = vpop.f32.mrf.mxu0
    %v7267 = vadd.f32 %v7154, %v7266
    %v7268 = vpop.f32.mrf.mxu0
    %v7269 = vadd.f32 %v7156, %v7268
    %7270 = vmatprep.mubr.bf16.mxu0 %v3764
    %7271 = vmatmul.mubr.bf16.gmra.mxu0 %v3763
    %v7272 = vpop.f32.mrf.mxu0
    %v7273 = vadd.f32 %v7160, %v7272
    %v7274 = vpop.f32.mrf.mxu0
    %v7275 = vadd.f32 %v7162, %v7274
    %v7276 = vpop.f32.mrf.mxu0
    %v7277 = vadd.f32 %v7164, %v7276
    %v7278 = vpop.f32.mrf.mxu0
    %v7279 = vadd.f32 %v7166, %v7278
    %7280 = vmatprep.mubr.bf16.mxu0 %v3772
    %7281 = vmatmul.mubr.bf16.gmra.mxu0 %v3771
    %v7282 = vpop.f32.mrf.mxu0
    %v7283 = vadd.f32 %v7170, %v7282
    %v7284 = vpop.f32.mrf.mxu0
    %v7285 = vadd.f32 %v7172, %v7284
    %v7286 = vpop.f32.mrf.mxu0
    %v7287 = vadd.f32 %v7174, %v7286
    %v7288 = vpop.f32.mrf.mxu0
    %v7289 = vadd.f32 %v7176, %v7288
    %7290 = vmatprep.mubr.bf16.mxu0 %v3780
    %7291 = vmatmul.mubr.bf16.gmra.mxu0 %v3779
    %v7292 = vpop.f32.mrf.mxu0
    %v7293 = vadd.f32 %v7180, %v7292
    %v7294 = vpop.f32.mrf.mxu0
    %v7295 = vadd.f32 %v7182, %v7294
    %v7296 = vpop.f32.mrf.mxu0
    %v7297 = vadd.f32 %v7184, %v7296
    %v7298 = vpop.f32.mrf.mxu0
    %v7299 = vadd.f32 %v7186, %v7298
    %7300 = vmatprep.mubr.bf16.mxu0 %v3788
    %7301 = vmatmul.mubr.bf16.gmra.mxu0 %v3787
    %v7302 = vpop.f32.mrf.mxu0
    %v7303 = vadd.f32 %v7190, %v7302
    %v7304 = vpop.f32.mrf.mxu0
    %v7305 = vadd.f32 %v7192, %v7304
    %v7306 = vpop.f32.mrf.mxu0
    %v7307 = vadd.f32 %v7194, %v7306
    %v7308 = vpop.f32.mrf.mxu0
    %v7309 = vadd.f32 %v7196, %v7308
    %7310 = vmatprep.mubr.bf16.mxu0 %v3796
    %7311 = vmatmul.mubr.bf16.gmra.mxu0 %v3795
    %v7312 = vpop.f32.mrf.mxu0
    %v7313 = vadd.f32 %v7200, %v7312
    %v7314 = vpop.f32.mrf.mxu0
    %v7315 = vadd.f32 %v7202, %v7314
    %v7316 = vpop.f32.mrf.mxu0
    %v7317 = vadd.f32 %v7204, %v7316
    %v7318 = vpop.f32.mrf.mxu0
    %v7319 = vadd.f32 %v7206, %v7318
    %7320 = vmatprep.mubr.bf16.mxu0 %v3804
    %7321 = vmatmul.mubr.bf16.gmra.mxu0 %v3803
    %v7322 = vpop.f32.mrf.mxu0
    %v7323 = vadd.f32 %v7210, %v7322
    %v7324 = vpop.f32.mrf.mxu0
    %v7325 = vadd.f32 %v7212, %v7324
    %v7326 = vpop.f32.mrf.mxu0
    %v7327 = vadd.f32 %v7214, %v7326
    %v7328 = vpop.f32.mrf.mxu0
    %v7329 = vadd.f32 %v7216, %v7328
    %7330 = vmatprep.mubr.bf16.mxu0 %v3812
    %7331 = vmatmul.mubr.bf16.gmra.mxu0 %v3811
    %v7332 = vpop.f32.mrf.mxu0
    %v7333 = vadd.f32 %v7220, %v7332
    %v7334 = vpop.f32.mrf.mxu0
    %v7335 = vadd.f32 %v7222, %v7334
    %v7336 = vpop.f32.mrf.mxu0
    %v7337 = vadd.f32 %v7224, %v7336
    %v7338 = vpop.f32.mrf.mxu0
    %v7339 = vadd.f32 %v7226, %v7338
    %7340 = vdwg.mxu0
    %7341 = vmatprep.subr.bf16.mxu0 %v5474
    %7342 = vmatpush1.bf16.msra.mxu0 %v5473
    %7343 = vmatprep.subr.bf16.mxu0 %v5466
    %7344 = vmatpush1.bf16.msra.mxu0 %v5465
    %7345 = vmatprep.subr.bf16.mxu0 %v5458
    %7346 = vmatpush1.bf16.msra.mxu0 %v5457
    %7347 = vmatprep.subr.bf16.mxu0 %v5450
    %7348 = vmatpush1.bf16.msra.mxu0 %v5449
    %7349 = vmatprep.subr.bf16.mxu0 %v5442
    %7350 = vmatpush1.bf16.msra.mxu0 %v5441
    %7351 = vmatprep.subr.bf16.mxu0 %v5434
    %7352 = vmatpush1.bf16.msra.mxu0 %v5433
    %7353 = vmatprep.subr.bf16.mxu0 %v5426
    %7354 = vmatpush1.bf16.msra.mxu0 %v5425
    %7355 = vmatprep.subr.bf16.mxu0 %v5418
    %7356 = vmatpush1.bf16.msra.mxu0 %v5417
    %7357 = vmatprep.subr.bf16.mxu0 %v5538
    %7358 = vmatpush2.bf16.msra.mxu0 %v5537
    %7359 = vmatprep.subr.bf16.mxu0 %v5530
    %7360 = vmatpush2.bf16.msra.mxu0 %v5529
    %7361 = vmatprep.subr.bf16.mxu0 %v5522
    %7362 = vmatpush2.bf16.msra.mxu0 %v5521
    %7363 = vmatprep.subr.bf16.mxu0 %v5514
    %7364 = vmatpush2.bf16.msra.mxu0 %v5513
    %7365 = vmatprep.subr.bf16.mxu0 %v5506
    %7366 = vmatpush2.bf16.msra.mxu0 %v5505
    %7367 = vmatprep.subr.bf16.mxu0 %v5498
    %7368 = vmatpush2.bf16.msra.mxu0 %v5497
    %7369 = vmatprep.subr.bf16.mxu0 %v5490
    %7370 = vmatpush2.bf16.msra.mxu0 %v5489
    %7371 = vmatprep.subr.bf16.mxu0 %v5482
    %7372 = vmatpush2.bf16.msra.mxu0 %v5481
    %7373 = vmatprep.mubr.bf16.mxu0 %v3750
    %7374 = vmatmul.mubr.bf16.gmra.mxu0 %v3749
    %v7375 = vpop.f32.mrf.mxu0
    %v7376 = vadd.f32 %v3536, %v7375
    %v7377 = vpop.f32.mrf.mxu0
    %v7378 = vadd.f32 %v3540, %v7377
    %v7379 = vpop.f32.mrf.mxu0
    %v7380 = vadd.f32 %v3536, %v7379
    %v7381 = vpop.f32.mrf.mxu0
    %v7382 = vadd.f32 %v3540, %v7381
    %7383 = vmatprep.mubr.bf16.mxu0 %v3758
    %7384 = vmatmul.mubr.bf16.gmra.mxu0 %v3757
    %v7385 = vpop.f32.mrf.mxu0
    %v7386 = vadd.f32 %v3536, %v7385
    %v7387 = vpop.f32.mrf.mxu0
    %v7388 = vadd.f32 %v3540, %v7387
    %v7389 = vpop.f32.mrf.mxu0
    %v7390 = vadd.f32 %v3536, %v7389
    %v7391 = vpop.f32.mrf.mxu0
    %v7392 = vadd.f32 %v3540, %v7391
    %7393 = vmatprep.mubr.bf16.mxu0 %v3766
    %7394 = vmatmul.mubr.bf16.gmra.mxu0 %v3765
    %v7395 = vpop.f32.mrf.mxu0
    %v7396 = vadd.f32 %v3536, %v7395
    %v7397 = vpop.f32.mrf.mxu0
    %v7398 = vadd.f32 %v3540, %v7397
    %v7399 = vpop.f32.mrf.mxu0
    %v7400 = vadd.f32 %v3536, %v7399
    %v7401 = vpop.f32.mrf.mxu0
    %v7402 = vadd.f32 %v3540, %v7401
    %7403 = vmatprep.mubr.bf16.mxu0 %v3774
    %7404 = vmatmul.mubr.bf16.gmra.mxu0 %v3773
    %v7405 = vpop.f32.mrf.mxu0
    %v7406 = vadd.f32 %v3536, %v7405
    %v7407 = vpop.f32.mrf.mxu0
    %v7408 = vadd.f32 %v3540, %v7407
    %v7409 = vpop.f32.mrf.mxu0
    %v7410 = vadd.f32 %v3536, %v7409
    %v7411 = vpop.f32.mrf.mxu0
    %v7412 = vadd.f32 %v3540, %v7411
    %7413 = vmatprep.mubr.bf16.mxu0 %v3782
    %7414 = vmatmul.mubr.bf16.gmra.mxu0 %v3781
    %v7415 = vpop.f32.mrf.mxu0
    %v7416 = vadd.f32 %v3536, %v7415
    %v7417 = vpop.f32.mrf.mxu0
    %v7418 = vadd.f32 %v3540, %v7417
    %v7419 = vpop.f32.mrf.mxu0
    %v7420 = vadd.f32 %v3536, %v7419
    %v7421 = vpop.f32.mrf.mxu0
    %v7422 = vadd.f32 %v3540, %v7421
    %7423 = vmatprep.mubr.bf16.mxu0 %v3790
    %7424 = vmatmul.mubr.bf16.gmra.mxu0 %v3789
    %v7425 = vpop.f32.mrf.mxu0
    %v7426 = vadd.f32 %v3536, %v7425
    %v7427 = vpop.f32.mrf.mxu0
    %v7428 = vadd.f32 %v3540, %v7427
    %v7429 = vpop.f32.mrf.mxu0
    %v7430 = vadd.f32 %v3536, %v7429
    %v7431 = vpop.f32.mrf.mxu0
    %v7432 = vadd.f32 %v3540, %v7431
    %7433 = vmatprep.mubr.bf16.mxu0 %v3798
    %7434 = vmatmul.mubr.bf16.gmra.mxu0 %v3797
    %v7435 = vpop.f32.mrf.mxu0
    %v7436 = vadd.f32 %v3536, %v7435
    %v7437 = vpop.f32.mrf.mxu0
    %v7438 = vadd.f32 %v3540, %v7437
    %v7439 = vpop.f32.mrf.mxu0
    %v7440 = vadd.f32 %v3536, %v7439
    %v7441 = vpop.f32.mrf.mxu0
    %v7442 = vadd.f32 %v3540, %v7441
    %7443 = vmatprep.mubr.bf16.mxu0 %v3806
    %7444 = vmatmul.mubr.bf16.gmra.mxu0 %v3805
    %v7445 = vpop.f32.mrf.mxu0
    %v7446 = vadd.f32 %v3536, %v7445
    %v7447 = vpop.f32.mrf.mxu0
    %v7448 = vadd.f32 %v3540, %v7447
    %v7449 = vpop.f32.mrf.mxu0
    %v7450 = vadd.f32 %v3536, %v7449
    %v7451 = vpop.f32.mrf.mxu0
    %v7452 = vadd.f32 %v3540, %v7451
    %7453 = vdwg.mxu0
    %7454 = vmatprep.subr.bf16.mxu0 %v5602
    %7455 = vmatpush1.bf16.msra.mxu0 %v5601
    %7456 = vmatprep.subr.bf16.mxu0 %v5594
    %7457 = vmatpush1.bf16.msra.mxu0 %v5593
    %7458 = vmatprep.subr.bf16.mxu0 %v5586
    %7459 = vmatpush1.bf16.msra.mxu0 %v5585
    %7460 = vmatprep.subr.bf16.mxu0 %v5578
    %7461 = vmatpush1.bf16.msra.mxu0 %v5577
    %7462 = vmatprep.subr.bf16.mxu0 %v5570
    %7463 = vmatpush1.bf16.msra.mxu0 %v5569
    %7464 = vmatprep.subr.bf16.mxu0 %v5562
    %7465 = vmatpush1.bf16.msra.mxu0 %v5561
    %7466 = vmatprep.subr.bf16.mxu0 %v5554
    %7467 = vmatpush1.bf16.msra.mxu0 %v5553
    %7468 = vmatprep.subr.bf16.mxu0 %v5546
    %7469 = vmatpush1.bf16.msra.mxu0 %v5545
    %7470 = vmatprep.subr.bf16.mxu0 %v5666
    %7471 = vmatpush2.bf16.msra.mxu0 %v5665
    %7472 = vmatprep.subr.bf16.mxu0 %v5658
    %7473 = vmatpush2.bf16.msra.mxu0 %v5657
    %7474 = vmatprep.subr.bf16.mxu0 %v5650
    %7475 = vmatpush2.bf16.msra.mxu0 %v5649
    %7476 = vmatprep.subr.bf16.mxu0 %v5642
    %7477 = vmatpush2.bf16.msra.mxu0 %v5641
    %7478 = vmatprep.subr.bf16.mxu0 %v5634
    %7479 = vmatpush2.bf16.msra.mxu0 %v5633
    %7480 = vmatprep.subr.bf16.mxu0 %v5626
    %7481 = vmatpush2.bf16.msra.mxu0 %v5625
    %7482 = vmatprep.subr.bf16.mxu0 %v5618
    %7483 = vmatpush2.bf16.msra.mxu0 %v5617
    %7484 = vmatprep.subr.bf16.mxu0 %v5610
    %7485 = vmatpush2.bf16.msra.mxu0 %v5609
    %7486 = vmatprep.mubr.bf16.mxu0 %v3752
    %7487 = vmatmul.mubr.bf16.gmra.mxu0 %v3751
    %v7488 = vpop.f32.mrf.mxu0
    %v7489 = vadd.f32 %v7376, %v7488
    %v7490 = vpop.f32.mrf.mxu0
    %v7491 = vadd.f32 %v7378, %v7490
    %v7492 = vpop.f32.mrf.mxu0
    %v7493 = vadd.f32 %v7380, %v7492
    %v7494 = vpop.f32.mrf.mxu0
    %v7495 = vadd.f32 %v7382, %v7494
    %7496 = vmatprep.mubr.bf16.mxu0 %v3760
    %7497 = vmatmul.mubr.bf16.gmra.mxu0 %v3759
    %v7498 = vpop.f32.mrf.mxu0
    %v7499 = vadd.f32 %v7386, %v7498
    %v7500 = vpop.f32.mrf.mxu0
    %v7501 = vadd.f32 %v7388, %v7500
    %v7502 = vpop.f32.mrf.mxu0
    %v7503 = vadd.f32 %v7390, %v7502
    %v7504 = vpop.f32.mrf.mxu0
    %v7505 = vadd.f32 %v7392, %v7504
    %7506 = vmatprep.mubr.bf16.mxu0 %v3768
    %7507 = vmatmul.mubr.bf16.gmra.mxu0 %v3767
    %v7508 = vpop.f32.mrf.mxu0
    %v7509 = vadd.f32 %v7396, %v7508
    %v7510 = vpop.f32.mrf.mxu0
    %v7511 = vadd.f32 %v7398, %v7510
    %v7512 = vpop.f32.mrf.mxu0
    %v7513 = vadd.f32 %v7400, %v7512
    %v7514 = vpop.f32.mrf.mxu0
    %v7515 = vadd.f32 %v7402, %v7514
    %7516 = vmatprep.mubr.bf16.mxu0 %v3776
    %7517 = vmatmul.mubr.bf16.gmra.mxu0 %v3775
    %v7518 = vpop.f32.mrf.mxu0
    %v7519 = vadd.f32 %v7406, %v7518
    %v7520 = vpop.f32.mrf.mxu0
    %v7521 = vadd.f32 %v7408, %v7520
    %v7522 = vpop.f32.mrf.mxu0
    %v7523 = vadd.f32 %v7410, %v7522
    %v7524 = vpop.f32.mrf.mxu0
    %v7525 = vadd.f32 %v7412, %v7524
    %7526 = vmatprep.mubr.bf16.mxu0 %v3784
    %7527 = vmatmul.mubr.bf16.gmra.mxu0 %v3783
    %v7528 = vpop.f32.mrf.mxu0
    %v7529 = vadd.f32 %v7416, %v7528
    %v7530 = vpop.f32.mrf.mxu0
    %v7531 = vadd.f32 %v7418, %v7530
    %v7532 = vpop.f32.mrf.mxu0
    %v7533 = vadd.f32 %v7420, %v7532
    %v7534 = vpop.f32.mrf.mxu0
    %v7535 = vadd.f32 %v7422, %v7534
    %7536 = vmatprep.mubr.bf16.mxu0 %v3792
    %7537 = vmatmul.mubr.bf16.gmra.mxu0 %v3791
    %v7538 = vpop.f32.mrf.mxu0
    %v7539 = vadd.f32 %v7426, %v7538
    %v7540 = vpop.f32.mrf.mxu0
    %v7541 = vadd.f32 %v7428, %v7540
    %v7542 = vpop.f32.mrf.mxu0
    %v7543 = vadd.f32 %v7430, %v7542
    %v7544 = vpop.f32.mrf.mxu0
    %v7545 = vadd.f32 %v7432, %v7544
    %7546 = vmatprep.mubr.bf16.mxu0 %v3800
    %7547 = vmatmul.mubr.bf16.gmra.mxu0 %v3799
    %v7548 = vpop.f32.mrf.mxu0
    %v7549 = vadd.f32 %v7436, %v7548
    %v7550 = vpop.f32.mrf.mxu0
    %v7551 = vadd.f32 %v7438, %v7550
    %v7552 = vpop.f32.mrf.mxu0
    %v7553 = vadd.f32 %v7440, %v7552
    %v7554 = vpop.f32.mrf.mxu0
    %v7555 = vadd.f32 %v7442, %v7554
    %7556 = vmatprep.mubr.bf16.mxu0 %v3808
    %7557 = vmatmul.mubr.bf16.gmra.mxu0 %v3807
    %v7558 = vpop.f32.mrf.mxu0
    %v7559 = vadd.f32 %v7446, %v7558
    %v7560 = vpop.f32.mrf.mxu0
    %v7561 = vadd.f32 %v7448, %v7560
    %v7562 = vpop.f32.mrf.mxu0
    %v7563 = vadd.f32 %v7450, %v7562
    %v7564 = vpop.f32.mrf.mxu0
    %v7565 = vadd.f32 %v7452, %v7564
    %7566 = vdwg.mxu0
    %7567 = vmatprep.subr.bf16.mxu0 %v5730
    %7568 = vmatpush1.bf16.msra.mxu0 %v5729
    %7569 = vmatprep.subr.bf16.mxu0 %v5722
    %7570 = vmatpush1.bf16.msra.mxu0 %v5721
    %7571 = vmatprep.subr.bf16.mxu0 %v5714
    %7572 = vmatpush1.bf16.msra.mxu0 %v5713
    %7573 = vmatprep.subr.bf16.mxu0 %v5706
    %7574 = vmatpush1.bf16.msra.mxu0 %v5705
    %7575 = vmatprep.subr.bf16.mxu0 %v5698
    %7576 = vmatpush1.bf16.msra.mxu0 %v5697
    %7577 = vmatprep.subr.bf16.mxu0 %v5690
    %7578 = vmatpush1.bf16.msra.mxu0 %v5689
    %7579 = vmatprep.subr.bf16.mxu0 %v5682
    %7580 = vmatpush1.bf16.msra.mxu0 %v5681
    %7581 = vmatprep.subr.bf16.mxu0 %v5674
    %7582 = vmatpush1.bf16.msra.mxu0 %v5673
    %7583 = vmatprep.subr.bf16.mxu0 %v5794
    %7584 = vmatpush2.bf16.msra.mxu0 %v5793
    %7585 = vmatprep.subr.bf16.mxu0 %v5786
    %7586 = vmatpush2.bf16.msra.mxu0 %v5785
    %7587 = vmatprep.subr.bf16.mxu0 %v5778
    %7588 = vmatpush2.bf16.msra.mxu0 %v5777
    %7589 = vmatprep.subr.bf16.mxu0 %v5770
    %7590 = vmatpush2.bf16.msra.mxu0 %v5769
    %7591 = vmatprep.subr.bf16.mxu0 %v5762
    %7592 = vmatpush2.bf16.msra.mxu0 %v5761
    %7593 = vmatprep.subr.bf16.mxu0 %v5754
    %7594 = vmatpush2.bf16.msra.mxu0 %v5753
    %7595 = vmatprep.subr.bf16.mxu0 %v5746
    %7596 = vmatpush2.bf16.msra.mxu0 %v5745
    %7597 = vmatprep.subr.bf16.mxu0 %v5738
    %7598 = vmatpush2.bf16.msra.mxu0 %v5737
    %7599 = vmatprep.mubr.bf16.mxu0 %v3754
    %7600 = vmatmul.mubr.bf16.gmra.mxu0 %v3753
    %v7601 = vpop.f32.mrf.mxu0
    %v7602 = vadd.f32 %v7489, %v7601
    %v7603 = vpop.f32.mrf.mxu0
    %v7604 = vadd.f32 %v7491, %v7603
    %v7605 = vpop.f32.mrf.mxu0
    %v7606 = vadd.f32 %v7493, %v7605
    %v7607 = vpop.f32.mrf.mxu0
    %v7608 = vadd.f32 %v7495, %v7607
    %7609 = vmatprep.mubr.bf16.mxu0 %v3762
    %7610 = vmatmul.mubr.bf16.gmra.mxu0 %v3761
    %v7611 = vpop.f32.mrf.mxu0
    %v7612 = vadd.f32 %v7499, %v7611
    %v7613 = vpop.f32.mrf.mxu0
    %v7614 = vadd.f32 %v7501, %v7613
    %v7615 = vpop.f32.mrf.mxu0
    %v7616 = vadd.f32 %v7503, %v7615
    %v7617 = vpop.f32.mrf.mxu0
    %v7618 = vadd.f32 %v7505, %v7617
    %7619 = vmatprep.mubr.bf16.mxu0 %v3770
    %7620 = vmatmul.mubr.bf16.gmra.mxu0 %v3769
    %v7621 = vpop.f32.mrf.mxu0
    %v7622 = vadd.f32 %v7509, %v7621
    %v7623 = vpop.f32.mrf.mxu0
    %v7624 = vadd.f32 %v7511, %v7623
    %v7625 = vpop.f32.mrf.mxu0
    %v7626 = vadd.f32 %v7513, %v7625
    %v7627 = vpop.f32.mrf.mxu0
    %v7628 = vadd.f32 %v7515, %v7627
    %7629 = vmatprep.mubr.bf16.mxu0 %v3778
    %7630 = vmatmul.mubr.bf16.gmra.mxu0 %v3777
    %v7631 = vpop.f32.mrf.mxu0
    %v7632 = vadd.f32 %v7519, %v7631
    %v7633 = vpop.f32.mrf.mxu0
    %v7634 = vadd.f32 %v7521, %v7633
    %v7635 = vpop.f32.mrf.mxu0
    %v7636 = vadd.f32 %v7523, %v7635
    %v7637 = vpop.f32.mrf.mxu0
    %v7638 = vadd.f32 %v7525, %v7637
    %7639 = vmatprep.mubr.bf16.mxu0 %v3786
    %7640 = vmatmul.mubr.bf16.gmra.mxu0 %v3785
    %v7641 = vpop.f32.mrf.mxu0
    %v7642 = vadd.f32 %v7529, %v7641
    %v7643 = vpop.f32.mrf.mxu0
    %v7644 = vadd.f32 %v7531, %v7643
    %v7645 = vpop.f32.mrf.mxu0
    %v7646 = vadd.f32 %v7533, %v7645
    %v7647 = vpop.f32.mrf.mxu0
    %v7648 = vadd.f32 %v7535, %v7647
    %7649 = vmatprep.mubr.bf16.mxu0 %v3794
    %7650 = vmatmul.mubr.bf16.gmra.mxu0 %v3793
    %v7651 = vpop.f32.mrf.mxu0
    %v7652 = vadd.f32 %v7539, %v7651
    %v7653 = vpop.f32.mrf.mxu0
    %v7654 = vadd.f32 %v7541, %v7653
    %v7655 = vpop.f32.mrf.mxu0
    %v7656 = vadd.f32 %v7543, %v7655
    %v7657 = vpop.f32.mrf.mxu0
    %v7658 = vadd.f32 %v7545, %v7657
    %7659 = vmatprep.mubr.bf16.mxu0 %v3802
    %7660 = vmatmul.mubr.bf16.gmra.mxu0 %v3801
    %v7661 = vpop.f32.mrf.mxu0
    %v7662 = vadd.f32 %v7549, %v7661
    %v7663 = vpop.f32.mrf.mxu0
    %v7664 = vadd.f32 %v7551, %v7663
    %v7665 = vpop.f32.mrf.mxu0
    %v7666 = vadd.f32 %v7553, %v7665
    %v7667 = vpop.f32.mrf.mxu0
    %v7668 = vadd.f32 %v7555, %v7667
    %7669 = vmatprep.mubr.bf16.mxu0 %v3810
    %7670 = vmatmul.mubr.bf16.gmra.mxu0 %v3809
    %v7671 = vpop.f32.mrf.mxu0
    %v7672 = vadd.f32 %v7559, %v7671
    %v7673 = vpop.f32.mrf.mxu0
    %v7674 = vadd.f32 %v7561, %v7673
    %v7675 = vpop.f32.mrf.mxu0
    %v7676 = vadd.f32 %v7563, %v7675
    %v7677 = vpop.f32.mrf.mxu0
    %v7678 = vadd.f32 %v7565, %v7677
    %7679 = vdwg.mxu0
    %7680 = vmatprep.subr.bf16.mxu0 %v5858
    %7681 = vmatpush1.bf16.msra.mxu0 %v5857
    %7682 = vmatprep.subr.bf16.mxu0 %v5850
    %7683 = vmatpush1.bf16.msra.mxu0 %v5849
    %7684 = vmatprep.subr.bf16.mxu0 %v5842
    %7685 = vmatpush1.bf16.msra.mxu0 %v5841
    %7686 = vmatprep.subr.bf16.mxu0 %v5834
    %7687 = vmatpush1.bf16.msra.mxu0 %v5833
    %7688 = vmatprep.subr.bf16.mxu0 %v5826
    %7689 = vmatpush1.bf16.msra.mxu0 %v5825
    %7690 = vmatprep.subr.bf16.mxu0 %v5818
    %7691 = vmatpush1.bf16.msra.mxu0 %v5817
    %7692 = vmatprep.subr.bf16.mxu0 %v5810
    %7693 = vmatpush1.bf16.msra.mxu0 %v5809
    %7694 = vmatprep.subr.bf16.mxu0 %v5802
    %7695 = vmatpush1.bf16.msra.mxu0 %v5801
    %7696 = vmatprep.subr.bf16.mxu0 %v5922
    %7697 = vmatpush2.bf16.msra.mxu0 %v5921
    %7698 = vmatprep.subr.bf16.mxu0 %v5914
    %7699 = vmatpush2.bf16.msra.mxu0 %v5913
    %7700 = vmatprep.subr.bf16.mxu0 %v5906
    %7701 = vmatpush2.bf16.msra.mxu0 %v5905
    %7702 = vmatprep.subr.bf16.mxu0 %v5898
    %7703 = vmatpush2.bf16.msra.mxu0 %v5897
    %7704 = vmatprep.subr.bf16.mxu0 %v5890
    %7705 = vmatpush2.bf16.msra.mxu0 %v5889
    %7706 = vmatprep.subr.bf16.mxu0 %v5882
    %7707 = vmatpush2.bf16.msra.mxu0 %v5881
    %7708 = vmatprep.subr.bf16.mxu0 %v5874
    %7709 = vmatpush2.bf16.msra.mxu0 %v5873
    %7710 = vmatprep.subr.bf16.mxu0 %v5866
    %7711 = vmatpush2.bf16.msra.mxu0 %v5865
    %7712 = vmatprep.mubr.bf16.mxu0 %v3756
    %7713 = vmatmul.mubr.bf16.gmra.mxu0 %v3755
    %v7714 = vpop.f32.mrf.mxu0
    %v7715 = vadd.f32 %v7602, %v7714
    %v7716 = vpop.f32.mrf.mxu0
    %v7717 = vadd.f32 %v7604, %v7716
    %v7718 = vpop.f32.mrf.mxu0
    %v7719 = vadd.f32 %v7606, %v7718
    %v7720 = vpop.f32.mrf.mxu0
    %v7721 = vadd.f32 %v7608, %v7720
    %7722 = vmatprep.mubr.bf16.mxu0 %v3764
    %7723 = vmatmul.mubr.bf16.gmra.mxu0 %v3763
    %v7724 = vpop.f32.mrf.mxu0
    %v7725 = vadd.f32 %v7612, %v7724
    %v7726 = vpop.f32.mrf.mxu0
    %v7727 = vadd.f32 %v7614, %v7726
    %v7728 = vpop.f32.mrf.mxu0
    %v7729 = vadd.f32 %v7616, %v7728
    %v7730 = vpop.f32.mrf.mxu0
    %v7731 = vadd.f32 %v7618, %v7730
    %7732 = vmatprep.mubr.bf16.mxu0 %v3772
    %7733 = vmatmul.mubr.bf16.gmra.mxu0 %v3771
    %v7734 = vpop.f32.mrf.mxu0
    %v7735 = vadd.f32 %v7622, %v7734
    %v7736 = vpop.f32.mrf.mxu0
    %v7737 = vadd.f32 %v7624, %v7736
    %v7738 = vpop.f32.mrf.mxu0
    %v7739 = vadd.f32 %v7626, %v7738
    %v7740 = vpop.f32.mrf.mxu0
    %v7741 = vadd.f32 %v7628, %v7740
    %7742 = vmatprep.mubr.bf16.mxu0 %v3780
    %7743 = vmatmul.mubr.bf16.gmra.mxu0 %v3779
    %v7744 = vpop.f32.mrf.mxu0
    %v7745 = vadd.f32 %v7632, %v7744
    %v7746 = vpop.f32.mrf.mxu0
    %v7747 = vadd.f32 %v7634, %v7746
    %v7748 = vpop.f32.mrf.mxu0
    %v7749 = vadd.f32 %v7636, %v7748
    %v7750 = vpop.f32.mrf.mxu0
    %v7751 = vadd.f32 %v7638, %v7750
    %7752 = vmatprep.mubr.bf16.mxu0 %v3788
    %7753 = vmatmul.mubr.bf16.gmra.mxu0 %v3787
    %v7754 = vpop.f32.mrf.mxu0
    %v7755 = vadd.f32 %v7642, %v7754
    %v7756 = vpop.f32.mrf.mxu0
    %v7757 = vadd.f32 %v7644, %v7756
    %v7758 = vpop.f32.mrf.mxu0
    %v7759 = vadd.f32 %v7646, %v7758
    %v7760 = vpop.f32.mrf.mxu0
    %v7761 = vadd.f32 %v7648, %v7760
    %7762 = vmatprep.mubr.bf16.mxu0 %v3796
    %7763 = vmatmul.mubr.bf16.gmra.mxu0 %v3795
    %v7764 = vpop.f32.mrf.mxu0
    %v7765 = vadd.f32 %v7652, %v7764
    %v7766 = vpop.f32.mrf.mxu0
    %v7767 = vadd.f32 %v7654, %v7766
    %v7768 = vpop.f32.mrf.mxu0
    %v7769 = vadd.f32 %v7656, %v7768
    %v7770 = vpop.f32.mrf.mxu0
    %v7771 = vadd.f32 %v7658, %v7770
    %7772 = vmatprep.mubr.bf16.mxu0 %v3804
    %7773 = vmatmul.mubr.bf16.gmra.mxu0 %v3803
    %v7774 = vpop.f32.mrf.mxu0
    %v7775 = vadd.f32 %v7662, %v7774
    %v7776 = vpop.f32.mrf.mxu0
    %v7777 = vadd.f32 %v7664, %v7776
    %v7778 = vpop.f32.mrf.mxu0
    %v7779 = vadd.f32 %v7666, %v7778
    %v7780 = vpop.f32.mrf.mxu0
    %v7781 = vadd.f32 %v7668, %v7780
    %7782 = vmatprep.mubr.bf16.mxu0 %v3812
    %7783 = vmatmul.mubr.bf16.gmra.mxu0 %v3811
    %v7784 = vpop.f32.mrf.mxu0
    %v7785 = vadd.f32 %v7672, %v7784
    %v7786 = vpop.f32.mrf.mxu0
    %v7787 = vadd.f32 %v7674, %v7786
    %v7788 = vpop.f32.mrf.mxu0
    %v7789 = vadd.f32 %v7676, %v7788
    %v7790 = vpop.f32.mrf.mxu0
    %v7791 = vadd.f32 %v7678, %v7790
    %7792 = vdwg.mxu0
    %7793 = vmatprep.subr.bf16.mxu0 %v5476
    %7794 = vmatpush1.bf16.msra.mxu0 %v5475
    %7795 = vmatprep.subr.bf16.mxu0 %v5468
    %7796 = vmatpush1.bf16.msra.mxu0 %v5467
    %7797 = vmatprep.subr.bf16.mxu0 %v5460
    %7798 = vmatpush1.bf16.msra.mxu0 %v5459
    %7799 = vmatprep.subr.bf16.mxu0 %v5452
    %7800 = vmatpush1.bf16.msra.mxu0 %v5451
    %7801 = vmatprep.subr.bf16.mxu0 %v5444
    %7802 = vmatpush1.bf16.msra.mxu0 %v5443
    %7803 = vmatprep.subr.bf16.mxu0 %v5436
    %7804 = vmatpush1.bf16.msra.mxu0 %v5435
    %7805 = vmatprep.subr.bf16.mxu0 %v5428
    %7806 = vmatpush1.bf16.msra.mxu0 %v5427
    %7807 = vmatprep.subr.bf16.mxu0 %v5420
    %7808 = vmatpush1.bf16.msra.mxu0 %v5419
    %7809 = vmatprep.subr.bf16.mxu0 %v5540
    %7810 = vmatpush2.bf16.msra.mxu0 %v5539
    %7811 = vmatprep.subr.bf16.mxu0 %v5532
    %7812 = vmatpush2.bf16.msra.mxu0 %v5531
    %7813 = vmatprep.subr.bf16.mxu0 %v5524
    %7814 = vmatpush2.bf16.msra.mxu0 %v5523
    %7815 = vmatprep.subr.bf16.mxu0 %v5516
    %7816 = vmatpush2.bf16.msra.mxu0 %v5515
    %7817 = vmatprep.subr.bf16.mxu0 %v5508
    %7818 = vmatpush2.bf16.msra.mxu0 %v5507
    %7819 = vmatprep.subr.bf16.mxu0 %v5500
    %7820 = vmatpush2.bf16.msra.mxu0 %v5499
    %7821 = vmatprep.subr.bf16.mxu0 %v5492
    %7822 = vmatpush2.bf16.msra.mxu0 %v5491
    %7823 = vmatprep.subr.bf16.mxu0 %v5484
    %7824 = vmatpush2.bf16.msra.mxu0 %v5483
    %7825 = vmatprep.mubr.bf16.mxu0 %v3750
    %7826 = vmatmul.mubr.bf16.gmra.mxu0 %v3749
    %v7827 = vpop.f32.mrf.mxu0
    %v7828 = vadd.f32 %v3544, %v7827
    %v7829 = vpop.f32.mrf.mxu0
    %v7830 = vadd.f32 %v3548, %v7829
    %v7831 = vpop.f32.mrf.mxu0
    %v7832 = vadd.f32 %v3544, %v7831
    %v7833 = vpop.f32.mrf.mxu0
    %v7834 = vadd.f32 %v3548, %v7833
    %7835 = vmatprep.mubr.bf16.mxu0 %v3758
    %7836 = vmatmul.mubr.bf16.gmra.mxu0 %v3757
    %v7837 = vpop.f32.mrf.mxu0
    %v7838 = vadd.f32 %v3544, %v7837
    %v7839 = vpop.f32.mrf.mxu0
    %v7840 = vadd.f32 %v3548, %v7839
    %v7841 = vpop.f32.mrf.mxu0
    %v7842 = vadd.f32 %v3544, %v7841
    %v7843 = vpop.f32.mrf.mxu0
    %v7844 = vadd.f32 %v3548, %v7843
    %7845 = vmatprep.mubr.bf16.mxu0 %v3766
    %7846 = vmatmul.mubr.bf16.gmra.mxu0 %v3765
    %v7847 = vpop.f32.mrf.mxu0
    %v7848 = vadd.f32 %v3544, %v7847
    %v7849 = vpop.f32.mrf.mxu0
    %v7850 = vadd.f32 %v3548, %v7849
    %v7851 = vpop.f32.mrf.mxu0
    %v7852 = vadd.f32 %v3544, %v7851
    %v7853 = vpop.f32.mrf.mxu0
    %v7854 = vadd.f32 %v3548, %v7853
    %7855 = vmatprep.mubr.bf16.mxu0 %v3774
    %7856 = vmatmul.mubr.bf16.gmra.mxu0 %v3773
    %v7857 = vpop.f32.mrf.mxu0
    %v7858 = vadd.f32 %v3544, %v7857
    %v7859 = vpop.f32.mrf.mxu0
    %v7860 = vadd.f32 %v3548, %v7859
    %v7861 = vpop.f32.mrf.mxu0
    %v7862 = vadd.f32 %v3544, %v7861
    %v7863 = vpop.f32.mrf.mxu0
    %v7864 = vadd.f32 %v3548, %v7863
    %7865 = vmatprep.mubr.bf16.mxu0 %v3782
    %7866 = vmatmul.mubr.bf16.gmra.mxu0 %v3781
    %v7867 = vpop.f32.mrf.mxu0
    %v7868 = vadd.f32 %v3544, %v7867
    %v7869 = vpop.f32.mrf.mxu0
    %v7870 = vadd.f32 %v3548, %v7869
    %v7871 = vpop.f32.mrf.mxu0
    %v7872 = vadd.f32 %v3544, %v7871
    %v7873 = vpop.f32.mrf.mxu0
    %v7874 = vadd.f32 %v3548, %v7873
    %7875 = vmatprep.mubr.bf16.mxu0 %v3790
    %7876 = vmatmul.mubr.bf16.gmra.mxu0 %v3789
    %v7877 = vpop.f32.mrf.mxu0
    %v7878 = vadd.f32 %v3544, %v7877
    %v7879 = vpop.f32.mrf.mxu0
    %v7880 = vadd.f32 %v3548, %v7879
    %v7881 = vpop.f32.mrf.mxu0
    %v7882 = vadd.f32 %v3544, %v7881
    %v7883 = vpop.f32.mrf.mxu0
    %v7884 = vadd.f32 %v3548, %v7883
    %7885 = vmatprep.mubr.bf16.mxu0 %v3798
    %7886 = vmatmul.mubr.bf16.gmra.mxu0 %v3797
    %v7887 = vpop.f32.mrf.mxu0
    %v7888 = vadd.f32 %v3544, %v7887
    %v7889 = vpop.f32.mrf.mxu0
    %v7890 = vadd.f32 %v3548, %v7889
    %v7891 = vpop.f32.mrf.mxu0
    %v7892 = vadd.f32 %v3544, %v7891
    %v7893 = vpop.f32.mrf.mxu0
    %v7894 = vadd.f32 %v3548, %v7893
    %7895 = vmatprep.mubr.bf16.mxu0 %v3806
    %7896 = vmatmul.mubr.bf16.gmra.mxu0 %v3805
    %v7897 = vpop.f32.mrf.mxu0
    %v7898 = vadd.f32 %v3544, %v7897
    %v7899 = vpop.f32.mrf.mxu0
    %v7900 = vadd.f32 %v3548, %v7899
    %v7901 = vpop.f32.mrf.mxu0
    %v7902 = vadd.f32 %v3544, %v7901
    %v7903 = vpop.f32.mrf.mxu0
    %v7904 = vadd.f32 %v3548, %v7903
    %7905 = vdwg.mxu0
    %7906 = vmatprep.subr.bf16.mxu0 %v5604
    %7907 = vmatpush1.bf16.msra.mxu0 %v5603
    %7908 = vmatprep.subr.bf16.mxu0 %v5596
    %7909 = vmatpush1.bf16.msra.mxu0 %v5595
    %7910 = vmatprep.subr.bf16.mxu0 %v5588
    %7911 = vmatpush1.bf16.msra.mxu0 %v5587
    %7912 = vmatprep.subr.bf16.mxu0 %v5580
    %7913 = vmatpush1.bf16.msra.mxu0 %v5579
    %7914 = vmatprep.subr.bf16.mxu0 %v5572
    %7915 = vmatpush1.bf16.msra.mxu0 %v5571
    %7916 = vmatprep.subr.bf16.mxu0 %v5564
    %7917 = vmatpush1.bf16.msra.mxu0 %v5563
    %7918 = vmatprep.subr.bf16.mxu0 %v5556
    %7919 = vmatpush1.bf16.msra.mxu0 %v5555
    %7920 = vmatprep.subr.bf16.mxu0 %v5548
    %7921 = vmatpush1.bf16.msra.mxu0 %v5547
    %7922 = vmatprep.subr.bf16.mxu0 %v5668
    %7923 = vmatpush2.bf16.msra.mxu0 %v5667
    %7924 = vmatprep.subr.bf16.mxu0 %v5660
    %7925 = vmatpush2.bf16.msra.mxu0 %v5659
    %7926 = vmatprep.subr.bf16.mxu0 %v5652
    %7927 = vmatpush2.bf16.msra.mxu0 %v5651
    %7928 = vmatprep.subr.bf16.mxu0 %v5644
    %7929 = vmatpush2.bf16.msra.mxu0 %v5643
    %7930 = vmatprep.subr.bf16.mxu0 %v5636
    %7931 = vmatpush2.bf16.msra.mxu0 %v5635
    %7932 = vmatprep.subr.bf16.mxu0 %v5628
    %7933 = vmatpush2.bf16.msra.mxu0 %v5627
    %7934 = vmatprep.subr.bf16.mxu0 %v5620
    %7935 = vmatpush2.bf16.msra.mxu0 %v5619
    %7936 = vmatprep.subr.bf16.mxu0 %v5612
    %7937 = vmatpush2.bf16.msra.mxu0 %v5611
    %7938 = vmatprep.mubr.bf16.mxu0 %v3752
    %7939 = vmatmul.mubr.bf16.gmra.mxu0 %v3751
    %v7940 = vpop.f32.mrf.mxu0
    %v7941 = vadd.f32 %v7828, %v7940
    %v7942 = vpop.f32.mrf.mxu0
    %v7943 = vadd.f32 %v7830, %v7942
    %v7944 = vpop.f32.mrf.mxu0
    %v7945 = vadd.f32 %v7832, %v7944
    %v7946 = vpop.f32.mrf.mxu0
    %v7947 = vadd.f32 %v7834, %v7946
    %7948 = vmatprep.mubr.bf16.mxu0 %v3760
    %7949 = vmatmul.mubr.bf16.gmra.mxu0 %v3759
    %v7950 = vpop.f32.mrf.mxu0
    %v7951 = vadd.f32 %v7838, %v7950
    %v7952 = vpop.f32.mrf.mxu0
    %v7953 = vadd.f32 %v7840, %v7952
    %v7954 = vpop.f32.mrf.mxu0
    %v7955 = vadd.f32 %v7842, %v7954
    %v7956 = vpop.f32.mrf.mxu0
    %v7957 = vadd.f32 %v7844, %v7956
    %7958 = vmatprep.mubr.bf16.mxu0 %v3768
    %7959 = vmatmul.mubr.bf16.gmra.mxu0 %v3767
    %v7960 = vpop.f32.mrf.mxu0
    %v7961 = vadd.f32 %v7848, %v7960
    %v7962 = vpop.f32.mrf.mxu0
    %v7963 = vadd.f32 %v7850, %v7962
    %v7964 = vpop.f32.mrf.mxu0
    %v7965 = vadd.f32 %v7852, %v7964
    %v7966 = vpop.f32.mrf.mxu0
    %v7967 = vadd.f32 %v7854, %v7966
    %7968 = vmatprep.mubr.bf16.mxu0 %v3776
    %7969 = vmatmul.mubr.bf16.gmra.mxu0 %v3775
    %v7970 = vpop.f32.mrf.mxu0
    %v7971 = vadd.f32 %v7858, %v7970
    %v7972 = vpop.f32.mrf.mxu0
    %v7973 = vadd.f32 %v7860, %v7972
    %v7974 = vpop.f32.mrf.mxu0
    %v7975 = vadd.f32 %v7862, %v7974
    %v7976 = vpop.f32.mrf.mxu0
    %v7977 = vadd.f32 %v7864, %v7976
    %7978 = vmatprep.mubr.bf16.mxu0 %v3784
    %7979 = vmatmul.mubr.bf16.gmra.mxu0 %v3783
    %v7980 = vpop.f32.mrf.mxu0
    %v7981 = vadd.f32 %v7868, %v7980
    %v7982 = vpop.f32.mrf.mxu0
    %v7983 = vadd.f32 %v7870, %v7982
    %v7984 = vpop.f32.mrf.mxu0
    %v7985 = vadd.f32 %v7872, %v7984
    %v7986 = vpop.f32.mrf.mxu0
    %v7987 = vadd.f32 %v7874, %v7986
    %7988 = vmatprep.mubr.bf16.mxu0 %v3792
    %7989 = vmatmul.mubr.bf16.gmra.mxu0 %v3791
    %v7990 = vpop.f32.mrf.mxu0
    %v7991 = vadd.f32 %v7878, %v7990
    %v7992 = vpop.f32.mrf.mxu0
    %v7993 = vadd.f32 %v7880, %v7992
    %v7994 = vpop.f32.mrf.mxu0
    %v7995 = vadd.f32 %v7882, %v7994
    %v7996 = vpop.f32.mrf.mxu0
    %v7997 = vadd.f32 %v7884, %v7996
    %7998 = vmatprep.mubr.bf16.mxu0 %v3800
    %7999 = vmatmul.mubr.bf16.gmra.mxu0 %v3799
    %v8000 = vpop.f32.mrf.mxu0
    %v8001 = vadd.f32 %v7888, %v8000
    %v8002 = vpop.f32.mrf.mxu0
    %v8003 = vadd.f32 %v7890, %v8002
    %v8004 = vpop.f32.mrf.mxu0
    %v8005 = vadd.f32 %v7892, %v8004
    %v8006 = vpop.f32.mrf.mxu0
    %v8007 = vadd.f32 %v7894, %v8006
    %8008 = vmatprep.mubr.bf16.mxu0 %v3808
    %8009 = vmatmul.mubr.bf16.gmra.mxu0 %v3807
    %v8010 = vpop.f32.mrf.mxu0
    %v8011 = vadd.f32 %v7898, %v8010
    %v8012 = vpop.f32.mrf.mxu0
    %v8013 = vadd.f32 %v7900, %v8012
    %v8014 = vpop.f32.mrf.mxu0
    %v8015 = vadd.f32 %v7902, %v8014
    %v8016 = vpop.f32.mrf.mxu0
    %v8017 = vadd.f32 %v7904, %v8016
    %8018 = vdwg.mxu0
    %8019 = vmatprep.subr.bf16.mxu0 %v5732
    %8020 = vmatpush1.bf16.msra.mxu0 %v5731
    %8021 = vmatprep.subr.bf16.mxu0 %v5724
    %8022 = vmatpush1.bf16.msra.mxu0 %v5723
    %8023 = vmatprep.subr.bf16.mxu0 %v5716
    %8024 = vmatpush1.bf16.msra.mxu0 %v5715
    %8025 = vmatprep.subr.bf16.mxu0 %v5708
    %8026 = vmatpush1.bf16.msra.mxu0 %v5707
    %8027 = vmatprep.subr.bf16.mxu0 %v5700
    %8028 = vmatpush1.bf16.msra.mxu0 %v5699
    %8029 = vmatprep.subr.bf16.mxu0 %v5692
    %8030 = vmatpush1.bf16.msra.mxu0 %v5691
    %8031 = vmatprep.subr.bf16.mxu0 %v5684
    %8032 = vmatpush1.bf16.msra.mxu0 %v5683
    %8033 = vmatprep.subr.bf16.mxu0 %v5676
    %8034 = vmatpush1.bf16.msra.mxu0 %v5675
    %8035 = vmatprep.subr.bf16.mxu0 %v5796
    %8036 = vmatpush2.bf16.msra.mxu0 %v5795
    %8037 = vmatprep.subr.bf16.mxu0 %v5788
    %8038 = vmatpush2.bf16.msra.mxu0 %v5787
    %8039 = vmatprep.subr.bf16.mxu0 %v5780
    %8040 = vmatpush2.bf16.msra.mxu0 %v5779
    %8041 = vmatprep.subr.bf16.mxu0 %v5772
    %8042 = vmatpush2.bf16.msra.mxu0 %v5771
    %8043 = vmatprep.subr.bf16.mxu0 %v5764
    %8044 = vmatpush2.bf16.msra.mxu0 %v5763
    %8045 = vmatprep.subr.bf16.mxu0 %v5756
    %8046 = vmatpush2.bf16.msra.mxu0 %v5755
    %8047 = vmatprep.subr.bf16.mxu0 %v5748
    %8048 = vmatpush2.bf16.msra.mxu0 %v5747
    %8049 = vmatprep.subr.bf16.mxu0 %v5740
    %8050 = vmatpush2.bf16.msra.mxu0 %v5739
    %8051 = vmatprep.mubr.bf16.mxu0 %v3754
    %8052 = vmatmul.mubr.bf16.gmra.mxu0 %v3753
    %v8053 = vpop.f32.mrf.mxu0
    %v8054 = vadd.f32 %v7941, %v8053
    %v8055 = vpop.f32.mrf.mxu0
    %v8056 = vadd.f32 %v7943, %v8055
    %v8057 = vpop.f32.mrf.mxu0
    %v8058 = vadd.f32 %v7945, %v8057
    %v8059 = vpop.f32.mrf.mxu0
    %v8060 = vadd.f32 %v7947, %v8059
    %8061 = vmatprep.mubr.bf16.mxu0 %v3762
    %8062 = vmatmul.mubr.bf16.gmra.mxu0 %v3761
    %v8063 = vpop.f32.mrf.mxu0
    %v8064 = vadd.f32 %v7951, %v8063
    %v8065 = vpop.f32.mrf.mxu0
    %v8066 = vadd.f32 %v7953, %v8065
    %v8067 = vpop.f32.mrf.mxu0
    %v8068 = vadd.f32 %v7955, %v8067
    %v8069 = vpop.f32.mrf.mxu0
    %v8070 = vadd.f32 %v7957, %v8069
    %8071 = vmatprep.mubr.bf16.mxu0 %v3770
    %8072 = vmatmul.mubr.bf16.gmra.mxu0 %v3769
    %v8073 = vpop.f32.mrf.mxu0
    %v8074 = vadd.f32 %v7961, %v8073
    %v8075 = vpop.f32.mrf.mxu0
    %v8076 = vadd.f32 %v7963, %v8075
    %v8077 = vpop.f32.mrf.mxu0
    %v8078 = vadd.f32 %v7965, %v8077
    %v8079 = vpop.f32.mrf.mxu0
    %v8080 = vadd.f32 %v7967, %v8079
    %8081 = vmatprep.mubr.bf16.mxu0 %v3778
    %8082 = vmatmul.mubr.bf16.gmra.mxu0 %v3777
    %v8083 = vpop.f32.mrf.mxu0
    %v8084 = vadd.f32 %v7971, %v8083
    %v8085 = vpop.f32.mrf.mxu0
    %v8086 = vadd.f32 %v7973, %v8085
    %v8087 = vpop.f32.mrf.mxu0
    %v8088 = vadd.f32 %v7975, %v8087
    %v8089 = vpop.f32.mrf.mxu0
    %v8090 = vadd.f32 %v7977, %v8089
    %8091 = vmatprep.mubr.bf16.mxu0 %v3786
    %8092 = vmatmul.mubr.bf16.gmra.mxu0 %v3785
    %v8093 = vpop.f32.mrf.mxu0
    %v8094 = vadd.f32 %v7981, %v8093
    %v8095 = vpop.f32.mrf.mxu0
    %v8096 = vadd.f32 %v7983, %v8095
    %v8097 = vpop.f32.mrf.mxu0
    %v8098 = vadd.f32 %v7985, %v8097
    %v8099 = vpop.f32.mrf.mxu0
    %v8100 = vadd.f32 %v7987, %v8099
    %8101 = vmatprep.mubr.bf16.mxu0 %v3794
    %8102 = vmatmul.mubr.bf16.gmra.mxu0 %v3793
    %v8103 = vpop.f32.mrf.mxu0
    %v8104 = vadd.f32 %v7991, %v8103
    %v8105 = vpop.f32.mrf.mxu0
    %v8106 = vadd.f32 %v7993, %v8105
    %v8107 = vpop.f32.mrf.mxu0
    %v8108 = vadd.f32 %v7995, %v8107
    %v8109 = vpop.f32.mrf.mxu0
    %v8110 = vadd.f32 %v7997, %v8109
    %8111 = vmatprep.mubr.bf16.mxu0 %v3802
    %8112 = vmatmul.mubr.bf16.gmra.mxu0 %v3801
    %v8113 = vpop.f32.mrf.mxu0
    %v8114 = vadd.f32 %v8001, %v8113
    %v8115 = vpop.f32.mrf.mxu0
    %v8116 = vadd.f32 %v8003, %v8115
    %v8117 = vpop.f32.mrf.mxu0
    %v8118 = vadd.f32 %v8005, %v8117
    %v8119 = vpop.f32.mrf.mxu0
    %v8120 = vadd.f32 %v8007, %v8119
    %8121 = vmatprep.mubr.bf16.mxu0 %v3810
    %8122 = vmatmul.mubr.bf16.gmra.mxu0 %v3809
    %v8123 = vpop.f32.mrf.mxu0
    %v8124 = vadd.f32 %v8011, %v8123
    %v8125 = vpop.f32.mrf.mxu0
    %v8126 = vadd.f32 %v8013, %v8125
    %v8127 = vpop.f32.mrf.mxu0
    %v8128 = vadd.f32 %v8015, %v8127
    %v8129 = vpop.f32.mrf.mxu0
    %v8130 = vadd.f32 %v8017, %v8129
    %8131 = vdwg.mxu0
    %8132 = vmatprep.subr.bf16.mxu0 %v5860
    %8133 = vmatpush1.bf16.msra.mxu0 %v5859
    %8134 = vmatprep.subr.bf16.mxu0 %v5852
    %8135 = vmatpush1.bf16.msra.mxu0 %v5851
    %8136 = vmatprep.subr.bf16.mxu0 %v5844
    %8137 = vmatpush1.bf16.msra.mxu0 %v5843
    %8138 = vmatprep.subr.bf16.mxu0 %v5836
    %8139 = vmatpush1.bf16.msra.mxu0 %v5835
    %8140 = vmatprep.subr.bf16.mxu0 %v5828
    %8141 = vmatpush1.bf16.msra.mxu0 %v5827
    %8142 = vmatprep.subr.bf16.mxu0 %v5820
    %8143 = vmatpush1.bf16.msra.mxu0 %v5819
    %8144 = vmatprep.subr.bf16.mxu0 %v5812
    %8145 = vmatpush1.bf16.msra.mxu0 %v5811
    %8146 = vmatprep.subr.bf16.mxu0 %v5804
    %8147 = vmatpush1.bf16.msra.mxu0 %v5803
    %8148 = vmatprep.subr.bf16.mxu0 %v5924
    %8149 = vmatpush2.bf16.msra.mxu0 %v5923
    %8150 = vmatprep.subr.bf16.mxu0 %v5916
    %8151 = vmatpush2.bf16.msra.mxu0 %v5915
    %8152 = vmatprep.subr.bf16.mxu0 %v5908
    %8153 = vmatpush2.bf16.msra.mxu0 %v5907
    %8154 = vmatprep.subr.bf16.mxu0 %v5900
    %8155 = vmatpush2.bf16.msra.mxu0 %v5899
    %8156 = vmatprep.subr.bf16.mxu0 %v5892
    %8157 = vmatpush2.bf16.msra.mxu0 %v5891
    %8158 = vmatprep.subr.bf16.mxu0 %v5884
    %8159 = vmatpush2.bf16.msra.mxu0 %v5883
    %8160 = vmatprep.subr.bf16.mxu0 %v5876
    %8161 = vmatpush2.bf16.msra.mxu0 %v5875
    %8162 = vmatprep.subr.bf16.mxu0 %v5868
    %8163 = vmatpush2.bf16.msra.mxu0 %v5867
    %8164 = vmatprep.mubr.bf16.mxu0 %v3756
    %8165 = vmatmul.mubr.bf16.gmra.mxu0 %v3755
    %v8166 = vpop.f32.mrf.mxu0
    %v8167 = vadd.f32 %v8054, %v8166
    %v8168 = vpop.f32.mrf.mxu0
    %v8169 = vadd.f32 %v8056, %v8168
    %v8170 = vpop.f32.mrf.mxu0
    %v8171 = vadd.f32 %v8058, %v8170
    %v8172 = vpop.f32.mrf.mxu0
    %v8173 = vadd.f32 %v8060, %v8172
    %8174 = vmatprep.mubr.bf16.mxu0 %v3764
    %8175 = vmatmul.mubr.bf16.gmra.mxu0 %v3763
    %v8176 = vpop.f32.mrf.mxu0
    %v8177 = vadd.f32 %v8064, %v8176
    %v8178 = vpop.f32.mrf.mxu0
    %v8179 = vadd.f32 %v8066, %v8178
    %v8180 = vpop.f32.mrf.mxu0
    %v8181 = vadd.f32 %v8068, %v8180
    %v8182 = vpop.f32.mrf.mxu0
    %v8183 = vadd.f32 %v8070, %v8182
    %8184 = vmatprep.mubr.bf16.mxu0 %v3772
    %8185 = vmatmul.mubr.bf16.gmra.mxu0 %v3771
    %v8186 = vpop.f32.mrf.mxu0
    %v8187 = vadd.f32 %v8074, %v8186
    %v8188 = vpop.f32.mrf.mxu0
    %v8189 = vadd.f32 %v8076, %v8188
    %v8190 = vpop.f32.mrf.mxu0
    %v8191 = vadd.f32 %v8078, %v8190
    %v8192 = vpop.f32.mrf.mxu0
    %v8193 = vadd.f32 %v8080, %v8192
    %8194 = vmatprep.mubr.bf16.mxu0 %v3780
    %8195 = vmatmul.mubr.bf16.gmra.mxu0 %v3779
    %v8196 = vpop.f32.mrf.mxu0
    %v8197 = vadd.f32 %v8084, %v8196
    %v8198 = vpop.f32.mrf.mxu0
    %v8199 = vadd.f32 %v8086, %v8198
    %v8200 = vpop.f32.mrf.mxu0
    %v8201 = vadd.f32 %v8088, %v8200
    %v8202 = vpop.f32.mrf.mxu0
    %v8203 = vadd.f32 %v8090, %v8202
    %8204 = vmatprep.mubr.bf16.mxu0 %v3788
    %8205 = vmatmul.mubr.bf16.gmra.mxu0 %v3787
    %v8206 = vpop.f32.mrf.mxu0
    %v8207 = vadd.f32 %v8094, %v8206
    %v8208 = vpop.f32.mrf.mxu0
    %v8209 = vadd.f32 %v8096, %v8208
    %v8210 = vpop.f32.mrf.mxu0
    %v8211 = vadd.f32 %v8098, %v8210
    %v8212 = vpop.f32.mrf.mxu0
    %v8213 = vadd.f32 %v8100, %v8212
    %8214 = vmatprep.mubr.bf16.mxu0 %v3796
    %8215 = vmatmul.mubr.bf16.gmra.mxu0 %v3795
    %v8216 = vpop.f32.mrf.mxu0
    %v8217 = vadd.f32 %v8104, %v8216
    %v8218 = vpop.f32.mrf.mxu0
    %v8219 = vadd.f32 %v8106, %v8218
    %v8220 = vpop.f32.mrf.mxu0
    %v8221 = vadd.f32 %v8108, %v8220
    %v8222 = vpop.f32.mrf.mxu0
    %v8223 = vadd.f32 %v8110, %v8222
    %8224 = vmatprep.mubr.bf16.mxu0 %v3804
    %8225 = vmatmul.mubr.bf16.gmra.mxu0 %v3803
    %v8226 = vpop.f32.mrf.mxu0
    %v8227 = vadd.f32 %v8114, %v8226
    %v8228 = vpop.f32.mrf.mxu0
    %v8229 = vadd.f32 %v8116, %v8228
    %v8230 = vpop.f32.mrf.mxu0
    %v8231 = vadd.f32 %v8118, %v8230
    %v8232 = vpop.f32.mrf.mxu0
    %v8233 = vadd.f32 %v8120, %v8232
    %8234 = vmatprep.mubr.bf16.mxu0 %v3812
    %8235 = vmatmul.mubr.bf16.gmra.mxu0 %v3811
    %v8236 = vpop.f32.mrf.mxu0
    %v8237 = vadd.f32 %v8124, %v8236
    %v8238 = vpop.f32.mrf.mxu0
    %v8239 = vadd.f32 %v8126, %v8238
    %v8240 = vpop.f32.mrf.mxu0
    %v8241 = vadd.f32 %v8128, %v8240
    %v8242 = vpop.f32.mrf.mxu0
    %v8243 = vadd.f32 %v8130, %v8242
    %8244 = vdwg.mxu0
    %v8245 = vmax.f32 %v6811, 0.0
    %v8246 = vmax.f32 %v6813, 0.0
    %v8247 = vmax.f32 %v7263, 0.0
    %v8248 = vmax.f32 %v7265, 0.0
    %v8249 = vmax.f32 %v7715, 0.0
    %v8250 = vmax.f32 %v7717, 0.0
    %v8251 = vmax.f32 %v8167, 0.0
    %v8252 = vmax.f32 %v8169, 0.0
    %v8253 = vmax.f32 %v6815, 0.0
    %v8254 = vmax.f32 %v6817, 0.0
    %v8255 = vmax.f32 %v7267, 0.0
    %v8256 = vmax.f32 %v7269, 0.0
    %v8257 = vmax.f32 %v7719, 0.0
    %v8258 = vmax.f32 %v7721, 0.0
    %v8259 = vmax.f32 %v8171, 0.0
    %v8260 = vmax.f32 %v8173, 0.0
    %v8261 = vmax.f32 %v6821, 0.0
    %v8262 = vmax.f32 %v6823, 0.0
    %v8263 = vmax.f32 %v7273, 0.0
    %v8264 = vmax.f32 %v7275, 0.0
    %v8265 = vmax.f32 %v7725, 0.0
    %v8266 = vmax.f32 %v7727, 0.0
    %v8267 = vmax.f32 %v8177, 0.0
    %v8268 = vmax.f32 %v8179, 0.0
    %v8269 = vmax.f32 %v6825, 0.0
    %v8270 = vmax.f32 %v6827, 0.0
    %v8271 = vmax.f32 %v7277, 0.0
    %v8272 = vmax.f32 %v7279, 0.0
    %v8273 = vmax.f32 %v7729, 0.0
    %v8274 = vmax.f32 %v7731, 0.0
    %v8275 = vmax.f32 %v8181, 0.0
    %v8276 = vmax.f32 %v8183, 0.0
    %v8277 = vmax.f32 %v6831, 0.0
    %v8278 = vmax.f32 %v6833, 0.0
    %v8279 = vmax.f32 %v7283, 0.0
    %v8280 = vmax.f32 %v7285, 0.0
    %v8281 = vmax.f32 %v7735, 0.0
    %v8282 = vmax.f32 %v7737, 0.0
    %v8283 = vmax.f32 %v8187, 0.0
    %v8284 = vmax.f32 %v8189, 0.0
    %v8285 = vmax.f32 %v6835, 0.0
    %v8286 = vmax.f32 %v6837, 0.0
    %v8287 = vmax.f32 %v7287, 0.0
    %v8288 = vmax.f32 %v7289, 0.0
    %v8289 = vmax.f32 %v7739, 0.0
    %v8290 = vmax.f32 %v7741, 0.0
    %v8291 = vmax.f32 %v8191, 0.0
    %v8292 = vmax.f32 %v8193, 0.0
    %v8293 = vmax.f32 %v6841, 0.0
    %v8294 = vmax.f32 %v6843, 0.0
    %v8295 = vmax.f32 %v7293, 0.0
    %v8296 = vmax.f32 %v7295, 0.0
    %v8297 = vmax.f32 %v7745, 0.0
    %v8298 = vmax.f32 %v7747, 0.0
    %v8299 = vmax.f32 %v8197, 0.0
    %v8300 = vmax.f32 %v8199, 0.0
    %v8301 = vmax.f32 %v6845, 0.0
    %v8302 = vmax.f32 %v6847, 0.0
    %v8303 = vmax.f32 %v7297, 0.0
    %v8304 = vmax.f32 %v7299, 0.0
    %v8305 = vmax.f32 %v7749, 0.0
    %v8306 = vmax.f32 %v7751, 0.0
    %v8307 = vmax.f32 %v8201, 0.0
    %v8308 = vmax.f32 %v8203, 0.0
    %v8309 = vmax.f32 %v6851, 0.0
    %v8310 = vmax.f32 %v6853, 0.0
    %v8311 = vmax.f32 %v7303, 0.0
    %v8312 = vmax.f32 %v7305, 0.0
    %v8313 = vmax.f32 %v7755, 0.0
    %v8314 = vmax.f32 %v7757, 0.0
    %v8315 = vmax.f32 %v8207, 0.0
    %v8316 = vmax.f32 %v8209, 0.0
    %v8317 = vmax.f32 %v6855, 0.0
    %v8318 = vmax.f32 %v6857, 0.0
    %v8319 = vmax.f32 %v7307, 0.0
    %v8320 = vmax.f32 %v7309, 0.0
    %v8321 = vmax.f32 %v7759, 0.0
    %v8322 = vmax.f32 %v7761, 0.0
    %v8323 = vmax.f32 %v8211, 0.0
    %v8324 = vmax.f32 %v8213, 0.0
    %v8325 = vmax.f32 %v6861, 0.0
    %v8326 = vmax.f32 %v6863, 0.0
    %v8327 = vmax.f32 %v7313, 0.0
    %v8328 = vmax.f32 %v7315, 0.0
    %v8329 = vmax.f32 %v7765, 0.0
    %v8330 = vmax.f32 %v7767, 0.0
    %v8331 = vmax.f32 %v8217, 0.0
    %v8332 = vmax.f32 %v8219, 0.0
    %v8333 = vmax.f32 %v6865, 0.0
    %v8334 = vmax.f32 %v6867, 0.0
    %v8335 = vmax.f32 %v7317, 0.0
    %v8336 = vmax.f32 %v7319, 0.0
    %v8337 = vmax.f32 %v7769, 0.0
    %v8338 = vmax.f32 %v7771, 0.0
    %v8339 = vmax.f32 %v8221, 0.0
    %v8340 = vmax.f32 %v8223, 0.0
    %v8341 = vmax.f32 %v6871, 0.0
    %v8342 = vmax.f32 %v6873, 0.0
    %v8343 = vmax.f32 %v7323, 0.0
    %v8344 = vmax.f32 %v7325, 0.0
    %v8345 = vmax.f32 %v7775, 0.0
    %v8346 = vmax.f32 %v7777, 0.0
    %v8347 = vmax.f32 %v8227, 0.0
    %v8348 = vmax.f32 %v8229, 0.0
    %v8349 = vmax.f32 %v6875, 0.0
    %v8350 = vmax.f32 %v6877, 0.0
    %v8351 = vmax.f32 %v7327, 0.0
    %v8352 = vmax.f32 %v7329, 0.0
    %v8353 = vmax.f32 %v7779, 0.0
    %v8354 = vmax.f32 %v7781, 0.0
    %v8355 = vmax.f32 %v8231, 0.0
    %v8356 = vmax.f32 %v8233, 0.0
    %v8357 = vmax.f32 %v6881, 0.0
    %v8358 = vmax.f32 %v6883, 0.0
    %v8359 = vmax.f32 %v7333, 0.0
    %v8360 = vmax.f32 %v7335, 0.0
    %v8361 = vmax.f32 %v7785, 0.0
    %v8362 = vmax.f32 %v7787, 0.0
    %v8363 = vmax.f32 %v8237, 0.0
    %v8364 = vmax.f32 %v8239, 0.0
    %v8365 = vmax.f32 %v6885, 0.0
    %v8366 = vmax.f32 %v6887, 0.0
    %v8367 = vmax.f32 %v7337, 0.0
    %v8368 = vmax.f32 %v7339, 0.0
    %v8369 = vmax.f32 %v7789, 0.0
    %v8370 = vmax.f32 %v7791, 0.0
    %v8371 = vmax.f32 %v8241, 0.0
    %v8372 = vmax.f32 %v8243, 0.0
    %8373 = vst [vmem:[#allocation3] sm:$0xff] %v8245
    %8374 = vst [vmem:[#allocation3 + $0x8] sm:$0xff] %v8246
    %8375 = vst [vmem:[#allocation3 + $0x10] sm:$0xff] %v8247
    %8376 = vst [vmem:[#allocation3 + $0x18] sm:$0xff] %v8248
    %8377 = vst [vmem:[#allocation3 + $0x20] sm:$0xff] %v8249
    %8378 = vst [vmem:[#allocation3 + $0x28] sm:$0xff] %v8250
    %8379 = vst [vmem:[#allocation3 + $0x30] sm:$0xff] %v8251
    %8380 = vst [vmem:[#allocation3 + $0x38] sm:$0xff] %v8252
    %8381 = vst [vmem:[#allocation3 + $0x40] sm:$0xff] %v8253
    %8382 = vst [vmem:[#allocation3 + $0x48] sm:$0xff] %v8254
    %8383 = vst [vmem:[#allocation3 + $0x50] sm:$0xff] %v8255
    %8384 = vst [vmem:[#allocation3 + $0x58] sm:$0xff] %v8256
    %8385 = vst [vmem:[#allocation3 + $0x60] sm:$0xff] %v8257
    %8386 = vst [vmem:[#allocation3 + $0x68] sm:$0xff] %v8258
    %8387 = vst [vmem:[#allocation3 + $0x70] sm:$0xff] %v8259
    %8388 = vst [vmem:[#allocation3 + $0x78] sm:$0xff] %v8260
    %8389 = vst [vmem:[#allocation3 + $0x80] sm:$0xff] %v8261
    %8390 = vst [vmem:[#allocation3 + $0x88] sm:$0xff] %v8262
    %8391 = vst [vmem:[#allocation3 + $0x90] sm:$0xff] %v8263
    %8392 = vst [vmem:[#allocation3 + $0x98] sm:$0xff] %v8264
    %8393 = vst [vmem:[#allocation3 + $0xa0] sm:$0xff] %v8265
    %8394 = vst [vmem:[#allocation3 + $0xa8] sm:$0xff] %v8266
    %8395 = vst [vmem:[#allocation3 + $0xb0] sm:$0xff] %v8267
    %8396 = vst [vmem:[#allocation3 + $0xb8] sm:$0xff] %v8268
    %8397 = vst [vmem:[#allocation3 + $0xc0] sm:$0xff] %v8269
    %8398 = vst [vmem:[#allocation3 + $0xc8] sm:$0xff] %v8270
    %8399 = vst [vmem:[#allocation3 + $0xd0] sm:$0xff] %v8271
    %8400 = vst [vmem:[#allocation3 + $0xd8] sm:$0xff] %v8272
    %8401 = vst [vmem:[#allocation3 + $0xe0] sm:$0xff] %v8273
    %8402 = vst [vmem:[#allocation3 + $0xe8] sm:$0xff] %v8274
    %8403 = vst [vmem:[#allocation3 + $0xf0] sm:$0xff] %v8275
    %8404 = vst [vmem:[#allocation3 + $0xf8] sm:$0xff] %v8276
    %8405 = vst [vmem:[#allocation3 + $0x100] sm:$0xff] %v8277
    %8406 = vst [vmem:[#allocation3 + $0x108] sm:$0xff] %v8278
    %8407 = vst [vmem:[#allocation3 + $0x110] sm:$0xff] %v8279
    %8408 = vst [vmem:[#allocation3 + $0x118] sm:$0xff] %v8280
    %8409 = vst [vmem:[#allocation3 + $0x120] sm:$0xff] %v8281
    %8410 = vst [vmem:[#allocation3 + $0x128] sm:$0xff] %v8282
    %8411 = vst [vmem:[#allocation3 + $0x130] sm:$0xff] %v8283
    %8412 = vst [vmem:[#allocation3 + $0x138] sm:$0xff] %v8284
    %8413 = vst [vmem:[#allocation3 + $0x140] sm:$0xff] %v8285
    %8414 = vst [vmem:[#allocation3 + $0x148] sm:$0xff] %v8286
    %8415 = vst [vmem:[#allocation3 + $0x150] sm:$0xff] %v8287
    %8416 = vst [vmem:[#allocation3 + $0x158] sm:$0xff] %v8288
    %8417 = vst [vmem:[#allocation3 + $0x160] sm:$0xff] %v8289
    %8418 = vst [vmem:[#allocation3 + $0x168] sm:$0xff] %v8290
    %8419 = vst [vmem:[#allocation3 + $0x170] sm:$0xff] %v8291
    %8420 = vst [vmem:[#allocation3 + $0x178] sm:$0xff] %v8292
    %8421 = vst [vmem:[#allocation3 + $0x180] sm:$0xff] %v8293
    %8422 = vst [vmem:[#allocation3 + $0x188] sm:$0xff] %v8294
    %8423 = vst [vmem:[#allocation3 + $0x190] sm:$0xff] %v8295
    %8424 = vst [vmem:[#allocation3 + $0x198] sm:$0xff] %v8296
    %8425 = vst [vmem:[#allocation3 + $0x1a0] sm:$0xff] %v8297
    %8426 = vst [vmem:[#allocation3 + $0x1a8] sm:$0xff] %v8298
    %8427 = vst [vmem:[#allocation3 + $0x1b0] sm:$0xff] %v8299
    %8428 = vst [vmem:[#allocation3 + $0x1b8] sm:$0xff] %v8300
    %8429 = vst [vmem:[#allocation3 + $0x1c0] sm:$0xff] %v8301
    %8430 = vst [vmem:[#allocation3 + $0x1c8] sm:$0xff] %v8302
    %8431 = vst [vmem:[#allocation3 + $0x1d0] sm:$0xff] %v8303
    %8432 = vst [vmem:[#allocation3 + $0x1d8] sm:$0xff] %v8304
    %8433 = vst [vmem:[#allocation3 + $0x1e0] sm:$0xff] %v8305
    %8434 = vst [vmem:[#allocation3 + $0x1e8] sm:$0xff] %v8306
    %8435 = vst [vmem:[#allocation3 + $0x1f0] sm:$0xff] %v8307
    %8436 = vst [vmem:[#allocation3 + $0x1f8] sm:$0xff] %v8308
    %8437 = vst [vmem:[#allocation3 + $0x200] sm:$0xff] %v8309
    %8438 = vst [vmem:[#allocation3 + $0x208] sm:$0xff] %v8310
    %8439 = vst [vmem:[#allocation3 + $0x210] sm:$0xff] %v8311
    %8440 = vst [vmem:[#allocation3 + $0x218] sm:$0xff] %v8312
    %8441 = vst [vmem:[#allocation3 + $0x220] sm:$0xff] %v8313
    %8442 = vst [vmem:[#allocation3 + $0x228] sm:$0xff] %v8314
    %8443 = vst [vmem:[#allocation3 + $0x230] sm:$0xff] %v8315
    %8444 = vst [vmem:[#allocation3 + $0x238] sm:$0xff] %v8316
    %8445 = vst [vmem:[#allocation3 + $0x240] sm:$0xff] %v8317
    %8446 = vst [vmem:[#allocation3 + $0x248] sm:$0xff] %v8318
    %8447 = vst [vmem:[#allocation3 + $0x250] sm:$0xff] %v8319
    %8448 = vst [vmem:[#allocation3 + $0x258] sm:$0xff] %v8320
    %8449 = vst [vmem:[#allocation3 + $0x260] sm:$0xff] %v8321
    %8450 = vst [vmem:[#allocation3 + $0x268] sm:$0xff] %v8322
    %8451 = vst [vmem:[#allocation3 + $0x270] sm:$0xff] %v8323
    %8452 = vst [vmem:[#allocation3 + $0x278] sm:$0xff] %v8324
    %8453 = vst [vmem:[#allocation3 + $0x280] sm:$0xff] %v8325
    %8454 = vst [vmem:[#allocation3 + $0x288] sm:$0xff] %v8326
    %8455 = vst [vmem:[#allocation3 + $0x290] sm:$0xff] %v8327
    %8456 = vst [vmem:[#allocation3 + $0x298] sm:$0xff] %v8328
    %8457 = vst [vmem:[#allocation3 + $0x2a0] sm:$0xff] %v8329
    %8458 = vst [vmem:[#allocation3 + $0x2a8] sm:$0xff] %v8330
    %8459 = vst [vmem:[#allocation3 + $0x2b0] sm:$0xff] %v8331
    %8460 = vst [vmem:[#allocation3 + $0x2b8] sm:$0xff] %v8332
    %8461 = vst [vmem:[#allocation3 + $0x2c0] sm:$0xff] %v8333
    %8462 = vst [vmem:[#allocation3 + $0x2c8] sm:$0xff] %v8334
    %8463 = vst [vmem:[#allocation3 + $0x2d0] sm:$0xff] %v8335
    %8464 = vst [vmem:[#allocation3 + $0x2d8] sm:$0xff] %v8336
    %8465 = vst [vmem:[#allocation3 + $0x2e0] sm:$0xff] %v8337
    %8466 = vst [vmem:[#allocation3 + $0x2e8] sm:$0xff] %v8338
    %8467 = vst [vmem:[#allocation3 + $0x2f0] sm:$0xff] %v8339
    %8468 = vst [vmem:[#allocation3 + $0x2f8] sm:$0xff] %v8340
    %8469 = vst [vmem:[#allocation3 + $0x300] sm:$0xff] %v8341
    %8470 = vst [vmem:[#allocation3 + $0x308] sm:$0xff] %v8342
    %8471 = vst [vmem:[#allocation3 + $0x310] sm:$0xff] %v8343
    %8472 = vst [vmem:[#allocation3 + $0x318] sm:$0xff] %v8344
    %8473 = vst [vmem:[#allocation3 + $0x320] sm:$0xff] %v8345
    %8474 = vst [vmem:[#allocation3 + $0x328] sm:$0xff] %v8346
    %8475 = vst [vmem:[#allocation3 + $0x330] sm:$0xff] %v8347
    %8476 = vst [vmem:[#allocation3 + $0x338] sm:$0xff] %v8348
    %8477 = vst [vmem:[#allocation3 + $0x340] sm:$0xff] %v8349
    %8478 = vst [vmem:[#allocation3 + $0x348] sm:$0xff] %v8350
    %8479 = vst [vmem:[#allocation3 + $0x350] sm:$0xff] %v8351
    %8480 = vst [vmem:[#allocation3 + $0x358] sm:$0xff] %v8352
    %8481 = vst [vmem:[#allocation3 + $0x360] sm:$0xff] %v8353
    %8482 = vst [vmem:[#allocation3 + $0x368] sm:$0xff] %v8354
    %8483 = vst [vmem:[#allocation3 + $0x370] sm:$0xff] %v8355
    %8484 = vst [vmem:[#allocation3 + $0x378] sm:$0xff] %v8356
    %8485 = vst [vmem:[#allocation3 + $0x380] sm:$0xff] %v8357
    %8486 = vst [vmem:[#allocation3 + $0x388] sm:$0xff] %v8358
    %8487 = vst [vmem:[#allocation3 + $0x390] sm:$0xff] %v8359
    %8488 = vst [vmem:[#allocation3 + $0x398] sm:$0xff] %v8360
    %8489 = vst [vmem:[#allocation3 + $0x3a0] sm:$0xff] %v8361
    %8490 = vst [vmem:[#allocation3 + $0x3a8] sm:$0xff] %v8362
    %8491 = vst [vmem:[#allocation3 + $0x3b0] sm:$0xff] %v8363
    %8492 = vst [vmem:[#allocation3 + $0x3b8] sm:$0xff] %v8364
    %8493 = vst [vmem:[#allocation3 + $0x3c0] sm:$0xff] %v8365
    %8494 = vst [vmem:[#allocation3 + $0x3c8] sm:$0xff] %v8366
    %8495 = vst [vmem:[#allocation3 + $0x3d0] sm:$0xff] %v8367
    %8496 = vst [vmem:[#allocation3 + $0x3d8] sm:$0xff] %v8368
    %8497 = vst [vmem:[#allocation3 + $0x3e0] sm:$0xff] %v8369
    %8498 = vst [vmem:[#allocation3 + $0x3e8] sm:$0xff] %v8370
    %8499 = vst [vmem:[#allocation3 + $0x3f0] sm:$0xff] %v8371
    %8500 = vst [vmem:[#allocation3 + $0x3f8] sm:$0xff] %v8372
    %v8501 = vld [vmem:[#allocation3] sm:$0xff]
    %v8502 = vld [vmem:[#allocation3 + $0x8] sm:$0xff]
    %v8503 = vld [vmem:[#allocation3 + $0x10] sm:$0xff]
    %v8504 = vld [vmem:[#allocation3 + $0x18] sm:$0xff]
    %v8505 = vld [vmem:[#allocation3 + $0x20] sm:$0xff]
    %v8506 = vld [vmem:[#allocation3 + $0x28] sm:$0xff]
    %v8507 = vld [vmem:[#allocation3 + $0x30] sm:$0xff]
    %v8508 = vld [vmem:[#allocation3 + $0x38] sm:$0xff]
    %v8509 = vld [vmem:[#allocation3 + $0x40] sm:$0xff]
    %v8510 = vld [vmem:[#allocation3 + $0x48] sm:$0xff]
    %v8511 = vld [vmem:[#allocation3 + $0x50] sm:$0xff]
    %v8512 = vld [vmem:[#allocation3 + $0x58] sm:$0xff]
    %v8513 = vld [vmem:[#allocation3 + $0x60] sm:$0xff]
    %v8514 = vld [vmem:[#allocation3 + $0x68] sm:$0xff]
    %v8515 = vld [vmem:[#allocation3 + $0x70] sm:$0xff]
    %v8516 = vld [vmem:[#allocation3 + $0x78] sm:$0xff]
    %v8517 = vld [vmem:[#allocation3 + $0x80] sm:$0xff]
    %v8518 = vld [vmem:[#allocation3 + $0x88] sm:$0xff]
    %v8519 = vld [vmem:[#allocation3 + $0x90] sm:$0xff]
    %v8520 = vld [vmem:[#allocation3 + $0x98] sm:$0xff]
    %v8521 = vld [vmem:[#allocation3 + $0xa0] sm:$0xff]
    %v8522 = vld [vmem:[#allocation3 + $0xa8] sm:$0xff]
    %v8523 = vld [vmem:[#allocation3 + $0xb0] sm:$0xff]
    %v8524 = vld [vmem:[#allocation3 + $0xb8] sm:$0xff]
    %v8525 = vld [vmem:[#allocation3 + $0xc0] sm:$0xff]
    %v8526 = vld [vmem:[#allocation3 + $0xc8] sm:$0xff]
    %v8527 = vld [vmem:[#allocation3 + $0xd0] sm:$0xff]
    %v8528 = vld [vmem:[#allocation3 + $0xd8] sm:$0xff]
    %v8529 = vld [vmem:[#allocation3 + $0xe0] sm:$0xff]
    %v8530 = vld [vmem:[#allocation3 + $0xe8] sm:$0xff]
    %v8531 = vld [vmem:[#allocation3 + $0xf0] sm:$0xff]
    %v8532 = vld [vmem:[#allocation3 + $0xf8] sm:$0xff]
    %v8533 = vld [vmem:[#allocation3 + $0x100] sm:$0xff]
    %v8534 = vld [vmem:[#allocation3 + $0x108] sm:$0xff]
    %v8535 = vld [vmem:[#allocation3 + $0x110] sm:$0xff]
    %v8536 = vld [vmem:[#allocation3 + $0x118] sm:$0xff]
    %v8537 = vld [vmem:[#allocation3 + $0x120] sm:$0xff]
    %v8538 = vld [vmem:[#allocation3 + $0x128] sm:$0xff]
    %v8539 = vld [vmem:[#allocation3 + $0x130] sm:$0xff]
    %v8540 = vld [vmem:[#allocation3 + $0x138] sm:$0xff]
    %v8541 = vld [vmem:[#allocation3 + $0x140] sm:$0xff]
    %v8542 = vld [vmem:[#allocation3 + $0x148] sm:$0xff]
    %v8543 = vld [vmem:[#allocation3 + $0x150] sm:$0xff]
    %v8544 = vld [vmem:[#allocation3 + $0x158] sm:$0xff]
    %v8545 = vld [vmem:[#allocation3 + $0x160] sm:$0xff]
    %v8546 = vld [vmem:[#allocation3 + $0x168] sm:$0xff]
    %v8547 = vld [vmem:[#allocation3 + $0x170] sm:$0xff]
    %v8548 = vld [vmem:[#allocation3 + $0x178] sm:$0xff]
    %v8549 = vld [vmem:[#allocation3 + $0x180] sm:$0xff]
    %v8550 = vld [vmem:[#allocation3 + $0x188] sm:$0xff]
    %v8551 = vld [vmem:[#allocation3 + $0x190] sm:$0xff]
    %v8552 = vld [vmem:[#allocation3 + $0x198] sm:$0xff]
    %v8553 = vld [vmem:[#allocation3 + $0x1a0] sm:$0xff]
    %v8554 = vld [vmem:[#allocation3 + $0x1a8] sm:$0xff]
    %v8555 = vld [vmem:[#allocation3 + $0x1b0] sm:$0xff]
    %v8556 = vld [vmem:[#allocation3 + $0x1b8] sm:$0xff]
    %v8557 = vld [vmem:[#allocation3 + $0x1c0] sm:$0xff]
    %v8558 = vld [vmem:[#allocation3 + $0x1c8] sm:$0xff]
    %v8559 = vld [vmem:[#allocation3 + $0x1d0] sm:$0xff]
    %v8560 = vld [vmem:[#allocation3 + $0x1d8] sm:$0xff]
    %v8561 = vld [vmem:[#allocation3 + $0x1e0] sm:$0xff]
    %v8562 = vld [vmem:[#allocation3 + $0x1e8] sm:$0xff]
    %v8563 = vld [vmem:[#allocation3 + $0x1f0] sm:$0xff]
    %v8564 = vld [vmem:[#allocation3 + $0x1f8] sm:$0xff]
    %v8565 = vld [vmem:[#allocation3 + $0x200] sm:$0xff]
    %v8566 = vld [vmem:[#allocation3 + $0x208] sm:$0xff]
    %v8567 = vld [vmem:[#allocation3 + $0x210] sm:$0xff]
    %v8568 = vld [vmem:[#allocation3 + $0x218] sm:$0xff]
    %v8569 = vld [vmem:[#allocation3 + $0x220] sm:$0xff]
    %v8570 = vld [vmem:[#allocation3 + $0x228] sm:$0xff]
    %v8571 = vld [vmem:[#allocation3 + $0x230] sm:$0xff]
    %v8572 = vld [vmem:[#allocation3 + $0x238] sm:$0xff]
    %v8573 = vld [vmem:[#allocation3 + $0x240] sm:$0xff]
    %v8574 = vld [vmem:[#allocation3 + $0x248] sm:$0xff]
    %v8575 = vld [vmem:[#allocation3 + $0x250] sm:$0xff]
    %v8576 = vld [vmem:[#allocation3 + $0x258] sm:$0xff]
    %v8577 = vld [vmem:[#allocation3 + $0x260] sm:$0xff]
    %v8578 = vld [vmem:[#allocation3 + $0x268] sm:$0xff]
    %v8579 = vld [vmem:[#allocation3 + $0x270] sm:$0xff]
    %v8580 = vld [vmem:[#allocation3 + $0x278] sm:$0xff]
    %v8581 = vld [vmem:[#allocation3 + $0x280] sm:$0xff]
    %v8582 = vld [vmem:[#allocation3 + $0x288] sm:$0xff]
    %v8583 = vld [vmem:[#allocation3 + $0x290] sm:$0xff]
    %v8584 = vld [vmem:[#allocation3 + $0x298] sm:$0xff]
    %v8585 = vld [vmem:[#allocation3 + $0x2a0] sm:$0xff]
    %v8586 = vld [vmem:[#allocation3 + $0x2a8] sm:$0xff]
    %v8587 = vld [vmem:[#allocation3 + $0x2b0] sm:$0xff]
    %v8588 = vld [vmem:[#allocation3 + $0x2b8] sm:$0xff]
    %v8589 = vld [vmem:[#allocation3 + $0x2c0] sm:$0xff]
    %v8590 = vld [vmem:[#allocation3 + $0x2c8] sm:$0xff]
    %v8591 = vld [vmem:[#allocation3 + $0x2d0] sm:$0xff]
    %v8592 = vld [vmem:[#allocation3 + $0x2d8] sm:$0xff]
    %v8593 = vld [vmem:[#allocation3 + $0x2e0] sm:$0xff]
    %v8594 = vld [vmem:[#allocation3 + $0x2e8] sm:$0xff]
    %v8595 = vld [vmem:[#allocation3 + $0x2f0] sm:$0xff]
    %v8596 = vld [vmem:[#allocation3 + $0x2f8] sm:$0xff]
    %v8597 = vld [vmem:[#allocation3 + $0x300] sm:$0xff]
    %v8598 = vld [vmem:[#allocation3 + $0x308] sm:$0xff]
    %v8599 = vld [vmem:[#allocation3 + $0x310] sm:$0xff]
    %v8600 = vld [vmem:[#allocation3 + $0x318] sm:$0xff]
    %v8601 = vld [vmem:[#allocation3 + $0x320] sm:$0xff]
    %v8602 = vld [vmem:[#allocation3 + $0x328] sm:$0xff]
    %v8603 = vld [vmem:[#allocation3 + $0x330] sm:$0xff]
    %v8604 = vld [vmem:[#allocation3 + $0x338] sm:$0xff]
    %v8605 = vld [vmem:[#allocation3 + $0x340] sm:$0xff]
    %v8606 = vld [vmem:[#allocation3 + $0x348] sm:$0xff]
    %v8607 = vld [vmem:[#allocation3 + $0x350] sm:$0xff]
    %v8608 = vld [vmem:[#allocation3 + $0x358] sm:$0xff]
    %v8609 = vld [vmem:[#allocation3 + $0x360] sm:$0xff]
    %v8610 = vld [vmem:[#allocation3 + $0x368] sm:$0xff]
    %v8611 = vld [vmem:[#allocation3 + $0x370] sm:$0xff]
    %v8612 = vld [vmem:[#allocation3 + $0x378] sm:$0xff]
    %v8613 = vld [vmem:[#allocation3 + $0x380] sm:$0xff]
    %v8614 = vld [vmem:[#allocation3 + $0x388] sm:$0xff]
    %v8615 = vld [vmem:[#allocation3 + $0x390] sm:$0xff]
    %v8616 = vld [vmem:[#allocation3 + $0x398] sm:$0xff]
    %v8617 = vld [vmem:[#allocation3 + $0x3a0] sm:$0xff]
    %v8618 = vld [vmem:[#allocation3 + $0x3a8] sm:$0xff]
    %v8619 = vld [vmem:[#allocation3 + $0x3b0] sm:$0xff]
    %v8620 = vld [vmem:[#allocation3 + $0x3b8] sm:$0xff]
    %v8621 = vld [vmem:[#allocation3 + $0x3c0] sm:$0xff]
    %v8622 = vld [vmem:[#allocation3 + $0x3c8] sm:$0xff]
    %v8623 = vld [vmem:[#allocation3 + $0x3d0] sm:$0xff]
    %v8624 = vld [vmem:[#allocation3 + $0x3d8] sm:$0xff]
    %v8625 = vld [vmem:[#allocation3 + $0x3e0] sm:$0xff]
    %v8626 = vld [vmem:[#allocation3 + $0x3e8] sm:$0xff]
    %v8627 = vld [vmem:[#allocation3 + $0x3f0] sm:$0xff]
    %v8628 = vld [vmem:[#allocation3 + $0x3f8] sm:$0xff]
    %v8629 = vld [vmem:[#allocation13] sm:$0xff]
    %v8631 = vlaneseq
    %v8632 = vshrl.u32 %v8631, 7
    %v8633 = vsub.s32 0, %v8632
    %v8634 = vrot.slane %v8629, %v8633
    %v8635 = vlaneseq
    %v8636 = vshrl.u32 %v8635, 7
    %v8637 = vsub.s32 1, %v8636
    %v8638 = vrot.slane %v8629, %v8637
    %v8639 = vlaneseq
    %v8640 = vshrl.u32 %v8639, 7
    %v8641 = vsub.s32 2, %v8640
    %v8642 = vrot.slane %v8629, %v8641
    %v8643 = vlaneseq
    %v8644 = vshrl.u32 %v8643, 7
    %v8645 = vsub.s32 3, %v8644
    %v8646 = vrot.slane %v8629, %v8645
    %v8647 = vlaneseq
    %v8648 = vshrl.u32 %v8647, 7
    %v8649 = vsub.s32 4, %v8648
    %v8650 = vrot.slane %v8629, %v8649
    %v8651 = vlaneseq
    %v8652 = vshrl.u32 %v8651, 7
    %v8653 = vsub.s32 5, %v8652
    %v8654 = vrot.slane %v8629, %v8653
    %v8655 = vlaneseq
    %v8656 = vshrl.u32 %v8655, 7
    %v8657 = vsub.s32 6, %v8656
    %v8658 = vrot.slane %v8629, %v8657
    %v8659 = vlaneseq
    %v8660 = vshrl.u32 %v8659, 7
    %v8661 = vsub.s32 7, %v8660
    %v8662 = vrot.slane %v8629, %v8661
    %v8671 = vmul.f32 %v8501, %v8634
    %v8672 = vmul.f32 %v8502, %v8638
    %v8673 = vmul.f32 %v8503, %v8642
    %v8674 = vmul.f32 %v8504, %v8646
    %v8675 = vmul.f32 %v8505, %v8650
    %v8676 = vmul.f32 %v8506, %v8654
    %v8677 = vmul.f32 %v8507, %v8658
    %v8678 = vmul.f32 %v8508, %v8662
    %v8679 = vmul.f32 %v8509, %v8634
    %v8680 = vmul.f32 %v8510, %v8638
    %v8681 = vmul.f32 %v8511, %v8642
    %v8682 = vmul.f32 %v8512, %v8646
    %v8683 = vmul.f32 %v8513, %v8650
    %v8684 = vmul.f32 %v8514, %v8654
    %v8685 = vmul.f32 %v8515, %v8658
    %v8686 = vmul.f32 %v8516, %v8662
    %v8687 = vmul.f32 %v8517, %v8634
    %v8688 = vmul.f32 %v8518, %v8638
    %v8689 = vmul.f32 %v8519, %v8642
    %v8690 = vmul.f32 %v8520, %v8646
    %v8691 = vmul.f32 %v8521, %v8650
    %v8692 = vmul.f32 %v8522, %v8654
    %v8693 = vmul.f32 %v8523, %v8658
    %v8694 = vmul.f32 %v8524, %v8662
    %v8695 = vmul.f32 %v8525, %v8634
    %v8696 = vmul.f32 %v8526, %v8638
    %v8697 = vmul.f32 %v8527, %v8642
    %v8698 = vmul.f32 %v8528, %v8646
    %v8699 = vmul.f32 %v8529, %v8650
    %v8700 = vmul.f32 %v8530, %v8654
    %v8701 = vmul.f32 %v8531, %v8658
    %v8702 = vmul.f32 %v8532, %v8662
    %v8703 = vmul.f32 %v8533, %v8634
    %v8704 = vmul.f32 %v8534, %v8638
    %v8705 = vmul.f32 %v8535, %v8642
    %v8706 = vmul.f32 %v8536, %v8646
    %v8707 = vmul.f32 %v8537, %v8650
    %v8708 = vmul.f32 %v8538, %v8654
    %v8709 = vmul.f32 %v8539, %v8658
    %v8710 = vmul.f32 %v8540, %v8662
    %v8711 = vmul.f32 %v8541, %v8634
    %v8712 = vmul.f32 %v8542, %v8638
    %v8713 = vmul.f32 %v8543, %v8642
    %v8714 = vmul.f32 %v8544, %v8646
    %v8715 = vmul.f32 %v8545, %v8650
    %v8716 = vmul.f32 %v8546, %v8654
    %v8717 = vmul.f32 %v8547, %v8658
    %v8718 = vmul.f32 %v8548, %v8662
    %v8719 = vmul.f32 %v8549, %v8634
    %v8720 = vmul.f32 %v8550, %v8638
    %v8721 = vmul.f32 %v8551, %v8642
    %v8722 = vmul.f32 %v8552, %v8646
    %v8723 = vmul.f32 %v8553, %v8650
    %v8724 = vmul.f32 %v8554, %v8654
    %v8725 = vmul.f32 %v8555, %v8658
    %v8726 = vmul.f32 %v8556, %v8662
    %v8727 = vmul.f32 %v8557, %v8634
    %v8728 = vmul.f32 %v8558, %v8638
    %v8729 = vmul.f32 %v8559, %v8642
    %v8730 = vmul.f32 %v8560, %v8646
    %v8731 = vmul.f32 %v8561, %v8650
    %v8732 = vmul.f32 %v8562, %v8654
    %v8733 = vmul.f32 %v8563, %v8658
    %v8734 = vmul.f32 %v8564, %v8662
    %v8735 = vmul.f32 %v8565, %v8634
    %v8736 = vmul.f32 %v8566, %v8638
    %v8737 = vmul.f32 %v8567, %v8642
    %v8738 = vmul.f32 %v8568, %v8646
    %v8739 = vmul.f32 %v8569, %v8650
    %v8740 = vmul.f32 %v8570, %v8654
    %v8741 = vmul.f32 %v8571, %v8658
    %v8742 = vmul.f32 %v8572, %v8662
    %v8743 = vmul.f32 %v8573, %v8634
    %v8744 = vmul.f32 %v8574, %v8638
    %v8745 = vmul.f32 %v8575, %v8642
    %v8746 = vmul.f32 %v8576, %v8646
    %v8747 = vmul.f32 %v8577, %v8650
    %v8748 = vmul.f32 %v8578, %v8654
    %v8749 = vmul.f32 %v8579, %v8658
    %v8750 = vmul.f32 %v8580, %v8662
    %v8751 = vmul.f32 %v8581, %v8634
    %v8752 = vmul.f32 %v8582, %v8638
    %v8753 = vmul.f32 %v8583, %v8642
    %v8754 = vmul.f32 %v8584, %v8646
    %v8755 = vmul.f32 %v8585, %v8650
    %v8756 = vmul.f32 %v8586, %v8654
    %v8757 = vmul.f32 %v8587, %v8658
    %v8758 = vmul.f32 %v8588, %v8662
    %v8759 = vmul.f32 %v8589, %v8634
    %v8760 = vmul.f32 %v8590, %v8638
    %v8761 = vmul.f32 %v8591, %v8642
    %v8762 = vmul.f32 %v8592, %v8646
    %v8763 = vmul.f32 %v8593, %v8650
    %v8764 = vmul.f32 %v8594, %v8654
    %v8765 = vmul.f32 %v8595, %v8658
    %v8766 = vmul.f32 %v8596, %v8662
    %v8767 = vmul.f32 %v8597, %v8634
    %v8768 = vmul.f32 %v8598, %v8638
    %v8769 = vmul.f32 %v8599, %v8642
    %v8770 = vmul.f32 %v8600, %v8646
    %v8771 = vmul.f32 %v8601, %v8650
    %v8772 = vmul.f32 %v8602, %v8654
    %v8773 = vmul.f32 %v8603, %v8658
    %v8774 = vmul.f32 %v8604, %v8662
    %v8775 = vmul.f32 %v8605, %v8634
    %v8776 = vmul.f32 %v8606, %v8638
    %v8777 = vmul.f32 %v8607, %v8642
    %v8778 = vmul.f32 %v8608, %v8646
    %v8779 = vmul.f32 %v8609, %v8650
    %v8780 = vmul.f32 %v8610, %v8654
    %v8781 = vmul.f32 %v8611, %v8658
    %v8782 = vmul.f32 %v8612, %v8662
    %v8783 = vmul.f32 %v8613, %v8634
    %v8784 = vmul.f32 %v8614, %v8638
    %v8785 = vmul.f32 %v8615, %v8642
    %v8786 = vmul.f32 %v8616, %v8646
    %v8787 = vmul.f32 %v8617, %v8650
    %v8788 = vmul.f32 %v8618, %v8654
    %v8789 = vmul.f32 %v8619, %v8658
    %v8790 = vmul.f32 %v8620, %v8662
    %v8791 = vmul.f32 %v8621, %v8634
    %v8792 = vmul.f32 %v8622, %v8638
    %v8793 = vmul.f32 %v8623, %v8642
    %v8794 = vmul.f32 %v8624, %v8646
    %v8795 = vmul.f32 %v8625, %v8650
    %v8796 = vmul.f32 %v8626, %v8654
    %v8797 = vmul.f32 %v8627, %v8658
    %v8798 = vmul.f32 %v8628, %v8662
    %v8799 = vadd.f32 %v8671, %v8672
    %v8800 = vadd.f32 %v8799, %v8673
    %v8801 = vadd.f32 %v8800, %v8674
    %v8802 = vadd.f32 %v8801, %v8675
    %v8803 = vadd.f32 %v8802, %v8676
    %v8804 = vadd.f32 %v8803, %v8677
    %v8805 = vadd.f32 %v8804, %v8678
    %8806 = vadd.xlane.f32.xlu0 %v8805
    %v8807 = vpop.xlane.xlu0 %8806
    %v8808 = vadd.f32 %v8679, %v8680
    %v8809 = vadd.f32 %v8808, %v8681
    %v8810 = vadd.f32 %v8809, %v8682
    %v8811 = vadd.f32 %v8810, %v8683
    %v8812 = vadd.f32 %v8811, %v8684
    %v8813 = vadd.f32 %v8812, %v8685
    %v8814 = vadd.f32 %v8813, %v8686
    %8815 = vadd.xlane.f32.xlu0 %v8814
    %v8816 = vpop.xlane.xlu0 %8815
    %v8817 = vadd.f32 %v8687, %v8688
    %v8818 = vadd.f32 %v8817, %v8689
    %v8819 = vadd.f32 %v8818, %v8690
    %v8820 = vadd.f32 %v8819, %v8691
    %v8821 = vadd.f32 %v8820, %v8692
    %v8822 = vadd.f32 %v8821, %v8693
    %v8823 = vadd.f32 %v8822, %v8694
    %8824 = vadd.xlane.f32.xlu0 %v8823
    %v8825 = vpop.xlane.xlu0 %8824
    %v8826 = vadd.f32 %v8695, %v8696
    %v8827 = vadd.f32 %v8826, %v8697
    %v8828 = vadd.f32 %v8827, %v8698
    %v8829 = vadd.f32 %v8828, %v8699
    %v8830 = vadd.f32 %v8829, %v8700
    %v8831 = vadd.f32 %v8830, %v8701
    %v8832 = vadd.f32 %v8831, %v8702
    %8833 = vadd.xlane.f32.xlu0 %v8832
    %v8834 = vpop.xlane.xlu0 %8833
    %v8835 = vadd.f32 %v8703, %v8704
    %v8836 = vadd.f32 %v8835, %v8705
    %v8837 = vadd.f32 %v8836, %v8706
    %v8838 = vadd.f32 %v8837, %v8707
    %v8839 = vadd.f32 %v8838, %v8708
    %v8840 = vadd.f32 %v8839, %v8709
    %v8841 = vadd.f32 %v8840, %v8710
    %8842 = vadd.xlane.f32.xlu0 %v8841
    %v8843 = vpop.xlane.xlu0 %8842
    %v8844 = vadd.f32 %v8711, %v8712
    %v8845 = vadd.f32 %v8844, %v8713
    %v8846 = vadd.f32 %v8845, %v8714
    %v8847 = vadd.f32 %v8846, %v8715
    %v8848 = vadd.f32 %v8847, %v8716
    %v8849 = vadd.f32 %v8848, %v8717
    %v8850 = vadd.f32 %v8849, %v8718
    %8851 = vadd.xlane.f32.xlu0 %v8850
    %v8852 = vpop.xlane.xlu0 %8851
    %v8853 = vadd.f32 %v8719, %v8720
    %v8854 = vadd.f32 %v8853, %v8721
    %v8855 = vadd.f32 %v8854, %v8722
    %v8856 = vadd.f32 %v8855, %v8723
    %v8857 = vadd.f32 %v8856, %v8724
    %v8858 = vadd.f32 %v8857, %v8725
    %v8859 = vadd.f32 %v8858, %v8726
    %8860 = vadd.xlane.f32.xlu0 %v8859
    %v8861 = vpop.xlane.xlu0 %8860
    %v8862 = vadd.f32 %v8727, %v8728
    %v8863 = vadd.f32 %v8862, %v8729
    %v8864 = vadd.f32 %v8863, %v8730
    %v8865 = vadd.f32 %v8864, %v8731
    %v8866 = vadd.f32 %v8865, %v8732
    %v8867 = vadd.f32 %v8866, %v8733
    %v8868 = vadd.f32 %v8867, %v8734
    %8869 = vadd.xlane.f32.xlu0 %v8868
    %v8870 = vpop.xlane.xlu0 %8869
    %v8871 = vadd.f32 %v8735, %v8736
    %v8872 = vadd.f32 %v8871, %v8737
    %v8873 = vadd.f32 %v8872, %v8738
    %v8874 = vadd.f32 %v8873, %v8739
    %v8875 = vadd.f32 %v8874, %v8740
    %v8876 = vadd.f32 %v8875, %v8741
    %v8877 = vadd.f32 %v8876, %v8742
    %8878 = vadd.xlane.f32.xlu0 %v8877
    %v8879 = vpop.xlane.xlu0 %8878
    %v8880 = vadd.f32 %v8743, %v8744
    %v8881 = vadd.f32 %v8880, %v8745
    %v8882 = vadd.f32 %v8881, %v8746
    %v8883 = vadd.f32 %v8882, %v8747
    %v8884 = vadd.f32 %v8883, %v8748
    %v8885 = vadd.f32 %v8884, %v8749
    %v8886 = vadd.f32 %v8885, %v8750
    %8887 = vadd.xlane.f32.xlu0 %v8886
    %v8888 = vpop.xlane.xlu0 %8887
    %v8889 = vadd.f32 %v8751, %v8752
    %v8890 = vadd.f32 %v8889, %v8753
    %v8891 = vadd.f32 %v8890, %v8754
    %v8892 = vadd.f32 %v8891, %v8755
    %v8893 = vadd.f32 %v8892, %v8756
    %v8894 = vadd.f32 %v8893, %v8757
    %v8895 = vadd.f32 %v8894, %v8758
    %8896 = vadd.xlane.f32.xlu0 %v8895
    %v8897 = vpop.xlane.xlu0 %8896
    %v8898 = vadd.f32 %v8759, %v8760
    %v8899 = vadd.f32 %v8898, %v8761
    %v8900 = vadd.f32 %v8899, %v8762
    %v8901 = vadd.f32 %v8900, %v8763
    %v8902 = vadd.f32 %v8901, %v8764
    %v8903 = vadd.f32 %v8902, %v8765
    %v8904 = vadd.f32 %v8903, %v8766
    %8905 = vadd.xlane.f32.xlu0 %v8904
    %v8906 = vpop.xlane.xlu0 %8905
    %v8907 = vadd.f32 %v8767, %v8768
    %v8908 = vadd.f32 %v8907, %v8769
    %v8909 = vadd.f32 %v8908, %v8770
    %v8910 = vadd.f32 %v8909, %v8771
    %v8911 = vadd.f32 %v8910, %v8772
    %v8912 = vadd.f32 %v8911, %v8773
    %v8913 = vadd.f32 %v8912, %v8774
    %8914 = vadd.xlane.f32.xlu0 %v8913
    %v8915 = vpop.xlane.xlu0 %8914
    %v8916 = vadd.f32 %v8775, %v8776
    %v8917 = vadd.f32 %v8916, %v8777
    %v8918 = vadd.f32 %v8917, %v8778
    %v8919 = vadd.f32 %v8918, %v8779
    %v8920 = vadd.f32 %v8919, %v8780
    %v8921 = vadd.f32 %v8920, %v8781
    %v8922 = vadd.f32 %v8921, %v8782
    %8923 = vadd.xlane.f32.xlu0 %v8922
    %v8924 = vpop.xlane.xlu0 %8923
    %v8925 = vadd.f32 %v8783, %v8784
    %v8926 = vadd.f32 %v8925, %v8785
    %v8927 = vadd.f32 %v8926, %v8786
    %v8928 = vadd.f32 %v8927, %v8787
    %v8929 = vadd.f32 %v8928, %v8788
    %v8930 = vadd.f32 %v8929, %v8789
    %v8931 = vadd.f32 %v8930, %v8790
    %8932 = vadd.xlane.f32.xlu0 %v8931
    %v8933 = vpop.xlane.xlu0 %8932
    %v8934 = vadd.f32 %v8791, %v8792
    %v8935 = vadd.f32 %v8934, %v8793
    %v8936 = vadd.f32 %v8935, %v8794
    %v8937 = vadd.f32 %v8936, %v8795
    %v8938 = vadd.f32 %v8937, %v8796
    %v8939 = vadd.f32 %v8938, %v8797
    %v8940 = vadd.f32 %v8939, %v8798
    %8941 = vadd.xlane.f32.xlu0 %v8940
    %v8942 = vpop.xlane.xlu0 %8941
    %v8943 = vld [vmem:[#allocation4] sm:$0x1]
    %v8945 = vlaneseq
    %v8946 = vshrl.u32 %v8945, 7
    %v8947 = vsub.s32 0, %v8946
    %v8948 = vrot.slane %v8943, %v8947
    %v8950 = vadd.f32 %v8807, %v8948
    %v8951 = vadd.f32 %v8816, %v8948
    %v8952 = vadd.f32 %v8825, %v8948
    %v8953 = vadd.f32 %v8834, %v8948
    %v8954 = vadd.f32 %v8843, %v8948
    %v8955 = vadd.f32 %v8852, %v8948
    %v8956 = vadd.f32 %v8861, %v8948
    %v8957 = vadd.f32 %v8870, %v8948
    %v8958 = vadd.f32 %v8879, %v8948
    %v8959 = vadd.f32 %v8888, %v8948
    %v8960 = vadd.f32 %v8897, %v8948
    %v8961 = vadd.f32 %v8906, %v8948
    %v8962 = vadd.f32 %v8915, %v8948
    %v8963 = vadd.f32 %v8924, %v8948
    %v8964 = vadd.f32 %v8933, %v8948
    %v8965 = vadd.f32 %v8942, %v8948
    %vm8966 = vcmask 7168
    %8967 = vst.msk [vmem:[%s7] sm:$0xff] %vm8966, %v8950
    %8968 = vst.msk [vmem:[%s7 + $0x8] sm:$0xff] %vm8966, %v8951
    %8969 = vst.msk [vmem:[%s7 + $0x10] sm:$0xff] %vm8966, %v8952
    %8970 = vst.msk [vmem:[%s7 + $0x18] sm:$0xff] %vm8966, %v8953
    %8971 = vst.msk [vmem:[%s7 + $0x20] sm:$0xff] %vm8966, %v8954
    %8972 = vst.msk [vmem:[%s7 + $0x28] sm:$0xff] %vm8966, %v8955
    %8973 = vst.msk [vmem:[%s7 + $0x30] sm:$0xff] %vm8966, %v8956
    %8974 = vst.msk [vmem:[%s7 + $0x38] sm:$0xff] %vm8966, %v8957
    %8975 = vst.msk [vmem:[%s7 + $0x40] sm:$0xff] %vm8966, %v8958
    %8976 = vst.msk [vmem:[%s7 + $0x48] sm:$0xff] %vm8966, %v8959
    %8977 = vst.msk [vmem:[%s7 + $0x50] sm:$0xff] %vm8966, %v8960
    %8978 = vst.msk [vmem:[%s7 + $0x58] sm:$0xff] %vm8966, %v8961
    %8979 = vst.msk [vmem:[%s7 + $0x60] sm:$0xff] %vm8966, %v8962
    %8980 = vst.msk [vmem:[%s7 + $0x68] sm:$0xff] %vm8966, %v8963
    %8981 = vst.msk [vmem:[%s7 + $0x70] sm:$0xff] %vm8966, %v8964
    %8982 = vst.msk [vmem:[%s7 + $0x78] sm:$0xff] %vm8966, %v8965
    // Predicated region
    $region54: #{tpu_custom_call.1} parent=1 // pred_check
      _
    $region55: #{tpu_custom_call.1} parent=1 // pred_check_branch
      %8984 = sbr.rel (0) target = $region57
    $region56: #{tpu_custom_call.1} parent=1 // pred_region
      _
    $region57: #{tpu_custom_call.1} parent=1 // pred_fallthru
      _
    // Predicated region
    $region58: #{tpu_custom_call.1} parent=1 // pred_check
      _
    $region59: #{tpu_custom_call.1} parent=1 // pred_check_branch
      %8986 = sbr.rel (0) target = $region61
    $region60: #{tpu_custom_call.1} parent=1 // pred_region
      _
    $region61: #{tpu_custom_call.1} parent=1 // pred_fallthru
      _
    %8987 = vsyncpa [#allocation6], 1
    %8988 = vsyncpa [#allocation8], 1
    %8989 = vsyncpa [#allocation11], 1
    %8990 = vsyncpa [#allocation14], 1

</llo_original>
